<compile_context>
chip_gen: v7x
topology: tpu7x:2x2x1
jax: 0.10.0
libtpu: 0.0.40
codegen_flags: <defaults>
</compile_context>

<pallas_src>
import functools
import math

import jax
import jax.numpy as jnp
from jax.experimental import pallas as pl
from jax.experimental.pallas import tpu as pltpu


# Set to jnp.bfloat16 to run MXU operands in bf16 (f32 accumulate) on real
# sizes; kept f32 here to keep the correctness assertion tight.
MATMUL_DTYPE = jnp.float32


def _mm(a, b):
    return jnp.dot(a.astype(MATMUL_DTYPE), b.astype(MATMUL_DTYPE),
                   preferred_element_type=jnp.float32)


def _bmm(spec, a, b):
    return jnp.einsum(spec, a.astype(MATMUL_DTYPE), b.astype(MATMUL_DTYPE),
                      preferred_element_type=jnp.float32)


def _layernorm(h, gamma, beta, eps=1e-5):
    mu = jnp.mean(h, axis=-1, keepdims=True)
    var = jnp.mean(jnp.square(h - mu), axis=-1, keepdims=True)
    return (h - mu) * jax.lax.rsqrt(var + eps) * gamma + beta


# ------------------------ fused forward Pallas kernel ------------------------

def microformer_kernel(
    tok_ref, emb_ref, pe_ref,
    wqkv_ref, bqkv_ref, wo_ref,
    w1_ref, b1_ref, w2_ref,
    wld_ref, bld_ref, wlu_ref,
    wsd_ref, bsd_ref, wsu_ref,
    evec_ref, wvoc_ref, bvoc_ref,
    out_ref,
    *, num_layers, num_heads, batch, seq,
):
    V, E = emb_ref.shape
    B, S, H = batch, seq, num_heads
    N = B * S
    hd = E // H
    scale = 1.0 / math.sqrt(hd)

    # --- embedding lookup as an exact one-hot matmul (MXU) + positional add ---
    tok = tok_ref[...]                                              # (N, 1) int32
    onehot = (jax.lax.broadcasted_iota(jnp.int32, (N, V), 1) == tok)
    x = _mm(onehot.astype(jnp.float32), emb_ref[...]) + pe_ref[...]  # (N, E)

    for l in range(num_layers):     # static unroll; all weights resident in VMEM
        ev = evec_ref[l]            # (8, E) rows: bo, b2, blu, bsu, g1, be1, g2, be2
        bo, b2, blu, bsu = ev[0:1], ev[1:2], ev[2:3], ev[3:4]
        g1, be1, g2, be2 = ev[4:5], ev[5:6], ev[6:7], ev[7:8]

        # --- multi-head self-attention (per-head weights pre-split at pack
        #     time: no activation lane-slicing, no head concat) ---
        attn = None
        for h in range(H):
            iq = (l * 3 + 0) * H + h
            ik = (l * 3 + 1) * H + h
            iv = (l * 3 + 2) * H + h
            q = (_mm(x, wqkv_ref[iq]) + bqkv_ref[iq]) * scale       # (N, hd)
            k = _mm(x, wqkv_ref[ik]) + bqkv_ref[ik]
            v = _mm(x, wqkv_ref[iv]) + bqkv_ref[iv]
            q = q.reshape(B, S, hd)
            k = k.reshape(B, S, hd)
            v = v.reshape(B, S, hd)
            s = _bmm("bqd,bkd->bqk", q, k)                          # (B, S, S)
            s = s - jnp.max(s, axis=-1, keepdims=True)
            p = jnp.exp(s)
            p = p / jnp.sum(p, axis=-1, keepdims=True)              # exact softmax
            o_h = _bmm("bqk,bkd->bqd", p, v).reshape(N, hd)
            part = _mm(o_h, wo_ref[l * H + h])                      # (N, E)
            attn = part if attn is None else attn + part
        h1 = _layernorm(x + attn + bo, g1, be1)

        # --- feed-forward ---
        ff = _mm(jnp.maximum(_mm(h1, w1_ref[l]) + b1_ref[l], 0.0), w2_ref[l]) + b2
        h2 = _layernorm(h1 + ff, g2, be2)

        # --- long-term adapter ---
        lt = _mm(jnp.maximum(_mm(h2, wld_ref[l]) + bld_ref[l], 0.0), wlu_ref[l]) + blu
        h3 = h2 + lt

        # --- session adapter ---
        sa = _mm(jnp.maximum(_mm(h3, wsd_ref[l]) + bsd_ref[l], 0.0), wsu_ref[l]) + bsu
        x = h3 + sa

    # Only HBM write of the whole forward: logits, lane-dense (V = 128).
    logits = _mm(x, wvoc_ref[...]) + bvoc_ref[...]                  # (N, V)
    out_ref[...] = logits.reshape(B, S, V)


def microformer_forward(tokens, params, *, num_heads):
    B, S = tokens.shape
    emb = params["embedding"]
    V, E = emb.shape
    pk = params["packed"]
    num_layers = pk["w1"].shape[0]

    pe_bs = jnp.tile(params["pe"][:S], (B, 1))            # (B*S, E) positional rows
    tok = tokens.reshape(B * S, 1).astype(jnp.int32)

    kernel = functools.partial(
        microformer_kernel, num_layers=num_layers, num_heads=num_heads,
        batch=B, seq=S)

    return pl.pallas_call(
        kernel,
        out_shape=jax.ShapeDtypeStruct((B, S, V), jnp.float32),
        compiler_params=pltpu.CompilerParams(vmem_limit_bytes=32 * 1024 * 1024),
    )(tok, emb, pe_bs,
      pk["wqkv"], pk["bqkv"], pk["wo"],
      pk["w1"], pk["b1"], pk["w2"],
      pk["wld"], pk["bld"], pk["wlu"],
      pk["wsd"], pk["bsd"], pk["wsu"],
      pk["evec"], params["w_vocab"], params["b_vocab"].reshape(1, V))


# ------------------------------ JAX reference -------------------------------

def _ref_layernorm(h, g, b, eps=1e-5):
    mu = jnp.mean(h, axis=-1, keepdims=True)
    var = jnp.mean((h - mu) ** 2, axis=-1, keepdims=True)
    return (h - mu) / jnp.sqrt(var + eps) * g + b


def _ref_block(x, p, num_heads):
    B, S, E = x.shape
    hd = E // num_heads
    q = x @ p["wq"] + p["bq"]
    k = x @ p["wk"] + p["bk"]
    v = x @ p["wv"] + p["bv"]

    def split(t):
        return t.reshape(B, S, num_heads, hd).transpose(0, 2, 1, 3)

    qh, kh, vh = split(q), split(k), split(v)
    s = jnp.einsum("bhqd,bhkd->bhqk", qh, kh) / math.sqrt(hd)
    pr = jax.nn.softmax(s, axis=-1)
    o = jnp.einsum("bhqk,bhkd->bhqd", pr, vh).transpose(0, 2, 1, 3).reshape(B, S, E)
    attn_out = o @ p["wo"] + p["bo"]
    h1 = _ref_layernorm(x + attn_out, p["g1"], p["be1"])
    ff = jnp.maximum(h1 @ p["w1"] + p["b1"], 0.0) @ p["w2"] + p["b2"]
    h2 = _ref_layernorm(h1 + ff, p["g2"], p["be2"])
    h3 = h2 + (jnp.maximum(h2 @ p["wld"] + p["bld"], 0.0) @ p["wlu"] + p["blu"])
    h4 = h3 + (jnp.maximum(h3 @ p["wsd"] + p["bsd"], 0.0) @ p["wsu"] + p["bsu"])
    return h4


def reference_microformer(tokens, params, *, num_heads):
    S = tokens.shape[1]
    x = jnp.take(params["embedding"], tokens, axis=0) + params["pe"][:S][None]
    for p in params["layers_raw"]:
        x = _ref_block(x, p, num_heads)
    return x @ params["w_vocab"] + params["b_vocab"]


# ---------------------------------- params ----------------------------------

def positional_encoding(max_len, d_model):
    position = jnp.arange(max_len, dtype=jnp.float32)[:, None]
    div_term = jnp.exp(jnp.arange(0, d_model, 2, dtype=jnp.float32)
                       * (-math.log(10000.0) / d_model))
    ang = position * div_term
    pe = jnp.zeros((max_len, d_model), jnp.float32)
    pe = pe.at[:, 0::2].set(jnp.sin(ang))
    pe = pe.at[:, 1::2].set(jnp.cos(ang))
    return pe


def _linear(key, din, dout, scale=0.1):
    kw, kb = jax.random.split(key)
    w = scale * jax.random.normal(kw, (din, dout), jnp.float32)
    b = scale * jax.random.normal(kb, (dout,), jnp.float32)
    return w, b


def _init_layer(key, E, F, Ld, Sd):
    ks = jax.random.split(key, 14)
    wq, bq = _linear(ks[0], E, E)
    wk, bk = _linear(ks[1], E, E)
    wv, bv = _linear(ks[2], E, E)
    wo, bo = _linear(ks[3], E, E)
    w1, b1 = _linear(ks[4], E, F)
    w2, b2 = _linear(ks[5], F, E)
    wld, bld = _linear(ks[6], E, Ld)
    wlu, blu = _linear(ks[7], Ld, E)
    wsd, bsd = _linear(ks[8], E, Sd)
    wsu, bsu = _linear(ks[9], Sd, E)
    g1 = 1.0 + 0.05 * jax.random.normal(ks[10], (E,), jnp.float32)
    be1 = 0.05 * jax.random.normal(ks[11], (E,), jnp.float32)
    g2 = 1.0 + 0.05 * jax.random.normal(ks[12], (E,), jnp.float32)
    be2 = 0.05 * jax.random.normal(ks[13], (E,), jnp.float32)
    return dict(wq=wq, bq=bq, wk=wk, bk=bk, wv=wv, bv=bv, wo=wo, bo=bo,
                w1=w1, b1=b1, w2=w2, b2=b2,
                wld=wld, bld=bld, wlu=wlu, blu=blu,
                wsd=wsd, bsd=bsd, wsu=wsu, bsu=bsu,
                g1=g1, be1=be1, g2=g2, be2=be2)


def pack_layers(layers, num_heads):
    """Stack per-layer params into lane-aligned, per-head pre-split blobs so the
    kernel never slices at sub-128-lane offsets."""
    E = layers[0]["wq"].shape[0]
    hd = E // num_heads
    wqkv, bqkv, wo = [], [], []
    w1, b1, w2 = [], [], []
    wld, bld, wlu = [], [], []
    wsd, bsd, wsu = [], [], []
    evec = []
    for p in layers:
        for wname, bname in (("wq", "bq"), ("wk", "bk"), ("wv", "bv")):
            for h in range(num_heads):
                wqkv.append(p[wname][:, h * hd:(h + 1) * hd])           # (E, hd)
                bqkv.append(p[bname][h * hd:(h + 1) * hd].reshape(1, hd))
        for h in range(num_heads):
            wo.append(p["wo"][h * hd:(h + 1) * hd, :])                  # (hd, E)
        w1.append(p["w1"]); b1.append(p["b1"].reshape(1, -1)); w2.append(p["w2"])
        wld.append(p["wld"]); bld.append(p["bld"].reshape(1, -1)); wlu.append(p["wlu"])
        wsd.append(p["wsd"]); bsd.append(p["bsd"].reshape(1, -1)); wsu.append(p["wsu"])
        evec.append(jnp.stack([p["bo"], p["b2"], p["blu"], p["bsu"],
                               p["g1"], p["be1"], p["g2"], p["be2"]], axis=0))
    stk = jnp.stack
    return dict(wqkv=stk(wqkv), bqkv=stk(bqkv), wo=stk(wo),
                w1=stk(w1), b1=stk(b1), w2=stk(w2),
                wld=stk(wld), bld=stk(bld), wlu=stk(wlu),
                wsd=stk(wsd), bsd=stk(bsd), wsu=stk(wsu),
                evec=stk(evec))


def make_params(key, vocab, E, F, Ld, Sd, num_layers, max_seq_len, num_heads):
    keys = jax.random.split(key, num_layers + 2)
    layers = [_init_layer(keys[i], E, F, Ld, Sd) for i in range(num_layers)]
    embedding = 0.5 * jax.random.normal(keys[num_layers], (vocab, E), jnp.float32)
    w_vocab, b_vocab = _linear(keys[num_layers + 1], E, vocab)
    pe = positional_encoding(max_seq_len, E)
    return dict(layers_raw=layers, packed=pack_layers(layers, num_heads),
                embedding=embedding, pe=pe, w_vocab=w_vocab, b_vocab=b_vocab)


# ----------------------------------- main ------------------------------------

if __name__ == "__main__":
    B, S = 2, 8
    E, H, F = 32, 4, 64
    Ld, Sd = 16, 16
    vocab = 128
    num_layers = 2
    max_seq_len = 64

    key = jax.random.PRNGKey(0)
    kt, kp = jax.random.split(key)
    tokens = jax.random.randint(kt, (B, S), 0, vocab, dtype=jnp.int32)
    params = make_params(kp, vocab, E, F, Ld, Sd, num_layers, max_seq_len, num_heads=H)

    out = microformer_forward(tokens, params, num_heads=H)
    out = jax.block_until_ready(out)

    ref = reference_microformer(tokens, params, num_heads=H)
    assert out.shape == (B, S, vocab)
    err = float(jnp.max(jnp.abs(out - ref)))
    assert err < 5e-4, f"mismatch vs JAX reference, max abs err = {err}"
    print("KERNEL_OK")
</pallas_src>

<mosaic_0001>
module attributes {stable_mosaic.version = 11 : i64} {
  func.func @microformer_kernel(%arg0: memref<16x1xi32, #tpu.memory_space<vmem>>, %arg1: memref<128x32xf32, #tpu.memory_space<vmem>>, %arg2: memref<16x32xf32, #tpu.memory_space<vmem>>, %arg3: memref<24x32x8xf32, #tpu.memory_space<vmem>>, %arg4: memref<24x1x8xf32, #tpu.memory_space<vmem>>, %arg5: memref<8x8x32xf32, #tpu.memory_space<vmem>>, %arg6: memref<2x32x64xf32, #tpu.memory_space<vmem>>, %arg7: memref<2x1x64xf32, #tpu.memory_space<vmem>>, %arg8: memref<2x64x32xf32, #tpu.memory_space<vmem>>, %arg9: memref<2x32x16xf32, #tpu.memory_space<vmem>>, %arg10: memref<2x1x16xf32, #tpu.memory_space<vmem>>, %arg11: memref<2x16x32xf32, #tpu.memory_space<vmem>>, %arg12: memref<2x32x16xf32, #tpu.memory_space<vmem>>, %arg13: memref<2x1x16xf32, #tpu.memory_space<vmem>>, %arg14: memref<2x16x32xf32, #tpu.memory_space<vmem>>, %arg15: memref<2x8x32xf32, #tpu.memory_space<vmem>>, %arg16: memref<32x128xf32, #tpu.memory_space<vmem>>, %arg17: memref<1x128xf32, #tpu.memory_space<vmem>>, %arg18: memref<2x8x128xf32, #tpu.memory_space<vmem>>) attributes {dimension_semantics = [], scalar_prefetch = 0 : i64, scratch_operands = 0 : i64, tpu.core_type = #tpu.core_type<tc>} {
    %c0 = arith.constant 0 : index
    %c0_0 = arith.constant 0 : index
    %0 = vector.load %arg0[%c0, %c0_0] : memref<16x1xi32, #tpu.memory_space<vmem>>, vector<16x1xi32>
    %1 = tpu.iota {dimensions = array<i32: 1>} : vector<16x128xi32>
    %2 = vector.broadcast %0 : vector<16x1xi32> to vector<16x128xi32>
    %3 = arith.cmpi eq, %1, %2 : vector<16x128xi32>
    %4 = arith.extui %3 : vector<16x128xi1> to vector<16x128xi32>
    %5 = arith.sitofp %4 : vector<16x128xi32> to vector<16x128xf32>
    %c0_1 = arith.constant 0 : index
    %c0_2 = arith.constant 0 : index
    %6 = vector.load %arg1[%c0_1, %c0_2] : memref<128x32xf32, #tpu.memory_space<vmem>>, vector<128x32xf32>
    %cst = arith.constant dense<0.000000e+00> : vector<16x32xf32>
    %7 = tpu.matmul %5, %6, %cst {dimension_numbers = #tpu.dot_dimension_numbers<[1], [0], [0], [1], [0, 0, 1, 1], [], []>} : vector<16x128xf32>, vector<128x32xf32>, vector<16x32xf32> -> vector<16x32xf32>
    %c0_3 = arith.constant 0 : index
    %c0_4 = arith.constant 0 : index
    %8 = vector.load %arg2[%c0_3, %c0_4] : memref<16x32xf32, #tpu.memory_space<vmem>>, vector<16x32xf32>
    %9 = arith.addf %7, %8 : vector<16x32xf32>
    %c0_5 = arith.constant 0 : index
    %c0_6 = arith.constant 0 : index
    %c0_7 = arith.constant 0 : index
    %10 = vector.load %arg15[%c0_5, %c0_6, %c0_7] : memref<2x8x32xf32, #tpu.memory_space<vmem>>, vector<1x8x32xf32>
    %11 = vector.shape_cast %10 : vector<1x8x32xf32> to vector<8x32xf32>
    %12 = vector.extract_strided_slice %11 {offsets = [0, 0], sizes = [1, 32], strides = [1, 1]} : vector<8x32xf32> to vector<1x32xf32>
    %13 = vector.extract_strided_slice %11 {offsets = [1, 0], sizes = [1, 32], strides = [1, 1]} : vector<8x32xf32> to vector<1x32xf32>
    %14 = vector.extract_strided_slice %11 {offsets = [2, 0], sizes = [1, 32], strides = [1, 1]} : vector<8x32xf32> to vector<1x32xf32>
    %15 = vector.extract_strided_slice %11 {offsets = [3, 0], sizes = [1, 32], strides = [1, 1]} : vector<8x32xf32> to vector<1x32xf32>
    %16 = vector.extract_strided_slice %11 {offsets = [4, 0], sizes = [1, 32], strides = [1, 1]} : vector<8x32xf32> to vector<1x32xf32>
    %17 = vector.extract_strided_slice %11 {offsets = [5, 0], sizes = [1, 32], strides = [1, 1]} : vector<8x32xf32> to vector<1x32xf32>
    %18 = vector.extract_strided_slice %11 {offsets = [6, 0], sizes = [1, 32], strides = [1, 1]} : vector<8x32xf32> to vector<1x32xf32>
    %19 = vector.extract_strided_slice %11 {offsets = [7, 0], sizes = [1, 32], strides = [1, 1]} : vector<8x32xf32> to vector<1x32xf32>
    %c0_8 = arith.constant 0 : index
    %c0_9 = arith.constant 0 : index
    %c0_10 = arith.constant 0 : index
    %20 = vector.load %arg3[%c0_8, %c0_9, %c0_10] : memref<24x32x8xf32, #tpu.memory_space<vmem>>, vector<1x32x8xf32>
    %21 = vector.shape_cast %20 : vector<1x32x8xf32> to vector<32x8xf32>
    %cst_11 = arith.constant dense<0.000000e+00> : vector<16x8xf32>
    %22 = tpu.matmul %9, %21, %cst_11 {dimension_numbers = #tpu.dot_dimension_numbers<[1], [0], [0], [1], [0, 0, 1, 1], [], []>} : vector<16x32xf32>, vector<32x8xf32>, vector<16x8xf32> -> vector<16x8xf32>
    %c0_12 = arith.constant 0 : index
    %c0_13 = arith.constant 0 : index
    %c0_14 = arith.constant 0 : index
    %23 = vector.load %arg4[%c0_12, %c0_13, %c0_14] : memref<24x1x8xf32, #tpu.memory_space<vmem>>, vector<1x1x8xf32>
    %24 = vector.shape_cast %23 : vector<1x1x8xf32> to vector<1x8xf32>
    %25 = vector.broadcast %24 : vector<1x8xf32> to vector<16x8xf32>
    %26 = arith.addf %22, %25 : vector<16x8xf32>
    %cst_15 = arith.constant 0.353553385 : f32
    %27 = vector.broadcast %cst_15 : f32 to vector<16x8xf32>
    %28 = arith.mulf %26, %27 : vector<16x8xf32>
    %c4 = arith.constant 4 : index
    %c0_16 = arith.constant 0 : index
    %c0_17 = arith.constant 0 : index
    %29 = vector.load %arg3[%c4, %c0_16, %c0_17] : memref<24x32x8xf32, #tpu.memory_space<vmem>>, vector<1x32x8xf32>
    %30 = vector.shape_cast %29 : vector<1x32x8xf32> to vector<32x8xf32>
    %cst_18 = arith.constant dense<0.000000e+00> : vector<16x8xf32>
    %31 = tpu.matmul %9, %30, %cst_18 {dimension_numbers = #tpu.dot_dimension_numbers<[1], [0], [0], [1], [0, 0, 1, 1], [], []>} : vector<16x32xf32>, vector<32x8xf32>, vector<16x8xf32> -> vector<16x8xf32>
    %c4_19 = arith.constant 4 : index
    %c0_20 = arith.constant 0 : index
    %c0_21 = arith.constant 0 : index
    %32 = vector.load %arg4[%c4_19, %c0_20, %c0_21] : memref<24x1x8xf32, #tpu.memory_space<vmem>>, vector<1x1x8xf32>
    %33 = vector.shape_cast %32 : vector<1x1x8xf32> to vector<1x8xf32>
    %34 = vector.broadcast %33 : vector<1x8xf32> to vector<16x8xf32>
    %35 = arith.addf %31, %34 : vector<16x8xf32>
    %c8 = arith.constant 8 : index
    %c0_22 = arith.constant 0 : index
    %c0_23 = arith.constant 0 : index
    %36 = vector.load %arg3[%c8, %c0_22, %c0_23] : memref<24x32x8xf32, #tpu.memory_space<vmem>>, vector<1x32x8xf32>
    %37 = vector.shape_cast %36 : vector<1x32x8xf32> to vector<32x8xf32>
    %cst_24 = arith.constant dense<0.000000e+00> : vector<16x8xf32>
    %38 = tpu.matmul %9, %37, %cst_24 {dimension_numbers = #tpu.dot_dimension_numbers<[1], [0], [0], [1], [0, 0, 1, 1], [], []>} : vector<16x32xf32>, vector<32x8xf32>, vector<16x8xf32> -> vector<16x8xf32>
    %c8_25 = arith.constant 8 : index
    %c0_26 = arith.constant 0 : index
    %c0_27 = arith.constant 0 : index
    %39 = vector.load %arg4[%c8_25, %c0_26, %c0_27] : memref<24x1x8xf32, #tpu.memory_space<vmem>>, vector<1x1x8xf32>
    %40 = vector.shape_cast %39 : vector<1x1x8xf32> to vector<1x8xf32>
    %41 = vector.broadcast %40 : vector<1x8xf32> to vector<16x8xf32>
    %42 = arith.addf %38, %41 : vector<16x8xf32>
    %43 = vector.shape_cast %28 : vector<16x8xf32> to vector<2x8x8xf32>
    %44 = vector.shape_cast %35 : vector<16x8xf32> to vector<2x8x8xf32>
    %45 = vector.shape_cast %42 : vector<16x8xf32> to vector<2x8x8xf32>
    "tpu.trace_start"() <{level = 10 : i32, message = "bqd,bkd->bqk"}> : () -> ()
    %cst_28 = arith.constant dense<0.000000e+00> : vector<2x8x8xf32>
    %46 = tpu.matmul %43, %44, %cst_28 {dimension_numbers = #tpu.dot_dimension_numbers<[2], [2], [1], [1], [0, 0, 0, 1, 1, 1], [0], [0]>} : vector<2x8x8xf32>, vector<2x8x8xf32>, vector<2x8x8xf32> -> vector<2x8x8xf32>
    "tpu.trace_stop"() : () -> ()
    %cst_29 = arith.constant dense<0xFF800000> : vector<2x8xf32>
    %47 = vector.multi_reduction <maximumf>, %46, %cst_29 [2] : vector<2x8x8xf32> to vector<2x8xf32>
    %48 = vector.shape_cast %47 : vector<2x8xf32> to vector<2x8x1xf32>
    %49 = vector.broadcast %48 : vector<2x8x1xf32> to vector<2x8x8xf32>
    %50 = arith.subf %46, %49 : vector<2x8x8xf32>
    %51 = math.exp %50 : vector<2x8x8xf32>
    %cst_30 = arith.constant dense<0.000000e+00> : vector<2x8xf32>
    %52 = vector.multi_reduction <add>, %51, %cst_30 [2] : vector<2x8x8xf32> to vector<2x8xf32>
    %53 = vector.shape_cast %52 : vector<2x8xf32> to vector<2x8x1xf32>
    %54 = vector.broadcast %53 : vector<2x8x1xf32> to vector<2x8x8xf32>
    %55 = arith.divf %51, %54 : vector<2x8x8xf32>
    "tpu.trace_start"() <{level = 10 : i32, message = "bqk,bkd->bqd"}> : () -> ()
    %cst_31 = arith.constant dense<0.000000e+00> : vector<2x8x8xf32>
    %56 = tpu.matmul %55, %45, %cst_31 {dimension_numbers = #tpu.dot_dimension_numbers<[2], [1], [1], [2], [0, 0, 0, 1, 1, 2], [0], [0]>} : vector<2x8x8xf32>, vector<2x8x8xf32>, vector<2x8x8xf32> -> vector<2x8x8xf32>
    "tpu.trace_stop"() : () -> ()
    %57 = vector.shape_cast %56 : vector<2x8x8xf32> to vector<16x8xf32>
    %c0_32 = arith.constant 0 : index
    %c0_33 = arith.constant 0 : index
    %c0_34 = arith.constant 0 : index
    %58 = vector.load %arg5[%c0_32, %c0_33, %c0_34] : memref<8x8x32xf32, #tpu.memory_space<vmem>>, vector<1x8x32xf32>
    %59 = vector.shape_cast %58 : vector<1x8x32xf32> to vector<8x32xf32>
    %cst_35 = arith.constant dense<0.000000e+00> : vector<16x32xf32>
    %60 = tpu.matmul %57, %59, %cst_35 {dimension_numbers = #tpu.dot_dimension_numbers<[1], [0], [0], [1], [0, 0, 1, 1], [], []>} : vector<16x8xf32>, vector<8x32xf32>, vector<16x32xf32> -> vector<16x32xf32>
    %c1 = arith.constant 1 : index
    %c0_36 = arith.constant 0 : index
    %c0_37 = arith.constant 0 : index
    %61 = vector.load %arg3[%c1, %c0_36, %c0_37] : memref<24x32x8xf32, #tpu.memory_space<vmem>>, vector<1x32x8xf32>
    %62 = vector.shape_cast %61 : vector<1x32x8xf32> to vector<32x8xf32>
    %cst_38 = arith.constant dense<0.000000e+00> : vector<16x8xf32>
    %63 = tpu.matmul %9, %62, %cst_38 {dimension_numbers = #tpu.dot_dimension_numbers<[1], [0], [0], [1], [0, 0, 1, 1], [], []>} : vector<16x32xf32>, vector<32x8xf32>, vector<16x8xf32> -> vector<16x8xf32>
    %c1_39 = arith.constant 1 : index
    %c0_40 = arith.constant 0 : index
    %c0_41 = arith.constant 0 : index
    %64 = vector.load %arg4[%c1_39, %c0_40, %c0_41] : memref<24x1x8xf32, #tpu.memory_space<vmem>>, vector<1x1x8xf32>
    %65 = vector.shape_cast %64 : vector<1x1x8xf32> to vector<1x8xf32>
    %66 = vector.broadcast %65 : vector<1x8xf32> to vector<16x8xf32>
    %67 = arith.addf %63, %66 : vector<16x8xf32>
    %cst_42 = arith.constant 0.353553385 : f32
    %68 = vector.broadcast %cst_42 : f32 to vector<16x8xf32>
    %69 = arith.mulf %67, %68 : vector<16x8xf32>
    %c5 = arith.constant 5 : index
    %c0_43 = arith.constant 0 : index
    %c0_44 = arith.constant 0 : index
    %70 = vector.load %arg3[%c5, %c0_43, %c0_44] : memref<24x32x8xf32, #tpu.memory_space<vmem>>, vector<1x32x8xf32>
    %71 = vector.shape_cast %70 : vector<1x32x8xf32> to vector<32x8xf32>
    %cst_45 = arith.constant dense<0.000000e+00> : vector<16x8xf32>
    %72 = tpu.matmul %9, %71, %cst_45 {dimension_numbers = #tpu.dot_dimension_numbers<[1], [0], [0], [1], [0, 0, 1, 1], [], []>} : vector<16x32xf32>, vector<32x8xf32>, vector<16x8xf32> -> vector<16x8xf32>
    %c5_46 = arith.constant 5 : index
    %c0_47 = arith.constant 0 : index
    %c0_48 = arith.constant 0 : index
    %73 = vector.load %arg4[%c5_46, %c0_47, %c0_48] : memref<24x1x8xf32, #tpu.memory_space<vmem>>, vector<1x1x8xf32>
    %74 = vector.shape_cast %73 : vector<1x1x8xf32> to vector<1x8xf32>
    %75 = vector.broadcast %74 : vector<1x8xf32> to vector<16x8xf32>
    %76 = arith.addf %72, %75 : vector<16x8xf32>
    %c9 = arith.constant 9 : index
    %c0_49 = arith.constant 0 : index
    %c0_50 = arith.constant 0 : index
    %77 = vector.load %arg3[%c9, %c0_49, %c0_50] : memref<24x32x8xf32, #tpu.memory_space<vmem>>, vector<1x32x8xf32>
    %78 = vector.shape_cast %77 : vector<1x32x8xf32> to vector<32x8xf32>
    %cst_51 = arith.constant dense<0.000000e+00> : vector<16x8xf32>
    %79 = tpu.matmul %9, %78, %cst_51 {dimension_numbers = #tpu.dot_dimension_numbers<[1], [0], [0], [1], [0, 0, 1, 1], [], []>} : vector<16x32xf32>, vector<32x8xf32>, vector<16x8xf32> -> vector<16x8xf32>
    %c9_52 = arith.constant 9 : index
    %c0_53 = arith.constant 0 : index
    %c0_54 = arith.constant 0 : index
    %80 = vector.load %arg4[%c9_52, %c0_53, %c0_54] : memref<24x1x8xf32, #tpu.memory_space<vmem>>, vector<1x1x8xf32>
    %81 = vector.shape_cast %80 : vector<1x1x8xf32> to vector<1x8xf32>
    %82 = vector.broadcast %81 : vector<1x8xf32> to vector<16x8xf32>
    %83 = arith.addf %79, %82 : vector<16x8xf32>
    %84 = vector.shape_cast %69 : vector<16x8xf32> to vector<2x8x8xf32>
    %85 = vector.shape_cast %76 : vector<16x8xf32> to vector<2x8x8xf32>
    %86 = vector.shape_cast %83 : vector<16x8xf32> to vector<2x8x8xf32>
    "tpu.trace_start"() <{level = 10 : i32, message = "bqd,bkd->bqk"}> : () -> ()
    %cst_55 = arith.constant dense<0.000000e+00> : vector<2x8x8xf32>
    %87 = tpu.matmul %84, %85, %cst_55 {dimension_numbers = #tpu.dot_dimension_numbers<[2], [2], [1], [1], [0, 0, 0, 1, 1, 1], [0], [0]>} : vector<2x8x8xf32>, vector<2x8x8xf32>, vector<2x8x8xf32> -> vector<2x8x8xf32>
    "tpu.trace_stop"() : () -> ()
    %cst_56 = arith.constant dense<0xFF800000> : vector<2x8xf32>
    %88 = vector.multi_reduction <maximumf>, %87, %cst_56 [2] : vector<2x8x8xf32> to vector<2x8xf32>
    %89 = vector.shape_cast %88 : vector<2x8xf32> to vector<2x8x1xf32>
    %90 = vector.broadcast %89 : vector<2x8x1xf32> to vector<2x8x8xf32>
    %91 = arith.subf %87, %90 : vector<2x8x8xf32>
    %92 = math.exp %91 : vector<2x8x8xf32>
    %cst_57 = arith.constant dense<0.000000e+00> : vector<2x8xf32>
    %93 = vector.multi_reduction <add>, %92, %cst_57 [2] : vector<2x8x8xf32> to vector<2x8xf32>
    %94 = vector.shape_cast %93 : vector<2x8xf32> to vector<2x8x1xf32>
    %95 = vector.broadcast %94 : vector<2x8x1xf32> to vector<2x8x8xf32>
    %96 = arith.divf %92, %95 : vector<2x8x8xf32>
    "tpu.trace_start"() <{level = 10 : i32, message = "bqk,bkd->bqd"}> : () -> ()
    %cst_58 = arith.constant dense<0.000000e+00> : vector<2x8x8xf32>
    %97 = tpu.matmul %96, %86, %cst_58 {dimension_numbers = #tpu.dot_dimension_numbers<[2], [1], [1], [2], [0, 0, 0, 1, 1, 2], [0], [0]>} : vector<2x8x8xf32>, vector<2x8x8xf32>, vector<2x8x8xf32> -> vector<2x8x8xf32>
    "tpu.trace_stop"() : () -> ()
    %98 = vector.shape_cast %97 : vector<2x8x8xf32> to vector<16x8xf32>
    %c1_59 = arith.constant 1 : index
    %c0_60 = arith.constant 0 : index
    %c0_61 = arith.constant 0 : index
    %99 = vector.load %arg5[%c1_59, %c0_60, %c0_61] : memref<8x8x32xf32, #tpu.memory_space<vmem>>, vector<1x8x32xf32>
    %100 = vector.shape_cast %99 : vector<1x8x32xf32> to vector<8x32xf32>
    %cst_62 = arith.constant dense<0.000000e+00> : vector<16x32xf32>
    %101 = tpu.matmul %98, %100, %cst_62 {dimension_numbers = #tpu.dot_dimension_numbers<[1], [0], [0], [1], [0, 0, 1, 1], [], []>} : vector<16x8xf32>, vector<8x32xf32>, vector<16x32xf32> -> vector<16x32xf32>
    %102 = arith.addf %60, %101 : vector<16x32xf32>
    %c2 = arith.constant 2 : index
    %c0_63 = arith.constant 0 : index
    %c0_64 = arith.constant 0 : index
    %103 = vector.load %arg3[%c2, %c0_63, %c0_64] : memref<24x32x8xf32, #tpu.memory_space<vmem>>, vector<1x32x8xf32>
    %104 = vector.shape_cast %103 : vector<1x32x8xf32> to vector<32x8xf32>
    %cst_65 = arith.constant dense<0.000000e+00> : vector<16x8xf32>
    %105 = tpu.matmul %9, %104, %cst_65 {dimension_numbers = #tpu.dot_dimension_numbers<[1], [0], [0], [1], [0, 0, 1, 1], [], []>} : vector<16x32xf32>, vector<32x8xf32>, vector<16x8xf32> -> vector<16x8xf32>
    %c2_66 = arith.constant 2 : index
    %c0_67 = arith.constant 0 : index
    %c0_68 = arith.constant 0 : index
    %106 = vector.load %arg4[%c2_66, %c0_67, %c0_68] : memref<24x1x8xf32, #tpu.memory_space<vmem>>, vector<1x1x8xf32>
    %107 = vector.shape_cast %106 : vector<1x1x8xf32> to vector<1x8xf32>
    %108 = vector.broadcast %107 : vector<1x8xf32> to vector<16x8xf32>
    %109 = arith.addf %105, %108 : vector<16x8xf32>
    %cst_69 = arith.constant 0.353553385 : f32
    %110 = vector.broadcast %cst_69 : f32 to vector<16x8xf32>
    %111 = arith.mulf %109, %110 : vector<16x8xf32>
    %c6 = arith.constant 6 : index
    %c0_70 = arith.constant 0 : index
    %c0_71 = arith.constant 0 : index
    %112 = vector.load %arg3[%c6, %c0_70, %c0_71] : memref<24x32x8xf32, #tpu.memory_space<vmem>>, vector<1x32x8xf32>
    %113 = vector.shape_cast %112 : vector<1x32x8xf32> to vector<32x8xf32>
    %cst_72 = arith.constant dense<0.000000e+00> : vector<16x8xf32>
    %114 = tpu.matmul %9, %113, %cst_72 {dimension_numbers = #tpu.dot_dimension_numbers<[1], [0], [0], [1], [0, 0, 1, 1], [], []>} : vector<16x32xf32>, vector<32x8xf32>, vector<16x8xf32> -> vector<16x8xf32>
    %c6_73 = arith.constant 6 : index
    %c0_74 = arith.constant 0 : index
    %c0_75 = arith.constant 0 : index
    %115 = vector.load %arg4[%c6_73, %c0_74, %c0_75] : memref<24x1x8xf32, #tpu.memory_space<vmem>>, vector<1x1x8xf32>
    %116 = vector.shape_cast %115 : vector<1x1x8xf32> to vector<1x8xf32>
    %117 = vector.broadcast %116 : vector<1x8xf32> to vector<16x8xf32>
    %118 = arith.addf %114, %117 : vector<16x8xf32>
    %c10 = arith.constant 10 : index
    %c0_76 = arith.constant 0 : index
    %c0_77 = arith.constant 0 : index
    %119 = vector.load %arg3[%c10, %c0_76, %c0_77] : memref<24x32x8xf32, #tpu.memory_space<vmem>>, vector<1x32x8xf32>
    %120 = vector.shape_cast %119 : vector<1x32x8xf32> to vector<32x8xf32>
    %cst_78 = arith.constant dense<0.000000e+00> : vector<16x8xf32>
    %121 = tpu.matmul %9, %120, %cst_78 {dimension_numbers = #tpu.dot_dimension_numbers<[1], [0], [0], [1], [0, 0, 1, 1], [], []>} : vector<16x32xf32>, vector<32x8xf32>, vector<16x8xf32> -> vector<16x8xf32>
    %c10_79 = arith.constant 10 : index
    %c0_80 = arith.constant 0 : index
    %c0_81 = arith.constant 0 : index
    %122 = vector.load %arg4[%c10_79, %c0_80, %c0_81] : memref<24x1x8xf32, #tpu.memory_space<vmem>>, vector<1x1x8xf32>
    %123 = vector.shape_cast %122 : vector<1x1x8xf32> to vector<1x8xf32>
    %124 = vector.broadcast %123 : vector<1x8xf32> to vector<16x8xf32>
    %125 = arith.addf %121, %124 : vector<16x8xf32>
    %126 = vector.shape_cast %111 : vector<16x8xf32> to vector<2x8x8xf32>
    %127 = vector.shape_cast %118 : vector<16x8xf32> to vector<2x8x8xf32>
    %128 = vector.shape_cast %125 : vector<16x8xf32> to vector<2x8x8xf32>
    "tpu.trace_start"() <{level = 10 : i32, message = "bqd,bkd->bqk"}> : () -> ()
    %cst_82 = arith.constant dense<0.000000e+00> : vector<2x8x8xf32>
    %129 = tpu.matmul %126, %127, %cst_82 {dimension_numbers = #tpu.dot_dimension_numbers<[2], [2], [1], [1], [0, 0, 0, 1, 1, 1], [0], [0]>} : vector<2x8x8xf32>, vector<2x8x8xf32>, vector<2x8x8xf32> -> vector<2x8x8xf32>
    "tpu.trace_stop"() : () -> ()
    %cst_83 = arith.constant dense<0xFF800000> : vector<2x8xf32>
    %130 = vector.multi_reduction <maximumf>, %129, %cst_83 [2] : vector<2x8x8xf32> to vector<2x8xf32>
    %131 = vector.shape_cast %130 : vector<2x8xf32> to vector<2x8x1xf32>
    %132 = vector.broadcast %131 : vector<2x8x1xf32> to vector<2x8x8xf32>
    %133 = arith.subf %129, %132 : vector<2x8x8xf32>
    %134 = math.exp %133 : vector<2x8x8xf32>
    %cst_84 = arith.constant dense<0.000000e+00> : vector<2x8xf32>
    %135 = vector.multi_reduction <add>, %134, %cst_84 [2] : vector<2x8x8xf32> to vector<2x8xf32>
    %136 = vector.shape_cast %135 : vector<2x8xf32> to vector<2x8x1xf32>
    %137 = vector.broadcast %136 : vector<2x8x1xf32> to vector<2x8x8xf32>
    %138 = arith.divf %134, %137 : vector<2x8x8xf32>
    "tpu.trace_start"() <{level = 10 : i32, message = "bqk,bkd->bqd"}> : () -> ()
    %cst_85 = arith.constant dense<0.000000e+00> : vector<2x8x8xf32>
    %139 = tpu.matmul %138, %128, %cst_85 {dimension_numbers = #tpu.dot_dimension_numbers<[2], [1], [1], [2], [0, 0, 0, 1, 1, 2], [0], [0]>} : vector<2x8x8xf32>, vector<2x8x8xf32>, vector<2x8x8xf32> -> vector<2x8x8xf32>
    "tpu.trace_stop"() : () -> ()
    %140 = vector.shape_cast %139 : vector<2x8x8xf32> to vector<16x8xf32>
    %c2_86 = arith.constant 2 : index
    %c0_87 = arith.constant 0 : index
    %c0_88 = arith.constant 0 : index
    %141 = vector.load %arg5[%c2_86, %c0_87, %c0_88] : memref<8x8x32xf32, #tpu.memory_space<vmem>>, vector<1x8x32xf32>
    %142 = vector.shape_cast %141 : vector<1x8x32xf32> to vector<8x32xf32>
    %cst_89 = arith.constant dense<0.000000e+00> : vector<16x32xf32>
    %143 = tpu.matmul %140, %142, %cst_89 {dimension_numbers = #tpu.dot_dimension_numbers<[1], [0], [0], [1], [0, 0, 1, 1], [], []>} : vector<16x8xf32>, vector<8x32xf32>, vector<16x32xf32> -> vector<16x32xf32>
    %144 = arith.addf %102, %143 : vector<16x32xf32>
    %c3 = arith.constant 3 : index
    %c0_90 = arith.constant 0 : index
    %c0_91 = arith.constant 0 : index
    %145 = vector.load %arg3[%c3, %c0_90, %c0_91] : memref<24x32x8xf32, #tpu.memory_space<vmem>>, vector<1x32x8xf32>
    %146 = vector.shape_cast %145 : vector<1x32x8xf32> to vector<32x8xf32>
    %cst_92 = arith.constant dense<0.000000e+00> : vector<16x8xf32>
    %147 = tpu.matmul %9, %146, %cst_92 {dimension_numbers = #tpu.dot_dimension_numbers<[1], [0], [0], [1], [0, 0, 1, 1], [], []>} : vector<16x32xf32>, vector<32x8xf32>, vector<16x8xf32> -> vector<16x8xf32>
    %c3_93 = arith.constant 3 : index
    %c0_94 = arith.constant 0 : index
    %c0_95 = arith.constant 0 : index
    %148 = vector.load %arg4[%c3_93, %c0_94, %c0_95] : memref<24x1x8xf32, #tpu.memory_space<vmem>>, vector<1x1x8xf32>
    %149 = vector.shape_cast %148 : vector<1x1x8xf32> to vector<1x8xf32>
    %150 = vector.broadcast %149 : vector<1x8xf32> to vector<16x8xf32>
    %151 = arith.addf %147, %150 : vector<16x8xf32>
    %cst_96 = arith.constant 0.353553385 : f32
    %152 = vector.broadcast %cst_96 : f32 to vector<16x8xf32>
    %153 = arith.mulf %151, %152 : vector<16x8xf32>
    %c7 = arith.constant 7 : index
    %c0_97 = arith.constant 0 : index
    %c0_98 = arith.constant 0 : index
    %154 = vector.load %arg3[%c7, %c0_97, %c0_98] : memref<24x32x8xf32, #tpu.memory_space<vmem>>, vector<1x32x8xf32>
    %155 = vector.shape_cast %154 : vector<1x32x8xf32> to vector<32x8xf32>
    %cst_99 = arith.constant dense<0.000000e+00> : vector<16x8xf32>
    %156 = tpu.matmul %9, %155, %cst_99 {dimension_numbers = #tpu.dot_dimension_numbers<[1], [0], [0], [1], [0, 0, 1, 1], [], []>} : vector<16x32xf32>, vector<32x8xf32>, vector<16x8xf32> -> vector<16x8xf32>
    %c7_100 = arith.constant 7 : index
    %c0_101 = arith.constant 0 : index
    %c0_102 = arith.constant 0 : index
    %157 = vector.load %arg4[%c7_100, %c0_101, %c0_102] : memref<24x1x8xf32, #tpu.memory_space<vmem>>, vector<1x1x8xf32>
    %158 = vector.shape_cast %157 : vector<1x1x8xf32> to vector<1x8xf32>
    %159 = vector.broadcast %158 : vector<1x8xf32> to vector<16x8xf32>
    %160 = arith.addf %156, %159 : vector<16x8xf32>
    %c11 = arith.constant 11 : index
    %c0_103 = arith.constant 0 : index
    %c0_104 = arith.constant 0 : index
    %161 = vector.load %arg3[%c11, %c0_103, %c0_104] : memref<24x32x8xf32, #tpu.memory_space<vmem>>, vector<1x32x8xf32>
    %162 = vector.shape_cast %161 : vector<1x32x8xf32> to vector<32x8xf32>
    %cst_105 = arith.constant dense<0.000000e+00> : vector<16x8xf32>
    %163 = tpu.matmul %9, %162, %cst_105 {dimension_numbers = #tpu.dot_dimension_numbers<[1], [0], [0], [1], [0, 0, 1, 1], [], []>} : vector<16x32xf32>, vector<32x8xf32>, vector<16x8xf32> -> vector<16x8xf32>
    %c11_106 = arith.constant 11 : index
    %c0_107 = arith.constant 0 : index
    %c0_108 = arith.constant 0 : index
    %164 = vector.load %arg4[%c11_106, %c0_107, %c0_108] : memref<24x1x8xf32, #tpu.memory_space<vmem>>, vector<1x1x8xf32>
    %165 = vector.shape_cast %164 : vector<1x1x8xf32> to vector<1x8xf32>
    %166 = vector.broadcast %165 : vector<1x8xf32> to vector<16x8xf32>
    %167 = arith.addf %163, %166 : vector<16x8xf32>
    %168 = vector.shape_cast %153 : vector<16x8xf32> to vector<2x8x8xf32>
    %169 = vector.shape_cast %160 : vector<16x8xf32> to vector<2x8x8xf32>
    %170 = vector.shape_cast %167 : vector<16x8xf32> to vector<2x8x8xf32>
    "tpu.trace_start"() <{level = 10 : i32, message = "bqd,bkd->bqk"}> : () -> ()
    %cst_109 = arith.constant dense<0.000000e+00> : vector<2x8x8xf32>
    %171 = tpu.matmul %168, %169, %cst_109 {dimension_numbers = #tpu.dot_dimension_numbers<[2], [2], [1], [1], [0, 0, 0, 1, 1, 1], [0], [0]>} : vector<2x8x8xf32>, vector<2x8x8xf32>, vector<2x8x8xf32> -> vector<2x8x8xf32>
    "tpu.trace_stop"() : () -> ()
    %cst_110 = arith.constant dense<0xFF800000> : vector<2x8xf32>
    %172 = vector.multi_reduction <maximumf>, %171, %cst_110 [2] : vector<2x8x8xf32> to vector<2x8xf32>
    %173 = vector.shape_cast %172 : vector<2x8xf32> to vector<2x8x1xf32>
    %174 = vector.broadcast %173 : vector<2x8x1xf32> to vector<2x8x8xf32>
    %175 = arith.subf %171, %174 : vector<2x8x8xf32>
    %176 = math.exp %175 : vector<2x8x8xf32>
    %cst_111 = arith.constant dense<0.000000e+00> : vector<2x8xf32>
    %177 = vector.multi_reduction <add>, %176, %cst_111 [2] : vector<2x8x8xf32> to vector<2x8xf32>
    %178 = vector.shape_cast %177 : vector<2x8xf32> to vector<2x8x1xf32>
    %179 = vector.broadcast %178 : vector<2x8x1xf32> to vector<2x8x8xf32>
    %180 = arith.divf %176, %179 : vector<2x8x8xf32>
    "tpu.trace_start"() <{level = 10 : i32, message = "bqk,bkd->bqd"}> : () -> ()
    %cst_112 = arith.constant dense<0.000000e+00> : vector<2x8x8xf32>
    %181 = tpu.matmul %180, %170, %cst_112 {dimension_numbers = #tpu.dot_dimension_numbers<[2], [1], [1], [2], [0, 0, 0, 1, 1, 2], [0], [0]>} : vector<2x8x8xf32>, vector<2x8x8xf32>, vector<2x8x8xf32> -> vector<2x8x8xf32>
    "tpu.trace_stop"() : () -> ()
    %182 = vector.shape_cast %181 : vector<2x8x8xf32> to vector<16x8xf32>
    %c3_113 = arith.constant 3 : index
    %c0_114 = arith.constant 0 : index
    %c0_115 = arith.constant 0 : index
    %183 = vector.load %arg5[%c3_113, %c0_114, %c0_115] : memref<8x8x32xf32, #tpu.memory_space<vmem>>, vector<1x8x32xf32>
    %184 = vector.shape_cast %183 : vector<1x8x32xf32> to vector<8x32xf32>
    %cst_116 = arith.constant dense<0.000000e+00> : vector<16x32xf32>
    %185 = tpu.matmul %182, %184, %cst_116 {dimension_numbers = #tpu.dot_dimension_numbers<[1], [0], [0], [1], [0, 0, 1, 1], [], []>} : vector<16x8xf32>, vector<8x32xf32>, vector<16x32xf32> -> vector<16x32xf32>
    %186 = arith.addf %144, %185 : vector<16x32xf32>
    %187 = arith.addf %9, %186 : vector<16x32xf32>
    %188 = vector.broadcast %12 : vector<1x32xf32> to vector<16x32xf32>
    %189 = arith.addf %187, %188 : vector<16x32xf32>
    %cst_117 = arith.constant dense<0.000000e+00> : vector<16xf32>
    %190 = vector.multi_reduction <add>, %189, %cst_117 [1] : vector<16x32xf32> to vector<16xf32>
    %191 = vector.shape_cast %190 : vector<16xf32> to vector<16x1xf32>
    %cst_118 = arith.constant 3.200000e+01 : f32
    %192 = vector.broadcast %cst_118 : f32 to vector<16x1xf32>
    %193 = arith.divf %191, %192 : vector<16x1xf32>
    %194 = vector.broadcast %193 : vector<16x1xf32> to vector<16x32xf32>
    %195 = arith.subf %189, %194 : vector<16x32xf32>
    %196 = arith.mulf %195, %195 : vector<16x32xf32>
    %cst_119 = arith.constant dense<0.000000e+00> : vector<16xf32>
    %197 = vector.multi_reduction <add>, %196, %cst_119 [1] : vector<16x32xf32> to vector<16xf32>
    %198 = vector.shape_cast %197 : vector<16xf32> to vector<16x1xf32>
    %cst_120 = arith.constant 3.200000e+01 : f32
    %199 = vector.broadcast %cst_120 : f32 to vector<16x1xf32>
    %200 = arith.divf %198, %199 : vector<16x1xf32>
    %201 = vector.broadcast %193 : vector<16x1xf32> to vector<16x32xf32>
    %202 = arith.subf %189, %201 : vector<16x32xf32>
    %cst_121 = arith.constant 9.99999974E-6 : f32
    %203 = vector.broadcast %cst_121 : f32 to vector<16x1xf32>
    %204 = arith.addf %200, %203 : vector<16x1xf32>
    %205 = math.rsqrt %204 : vector<16x1xf32>
    %206 = vector.broadcast %205 : vector<16x1xf32> to vector<16x32xf32>
    %207 = arith.mulf %202, %206 : vector<16x32xf32>
    %208 = vector.broadcast %16 : vector<1x32xf32> to vector<16x32xf32>
    %209 = arith.mulf %207, %208 : vector<16x32xf32>
    %210 = vector.broadcast %17 : vector<1x32xf32> to vector<16x32xf32>
    %211 = arith.addf %209, %210 : vector<16x32xf32>
    %c0_122 = arith.constant 0 : index
    %c0_123 = arith.constant 0 : index
    %c0_124 = arith.constant 0 : index
    %212 = vector.load %arg6[%c0_122, %c0_123, %c0_124] : memref<2x32x64xf32, #tpu.memory_space<vmem>>, vector<1x32x64xf32>
    %213 = vector.shape_cast %212 : vector<1x32x64xf32> to vector<32x64xf32>
    %cst_125 = arith.constant dense<0.000000e+00> : vector<16x64xf32>
    %214 = tpu.matmul %211, %213, %cst_125 {dimension_numbers = #tpu.dot_dimension_numbers<[1], [0], [0], [1], [0, 0, 1, 1], [], []>} : vector<16x32xf32>, vector<32x64xf32>, vector<16x64xf32> -> vector<16x64xf32>
    %c0_126 = arith.constant 0 : index
    %c0_127 = arith.constant 0 : index
    %c0_128 = arith.constant 0 : index
    %215 = vector.load %arg7[%c0_126, %c0_127, %c0_128] : memref<2x1x64xf32, #tpu.memory_space<vmem>>, vector<1x1x64xf32>
    %216 = vector.shape_cast %215 : vector<1x1x64xf32> to vector<1x64xf32>
    %217 = vector.broadcast %216 : vector<1x64xf32> to vector<16x64xf32>
    %218 = arith.addf %214, %217 : vector<16x64xf32>
    %cst_129 = arith.constant 0.000000e+00 : f32
    %219 = vector.broadcast %cst_129 : f32 to vector<16x64xf32>
    %220 = arith.maximumf %218, %219 : vector<16x64xf32>
    %c0_130 = arith.constant 0 : index
    %c0_131 = arith.constant 0 : index
    %c0_132 = arith.constant 0 : index
    %221 = vector.load %arg8[%c0_130, %c0_131, %c0_132] : memref<2x64x32xf32, #tpu.memory_space<vmem>>, vector<1x64x32xf32>
    %222 = vector.shape_cast %221 : vector<1x64x32xf32> to vector<64x32xf32>
    %cst_133 = arith.constant dense<0.000000e+00> : vector<16x32xf32>
    %223 = tpu.matmul %220, %222, %cst_133 {dimension_numbers = #tpu.dot_dimension_numbers<[1], [0], [0], [1], [0, 0, 1, 1], [], []>} : vector<16x64xf32>, vector<64x32xf32>, vector<16x32xf32> -> vector<16x32xf32>
    %224 = vector.broadcast %13 : vector<1x32xf32> to vector<16x32xf32>
    %225 = arith.addf %223, %224 : vector<16x32xf32>
    %226 = arith.addf %211, %225 : vector<16x32xf32>
    %cst_134 = arith.constant dense<0.000000e+00> : vector<16xf32>
    %227 = vector.multi_reduction <add>, %226, %cst_134 [1] : vector<16x32xf32> to vector<16xf32>
    %228 = vector.shape_cast %227 : vector<16xf32> to vector<16x1xf32>
    %cst_135 = arith.constant 3.200000e+01 : f32
    %229 = vector.broadcast %cst_135 : f32 to vector<16x1xf32>
    %230 = arith.divf %228, %229 : vector<16x1xf32>
    %231 = vector.broadcast %230 : vector<16x1xf32> to vector<16x32xf32>
    %232 = arith.subf %226, %231 : vector<16x32xf32>
    %233 = arith.mulf %232, %232 : vector<16x32xf32>
    %cst_136 = arith.constant dense<0.000000e+00> : vector<16xf32>
    %234 = vector.multi_reduction <add>, %233, %cst_136 [1] : vector<16x32xf32> to vector<16xf32>
    %235 = vector.shape_cast %234 : vector<16xf32> to vector<16x1xf32>
    %cst_137 = arith.constant 3.200000e+01 : f32
    %236 = vector.broadcast %cst_137 : f32 to vector<16x1xf32>
    %237 = arith.divf %235, %236 : vector<16x1xf32>
    %238 = vector.broadcast %230 : vector<16x1xf32> to vector<16x32xf32>
    %239 = arith.subf %226, %238 : vector<16x32xf32>
    %cst_138 = arith.constant 9.99999974E-6 : f32
    %240 = vector.broadcast %cst_138 : f32 to vector<16x1xf32>
    %241 = arith.addf %237, %240 : vector<16x1xf32>
    %242 = math.rsqrt %241 : vector<16x1xf32>
    %243 = vector.broadcast %242 : vector<16x1xf32> to vector<16x32xf32>
    %244 = arith.mulf %239, %243 : vector<16x32xf32>
    %245 = vector.broadcast %18 : vector<1x32xf32> to vector<16x32xf32>
    %246 = arith.mulf %244, %245 : vector<16x32xf32>
    %247 = vector.broadcast %19 : vector<1x32xf32> to vector<16x32xf32>
    %248 = arith.addf %246, %247 : vector<16x32xf32>
    %c0_139 = arith.constant 0 : index
    %c0_140 = arith.constant 0 : index
    %c0_141 = arith.constant 0 : index
    %249 = vector.load %arg9[%c0_139, %c0_140, %c0_141] : memref<2x32x16xf32, #tpu.memory_space<vmem>>, vector<1x32x16xf32>
    %250 = vector.shape_cast %249 : vector<1x32x16xf32> to vector<32x16xf32>
    %cst_142 = arith.constant dense<0.000000e+00> : vector<16x16xf32>
    %251 = tpu.matmul %248, %250, %cst_142 {dimension_numbers = #tpu.dot_dimension_numbers<[1], [0], [0], [1], [0, 0, 1, 1], [], []>} : vector<16x32xf32>, vector<32x16xf32>, vector<16x16xf32> -> vector<16x16xf32>
    %c0_143 = arith.constant 0 : index
    %c0_144 = arith.constant 0 : index
    %c0_145 = arith.constant 0 : index
    %252 = vector.load %arg10[%c0_143, %c0_144, %c0_145] : memref<2x1x16xf32, #tpu.memory_space<vmem>>, vector<1x1x16xf32>
    %253 = vector.shape_cast %252 : vector<1x1x16xf32> to vector<1x16xf32>
    %254 = vector.broadcast %253 : vector<1x16xf32> to vector<16x16xf32>
    %255 = arith.addf %251, %254 : vector<16x16xf32>
    %cst_146 = arith.constant 0.000000e+00 : f32
    %256 = vector.broadcast %cst_146 : f32 to vector<16x16xf32>
    %257 = arith.maximumf %255, %256 : vector<16x16xf32>
    %c0_147 = arith.constant 0 : index
    %c0_148 = arith.constant 0 : index
    %c0_149 = arith.constant 0 : index
    %258 = vector.load %arg11[%c0_147, %c0_148, %c0_149] : memref<2x16x32xf32, #tpu.memory_space<vmem>>, vector<1x16x32xf32>
    %259 = vector.shape_cast %258 : vector<1x16x32xf32> to vector<16x32xf32>
    %cst_150 = arith.constant dense<0.000000e+00> : vector<16x32xf32>
    %260 = tpu.matmul %257, %259, %cst_150 {dimension_numbers = #tpu.dot_dimension_numbers<[1], [0], [0], [1], [0, 0, 1, 1], [], []>} : vector<16x16xf32>, vector<16x32xf32>, vector<16x32xf32> -> vector<16x32xf32>
    %261 = vector.broadcast %14 : vector<1x32xf32> to vector<16x32xf32>
    %262 = arith.addf %260, %261 : vector<16x32xf32>
    %263 = arith.addf %248, %262 : vector<16x32xf32>
    %c0_151 = arith.constant 0 : index
    %c0_152 = arith.constant 0 : index
    %c0_153 = arith.constant 0 : index
    %264 = vector.load %arg12[%c0_151, %c0_152, %c0_153] : memref<2x32x16xf32, #tpu.memory_space<vmem>>, vector<1x32x16xf32>
    %265 = vector.shape_cast %264 : vector<1x32x16xf32> to vector<32x16xf32>
    %cst_154 = arith.constant dense<0.000000e+00> : vector<16x16xf32>
    %266 = tpu.matmul %263, %265, %cst_154 {dimension_numbers = #tpu.dot_dimension_numbers<[1], [0], [0], [1], [0, 0, 1, 1], [], []>} : vector<16x32xf32>, vector<32x16xf32>, vector<16x16xf32> -> vector<16x16xf32>
    %c0_155 = arith.constant 0 : index
    %c0_156 = arith.constant 0 : index
    %c0_157 = arith.constant 0 : index
    %267 = vector.load %arg13[%c0_155, %c0_156, %c0_157] : memref<2x1x16xf32, #tpu.memory_space<vmem>>, vector<1x1x16xf32>
    %268 = vector.shape_cast %267 : vector<1x1x16xf32> to vector<1x16xf32>
    %269 = vector.broadcast %268 : vector<1x16xf32> to vector<16x16xf32>
    %270 = arith.addf %266, %269 : vector<16x16xf32>
    %cst_158 = arith.constant 0.000000e+00 : f32
    %271 = vector.broadcast %cst_158 : f32 to vector<16x16xf32>
    %272 = arith.maximumf %270, %271 : vector<16x16xf32>
    %c0_159 = arith.constant 0 : index
    %c0_160 = arith.constant 0 : index
    %c0_161 = arith.constant 0 : index
    %273 = vector.load %arg14[%c0_159, %c0_160, %c0_161] : memref<2x16x32xf32, #tpu.memory_space<vmem>>, vector<1x16x32xf32>
    %274 = vector.shape_cast %273 : vector<1x16x32xf32> to vector<16x32xf32>
    %cst_162 = arith.constant dense<0.000000e+00> : vector<16x32xf32>
    %275 = tpu.matmul %272, %274, %cst_162 {dimension_numbers = #tpu.dot_dimension_numbers<[1], [0], [0], [1], [0, 0, 1, 1], [], []>} : vector<16x16xf32>, vector<16x32xf32>, vector<16x32xf32> -> vector<16x32xf32>
    %276 = vector.broadcast %15 : vector<1x32xf32> to vector<16x32xf32>
    %277 = arith.addf %275, %276 : vector<16x32xf32>
    %278 = arith.addf %263, %277 : vector<16x32xf32>
    %c1_163 = arith.constant 1 : index
    %c0_164 = arith.constant 0 : index
    %c0_165 = arith.constant 0 : index
    %279 = vector.load %arg15[%c1_163, %c0_164, %c0_165] : memref<2x8x32xf32, #tpu.memory_space<vmem>>, vector<1x8x32xf32>
    %280 = vector.shape_cast %279 : vector<1x8x32xf32> to vector<8x32xf32>
    %281 = vector.extract_strided_slice %280 {offsets = [0, 0], sizes = [1, 32], strides = [1, 1]} : vector<8x32xf32> to vector<1x32xf32>
    %282 = vector.extract_strided_slice %280 {offsets = [1, 0], sizes = [1, 32], strides = [1, 1]} : vector<8x32xf32> to vector<1x32xf32>
    %283 = vector.extract_strided_slice %280 {offsets = [2, 0], sizes = [1, 32], strides = [1, 1]} : vector<8x32xf32> to vector<1x32xf32>
    %284 = vector.extract_strided_slice %280 {offsets = [3, 0], sizes = [1, 32], strides = [1, 1]} : vector<8x32xf32> to vector<1x32xf32>
    %285 = vector.extract_strided_slice %280 {offsets = [4, 0], sizes = [1, 32], strides = [1, 1]} : vector<8x32xf32> to vector<1x32xf32>
    %286 = vector.extract_strided_slice %280 {offsets = [5, 0], sizes = [1, 32], strides = [1, 1]} : vector<8x32xf32> to vector<1x32xf32>
    %287 = vector.extract_strided_slice %280 {offsets = [6, 0], sizes = [1, 32], strides = [1, 1]} : vector<8x32xf32> to vector<1x32xf32>
    %288 = vector.extract_strided_slice %280 {offsets = [7, 0], sizes = [1, 32], strides = [1, 1]} : vector<8x32xf32> to vector<1x32xf32>
    %c12 = arith.constant 12 : index
    %c0_166 = arith.constant 0 : index
    %c0_167 = arith.constant 0 : index
    %289 = vector.load %arg3[%c12, %c0_166, %c0_167] : memref<24x32x8xf32, #tpu.memory_space<vmem>>, vector<1x32x8xf32>
    %290 = vector.shape_cast %289 : vector<1x32x8xf32> to vector<32x8xf32>
    %cst_168 = arith.constant dense<0.000000e+00> : vector<16x8xf32>
    %291 = tpu.matmul %278, %290, %cst_168 {dimension_numbers = #tpu.dot_dimension_numbers<[1], [0], [0], [1], [0, 0, 1, 1], [], []>} : vector<16x32xf32>, vector<32x8xf32>, vector<16x8xf32> -> vector<16x8xf32>
    %c12_169 = arith.constant 12 : index
    %c0_170 = arith.constant 0 : index
    %c0_171 = arith.constant 0 : index
    %292 = vector.load %arg4[%c12_169, %c0_170, %c0_171] : memref<24x1x8xf32, #tpu.memory_space<vmem>>, vector<1x1x8xf32>
    %293 = vector.shape_cast %292 : vector<1x1x8xf32> to vector<1x8xf32>
    %294 = vector.broadcast %293 : vector<1x8xf32> to vector<16x8xf32>
    %295 = arith.addf %291, %294 : vector<16x8xf32>
    %cst_172 = arith.constant 0.353553385 : f32
    %296 = vector.broadcast %cst_172 : f32 to vector<16x8xf32>
    %297 = arith.mulf %295, %296 : vector<16x8xf32>
    %c16 = arith.constant 16 : index
    %c0_173 = arith.constant 0 : index
    %c0_174 = arith.constant 0 : index
    %298 = vector.load %arg3[%c16, %c0_173, %c0_174] : memref<24x32x8xf32, #tpu.memory_space<vmem>>, vector<1x32x8xf32>
    %299 = vector.shape_cast %298 : vector<1x32x8xf32> to vector<32x8xf32>
    %cst_175 = arith.constant dense<0.000000e+00> : vector<16x8xf32>
    %300 = tpu.matmul %278, %299, %cst_175 {dimension_numbers = #tpu.dot_dimension_numbers<[1], [0], [0], [1], [0, 0, 1, 1], [], []>} : vector<16x32xf32>, vector<32x8xf32>, vector<16x8xf32> -> vector<16x8xf32>
    %c16_176 = arith.constant 16 : index
    %c0_177 = arith.constant 0 : index
    %c0_178 = arith.constant 0 : index
    %301 = vector.load %arg4[%c16_176, %c0_177, %c0_178] : memref<24x1x8xf32, #tpu.memory_space<vmem>>, vector<1x1x8xf32>
    %302 = vector.shape_cast %301 : vector<1x1x8xf32> to vector<1x8xf32>
    %303 = vector.broadcast %302 : vector<1x8xf32> to vector<16x8xf32>
    %304 = arith.addf %300, %303 : vector<16x8xf32>
    %c20 = arith.constant 20 : index
    %c0_179 = arith.constant 0 : index
    %c0_180 = arith.constant 0 : index
    %305 = vector.load %arg3[%c20, %c0_179, %c0_180] : memref<24x32x8xf32, #tpu.memory_space<vmem>>, vector<1x32x8xf32>
    %306 = vector.shape_cast %305 : vector<1x32x8xf32> to vector<32x8xf32>
    %cst_181 = arith.constant dense<0.000000e+00> : vector<16x8xf32>
    %307 = tpu.matmul %278, %306, %cst_181 {dimension_numbers = #tpu.dot_dimension_numbers<[1], [0], [0], [1], [0, 0, 1, 1], [], []>} : vector<16x32xf32>, vector<32x8xf32>, vector<16x8xf32> -> vector<16x8xf32>
    %c20_182 = arith.constant 20 : index
    %c0_183 = arith.constant 0 : index
    %c0_184 = arith.constant 0 : index
    %308 = vector.load %arg4[%c20_182, %c0_183, %c0_184] : memref<24x1x8xf32, #tpu.memory_space<vmem>>, vector<1x1x8xf32>
    %309 = vector.shape_cast %308 : vector<1x1x8xf32> to vector<1x8xf32>
    %310 = vector.broadcast %309 : vector<1x8xf32> to vector<16x8xf32>
    %311 = arith.addf %307, %310 : vector<16x8xf32>
    %312 = vector.shape_cast %297 : vector<16x8xf32> to vector<2x8x8xf32>
    %313 = vector.shape_cast %304 : vector<16x8xf32> to vector<2x8x8xf32>
    %314 = vector.shape_cast %311 : vector<16x8xf32> to vector<2x8x8xf32>
    "tpu.trace_start"() <{level = 10 : i32, message = "bqd,bkd->bqk"}> : () -> ()
    %cst_185 = arith.constant dense<0.000000e+00> : vector<2x8x8xf32>
    %315 = tpu.matmul %312, %313, %cst_185 {dimension_numbers = #tpu.dot_dimension_numbers<[2], [2], [1], [1], [0, 0, 0, 1, 1, 1], [0], [0]>} : vector<2x8x8xf32>, vector<2x8x8xf32>, vector<2x8x8xf32> -> vector<2x8x8xf32>
    "tpu.trace_stop"() : () -> ()
    %cst_186 = arith.constant dense<0xFF800000> : vector<2x8xf32>
    %316 = vector.multi_reduction <maximumf>, %315, %cst_186 [2] : vector<2x8x8xf32> to vector<2x8xf32>
    %317 = vector.shape_cast %316 : vector<2x8xf32> to vector<2x8x1xf32>
    %318 = vector.broadcast %317 : vector<2x8x1xf32> to vector<2x8x8xf32>
    %319 = arith.subf %315, %318 : vector<2x8x8xf32>
    %320 = math.exp %319 : vector<2x8x8xf32>
    %cst_187 = arith.constant dense<0.000000e+00> : vector<2x8xf32>
    %321 = vector.multi_reduction <add>, %320, %cst_187 [2] : vector<2x8x8xf32> to vector<2x8xf32>
    %322 = vector.shape_cast %321 : vector<2x8xf32> to vector<2x8x1xf32>
    %323 = vector.broadcast %322 : vector<2x8x1xf32> to vector<2x8x8xf32>
    %324 = arith.divf %320, %323 : vector<2x8x8xf32>
    "tpu.trace_start"() <{level = 10 : i32, message = "bqk,bkd->bqd"}> : () -> ()
    %cst_188 = arith.constant dense<0.000000e+00> : vector<2x8x8xf32>
    %325 = tpu.matmul %324, %314, %cst_188 {dimension_numbers = #tpu.dot_dimension_numbers<[2], [1], [1], [2], [0, 0, 0, 1, 1, 2], [0], [0]>} : vector<2x8x8xf32>, vector<2x8x8xf32>, vector<2x8x8xf32> -> vector<2x8x8xf32>
    "tpu.trace_stop"() : () -> ()
    %326 = vector.shape_cast %325 : vector<2x8x8xf32> to vector<16x8xf32>
    %c4_189 = arith.constant 4 : index
    %c0_190 = arith.constant 0 : index
    %c0_191 = arith.constant 0 : index
    %327 = vector.load %arg5[%c4_189, %c0_190, %c0_191] : memref<8x8x32xf32, #tpu.memory_space<vmem>>, vector<1x8x32xf32>
    %328 = vector.shape_cast %327 : vector<1x8x32xf32> to vector<8x32xf32>
    %cst_192 = arith.constant dense<0.000000e+00> : vector<16x32xf32>
    %329 = tpu.matmul %326, %328, %cst_192 {dimension_numbers = #tpu.dot_dimension_numbers<[1], [0], [0], [1], [0, 0, 1, 1], [], []>} : vector<16x8xf32>, vector<8x32xf32>, vector<16x32xf32> -> vector<16x32xf32>
    %c13 = arith.constant 13 : index
    %c0_193 = arith.constant 0 : index
    %c0_194 = arith.constant 0 : index
    %330 = vector.load %arg3[%c13, %c0_193, %c0_194] : memref<24x32x8xf32, #tpu.memory_space<vmem>>, vector<1x32x8xf32>
    %331 = vector.shape_cast %330 : vector<1x32x8xf32> to vector<32x8xf32>
    %cst_195 = arith.constant dense<0.000000e+00> : vector<16x8xf32>
    %332 = tpu.matmul %278, %331, %cst_195 {dimension_numbers = #tpu.dot_dimension_numbers<[1], [0], [0], [1], [0, 0, 1, 1], [], []>} : vector<16x32xf32>, vector<32x8xf32>, vector<16x8xf32> -> vector<16x8xf32>
    %c13_196 = arith.constant 13 : index
    %c0_197 = arith.constant 0 : index
    %c0_198 = arith.constant 0 : index
    %333 = vector.load %arg4[%c13_196, %c0_197, %c0_198] : memref<24x1x8xf32, #tpu.memory_space<vmem>>, vector<1x1x8xf32>
    %334 = vector.shape_cast %333 : vector<1x1x8xf32> to vector<1x8xf32>
    %335 = vector.broadcast %334 : vector<1x8xf32> to vector<16x8xf32>
    %336 = arith.addf %332, %335 : vector<16x8xf32>
    %cst_199 = arith.constant 0.353553385 : f32
    %337 = vector.broadcast %cst_199 : f32 to vector<16x8xf32>
    %338 = arith.mulf %336, %337 : vector<16x8xf32>
    %c17 = arith.constant 17 : index
    %c0_200 = arith.constant 0 : index
    %c0_201 = arith.constant 0 : index
    %339 = vector.load %arg3[%c17, %c0_200, %c0_201] : memref<24x32x8xf32, #tpu.memory_space<vmem>>, vector<1x32x8xf32>
    %340 = vector.shape_cast %339 : vector<1x32x8xf32> to vector<32x8xf32>
    %cst_202 = arith.constant dense<0.000000e+00> : vector<16x8xf32>
    %341 = tpu.matmul %278, %340, %cst_202 {dimension_numbers = #tpu.dot_dimension_numbers<[1], [0], [0], [1], [0, 0, 1, 1], [], []>} : vector<16x32xf32>, vector<32x8xf32>, vector<16x8xf32> -> vector<16x8xf32>
    %c17_203 = arith.constant 17 : index
    %c0_204 = arith.constant 0 : index
    %c0_205 = arith.constant 0 : index
    %342 = vector.load %arg4[%c17_203, %c0_204, %c0_205] : memref<24x1x8xf32, #tpu.memory_space<vmem>>, vector<1x1x8xf32>
    %343 = vector.shape_cast %342 : vector<1x1x8xf32> to vector<1x8xf32>
    %344 = vector.broadcast %343 : vector<1x8xf32> to vector<16x8xf32>
    %345 = arith.addf %341, %344 : vector<16x8xf32>
    %c21 = arith.constant 21 : index
    %c0_206 = arith.constant 0 : index
    %c0_207 = arith.constant 0 : index
    %346 = vector.load %arg3[%c21, %c0_206, %c0_207] : memref<24x32x8xf32, #tpu.memory_space<vmem>>, vector<1x32x8xf32>
    %347 = vector.shape_cast %346 : vector<1x32x8xf32> to vector<32x8xf32>
    %cst_208 = arith.constant dense<0.000000e+00> : vector<16x8xf32>
    %348 = tpu.matmul %278, %347, %cst_208 {dimension_numbers = #tpu.dot_dimension_numbers<[1], [0], [0], [1], [0, 0, 1, 1], [], []>} : vector<16x32xf32>, vector<32x8xf32>, vector<16x8xf32> -> vector<16x8xf32>
    %c21_209 = arith.constant 21 : index
    %c0_210 = arith.constant 0 : index
    %c0_211 = arith.constant 0 : index
    %349 = vector.load %arg4[%c21_209, %c0_210, %c0_211] : memref<24x1x8xf32, #tpu.memory_space<vmem>>, vector<1x1x8xf32>
    %350 = vector.shape_cast %349 : vector<1x1x8xf32> to vector<1x8xf32>
    %351 = vector.broadcast %350 : vector<1x8xf32> to vector<16x8xf32>
    %352 = arith.addf %348, %351 : vector<16x8xf32>
    %353 = vector.shape_cast %338 : vector<16x8xf32> to vector<2x8x8xf32>
    %354 = vector.shape_cast %345 : vector<16x8xf32> to vector<2x8x8xf32>
    %355 = vector.shape_cast %352 : vector<16x8xf32> to vector<2x8x8xf32>
    "tpu.trace_start"() <{level = 10 : i32, message = "bqd,bkd->bqk"}> : () -> ()
    %cst_212 = arith.constant dense<0.000000e+00> : vector<2x8x8xf32>
    %356 = tpu.matmul %353, %354, %cst_212 {dimension_numbers = #tpu.dot_dimension_numbers<[2], [2], [1], [1], [0, 0, 0, 1, 1, 1], [0], [0]>} : vector<2x8x8xf32>, vector<2x8x8xf32>, vector<2x8x8xf32> -> vector<2x8x8xf32>
    "tpu.trace_stop"() : () -> ()
    %cst_213 = arith.constant dense<0xFF800000> : vector<2x8xf32>
    %357 = vector.multi_reduction <maximumf>, %356, %cst_213 [2] : vector<2x8x8xf32> to vector<2x8xf32>
    %358 = vector.shape_cast %357 : vector<2x8xf32> to vector<2x8x1xf32>
    %359 = vector.broadcast %358 : vector<2x8x1xf32> to vector<2x8x8xf32>
    %360 = arith.subf %356, %359 : vector<2x8x8xf32>
    %361 = math.exp %360 : vector<2x8x8xf32>
    %cst_214 = arith.constant dense<0.000000e+00> : vector<2x8xf32>
    %362 = vector.multi_reduction <add>, %361, %cst_214 [2] : vector<2x8x8xf32> to vector<2x8xf32>
    %363 = vector.shape_cast %362 : vector<2x8xf32> to vector<2x8x1xf32>
    %364 = vector.broadcast %363 : vector<2x8x1xf32> to vector<2x8x8xf32>
    %365 = arith.divf %361, %364 : vector<2x8x8xf32>
    "tpu.trace_start"() <{level = 10 : i32, message = "bqk,bkd->bqd"}> : () -> ()
    %cst_215 = arith.constant dense<0.000000e+00> : vector<2x8x8xf32>
    %366 = tpu.matmul %365, %355, %cst_215 {dimension_numbers = #tpu.dot_dimension_numbers<[2], [1], [1], [2], [0, 0, 0, 1, 1, 2], [0], [0]>} : vector<2x8x8xf32>, vector<2x8x8xf32>, vector<2x8x8xf32> -> vector<2x8x8xf32>
    "tpu.trace_stop"() : () -> ()
    %367 = vector.shape_cast %366 : vector<2x8x8xf32> to vector<16x8xf32>
    %c5_216 = arith.constant 5 : index
    %c0_217 = arith.constant 0 : index
    %c0_218 = arith.constant 0 : index
    %368 = vector.load %arg5[%c5_216, %c0_217, %c0_218] : memref<8x8x32xf32, #tpu.memory_space<vmem>>, vector<1x8x32xf32>
    %369 = vector.shape_cast %368 : vector<1x8x32xf32> to vector<8x32xf32>
    %cst_219 = arith.constant dense<0.000000e+00> : vector<16x32xf32>
    %370 = tpu.matmul %367, %369, %cst_219 {dimension_numbers = #tpu.dot_dimension_numbers<[1], [0], [0], [1], [0, 0, 1, 1], [], []>} : vector<16x8xf32>, vector<8x32xf32>, vector<16x32xf32> -> vector<16x32xf32>
    %371 = arith.addf %329, %370 : vector<16x32xf32>
    %c14 = arith.constant 14 : index
    %c0_220 = arith.constant 0 : index
    %c0_221 = arith.constant 0 : index
    %372 = vector.load %arg3[%c14, %c0_220, %c0_221] : memref<24x32x8xf32, #tpu.memory_space<vmem>>, vector<1x32x8xf32>
    %373 = vector.shape_cast %372 : vector<1x32x8xf32> to vector<32x8xf32>
    %cst_222 = arith.constant dense<0.000000e+00> : vector<16x8xf32>
    %374 = tpu.matmul %278, %373, %cst_222 {dimension_numbers = #tpu.dot_dimension_numbers<[1], [0], [0], [1], [0, 0, 1, 1], [], []>} : vector<16x32xf32>, vector<32x8xf32>, vector<16x8xf32> -> vector<16x8xf32>
    %c14_223 = arith.constant 14 : index
    %c0_224 = arith.constant 0 : index
    %c0_225 = arith.constant 0 : index
    %375 = vector.load %arg4[%c14_223, %c0_224, %c0_225] : memref<24x1x8xf32, #tpu.memory_space<vmem>>, vector<1x1x8xf32>
    %376 = vector.shape_cast %375 : vector<1x1x8xf32> to vector<1x8xf32>
    %377 = vector.broadcast %376 : vector<1x8xf32> to vector<16x8xf32>
    %378 = arith.addf %374, %377 : vector<16x8xf32>
    %cst_226 = arith.constant 0.353553385 : f32
    %379 = vector.broadcast %cst_226 : f32 to vector<16x8xf32>
    %380 = arith.mulf %378, %379 : vector<16x8xf32>
    %c18 = arith.constant 18 : index
    %c0_227 = arith.constant 0 : index
    %c0_228 = arith.constant 0 : index
    %381 = vector.load %arg3[%c18, %c0_227, %c0_228] : memref<24x32x8xf32, #tpu.memory_space<vmem>>, vector<1x32x8xf32>
    %382 = vector.shape_cast %381 : vector<1x32x8xf32> to vector<32x8xf32>
    %cst_229 = arith.constant dense<0.000000e+00> : vector<16x8xf32>
    %383 = tpu.matmul %278, %382, %cst_229 {dimension_numbers = #tpu.dot_dimension_numbers<[1], [0], [0], [1], [0, 0, 1, 1], [], []>} : vector<16x32xf32>, vector<32x8xf32>, vector<16x8xf32> -> vector<16x8xf32>
    %c18_230 = arith.constant 18 : index
    %c0_231 = arith.constant 0 : index
    %c0_232 = arith.constant 0 : index
    %384 = vector.load %arg4[%c18_230, %c0_231, %c0_232] : memref<24x1x8xf32, #tpu.memory_space<vmem>>, vector<1x1x8xf32>
    %385 = vector.shape_cast %384 : vector<1x1x8xf32> to vector<1x8xf32>
    %386 = vector.broadcast %385 : vector<1x8xf32> to vector<16x8xf32>
    %387 = arith.addf %383, %386 : vector<16x8xf32>
    %c22 = arith.constant 22 : index
    %c0_233 = arith.constant 0 : index
    %c0_234 = arith.constant 0 : index
    %388 = vector.load %arg3[%c22, %c0_233, %c0_234] : memref<24x32x8xf32, #tpu.memory_space<vmem>>, vector<1x32x8xf32>
    %389 = vector.shape_cast %388 : vector<1x32x8xf32> to vector<32x8xf32>
    %cst_235 = arith.constant dense<0.000000e+00> : vector<16x8xf32>
    %390 = tpu.matmul %278, %389, %cst_235 {dimension_numbers = #tpu.dot_dimension_numbers<[1], [0], [0], [1], [0, 0, 1, 1], [], []>} : vector<16x32xf32>, vector<32x8xf32>, vector<16x8xf32> -> vector<16x8xf32>
    %c22_236 = arith.constant 22 : index
    %c0_237 = arith.constant 0 : index
    %c0_238 = arith.constant 0 : index
    %391 = vector.load %arg4[%c22_236, %c0_237, %c0_238] : memref<24x1x8xf32, #tpu.memory_space<vmem>>, vector<1x1x8xf32>
    %392 = vector.shape_cast %391 : vector<1x1x8xf32> to vector<1x8xf32>
    %393 = vector.broadcast %392 : vector<1x8xf32> to vector<16x8xf32>
    %394 = arith.addf %390, %393 : vector<16x8xf32>
    %395 = vector.shape_cast %380 : vector<16x8xf32> to vector<2x8x8xf32>
    %396 = vector.shape_cast %387 : vector<16x8xf32> to vector<2x8x8xf32>
    %397 = vector.shape_cast %394 : vector<16x8xf32> to vector<2x8x8xf32>
    "tpu.trace_start"() <{level = 10 : i32, message = "bqd,bkd->bqk"}> : () -> ()
    %cst_239 = arith.constant dense<0.000000e+00> : vector<2x8x8xf32>
    %398 = tpu.matmul %395, %396, %cst_239 {dimension_numbers = #tpu.dot_dimension_numbers<[2], [2], [1], [1], [0, 0, 0, 1, 1, 1], [0], [0]>} : vector<2x8x8xf32>, vector<2x8x8xf32>, vector<2x8x8xf32> -> vector<2x8x8xf32>
    "tpu.trace_stop"() : () -> ()
    %cst_240 = arith.constant dense<0xFF800000> : vector<2x8xf32>
    %399 = vector.multi_reduction <maximumf>, %398, %cst_240 [2] : vector<2x8x8xf32> to vector<2x8xf32>
    %400 = vector.shape_cast %399 : vector<2x8xf32> to vector<2x8x1xf32>
    %401 = vector.broadcast %400 : vector<2x8x1xf32> to vector<2x8x8xf32>
    %402 = arith.subf %398, %401 : vector<2x8x8xf32>
    %403 = math.exp %402 : vector<2x8x8xf32>
    %cst_241 = arith.constant dense<0.000000e+00> : vector<2x8xf32>
    %404 = vector.multi_reduction <add>, %403, %cst_241 [2] : vector<2x8x8xf32> to vector<2x8xf32>
    %405 = vector.shape_cast %404 : vector<2x8xf32> to vector<2x8x1xf32>
    %406 = vector.broadcast %405 : vector<2x8x1xf32> to vector<2x8x8xf32>
    %407 = arith.divf %403, %406 : vector<2x8x8xf32>
    "tpu.trace_start"() <{level = 10 : i32, message = "bqk,bkd->bqd"}> : () -> ()
    %cst_242 = arith.constant dense<0.000000e+00> : vector<2x8x8xf32>
    %408 = tpu.matmul %407, %397, %cst_242 {dimension_numbers = #tpu.dot_dimension_numbers<[2], [1], [1], [2], [0, 0, 0, 1, 1, 2], [0], [0]>} : vector<2x8x8xf32>, vector<2x8x8xf32>, vector<2x8x8xf32> -> vector<2x8x8xf32>
    "tpu.trace_stop"() : () -> ()
    %409 = vector.shape_cast %408 : vector<2x8x8xf32> to vector<16x8xf32>
    %c6_243 = arith.constant 6 : index
    %c0_244 = arith.constant 0 : index
    %c0_245 = arith.constant 0 : index
    %410 = vector.load %arg5[%c6_243, %c0_244, %c0_245] : memref<8x8x32xf32, #tpu.memory_space<vmem>>, vector<1x8x32xf32>
    %411 = vector.shape_cast %410 : vector<1x8x32xf32> to vector<8x32xf32>
    %cst_246 = arith.constant dense<0.000000e+00> : vector<16x32xf32>
    %412 = tpu.matmul %409, %411, %cst_246 {dimension_numbers = #tpu.dot_dimension_numbers<[1], [0], [0], [1], [0, 0, 1, 1], [], []>} : vector<16x8xf32>, vector<8x32xf32>, vector<16x32xf32> -> vector<16x32xf32>
    %413 = arith.addf %371, %412 : vector<16x32xf32>
    %c15 = arith.constant 15 : index
    %c0_247 = arith.constant 0 : index
    %c0_248 = arith.constant 0 : index
    %414 = vector.load %arg3[%c15, %c0_247, %c0_248] : memref<24x32x8xf32, #tpu.memory_space<vmem>>, vector<1x32x8xf32>
    %415 = vector.shape_cast %414 : vector<1x32x8xf32> to vector<32x8xf32>
    %cst_249 = arith.constant dense<0.000000e+00> : vector<16x8xf32>
    %416 = tpu.matmul %278, %415, %cst_249 {dimension_numbers = #tpu.dot_dimension_numbers<[1], [0], [0], [1], [0, 0, 1, 1], [], []>} : vector<16x32xf32>, vector<32x8xf32>, vector<16x8xf32> -> vector<16x8xf32>
    %c15_250 = arith.constant 15 : index
    %c0_251 = arith.constant 0 : index
    %c0_252 = arith.constant 0 : index
    %417 = vector.load %arg4[%c15_250, %c0_251, %c0_252] : memref<24x1x8xf32, #tpu.memory_space<vmem>>, vector<1x1x8xf32>
    %418 = vector.shape_cast %417 : vector<1x1x8xf32> to vector<1x8xf32>
    %419 = vector.broadcast %418 : vector<1x8xf32> to vector<16x8xf32>
    %420 = arith.addf %416, %419 : vector<16x8xf32>
    %cst_253 = arith.constant 0.353553385 : f32
    %421 = vector.broadcast %cst_253 : f32 to vector<16x8xf32>
    %422 = arith.mulf %420, %421 : vector<16x8xf32>
    %c19 = arith.constant 19 : index
    %c0_254 = arith.constant 0 : index
    %c0_255 = arith.constant 0 : index
    %423 = vector.load %arg3[%c19, %c0_254, %c0_255] : memref<24x32x8xf32, #tpu.memory_space<vmem>>, vector<1x32x8xf32>
    %424 = vector.shape_cast %423 : vector<1x32x8xf32> to vector<32x8xf32>
    %cst_256 = arith.constant dense<0.000000e+00> : vector<16x8xf32>
    %425 = tpu.matmul %278, %424, %cst_256 {dimension_numbers = #tpu.dot_dimension_numbers<[1], [0], [0], [1], [0, 0, 1, 1], [], []>} : vector<16x32xf32>, vector<32x8xf32>, vector<16x8xf32> -> vector<16x8xf32>
    %c19_257 = arith.constant 19 : index
    %c0_258 = arith.constant 0 : index
    %c0_259 = arith.constant 0 : index
    %426 = vector.load %arg4[%c19_257, %c0_258, %c0_259] : memref<24x1x8xf32, #tpu.memory_space<vmem>>, vector<1x1x8xf32>
    %427 = vector.shape_cast %426 : vector<1x1x8xf32> to vector<1x8xf32>
    %428 = vector.broadcast %427 : vector<1x8xf32> to vector<16x8xf32>
    %429 = arith.addf %425, %428 : vector<16x8xf32>
    %c23 = arith.constant 23 : index
    %c0_260 = arith.constant 0 : index
    %c0_261 = arith.constant 0 : index
    %430 = vector.load %arg3[%c23, %c0_260, %c0_261] : memref<24x32x8xf32, #tpu.memory_space<vmem>>, vector<1x32x8xf32>
    %431 = vector.shape_cast %430 : vector<1x32x8xf32> to vector<32x8xf32>
    %cst_262 = arith.constant dense<0.000000e+00> : vector<16x8xf32>
    %432 = tpu.matmul %278, %431, %cst_262 {dimension_numbers = #tpu.dot_dimension_numbers<[1], [0], [0], [1], [0, 0, 1, 1], [], []>} : vector<16x32xf32>, vector<32x8xf32>, vector<16x8xf32> -> vector<16x8xf32>
    %c23_263 = arith.constant 23 : index
    %c0_264 = arith.constant 0 : index
    %c0_265 = arith.constant 0 : index
    %433 = vector.load %arg4[%c23_263, %c0_264, %c0_265] : memref<24x1x8xf32, #tpu.memory_space<vmem>>, vector<1x1x8xf32>
    %434 = vector.shape_cast %433 : vector<1x1x8xf32> to vector<1x8xf32>
    %435 = vector.broadcast %434 : vector<1x8xf32> to vector<16x8xf32>
    %436 = arith.addf %432, %435 : vector<16x8xf32>
    %437 = vector.shape_cast %422 : vector<16x8xf32> to vector<2x8x8xf32>
    %438 = vector.shape_cast %429 : vector<16x8xf32> to vector<2x8x8xf32>
    %439 = vector.shape_cast %436 : vector<16x8xf32> to vector<2x8x8xf32>
    "tpu.trace_start"() <{level = 10 : i32, message = "bqd,bkd->bqk"}> : () -> ()
    %cst_266 = arith.constant dense<0.000000e+00> : vector<2x8x8xf32>
    %440 = tpu.matmul %437, %438, %cst_266 {dimension_numbers = #tpu.dot_dimension_numbers<[2], [2], [1], [1], [0, 0, 0, 1, 1, 1], [0], [0]>} : vector<2x8x8xf32>, vector<2x8x8xf32>, vector<2x8x8xf32> -> vector<2x8x8xf32>
    "tpu.trace_stop"() : () -> ()
    %cst_267 = arith.constant dense<0xFF800000> : vector<2x8xf32>
    %441 = vector.multi_reduction <maximumf>, %440, %cst_267 [2] : vector<2x8x8xf32> to vector<2x8xf32>
    %442 = vector.shape_cast %441 : vector<2x8xf32> to vector<2x8x1xf32>
    %443 = vector.broadcast %442 : vector<2x8x1xf32> to vector<2x8x8xf32>
    %444 = arith.subf %440, %443 : vector<2x8x8xf32>
    %445 = math.exp %444 : vector<2x8x8xf32>
    %cst_268 = arith.constant dense<0.000000e+00> : vector<2x8xf32>
    %446 = vector.multi_reduction <add>, %445, %cst_268 [2] : vector<2x8x8xf32> to vector<2x8xf32>
    %447 = vector.shape_cast %446 : vector<2x8xf32> to vector<2x8x1xf32>
    %448 = vector.broadcast %447 : vector<2x8x1xf32> to vector<2x8x8xf32>
    %449 = arith.divf %445, %448 : vector<2x8x8xf32>
    "tpu.trace_start"() <{level = 10 : i32, message = "bqk,bkd->bqd"}> : () -> ()
    %cst_269 = arith.constant dense<0.000000e+00> : vector<2x8x8xf32>
    %450 = tpu.matmul %449, %439, %cst_269 {dimension_numbers = #tpu.dot_dimension_numbers<[2], [1], [1], [2], [0, 0, 0, 1, 1, 2], [0], [0]>} : vector<2x8x8xf32>, vector<2x8x8xf32>, vector<2x8x8xf32> -> vector<2x8x8xf32>
    "tpu.trace_stop"() : () -> ()
    %451 = vector.shape_cast %450 : vector<2x8x8xf32> to vector<16x8xf32>
    %c7_270 = arith.constant 7 : index
    %c0_271 = arith.constant 0 : index
    %c0_272 = arith.constant 0 : index
    %452 = vector.load %arg5[%c7_270, %c0_271, %c0_272] : memref<8x8x32xf32, #tpu.memory_space<vmem>>, vector<1x8x32xf32>
    %453 = vector.shape_cast %452 : vector<1x8x32xf32> to vector<8x32xf32>
    %cst_273 = arith.constant dense<0.000000e+00> : vector<16x32xf32>
    %454 = tpu.matmul %451, %453, %cst_273 {dimension_numbers = #tpu.dot_dimension_numbers<[1], [0], [0], [1], [0, 0, 1, 1], [], []>} : vector<16x8xf32>, vector<8x32xf32>, vector<16x32xf32> -> vector<16x32xf32>
    %455 = arith.addf %413, %454 : vector<16x32xf32>
    %456 = arith.addf %278, %455 : vector<16x32xf32>
    %457 = vector.broadcast %281 : vector<1x32xf32> to vector<16x32xf32>
    %458 = arith.addf %456, %457 : vector<16x32xf32>
    %cst_274 = arith.constant dense<0.000000e+00> : vector<16xf32>
    %459 = vector.multi_reduction <add>, %458, %cst_274 [1] : vector<16x32xf32> to vector<16xf32>
    %460 = vector.shape_cast %459 : vector<16xf32> to vector<16x1xf32>
    %cst_275 = arith.constant 3.200000e+01 : f32
    %461 = vector.broadcast %cst_275 : f32 to vector<16x1xf32>
    %462 = arith.divf %460, %461 : vector<16x1xf32>
    %463 = vector.broadcast %462 : vector<16x1xf32> to vector<16x32xf32>
    %464 = arith.subf %458, %463 : vector<16x32xf32>
    %465 = arith.mulf %464, %464 : vector<16x32xf32>
    %cst_276 = arith.constant dense<0.000000e+00> : vector<16xf32>
    %466 = vector.multi_reduction <add>, %465, %cst_276 [1] : vector<16x32xf32> to vector<16xf32>
    %467 = vector.shape_cast %466 : vector<16xf32> to vector<16x1xf32>
    %cst_277 = arith.constant 3.200000e+01 : f32
    %468 = vector.broadcast %cst_277 : f32 to vector<16x1xf32>
    %469 = arith.divf %467, %468 : vector<16x1xf32>
    %470 = vector.broadcast %462 : vector<16x1xf32> to vector<16x32xf32>
    %471 = arith.subf %458, %470 : vector<16x32xf32>
    %cst_278 = arith.constant 9.99999974E-6 : f32
    %472 = vector.broadcast %cst_278 : f32 to vector<16x1xf32>
    %473 = arith.addf %469, %472 : vector<16x1xf32>
    %474 = math.rsqrt %473 : vector<16x1xf32>
    %475 = vector.broadcast %474 : vector<16x1xf32> to vector<16x32xf32>
    %476 = arith.mulf %471, %475 : vector<16x32xf32>
    %477 = vector.broadcast %285 : vector<1x32xf32> to vector<16x32xf32>
    %478 = arith.mulf %476, %477 : vector<16x32xf32>
    %479 = vector.broadcast %286 : vector<1x32xf32> to vector<16x32xf32>
    %480 = arith.addf %478, %479 : vector<16x32xf32>
    %c1_279 = arith.constant 1 : index
    %c0_280 = arith.constant 0 : index
    %c0_281 = arith.constant 0 : index
    %481 = vector.load %arg6[%c1_279, %c0_280, %c0_281] : memref<2x32x64xf32, #tpu.memory_space<vmem>>, vector<1x32x64xf32>
    %482 = vector.shape_cast %481 : vector<1x32x64xf32> to vector<32x64xf32>
    %cst_282 = arith.constant dense<0.000000e+00> : vector<16x64xf32>
    %483 = tpu.matmul %480, %482, %cst_282 {dimension_numbers = #tpu.dot_dimension_numbers<[1], [0], [0], [1], [0, 0, 1, 1], [], []>} : vector<16x32xf32>, vector<32x64xf32>, vector<16x64xf32> -> vector<16x64xf32>
    %c1_283 = arith.constant 1 : index
    %c0_284 = arith.constant 0 : index
    %c0_285 = arith.constant 0 : index
    %484 = vector.load %arg7[%c1_283, %c0_284, %c0_285] : memref<2x1x64xf32, #tpu.memory_space<vmem>>, vector<1x1x64xf32>
    %485 = vector.shape_cast %484 : vector<1x1x64xf32> to vector<1x64xf32>
    %486 = vector.broadcast %485 : vector<1x64xf32> to vector<16x64xf32>
    %487 = arith.addf %483, %486 : vector<16x64xf32>
    %cst_286 = arith.constant 0.000000e+00 : f32
    %488 = vector.broadcast %cst_286 : f32 to vector<16x64xf32>
    %489 = arith.maximumf %487, %488 : vector<16x64xf32>
    %c1_287 = arith.constant 1 : index
    %c0_288 = arith.constant 0 : index
    %c0_289 = arith.constant 0 : index
    %490 = vector.load %arg8[%c1_287, %c0_288, %c0_289] : memref<2x64x32xf32, #tpu.memory_space<vmem>>, vector<1x64x32xf32>
    %491 = vector.shape_cast %490 : vector<1x64x32xf32> to vector<64x32xf32>
    %cst_290 = arith.constant dense<0.000000e+00> : vector<16x32xf32>
    %492 = tpu.matmul %489, %491, %cst_290 {dimension_numbers = #tpu.dot_dimension_numbers<[1], [0], [0], [1], [0, 0, 1, 1], [], []>} : vector<16x64xf32>, vector<64x32xf32>, vector<16x32xf32> -> vector<16x32xf32>
    %493 = vector.broadcast %282 : vector<1x32xf32> to vector<16x32xf32>
    %494 = arith.addf %492, %493 : vector<16x32xf32>
    %495 = arith.addf %480, %494 : vector<16x32xf32>
    %cst_291 = arith.constant dense<0.000000e+00> : vector<16xf32>
    %496 = vector.multi_reduction <add>, %495, %cst_291 [1] : vector<16x32xf32> to vector<16xf32>
    %497 = vector.shape_cast %496 : vector<16xf32> to vector<16x1xf32>
    %cst_292 = arith.constant 3.200000e+01 : f32
    %498 = vector.broadcast %cst_292 : f32 to vector<16x1xf32>
    %499 = arith.divf %497, %498 : vector<16x1xf32>
    %500 = vector.broadcast %499 : vector<16x1xf32> to vector<16x32xf32>
    %501 = arith.subf %495, %500 : vector<16x32xf32>
    %502 = arith.mulf %501, %501 : vector<16x32xf32>
    %cst_293 = arith.constant dense<0.000000e+00> : vector<16xf32>
    %503 = vector.multi_reduction <add>, %502, %cst_293 [1] : vector<16x32xf32> to vector<16xf32>
    %504 = vector.shape_cast %503 : vector<16xf32> to vector<16x1xf32>
    %cst_294 = arith.constant 3.200000e+01 : f32
    %505 = vector.broadcast %cst_294 : f32 to vector<16x1xf32>
    %506 = arith.divf %504, %505 : vector<16x1xf32>
    %507 = vector.broadcast %499 : vector<16x1xf32> to vector<16x32xf32>
    %508 = arith.subf %495, %507 : vector<16x32xf32>
    %cst_295 = arith.constant 9.99999974E-6 : f32
    %509 = vector.broadcast %cst_295 : f32 to vector<16x1xf32>
    %510 = arith.addf %506, %509 : vector<16x1xf32>
    %511 = math.rsqrt %510 : vector<16x1xf32>
    %512 = vector.broadcast %511 : vector<16x1xf32> to vector<16x32xf32>
    %513 = arith.mulf %508, %512 : vector<16x32xf32>
    %514 = vector.broadcast %287 : vector<1x32xf32> to vector<16x32xf32>
    %515 = arith.mulf %513, %514 : vector<16x32xf32>
    %516 = vector.broadcast %288 : vector<1x32xf32> to vector<16x32xf32>
    %517 = arith.addf %515, %516 : vector<16x32xf32>
    %c1_296 = arith.constant 1 : index
    %c0_297 = arith.constant 0 : index
    %c0_298 = arith.constant 0 : index
    %518 = vector.load %arg9[%c1_296, %c0_297, %c0_298] : memref<2x32x16xf32, #tpu.memory_space<vmem>>, vector<1x32x16xf32>
    %519 = vector.shape_cast %518 : vector<1x32x16xf32> to vector<32x16xf32>
    %cst_299 = arith.constant dense<0.000000e+00> : vector<16x16xf32>
    %520 = tpu.matmul %517, %519, %cst_299 {dimension_numbers = #tpu.dot_dimension_numbers<[1], [0], [0], [1], [0, 0, 1, 1], [], []>} : vector<16x32xf32>, vector<32x16xf32>, vector<16x16xf32> -> vector<16x16xf32>
    %c1_300 = arith.constant 1 : index
    %c0_301 = arith.constant 0 : index
    %c0_302 = arith.constant 0 : index
    %521 = vector.load %arg10[%c1_300, %c0_301, %c0_302] : memref<2x1x16xf32, #tpu.memory_space<vmem>>, vector<1x1x16xf32>
    %522 = vector.shape_cast %521 : vector<1x1x16xf32> to vector<1x16xf32>
    %523 = vector.broadcast %522 : vector<1x16xf32> to vector<16x16xf32>
    %524 = arith.addf %520, %523 : vector<16x16xf32>
    %cst_303 = arith.constant 0.000000e+00 : f32
    %525 = vector.broadcast %cst_303 : f32 to vector<16x16xf32>
    %526 = arith.maximumf %524, %525 : vector<16x16xf32>
    %c1_304 = arith.constant 1 : index
    %c0_305 = arith.constant 0 : index
    %c0_306 = arith.constant 0 : index
    %527 = vector.load %arg11[%c1_304, %c0_305, %c0_306] : memref<2x16x32xf32, #tpu.memory_space<vmem>>, vector<1x16x32xf32>
    %528 = vector.shape_cast %527 : vector<1x16x32xf32> to vector<16x32xf32>
    %cst_307 = arith.constant dense<0.000000e+00> : vector<16x32xf32>
    %529 = tpu.matmul %526, %528, %cst_307 {dimension_numbers = #tpu.dot_dimension_numbers<[1], [0], [0], [1], [0, 0, 1, 1], [], []>} : vector<16x16xf32>, vector<16x32xf32>, vector<16x32xf32> -> vector<16x32xf32>
    %530 = vector.broadcast %283 : vector<1x32xf32> to vector<16x32xf32>
    %531 = arith.addf %529, %530 : vector<16x32xf32>
    %532 = arith.addf %517, %531 : vector<16x32xf32>
    %c1_308 = arith.constant 1 : index
    %c0_309 = arith.constant 0 : index
    %c0_310 = arith.constant 0 : index
    %533 = vector.load %arg12[%c1_308, %c0_309, %c0_310] : memref<2x32x16xf32, #tpu.memory_space<vmem>>, vector<1x32x16xf32>
    %534 = vector.shape_cast %533 : vector<1x32x16xf32> to vector<32x16xf32>
    %cst_311 = arith.constant dense<0.000000e+00> : vector<16x16xf32>
    %535 = tpu.matmul %532, %534, %cst_311 {dimension_numbers = #tpu.dot_dimension_numbers<[1], [0], [0], [1], [0, 0, 1, 1], [], []>} : vector<16x32xf32>, vector<32x16xf32>, vector<16x16xf32> -> vector<16x16xf32>
    %c1_312 = arith.constant 1 : index
    %c0_313 = arith.constant 0 : index
    %c0_314 = arith.constant 0 : index
    %536 = vector.load %arg13[%c1_312, %c0_313, %c0_314] : memref<2x1x16xf32, #tpu.memory_space<vmem>>, vector<1x1x16xf32>
    %537 = vector.shape_cast %536 : vector<1x1x16xf32> to vector<1x16xf32>
    %538 = vector.broadcast %537 : vector<1x16xf32> to vector<16x16xf32>
    %539 = arith.addf %535, %538 : vector<16x16xf32>
    %cst_315 = arith.constant 0.000000e+00 : f32
    %540 = vector.broadcast %cst_315 : f32 to vector<16x16xf32>
    %541 = arith.maximumf %539, %540 : vector<16x16xf32>
    %c1_316 = arith.constant 1 : index
    %c0_317 = arith.constant 0 : index
    %c0_318 = arith.constant 0 : index
    %542 = vector.load %arg14[%c1_316, %c0_317, %c0_318] : memref<2x16x32xf32, #tpu.memory_space<vmem>>, vector<1x16x32xf32>
    %543 = vector.shape_cast %542 : vector<1x16x32xf32> to vector<16x32xf32>
    %cst_319 = arith.constant dense<0.000000e+00> : vector<16x32xf32>
    %544 = tpu.matmul %541, %543, %cst_319 {dimension_numbers = #tpu.dot_dimension_numbers<[1], [0], [0], [1], [0, 0, 1, 1], [], []>} : vector<16x16xf32>, vector<16x32xf32>, vector<16x32xf32> -> vector<16x32xf32>
    %545 = vector.broadcast %284 : vector<1x32xf32> to vector<16x32xf32>
    %546 = arith.addf %544, %545 : vector<16x32xf32>
    %547 = arith.addf %532, %546 : vector<16x32xf32>
    %c0_320 = arith.constant 0 : index
    %c0_321 = arith.constant 0 : index
    %548 = vector.load %arg16[%c0_320, %c0_321] : memref<32x128xf32, #tpu.memory_space<vmem>>, vector<32x128xf32>
    %cst_322 = arith.constant dense<0.000000e+00> : vector<16x128xf32>
    %549 = tpu.matmul %547, %548, %cst_322 {dimension_numbers = #tpu.dot_dimension_numbers<[1], [0], [0], [1], [0, 0, 1, 1], [], []>} : vector<16x32xf32>, vector<32x128xf32>, vector<16x128xf32> -> vector<16x128xf32>
    %c0_323 = arith.constant 0 : index
    %c0_324 = arith.constant 0 : index
    %550 = vector.load %arg17[%c0_323, %c0_324] : memref<1x128xf32, #tpu.memory_space<vmem>>, vector<1x128xf32>
    %551 = vector.broadcast %550 : vector<1x128xf32> to vector<16x128xf32>
    %552 = arith.addf %549, %551 : vector<16x128xf32>
    %553 = vector.shape_cast %552 : vector<16x128xf32> to vector<2x8x128xf32>
    %c0_325 = arith.constant 0 : index
    %c0_326 = arith.constant 0 : index
    %c0_327 = arith.constant 0 : index
    %554 = vector.load %arg18[%c0_325, %c0_326, %c0_327] : memref<2x8x128xf32, #tpu.memory_space<vmem>>, vector<2x8x128xf32>
    tpu.vector_store %arg18[%c0_325, %c0_326, %c0_327], %553 {strides = array<i32>} : memref<2x8x128xf32, #tpu.memory_space<vmem>>, vector<2x8x128xf32>,
    return
  }
}

</mosaic_0001>

<llo_original>
// kernel: tpu_custom_call.1
$region0: #{tpu_custom_call.1}
  #allocation0 [shape = 'u32[]', space=smem, size = 0x4, offset = 0x4, fixed_abs, tag = 'smem constant byte address 0x4 - core index']
  #allocation1 [shape = 'u32[144,128]{1,0:T(1,128)}', space=vmem, size = 0x12000, scoped, tag = 'internal scratch']
  %s0 = inlined_call_operand.vmem [shape: s32[16,1], index: 0, kind: input, shape index: {}]
  %s1 = inlined_call_operand.vmem [shape: f32[128,32], index: 1, kind: input, shape index: {}]
  %s2 = inlined_call_operand.vmem [shape: f32[16,32], index: 2, kind: input, shape index: {}]
  %s3 = inlined_call_operand.vmem [shape: f32[24,32,8], index: 3, kind: input, shape index: {}]
  %s4 = inlined_call_operand.vmem [shape: f32[24,1,8], index: 4, kind: input, shape index: {}]
  %s5 = inlined_call_operand.vmem [shape: f32[8,8,32], index: 5, kind: input, shape index: {}]
  %s6 = inlined_call_operand.vmem [shape: f32[2,32,64], index: 6, kind: input, shape index: {}]
  %s7 = inlined_call_operand.vmem [shape: f32[2,1,64], index: 7, kind: input, shape index: {}]
  %s8 = inlined_call_operand.vmem [shape: f32[2,64,32], index: 8, kind: input, shape index: {}]
  %s9 = inlined_call_operand.vmem [shape: f32[2,32,16], index: 9, kind: input, shape index: {}]
  %s10 = inlined_call_operand.vmem [shape: f32[2,1,16], index: 10, kind: input, shape index: {}]
  %s11 = inlined_call_operand.vmem [shape: f32[2,16,32], index: 11, kind: input, shape index: {}]
  %s12 = inlined_call_operand.vmem [shape: f32[2,32,16], index: 12, kind: input, shape index: {}]
  %s13 = inlined_call_operand.vmem [shape: f32[2,1,16], index: 13, kind: input, shape index: {}]
  %s14 = inlined_call_operand.vmem [shape: f32[2,16,32], index: 14, kind: input, shape index: {}]
  %s15 = inlined_call_operand.vmem [shape: f32[2,8,32], index: 15, kind: input, shape index: {}]
  %s16 = inlined_call_operand.vmem [shape: f32[32,128], index: 16, kind: input, shape index: {}]
  %s17 = inlined_call_operand.vmem [shape: f32[1,128], index: 17, kind: input, shape index: {}]
  %s18 = inlined_call_operand.hbm [shape: f32[2,8,128], index: 18, kind: output, shape index: {}]
  %s19 = sld [smem:[#allocation0]]
  $region82: #{tpu_custom_call.1} parent=0
    _
  %s21 = ssub.s32 1, %s19
  %s22 = scalar_select 0, %s21, %s19
  $region1: #{tpu_custom_call.1} parent=0
    #allocation2 [shape = 'u8[8192]{0}', space=vmem, size = 0x2000, scoped, tag = 'output window, operand 0, single buffered']
    #allocation3 [shape = 's32[1]{0}', space=sflag, size = 0x4, scoped, tag = 'scoped memory for tpu_custom_call.1']
    %23 = vsyncpa [#allocation3], 0
    // Predicated region
    $region2: #{tpu_custom_call.1} parent=1 // pred_check
      _
    $region3: #{tpu_custom_call.1} parent=1 // pred_check_branch
      %25 = sbr.rel (0) target = $region5
    $region4: #{tpu_custom_call.1} parent=1 // pred_region
      _
    $region5: #{tpu_custom_call.1} parent=1 // pred_fallthru
      _
    // Predicated region
    $region6: #{tpu_custom_call.1} parent=1 // pred_check
      _
    $region7: #{tpu_custom_call.1} parent=1 // pred_check_branch
      %27 = sbr.rel (0) target = $region9
    $region8: #{tpu_custom_call.1} parent=1 // pred_region
      _
    $region9: #{tpu_custom_call.1} parent=1 // pred_fallthru
      _
    // Predicated region
    $region10: #{tpu_custom_call.1} parent=1 // pred_check
      _
    $region11: #{tpu_custom_call.1} parent=1 // pred_check_branch
      %29 = sbr.rel (0) target = $region13
    $region12: #{tpu_custom_call.1} parent=1 // pred_region
      _
    $region13: #{tpu_custom_call.1} parent=1 // pred_fallthru
      _
    // Predicated region
    $region14: #{tpu_custom_call.1} parent=1 // pred_check
      _
    $region15: #{tpu_custom_call.1} parent=1 // pred_check_branch
      %31 = sbr.rel (0) target = $region17
    $region16: #{tpu_custom_call.1} parent=1 // pred_region
      _
    $region17: #{tpu_custom_call.1} parent=1 // pred_fallthru
      _
    // Predicated region
    $region18: #{tpu_custom_call.1} parent=1 // pred_check
      _
    $region19: #{tpu_custom_call.1} parent=1 // pred_check_branch
      %33 = sbr.rel (0) target = $region21
    $region20: #{tpu_custom_call.1} parent=1 // pred_region
      _
    $region21: #{tpu_custom_call.1} parent=1 // pred_fallthru
      _
    // Predicated region
    $region22: #{tpu_custom_call.1} parent=1 // pred_check
      _
    $region23: #{tpu_custom_call.1} parent=1 // pred_check_branch
      %35 = sbr.rel (0) target = $region25
    $region24: #{tpu_custom_call.1} parent=1 // pred_region
      _
    $region25: #{tpu_custom_call.1} parent=1 // pred_fallthru
      _
    // Predicated region
    $region26: #{tpu_custom_call.1} parent=1 // pred_check
      _
    $region27: #{tpu_custom_call.1} parent=1 // pred_check_branch
      %37 = sbr.rel (0) target = $region29
    $region28: #{tpu_custom_call.1} parent=1 // pred_region
      _
    $region29: #{tpu_custom_call.1} parent=1 // pred_fallthru
      _
    // Predicated region
    $region30: #{tpu_custom_call.1} parent=1 // pred_check
      _
    $region31: #{tpu_custom_call.1} parent=1 // pred_check_branch
      %39 = sbr.rel (0) target = $region33
    $region32: #{tpu_custom_call.1} parent=1 // pred_region
      _
    $region33: #{tpu_custom_call.1} parent=1 // pred_fallthru
      _
    // Predicated region
    $region34: #{tpu_custom_call.1} parent=1 // pred_check
      _
    $region35: #{tpu_custom_call.1} parent=1 // pred_check_branch
      %41 = sbr.rel (0) target = $region37
    $region36: #{tpu_custom_call.1} parent=1 // pred_region
      _
    $region37: #{tpu_custom_call.1} parent=1 // pred_fallthru
      _
    // Predicated region
    $region38: #{tpu_custom_call.1} parent=1 // pred_check
      _
    $region39: #{tpu_custom_call.1} parent=1 // pred_check_branch
      %43 = sbr.rel (0) target = $region41
    $region40: #{tpu_custom_call.1} parent=1 // pred_region
      _
    $region41: #{tpu_custom_call.1} parent=1 // pred_fallthru
      _
    // Predicated region
    $region42: #{tpu_custom_call.1} parent=1 // pred_check
      _
    $region43: #{tpu_custom_call.1} parent=1 // pred_check_branch
      %45 = sbr.rel (0) target = $region45
    $region44: #{tpu_custom_call.1} parent=1 // pred_region
      _
    $region45: #{tpu_custom_call.1} parent=1 // pred_fallthru
      _
    // Predicated region
    $region46: #{tpu_custom_call.1} parent=1 // pred_check
      _
    $region47: #{tpu_custom_call.1} parent=1 // pred_check_branch
      %47 = sbr.rel (0) target = $region49
    $region48: #{tpu_custom_call.1} parent=1 // pred_region
      _
    $region49: #{tpu_custom_call.1} parent=1 // pred_fallthru
      _
    // Predicated region
    $region50: #{tpu_custom_call.1} parent=1 // pred_check
      _
    $region51: #{tpu_custom_call.1} parent=1 // pred_check_branch
      %49 = sbr.rel (0) target = $region53
    $region52: #{tpu_custom_call.1} parent=1 // pred_region
      _
    $region53: #{tpu_custom_call.1} parent=1 // pred_fallthru
      _
    // Predicated region
    $region54: #{tpu_custom_call.1} parent=1 // pred_check
      _
    $region55: #{tpu_custom_call.1} parent=1 // pred_check_branch
      %51 = sbr.rel (0) target = $region57
    $region56: #{tpu_custom_call.1} parent=1 // pred_region
      _
    $region57: #{tpu_custom_call.1} parent=1 // pred_fallthru
      _
    // Predicated region
    $region58: #{tpu_custom_call.1} parent=1 // pred_check
      _
    $region59: #{tpu_custom_call.1} parent=1 // pred_check_branch
      %53 = sbr.rel (0) target = $region61
    $region60: #{tpu_custom_call.1} parent=1 // pred_region
      _
    $region61: #{tpu_custom_call.1} parent=1 // pred_fallthru
      _
    // Predicated region
    $region62: #{tpu_custom_call.1} parent=1 // pred_check
      _
    $region63: #{tpu_custom_call.1} parent=1 // pred_check_branch
      %55 = sbr.rel (0) target = $region65
    $region64: #{tpu_custom_call.1} parent=1 // pred_region
      _
    $region65: #{tpu_custom_call.1} parent=1 // pred_fallthru
      _
    // Predicated region
    $region66: #{tpu_custom_call.1} parent=1 // pred_check
      _
    $region67: #{tpu_custom_call.1} parent=1 // pred_check_branch
      %57 = sbr.rel (0) target = $region69
    $region68: #{tpu_custom_call.1} parent=1 // pred_region
      _
    $region69: #{tpu_custom_call.1} parent=1 // pred_fallthru
      _
    // Predicated region
    $region70: #{tpu_custom_call.1} parent=1 // pred_check
      _
    $region71: #{tpu_custom_call.1} parent=1 // pred_check_branch
      %59 = sbr.rel (0) target = $region73
    $region72: #{tpu_custom_call.1} parent=1 // pred_region
      _
    $region73: #{tpu_custom_call.1} parent=1 // pred_fallthru
      _
    %v60 = vld [vmem:[%s0] sm:$0xff]
    %v61 = vld [vmem:[%s0 + $0x8] sm:$0xff]
    %v62 = vlaneseq
    %v63 = vand.u32 %v62, 127
    %64 = vset.pattern.permute.xlu0 0
    %65 = vperm.xlu0 %64, %v60
    %v66 = vpop.permute.xlu0 %65
    %67 = vset.pattern.permute.xlu0 0
    %68 = vperm.xlu0 %67, %v61
    %v69 = vpop.permute.xlu0 %68
    %vm70 = vcmp.eq.s32.totalorder %v63, %v66
    %vm71 = vcmp.eq.s32.totalorder %v63, %v69
    %v72 = vsel %vm70, 1, 0
    %v73 = vsel %vm71, 1, 0
    %v74 = vcvt.s32.f32 %v72
    %v75 = vcvt.s32.f32 %v73
    %v76 = vld [vmem:[%s1] sm:$0xff]
    %v77 = vld [vmem:[%s1 + $0x8] sm:$0xff]
    %v78 = vld [vmem:[%s1 + $0x10] sm:$0xff]
    %v79 = vld [vmem:[%s1 + $0x18] sm:$0xff]
    %v80 = vld [vmem:[%s1 + $0x20] sm:$0xff]
    %v81 = vld [vmem:[%s1 + $0x28] sm:$0xff]
    %v82 = vld [vmem:[%s1 + $0x30] sm:$0xff]
    %v83 = vld [vmem:[%s1 + $0x38] sm:$0xff]
    %v84 = vld [vmem:[%s1 + $0x40] sm:$0xff]
    %v85 = vld [vmem:[%s1 + $0x48] sm:$0xff]
    %v86 = vld [vmem:[%s1 + $0x50] sm:$0xff]
    %v87 = vld [vmem:[%s1 + $0x58] sm:$0xff]
    %v88 = vld [vmem:[%s1 + $0x60] sm:$0xff]
    %v89 = vld [vmem:[%s1 + $0x68] sm:$0xff]
    %v90 = vld [vmem:[%s1 + $0x70] sm:$0xff]
    %v91 = vld [vmem:[%s1 + $0x78] sm:$0xff]
    %v92 = vld [vmem:[%s2] sm:$0xff]
    %v93 = vld [vmem:[%s2 + $0x8] sm:$0xff]
    %94 = vmatprep.subr.mxu0 0.0
    %95 = vmatpush1.msra.mxu0 %v76
    %96 = vmatprep.subr.mxu0 0.0
    %97 = vmatpush1.msra.mxu0 %v77
    %98 = vmatprep.subr.mxu0 0.0
    %99 = vmatpush1.msra.mxu0 %v78
    %100 = vmatprep.subr.mxu0 0.0
    %101 = vmatpush1.msra.mxu0 %v79
    %102 = vmatprep.subr.mxu0 0.0
    %103 = vmatpush1.msra.mxu0 %v80
    %104 = vmatprep.subr.mxu0 0.0
    %105 = vmatpush1.msra.mxu0 %v81
    %106 = vmatprep.subr.mxu0 0.0
    %107 = vmatpush1.msra.mxu0 %v82
    %108 = vmatprep.subr.mxu0 0.0
    %109 = vmatpush1.msra.mxu0 %v83
    %110 = vmatprep.subr.mxu0 0.0
    %111 = vmatpush1.msra.mxu0 %v84
    %112 = vmatprep.subr.mxu0 0.0
    %113 = vmatpush1.msra.mxu0 %v85
    %114 = vmatprep.subr.mxu0 0.0
    %115 = vmatpush1.msra.mxu0 %v86
    %116 = vmatprep.subr.mxu0 0.0
    %117 = vmatpush1.msra.mxu0 %v87
    %118 = vmatprep.subr.mxu0 0.0
    %119 = vmatpush1.msra.mxu0 %v88
    %120 = vmatprep.subr.mxu0 0.0
    %121 = vmatpush1.msra.mxu0 %v89
    %122 = vmatprep.subr.mxu0 0.0
    %123 = vmatpush1.msra.mxu0 %v90
    %124 = vmatprep.subr.mxu0 0.0
    %125 = vmatpush1.msra.mxu0 %v91
    %126 = vmatprep.subr.mxu0 0.0
    %127 = vmatpush1.msra.mxu0 0.0
    %128 = vmatprep.subr.mxu0 0.0
    %129 = vmatpush1.msra.mxu0 0.0
    %130 = vmatprep.subr.mxu0 0.0
    %131 = vmatpush1.msra.mxu0 0.0
    %132 = vmatprep.subr.mxu0 0.0
    %133 = vmatpush1.msra.mxu0 0.0
    %134 = vmatprep.subr.mxu0 0.0
    %135 = vmatpush1.msra.mxu0 0.0
    %136 = vmatprep.subr.mxu0 0.0
    %137 = vmatpush1.msra.mxu0 0.0
    %138 = vmatprep.subr.mxu0 0.0
    %139 = vmatpush1.msra.mxu0 0.0
    %140 = vmatprep.subr.mxu0 0.0
    %141 = vmatpush1.msra.mxu0 0.0
    %142 = vmatprep.subr.mxu0 0.0
    %143 = vmatpush1.msra.mxu0 0.0
    %144 = vmatprep.subr.mxu0 0.0
    %145 = vmatpush1.msra.mxu0 0.0
    %146 = vmatprep.subr.mxu0 0.0
    %147 = vmatpush1.msra.mxu0 0.0
    %148 = vmatprep.subr.mxu0 0.0
    %149 = vmatpush1.msra.mxu0 0.0
    %150 = vmatprep.subr.mxu0 0.0
    %151 = vmatpush1.msra.mxu0 0.0
    %152 = vmatprep.subr.mxu0 0.0
    %153 = vmatpush1.msra.mxu0 0.0
    %154 = vmatprep.subr.mxu0 0.0
    %155 = vmatpush1.msra.mxu0 0.0
    %156 = vmatprep.subr.mxu0 0.0
    %157 = vmatpush1.msra.mxu0 0.0
    %158 = vmatprep.mubr.f32.mxu0 0.0
    %159 = vmatmul.mubr.f32.gmra.mrb[0].mxu0 %v74
    %v160 = vpop.f32.mrb[0].mxu0
    %v161 = vadd.f32 %v92, %v160
    %v162 = vpop.f32.mrb[0].mxu0
    %163 = vmatprep.mubr.f32.mxu0 0.0
    %164 = vmatmul.mubr.f32.gmra.mrb[0].mxu0 %v75
    %v165 = vpop.f32.mrb[0].mxu0
    %v166 = vadd.f32 %v93, %v165
    %v167 = vpop.f32.mrb[0].mxu0
    %168 = vdwg.mxu0
    %v169 = vld [vmem:[%s15] sm:$0xff]
    %v170 = vld [vmem:[%s3] sm:$0xff]
    %v171 = vld [vmem:[%s3 + $0x8] sm:$0xff]
    %v172 = vld [vmem:[%s3 + $0x10] sm:$0xff]
    %v173 = vld [vmem:[%s3 + $0x18] sm:$0xff]
    %v174 = vld [vmem:[%s4] sm:$0x1]
    %v176 = vlaneseq
    %v177 = vshrl.u32 %v176, 7
    %v178 = vsub.s32 0, %v177
    %v179 = vrot.slane %v174, %v178
    %vm181 = vcmask 261120
    %v183 = vsel %vm181, %v161, 0
    %v186 = vsel %vm181, %v166, 0
    %188 = vmatprep.subr.mxu0 0.0
    %189 = vmatpush1.msra.mxu0 %v170
    %190 = vmatprep.subr.mxu0 0.0
    %191 = vmatpush1.msra.mxu0 %v171
    %192 = vmatprep.subr.mxu0 0.0
    %193 = vmatpush1.msra.mxu0 %v172
    %194 = vmatprep.subr.mxu0 0.0
    %195 = vmatpush1.msra.mxu0 %v173
    %196 = vmatprep.subr.mxu0 0.0
    %197 = vmatpush1.msra.mxu0 0.0
    %198 = vmatprep.subr.mxu0 0.0
    %199 = vmatpush1.msra.mxu0 0.0
    %200 = vmatprep.subr.mxu0 0.0
    %201 = vmatpush1.msra.mxu0 0.0
    %202 = vmatprep.subr.mxu0 0.0
    %203 = vmatpush1.msra.mxu0 0.0
    %204 = vmatprep.subr.mxu0 0.0
    %205 = vmatpush1.msra.mxu0 0.0
    %206 = vmatprep.subr.mxu0 0.0
    %207 = vmatpush1.msra.mxu0 0.0
    %208 = vmatprep.subr.mxu0 0.0
    %209 = vmatpush1.msra.mxu0 0.0
    %210 = vmatprep.subr.mxu0 0.0
    %211 = vmatpush1.msra.mxu0 0.0
    %212 = vmatprep.subr.mxu0 0.0
    %213 = vmatpush1.msra.mxu0 0.0
    %214 = vmatprep.subr.mxu0 0.0
    %215 = vmatpush1.msra.mxu0 0.0
    %216 = vmatprep.subr.mxu0 0.0
    %217 = vmatpush1.msra.mxu0 0.0
    %218 = vmatprep.subr.mxu0 0.0
    %219 = vmatpush1.msra.mxu0 0.0
    %220 = vmatprep.subr.mxu0 0.0
    %221 = vmatpush1.msra.mxu0 0.0
    %222 = vmatprep.subr.mxu0 0.0
    %223 = vmatpush1.msra.mxu0 0.0
    %224 = vmatprep.subr.mxu0 0.0
    %225 = vmatpush1.msra.mxu0 0.0
    %226 = vmatprep.subr.mxu0 0.0
    %227 = vmatpush1.msra.mxu0 0.0
    %228 = vmatprep.subr.mxu0 0.0
    %229 = vmatpush1.msra.mxu0 0.0
    %230 = vmatprep.subr.mxu0 0.0
    %231 = vmatpush1.msra.mxu0 0.0
    %232 = vmatprep.subr.mxu0 0.0
    %233 = vmatpush1.msra.mxu0 0.0
    %234 = vmatprep.subr.mxu0 0.0
    %235 = vmatpush1.msra.mxu0 0.0
    %236 = vmatprep.subr.mxu0 0.0
    %237 = vmatpush1.msra.mxu0 0.0
    %238 = vmatprep.subr.mxu0 0.0
    %239 = vmatpush1.msra.mxu0 0.0
    %240 = vmatprep.subr.mxu0 0.0
    %241 = vmatpush1.msra.mxu0 0.0
    %242 = vmatprep.subr.mxu0 0.0
    %243 = vmatpush1.msra.mxu0 0.0
    %244 = vmatprep.subr.mxu0 0.0
    %245 = vmatpush1.msra.mxu0 0.0
    %246 = vmatprep.subr.mxu0 0.0
    %247 = vmatpush1.msra.mxu0 0.0
    %248 = vmatprep.subr.mxu0 0.0
    %249 = vmatpush1.msra.mxu0 0.0
    %250 = vmatprep.subr.mxu0 0.0
    %251 = vmatpush1.msra.mxu0 0.0
    %252 = vmatprep.mubr.f32.mxu0 0.0
    %253 = vmatmul.mubr.f32.gmra.mrb[0].mxu0 %v183
    %v254 = vpop.f32.mrb[0].mxu0
    %v255 = vadd.f32 %v179, %v254
    %v256 = vpop.f32.mrb[0].mxu0
    %257 = vmatprep.mubr.f32.mxu0 0.0
    %258 = vmatmul.mubr.f32.gmra.mrb[0].mxu0 %v186
    %v259 = vpop.f32.mrb[0].mxu0
    %v260 = vadd.f32 %v179, %v259
    %v261 = vpop.f32.mrb[0].mxu0
    %262 = vdwg.mxu0
    %v263 = vmul.f32 %v255, 0.35355338
    %v264 = vmul.f32 %v260, 0.35355338
    %s265 = scalar_lea.vmem %s3, 128
    %v266 = vld [vmem:[%s265] sm:$0xff]
    %v267 = vld [vmem:[%s265 + $0x8] sm:$0xff]
    %v268 = vld [vmem:[%s265 + $0x10] sm:$0xff]
    %v269 = vld [vmem:[%s265 + $0x18] sm:$0xff]
    %s270 = scalar_lea.vmem %s4, 4
    %v271 = vld [vmem:[%s270] sm:$0x1]
    %v273 = vlaneseq
    %v274 = vshrl.u32 %v273, 7
    %v275 = vsub.s32 0, %v274
    %v276 = vrot.slane %v271, %v275
    %278 = vmatprep.subr.mxu0 0.0
    %279 = vmatpush1.msra.mxu0 %v266
    %280 = vmatprep.subr.mxu0 0.0
    %281 = vmatpush1.msra.mxu0 %v267
    %282 = vmatprep.subr.mxu0 0.0
    %283 = vmatpush1.msra.mxu0 %v268
    %284 = vmatprep.subr.mxu0 0.0
    %285 = vmatpush1.msra.mxu0 %v269
    %286 = vmatprep.subr.mxu0 0.0
    %287 = vmatpush1.msra.mxu0 0.0
    %288 = vmatprep.subr.mxu0 0.0
    %289 = vmatpush1.msra.mxu0 0.0
    %290 = vmatprep.subr.mxu0 0.0
    %291 = vmatpush1.msra.mxu0 0.0
    %292 = vmatprep.subr.mxu0 0.0
    %293 = vmatpush1.msra.mxu0 0.0
    %294 = vmatprep.subr.mxu0 0.0
    %295 = vmatpush1.msra.mxu0 0.0
    %296 = vmatprep.subr.mxu0 0.0
    %297 = vmatpush1.msra.mxu0 0.0
    %298 = vmatprep.subr.mxu0 0.0
    %299 = vmatpush1.msra.mxu0 0.0
    %300 = vmatprep.subr.mxu0 0.0
    %301 = vmatpush1.msra.mxu0 0.0
    %302 = vmatprep.subr.mxu0 0.0
    %303 = vmatpush1.msra.mxu0 0.0
    %304 = vmatprep.subr.mxu0 0.0
    %305 = vmatpush1.msra.mxu0 0.0
    %306 = vmatprep.subr.mxu0 0.0
    %307 = vmatpush1.msra.mxu0 0.0
    %308 = vmatprep.subr.mxu0 0.0
    %309 = vmatpush1.msra.mxu0 0.0
    %310 = vmatprep.subr.mxu0 0.0
    %311 = vmatpush1.msra.mxu0 0.0
    %312 = vmatprep.subr.mxu0 0.0
    %313 = vmatpush1.msra.mxu0 0.0
    %314 = vmatprep.subr.mxu0 0.0
    %315 = vmatpush1.msra.mxu0 0.0
    %316 = vmatprep.subr.mxu0 0.0
    %317 = vmatpush1.msra.mxu0 0.0
    %318 = vmatprep.subr.mxu0 0.0
    %319 = vmatpush1.msra.mxu0 0.0
    %320 = vmatprep.subr.mxu0 0.0
    %321 = vmatpush1.msra.mxu0 0.0
    %322 = vmatprep.subr.mxu0 0.0
    %323 = vmatpush1.msra.mxu0 0.0
    %324 = vmatprep.subr.mxu0 0.0
    %325 = vmatpush1.msra.mxu0 0.0
    %326 = vmatprep.subr.mxu0 0.0
    %327 = vmatpush1.msra.mxu0 0.0
    %328 = vmatprep.subr.mxu0 0.0
    %329 = vmatpush1.msra.mxu0 0.0
    %330 = vmatprep.subr.mxu0 0.0
    %331 = vmatpush1.msra.mxu0 0.0
    %332 = vmatprep.subr.mxu0 0.0
    %333 = vmatpush1.msra.mxu0 0.0
    %334 = vmatprep.subr.mxu0 0.0
    %335 = vmatpush1.msra.mxu0 0.0
    %336 = vmatprep.subr.mxu0 0.0
    %337 = vmatpush1.msra.mxu0 0.0
    %338 = vmatprep.subr.mxu0 0.0
    %339 = vmatpush1.msra.mxu0 0.0
    %340 = vmatprep.subr.mxu0 0.0
    %341 = vmatpush1.msra.mxu0 0.0
    %342 = vmatprep.mubr.f32.mxu0 0.0
    %343 = vmatmul.mubr.f32.gmra.mrb[0].mxu0 %v183
    %v344 = vpop.f32.mrb[0].mxu0
    %v345 = vadd.f32 %v276, %v344
    %v346 = vpop.f32.mrb[0].mxu0
    %347 = vmatprep.mubr.f32.mxu0 0.0
    %348 = vmatmul.mubr.f32.gmra.mrb[0].mxu0 %v186
    %v349 = vpop.f32.mrb[0].mxu0
    %v350 = vadd.f32 %v276, %v349
    %v351 = vpop.f32.mrb[0].mxu0
    %352 = vdwg.mxu0
    %s353 = scalar_lea.vmem %s3, 256
    %v354 = vld [vmem:[%s353] sm:$0xff]
    %v355 = vld [vmem:[%s353 + $0x8] sm:$0xff]
    %v356 = vld [vmem:[%s353 + $0x10] sm:$0xff]
    %v357 = vld [vmem:[%s353 + $0x18] sm:$0xff]
    %s358 = scalar_lea.vmem %s4, 8
    %v359 = vld [vmem:[%s358] sm:$0x1]
    %v361 = vlaneseq
    %v362 = vshrl.u32 %v361, 7
    %v363 = vsub.s32 0, %v362
    %v364 = vrot.slane %v359, %v363
    %366 = vmatprep.subr.mxu0 0.0
    %367 = vmatpush1.msra.mxu0 %v354
    %368 = vmatprep.subr.mxu0 0.0
    %369 = vmatpush1.msra.mxu0 %v355
    %370 = vmatprep.subr.mxu0 0.0
    %371 = vmatpush1.msra.mxu0 %v356
    %372 = vmatprep.subr.mxu0 0.0
    %373 = vmatpush1.msra.mxu0 %v357
    %374 = vmatprep.subr.mxu0 0.0
    %375 = vmatpush1.msra.mxu0 0.0
    %376 = vmatprep.subr.mxu0 0.0
    %377 = vmatpush1.msra.mxu0 0.0
    %378 = vmatprep.subr.mxu0 0.0
    %379 = vmatpush1.msra.mxu0 0.0
    %380 = vmatprep.subr.mxu0 0.0
    %381 = vmatpush1.msra.mxu0 0.0
    %382 = vmatprep.subr.mxu0 0.0
    %383 = vmatpush1.msra.mxu0 0.0
    %384 = vmatprep.subr.mxu0 0.0
    %385 = vmatpush1.msra.mxu0 0.0
    %386 = vmatprep.subr.mxu0 0.0
    %387 = vmatpush1.msra.mxu0 0.0
    %388 = vmatprep.subr.mxu0 0.0
    %389 = vmatpush1.msra.mxu0 0.0
    %390 = vmatprep.subr.mxu0 0.0
    %391 = vmatpush1.msra.mxu0 0.0
    %392 = vmatprep.subr.mxu0 0.0
    %393 = vmatpush1.msra.mxu0 0.0
    %394 = vmatprep.subr.mxu0 0.0
    %395 = vmatpush1.msra.mxu0 0.0
    %396 = vmatprep.subr.mxu0 0.0
    %397 = vmatpush1.msra.mxu0 0.0
    %398 = vmatprep.subr.mxu0 0.0
    %399 = vmatpush1.msra.mxu0 0.0
    %400 = vmatprep.subr.mxu0 0.0
    %401 = vmatpush1.msra.mxu0 0.0
    %402 = vmatprep.subr.mxu0 0.0
    %403 = vmatpush1.msra.mxu0 0.0
    %404 = vmatprep.subr.mxu0 0.0
    %405 = vmatpush1.msra.mxu0 0.0
    %406 = vmatprep.subr.mxu0 0.0
    %407 = vmatpush1.msra.mxu0 0.0
    %408 = vmatprep.subr.mxu0 0.0
    %409 = vmatpush1.msra.mxu0 0.0
    %410 = vmatprep.subr.mxu0 0.0
    %411 = vmatpush1.msra.mxu0 0.0
    %412 = vmatprep.subr.mxu0 0.0
    %413 = vmatpush1.msra.mxu0 0.0
    %414 = vmatprep.subr.mxu0 0.0
    %415 = vmatpush1.msra.mxu0 0.0
    %416 = vmatprep.subr.mxu0 0.0
    %417 = vmatpush1.msra.mxu0 0.0
    %418 = vmatprep.subr.mxu0 0.0
    %419 = vmatpush1.msra.mxu0 0.0
    %420 = vmatprep.subr.mxu0 0.0
    %421 = vmatpush1.msra.mxu0 0.0
    %422 = vmatprep.subr.mxu0 0.0
    %423 = vmatpush1.msra.mxu0 0.0
    %424 = vmatprep.subr.mxu0 0.0
    %425 = vmatpush1.msra.mxu0 0.0
    %426 = vmatprep.subr.mxu0 0.0
    %427 = vmatpush1.msra.mxu0 0.0
    %428 = vmatprep.subr.mxu0 0.0
    %429 = vmatpush1.msra.mxu0 0.0
    %430 = vmatprep.mubr.f32.mxu0 0.0
    %431 = vmatmul.mubr.f32.gmra.mrb[0].mxu0 %v183
    %v432 = vpop.f32.mrb[0].mxu0
    %v433 = vadd.f32 %v364, %v432
    %v434 = vpop.f32.mrb[0].mxu0
    %435 = vmatprep.mubr.f32.mxu0 0.0
    %436 = vmatmul.mubr.f32.gmra.mrb[0].mxu0 %v186
    %v437 = vpop.f32.mrb[0].mxu0
    %v438 = vadd.f32 %v364, %v437
    %v439 = vpop.f32.mrb[0].mxu0
    %440 = vdwg.mxu0
    %vm441 = vcmask 64512
    %v443 = vsel %vm441, %v263, 0
    %v446 = vsel %vm441, %v345, 0
    %448 = vmatprep.subr.mxu0 0.0
    %449 = vmatpush1.xpose.msra.mxu0 %v446
    %450 = vmatprep.subr.mxu0 0.0
    %451 = vmatpush1.xpose.msra.mxu0 0.0
    %452 = vmatprep.subr.mxu0 0.0
    %453 = vmatpush1.xpose.msra.mxu0 0.0
    %454 = vmatprep.subr.mxu0 0.0
    %455 = vmatpush1.xpose.msra.mxu0 0.0
    %456 = vmatprep.subr.mxu0 0.0
    %457 = vmatpush1.xpose.msra.mxu0 0.0
    %458 = vmatprep.subr.mxu0 0.0
    %459 = vmatpush1.xpose.msra.mxu0 0.0
    %460 = vmatprep.subr.mxu0 0.0
    %461 = vmatpush1.xpose.msra.mxu0 0.0
    %462 = vmatprep.subr.mxu0 0.0
    %463 = vmatpush1.xpose.msra.mxu0 0.0
    %464 = vmatprep.subr.mxu0 0.0
    %465 = vmatpush1.xpose.msra.mxu0 0.0
    %466 = vmatprep.subr.mxu0 0.0
    %467 = vmatpush1.xpose.msra.mxu0 0.0
    %468 = vmatprep.subr.mxu0 0.0
    %469 = vmatpush1.xpose.msra.mxu0 0.0
    %470 = vmatprep.subr.mxu0 0.0
    %471 = vmatpush1.xpose.msra.mxu0 0.0
    %472 = vmatprep.subr.mxu0 0.0
    %473 = vmatpush1.xpose.msra.mxu0 0.0
    %474 = vmatprep.subr.mxu0 0.0
    %475 = vmatpush1.xpose.msra.mxu0 0.0
    %476 = vmatprep.subr.mxu0 0.0
    %477 = vmatpush1.xpose.msra.mxu0 0.0
    %478 = vmatprep.subr.mxu0 0.0
    %479 = vmatpush1.xpose.msra.mxu0 0.0
    %480 = vmatprep.subr.mxu0 0.0
    %481 = vmatpush1.xpose.msra.mxu0 0.0
    %482 = vmatprep.subr.mxu0 0.0
    %483 = vmatpush1.xpose.msra.mxu0 0.0
    %484 = vmatprep.subr.mxu0 0.0
    %485 = vmatpush1.xpose.msra.mxu0 0.0
    %486 = vmatprep.subr.mxu0 0.0
    %487 = vmatpush1.xpose.msra.mxu0 0.0
    %488 = vmatprep.subr.mxu0 0.0
    %489 = vmatpush1.xpose.msra.mxu0 0.0
    %490 = vmatprep.subr.mxu0 0.0
    %491 = vmatpush1.xpose.msra.mxu0 0.0
    %492 = vmatprep.subr.mxu0 0.0
    %493 = vmatpush1.xpose.msra.mxu0 0.0
    %494 = vmatprep.subr.mxu0 0.0
    %495 = vmatpush1.xpose.msra.mxu0 0.0
    %496 = vmatprep.subr.mxu0 0.0
    %497 = vmatpush1.xpose.msra.mxu0 0.0
    %498 = vmatprep.subr.mxu0 0.0
    %499 = vmatpush1.xpose.msra.mxu0 0.0
    %500 = vmatprep.subr.mxu0 0.0
    %501 = vmatpush1.xpose.msra.mxu0 0.0
    %502 = vmatprep.subr.mxu0 0.0
    %503 = vmatpush1.xpose.msra.mxu0 0.0
    %504 = vmatprep.subr.mxu0 0.0
    %505 = vmatpush1.xpose.msra.mxu0 0.0
    %506 = vmatprep.subr.mxu0 0.0
    %507 = vmatpush1.xpose.msra.mxu0 0.0
    %508 = vmatprep.subr.mxu0 0.0
    %509 = vmatpush1.xpose.msra.mxu0 0.0
    %510 = vmatprep.subr.mxu0 0.0
    %511 = vmatpush1.xpose.msra.mxu0 0.0
    %512 = vmatprep.mubr.f32.mxu0 0.0
    %513 = vmatmul.mubr.f32.gmra.mrb[0].mxu0 %v443
    %v514 = vpop.f32.mrb[0].mxu0
    %v515 = vadd.f32 0.0, %v514
    %v516 = vpop.f32.mrb[0].mxu0
    %517 = vdwg.mxu0
    %v519 = vsel %vm441, %v264, 0
    %v522 = vsel %vm441, %v350, 0
    %524 = vmatprep.subr.mxu0 0.0
    %525 = vmatpush1.xpose.msra.mxu0 %v522
    %526 = vmatprep.subr.mxu0 0.0
    %527 = vmatpush1.xpose.msra.mxu0 0.0
    %528 = vmatprep.subr.mxu0 0.0
    %529 = vmatpush1.xpose.msra.mxu0 0.0
    %530 = vmatprep.subr.mxu0 0.0
    %531 = vmatpush1.xpose.msra.mxu0 0.0
    %532 = vmatprep.subr.mxu0 0.0
    %533 = vmatpush1.xpose.msra.mxu0 0.0
    %534 = vmatprep.subr.mxu0 0.0
    %535 = vmatpush1.xpose.msra.mxu0 0.0
    %536 = vmatprep.subr.mxu0 0.0
    %537 = vmatpush1.xpose.msra.mxu0 0.0
    %538 = vmatprep.subr.mxu0 0.0
    %539 = vmatpush1.xpose.msra.mxu0 0.0
    %540 = vmatprep.subr.mxu0 0.0
    %541 = vmatpush1.xpose.msra.mxu0 0.0
    %542 = vmatprep.subr.mxu0 0.0
    %543 = vmatpush1.xpose.msra.mxu0 0.0
    %544 = vmatprep.subr.mxu0 0.0
    %545 = vmatpush1.xpose.msra.mxu0 0.0
    %546 = vmatprep.subr.mxu0 0.0
    %547 = vmatpush1.xpose.msra.mxu0 0.0
    %548 = vmatprep.subr.mxu0 0.0
    %549 = vmatpush1.xpose.msra.mxu0 0.0
    %550 = vmatprep.subr.mxu0 0.0
    %551 = vmatpush1.xpose.msra.mxu0 0.0
    %552 = vmatprep.subr.mxu0 0.0
    %553 = vmatpush1.xpose.msra.mxu0 0.0
    %554 = vmatprep.subr.mxu0 0.0
    %555 = vmatpush1.xpose.msra.mxu0 0.0
    %556 = vmatprep.subr.mxu0 0.0
    %557 = vmatpush1.xpose.msra.mxu0 0.0
    %558 = vmatprep.subr.mxu0 0.0
    %559 = vmatpush1.xpose.msra.mxu0 0.0
    %560 = vmatprep.subr.mxu0 0.0
    %561 = vmatpush1.xpose.msra.mxu0 0.0
    %562 = vmatprep.subr.mxu0 0.0
    %563 = vmatpush1.xpose.msra.mxu0 0.0
    %564 = vmatprep.subr.mxu0 0.0
    %565 = vmatpush1.xpose.msra.mxu0 0.0
    %566 = vmatprep.subr.mxu0 0.0
    %567 = vmatpush1.xpose.msra.mxu0 0.0
    %568 = vmatprep.subr.mxu0 0.0
    %569 = vmatpush1.xpose.msra.mxu0 0.0
    %570 = vmatprep.subr.mxu0 0.0
    %571 = vmatpush1.xpose.msra.mxu0 0.0
    %572 = vmatprep.subr.mxu0 0.0
    %573 = vmatpush1.xpose.msra.mxu0 0.0
    %574 = vmatprep.subr.mxu0 0.0
    %575 = vmatpush1.xpose.msra.mxu0 0.0
    %576 = vmatprep.subr.mxu0 0.0
    %577 = vmatpush1.xpose.msra.mxu0 0.0
    %578 = vmatprep.subr.mxu0 0.0
    %579 = vmatpush1.xpose.msra.mxu0 0.0
    %580 = vmatprep.subr.mxu0 0.0
    %581 = vmatpush1.xpose.msra.mxu0 0.0
    %582 = vmatprep.subr.mxu0 0.0
    %583 = vmatpush1.xpose.msra.mxu0 0.0
    %584 = vmatprep.subr.mxu0 0.0
    %585 = vmatpush1.xpose.msra.mxu0 0.0
    %586 = vmatprep.subr.mxu0 0.0
    %587 = vmatpush1.xpose.msra.mxu0 0.0
    %588 = vmatprep.mubr.f32.mxu0 0.0
    %589 = vmatmul.mubr.f32.gmra.mrb[0].mxu0 %v519
    %v590 = vpop.f32.mrb[0].mxu0
    %v591 = vadd.f32 0.0, %v590
    %v592 = vpop.f32.mrb[0].mxu0
    %593 = vdwg.mxu0
    %v594 = vsel %vm441, %v515, -inf
    %595 = vmax.xlane.f32.xlu0 %v594
    %v596 = vpop.xlane.xlu0 %595
    %v597 = vsel %vm441, %v591, -inf
    %598 = vmax.xlane.f32.xlu0 %v597
    %v599 = vpop.xlane.xlu0 %598
    %v600 = vsub.f32 %v515, %v596
    %v601 = vsub.f32 %v591, %v599
    %v602 = vmul.f32 %v600, 1.442695
    %v603 = vpow.pop %v602
    %v604 = vmul.f32 %v601, 1.442695
    %v605 = vpow.pop %v604
    %v606 = vsel %vm441, %v603, 0.0
    %607 = vadd.xlane.f32.xlu0 %v606
    %v608 = vpop.xlane.xlu0 %607
    %v609 = vsel %vm441, %v605, 0.0
    %610 = vadd.xlane.f32.xlu0 %v609
    %v611 = vpop.xlane.xlu0 %610
    %v612 = vrcp.pop %v608
    %v613 = vmul.f32 %v603, %v612
    %v614 = vrcp.pop %v611
    %v615 = vmul.f32 %v605, %v614
    %v617 = vsel %vm441, %v613, 0
    %619 = vmatprep.subr.mxu0 0.0
    %620 = vmatpush1.msra.mxu0 %v433
    %621 = vmatprep.subr.mxu0 0.0
    %622 = vmatpush1.msra.mxu0 0.0
    %623 = vmatprep.subr.mxu0 0.0
    %624 = vmatpush1.msra.mxu0 0.0
    %625 = vmatprep.subr.mxu0 0.0
    %626 = vmatpush1.msra.mxu0 0.0
    %627 = vmatprep.subr.mxu0 0.0
    %628 = vmatpush1.msra.mxu0 0.0
    %629 = vmatprep.subr.mxu0 0.0
    %630 = vmatpush1.msra.mxu0 0.0
    %631 = vmatprep.subr.mxu0 0.0
    %632 = vmatpush1.msra.mxu0 0.0
    %633 = vmatprep.subr.mxu0 0.0
    %634 = vmatpush1.msra.mxu0 0.0
    %635 = vmatprep.subr.mxu0 0.0
    %636 = vmatpush1.msra.mxu0 0.0
    %637 = vmatprep.subr.mxu0 0.0
    %638 = vmatpush1.msra.mxu0 0.0
    %639 = vmatprep.subr.mxu0 0.0
    %640 = vmatpush1.msra.mxu0 0.0
    %641 = vmatprep.subr.mxu0 0.0
    %642 = vmatpush1.msra.mxu0 0.0
    %643 = vmatprep.subr.mxu0 0.0
    %644 = vmatpush1.msra.mxu0 0.0
    %645 = vmatprep.subr.mxu0 0.0
    %646 = vmatpush1.msra.mxu0 0.0
    %647 = vmatprep.subr.mxu0 0.0
    %648 = vmatpush1.msra.mxu0 0.0
    %649 = vmatprep.subr.mxu0 0.0
    %650 = vmatpush1.msra.mxu0 0.0
    %651 = vmatprep.subr.mxu0 0.0
    %652 = vmatpush1.msra.mxu0 0.0
    %653 = vmatprep.subr.mxu0 0.0
    %654 = vmatpush1.msra.mxu0 0.0
    %655 = vmatprep.subr.mxu0 0.0
    %656 = vmatpush1.msra.mxu0 0.0
    %657 = vmatprep.subr.mxu0 0.0
    %658 = vmatpush1.msra.mxu0 0.0
    %659 = vmatprep.subr.mxu0 0.0
    %660 = vmatpush1.msra.mxu0 0.0
    %661 = vmatprep.subr.mxu0 0.0
    %662 = vmatpush1.msra.mxu0 0.0
    %663 = vmatprep.subr.mxu0 0.0
    %664 = vmatpush1.msra.mxu0 0.0
    %665 = vmatprep.subr.mxu0 0.0
    %666 = vmatpush1.msra.mxu0 0.0
    %667 = vmatprep.subr.mxu0 0.0
    %668 = vmatpush1.msra.mxu0 0.0
    %669 = vmatprep.subr.mxu0 0.0
    %670 = vmatpush1.msra.mxu0 0.0
    %671 = vmatprep.subr.mxu0 0.0
    %672 = vmatpush1.msra.mxu0 0.0
    %673 = vmatprep.subr.mxu0 0.0
    %674 = vmatpush1.msra.mxu0 0.0
    %675 = vmatprep.subr.mxu0 0.0
    %676 = vmatpush1.msra.mxu0 0.0
    %677 = vmatprep.subr.mxu0 0.0
    %678 = vmatpush1.msra.mxu0 0.0
    %679 = vmatprep.subr.mxu0 0.0
    %680 = vmatpush1.msra.mxu0 0.0
    %681 = vmatprep.subr.mxu0 0.0
    %682 = vmatpush1.msra.mxu0 0.0
    %683 = vmatprep.mubr.f32.mxu0 0.0
    %684 = vmatmul.mubr.f32.gmra.mrb[0].mxu0 %v617
    %v685 = vpop.f32.mrb[0].mxu0
    %v686 = vadd.f32 0.0, %v685
    %v687 = vpop.f32.mrb[0].mxu0
    %688 = vdwg.mxu0
    %v690 = vsel %vm441, %v615, 0
    %692 = vmatprep.subr.mxu0 0.0
    %693 = vmatpush1.msra.mxu0 %v438
    %694 = vmatprep.subr.mxu0 0.0
    %695 = vmatpush1.msra.mxu0 0.0
    %696 = vmatprep.subr.mxu0 0.0
    %697 = vmatpush1.msra.mxu0 0.0
    %698 = vmatprep.subr.mxu0 0.0
    %699 = vmatpush1.msra.mxu0 0.0
    %700 = vmatprep.subr.mxu0 0.0
    %701 = vmatpush1.msra.mxu0 0.0
    %702 = vmatprep.subr.mxu0 0.0
    %703 = vmatpush1.msra.mxu0 0.0
    %704 = vmatprep.subr.mxu0 0.0
    %705 = vmatpush1.msra.mxu0 0.0
    %706 = vmatprep.subr.mxu0 0.0
    %707 = vmatpush1.msra.mxu0 0.0
    %708 = vmatprep.subr.mxu0 0.0
    %709 = vmatpush1.msra.mxu0 0.0
    %710 = vmatprep.subr.mxu0 0.0
    %711 = vmatpush1.msra.mxu0 0.0
    %712 = vmatprep.subr.mxu0 0.0
    %713 = vmatpush1.msra.mxu0 0.0
    %714 = vmatprep.subr.mxu0 0.0
    %715 = vmatpush1.msra.mxu0 0.0
    %716 = vmatprep.subr.mxu0 0.0
    %717 = vmatpush1.msra.mxu0 0.0
    %718 = vmatprep.subr.mxu0 0.0
    %719 = vmatpush1.msra.mxu0 0.0
    %720 = vmatprep.subr.mxu0 0.0
    %721 = vmatpush1.msra.mxu0 0.0
    %722 = vmatprep.subr.mxu0 0.0
    %723 = vmatpush1.msra.mxu0 0.0
    %724 = vmatprep.subr.mxu0 0.0
    %725 = vmatpush1.msra.mxu0 0.0
    %726 = vmatprep.subr.mxu0 0.0
    %727 = vmatpush1.msra.mxu0 0.0
    %728 = vmatprep.subr.mxu0 0.0
    %729 = vmatpush1.msra.mxu0 0.0
    %730 = vmatprep.subr.mxu0 0.0
    %731 = vmatpush1.msra.mxu0 0.0
    %732 = vmatprep.subr.mxu0 0.0
    %733 = vmatpush1.msra.mxu0 0.0
    %734 = vmatprep.subr.mxu0 0.0
    %735 = vmatpush1.msra.mxu0 0.0
    %736 = vmatprep.subr.mxu0 0.0
    %737 = vmatpush1.msra.mxu0 0.0
    %738 = vmatprep.subr.mxu0 0.0
    %739 = vmatpush1.msra.mxu0 0.0
    %740 = vmatprep.subr.mxu0 0.0
    %741 = vmatpush1.msra.mxu0 0.0
    %742 = vmatprep.subr.mxu0 0.0
    %743 = vmatpush1.msra.mxu0 0.0
    %744 = vmatprep.subr.mxu0 0.0
    %745 = vmatpush1.msra.mxu0 0.0
    %746 = vmatprep.subr.mxu0 0.0
    %747 = vmatpush1.msra.mxu0 0.0
    %748 = vmatprep.subr.mxu0 0.0
    %749 = vmatpush1.msra.mxu0 0.0
    %750 = vmatprep.subr.mxu0 0.0
    %751 = vmatpush1.msra.mxu0 0.0
    %752 = vmatprep.subr.mxu0 0.0
    %753 = vmatpush1.msra.mxu0 0.0
    %754 = vmatprep.subr.mxu0 0.0
    %755 = vmatpush1.msra.mxu0 0.0
    %756 = vmatprep.mubr.f32.mxu0 0.0
    %757 = vmatmul.mubr.f32.gmra.mrb[0].mxu0 %v690
    %v758 = vpop.f32.mrb[0].mxu0
    %v759 = vadd.f32 0.0, %v758
    %v760 = vpop.f32.mrb[0].mxu0
    %761 = vdwg.mxu0
    %v762 = vld [vmem:[%s5] sm:$0xff]
    %s763 = scalar_lea.vmem %s3, 32
    %v764 = vld [vmem:[%s763] sm:$0xff]
    %v765 = vld [vmem:[%s763 + $0x8] sm:$0xff]
    %v766 = vld [vmem:[%s763 + $0x10] sm:$0xff]
    %v767 = vld [vmem:[%s763 + $0x18] sm:$0xff]
    %s768 = scalar_lea.vmem %s4, 1
    %v769 = vld [vmem:[%s768] sm:$0x1]
    %v771 = vlaneseq
    %v772 = vshrl.u32 %v771, 7
    %v773 = vsub.s32 0, %v772
    %v774 = vrot.slane %v769, %v773
    %776 = vmatprep.subr.mxu0 0.0
    %777 = vmatpush1.msra.mxu0 %v764
    %778 = vmatprep.subr.mxu0 0.0
    %779 = vmatpush1.msra.mxu0 %v765
    %780 = vmatprep.subr.mxu0 0.0
    %781 = vmatpush1.msra.mxu0 %v766
    %782 = vmatprep.subr.mxu0 0.0
    %783 = vmatpush1.msra.mxu0 %v767
    %784 = vmatprep.subr.mxu0 0.0
    %785 = vmatpush1.msra.mxu0 0.0
    %786 = vmatprep.subr.mxu0 0.0
    %787 = vmatpush1.msra.mxu0 0.0
    %788 = vmatprep.subr.mxu0 0.0
    %789 = vmatpush1.msra.mxu0 0.0
    %790 = vmatprep.subr.mxu0 0.0
    %791 = vmatpush1.msra.mxu0 0.0
    %792 = vmatprep.subr.mxu0 0.0
    %793 = vmatpush1.msra.mxu0 0.0
    %794 = vmatprep.subr.mxu0 0.0
    %795 = vmatpush1.msra.mxu0 0.0
    %796 = vmatprep.subr.mxu0 0.0
    %797 = vmatpush1.msra.mxu0 0.0
    %798 = vmatprep.subr.mxu0 0.0
    %799 = vmatpush1.msra.mxu0 0.0
    %800 = vmatprep.subr.mxu0 0.0
    %801 = vmatpush1.msra.mxu0 0.0
    %802 = vmatprep.subr.mxu0 0.0
    %803 = vmatpush1.msra.mxu0 0.0
    %804 = vmatprep.subr.mxu0 0.0
    %805 = vmatpush1.msra.mxu0 0.0
    %806 = vmatprep.subr.mxu0 0.0
    %807 = vmatpush1.msra.mxu0 0.0
    %808 = vmatprep.subr.mxu0 0.0
    %809 = vmatpush1.msra.mxu0 0.0
    %810 = vmatprep.subr.mxu0 0.0
    %811 = vmatpush1.msra.mxu0 0.0
    %812 = vmatprep.subr.mxu0 0.0
    %813 = vmatpush1.msra.mxu0 0.0
    %814 = vmatprep.subr.mxu0 0.0
    %815 = vmatpush1.msra.mxu0 0.0
    %816 = vmatprep.subr.mxu0 0.0
    %817 = vmatpush1.msra.mxu0 0.0
    %818 = vmatprep.subr.mxu0 0.0
    %819 = vmatpush1.msra.mxu0 0.0
    %820 = vmatprep.subr.mxu0 0.0
    %821 = vmatpush1.msra.mxu0 0.0
    %822 = vmatprep.subr.mxu0 0.0
    %823 = vmatpush1.msra.mxu0 0.0
    %824 = vmatprep.subr.mxu0 0.0
    %825 = vmatpush1.msra.mxu0 0.0
    %826 = vmatprep.subr.mxu0 0.0
    %827 = vmatpush1.msra.mxu0 0.0
    %828 = vmatprep.subr.mxu0 0.0
    %829 = vmatpush1.msra.mxu0 0.0
    %830 = vmatprep.subr.mxu0 0.0
    %831 = vmatpush1.msra.mxu0 0.0
    %832 = vmatprep.subr.mxu0 0.0
    %833 = vmatpush1.msra.mxu0 0.0
    %834 = vmatprep.subr.mxu0 0.0
    %835 = vmatpush1.msra.mxu0 0.0
    %836 = vmatprep.subr.mxu0 0.0
    %837 = vmatpush1.msra.mxu0 0.0
    %838 = vmatprep.subr.mxu0 0.0
    %839 = vmatpush1.msra.mxu0 0.0
    %840 = vmatprep.mubr.f32.mxu0 0.0
    %841 = vmatmul.mubr.f32.gmra.mrb[0].mxu0 %v183
    %v842 = vpop.f32.mrb[0].mxu0
    %v843 = vadd.f32 %v774, %v842
    %v844 = vpop.f32.mrb[0].mxu0
    %845 = vmatprep.mubr.f32.mxu0 0.0
    %846 = vmatmul.mubr.f32.gmra.mrb[0].mxu0 %v186
    %v847 = vpop.f32.mrb[0].mxu0
    %v848 = vadd.f32 %v774, %v847
    %v849 = vpop.f32.mrb[0].mxu0
    %850 = vdwg.mxu0
    %v851 = vmul.f32 %v843, 0.35355338
    %v852 = vmul.f32 %v848, 0.35355338
    %s853 = scalar_lea.vmem %s3, 160
    %v854 = vld [vmem:[%s853] sm:$0xff]
    %v855 = vld [vmem:[%s853 + $0x8] sm:$0xff]
    %v856 = vld [vmem:[%s853 + $0x10] sm:$0xff]
    %v857 = vld [vmem:[%s853 + $0x18] sm:$0xff]
    %s858 = scalar_lea.vmem %s4, 5
    %v859 = vld [vmem:[%s858] sm:$0x1]
    %v861 = vlaneseq
    %v862 = vshrl.u32 %v861, 7
    %v863 = vsub.s32 0, %v862
    %v864 = vrot.slane %v859, %v863
    %866 = vmatprep.subr.mxu0 0.0
    %867 = vmatpush1.msra.mxu0 %v854
    %868 = vmatprep.subr.mxu0 0.0
    %869 = vmatpush1.msra.mxu0 %v855
    %870 = vmatprep.subr.mxu0 0.0
    %871 = vmatpush1.msra.mxu0 %v856
    %872 = vmatprep.subr.mxu0 0.0
    %873 = vmatpush1.msra.mxu0 %v857
    %874 = vmatprep.subr.mxu0 0.0
    %875 = vmatpush1.msra.mxu0 0.0
    %876 = vmatprep.subr.mxu0 0.0
    %877 = vmatpush1.msra.mxu0 0.0
    %878 = vmatprep.subr.mxu0 0.0
    %879 = vmatpush1.msra.mxu0 0.0
    %880 = vmatprep.subr.mxu0 0.0
    %881 = vmatpush1.msra.mxu0 0.0
    %882 = vmatprep.subr.mxu0 0.0
    %883 = vmatpush1.msra.mxu0 0.0
    %884 = vmatprep.subr.mxu0 0.0
    %885 = vmatpush1.msra.mxu0 0.0
    %886 = vmatprep.subr.mxu0 0.0
    %887 = vmatpush1.msra.mxu0 0.0
    %888 = vmatprep.subr.mxu0 0.0
    %889 = vmatpush1.msra.mxu0 0.0
    %890 = vmatprep.subr.mxu0 0.0
    %891 = vmatpush1.msra.mxu0 0.0
    %892 = vmatprep.subr.mxu0 0.0
    %893 = vmatpush1.msra.mxu0 0.0
    %894 = vmatprep.subr.mxu0 0.0
    %895 = vmatpush1.msra.mxu0 0.0
    %896 = vmatprep.subr.mxu0 0.0
    %897 = vmatpush1.msra.mxu0 0.0
    %898 = vmatprep.subr.mxu0 0.0
    %899 = vmatpush1.msra.mxu0 0.0
    %900 = vmatprep.subr.mxu0 0.0
    %901 = vmatpush1.msra.mxu0 0.0
    %902 = vmatprep.subr.mxu0 0.0
    %903 = vmatpush1.msra.mxu0 0.0
    %904 = vmatprep.subr.mxu0 0.0
    %905 = vmatpush1.msra.mxu0 0.0
    %906 = vmatprep.subr.mxu0 0.0
    %907 = vmatpush1.msra.mxu0 0.0
    %908 = vmatprep.subr.mxu0 0.0
    %909 = vmatpush1.msra.mxu0 0.0
    %910 = vmatprep.subr.mxu0 0.0
    %911 = vmatpush1.msra.mxu0 0.0
    %912 = vmatprep.subr.mxu0 0.0
    %913 = vmatpush1.msra.mxu0 0.0
    %914 = vmatprep.subr.mxu0 0.0
    %915 = vmatpush1.msra.mxu0 0.0
    %916 = vmatprep.subr.mxu0 0.0
    %917 = vmatpush1.msra.mxu0 0.0
    %918 = vmatprep.subr.mxu0 0.0
    %919 = vmatpush1.msra.mxu0 0.0
    %920 = vmatprep.subr.mxu0 0.0
    %921 = vmatpush1.msra.mxu0 0.0
    %922 = vmatprep.subr.mxu0 0.0
    %923 = vmatpush1.msra.mxu0 0.0
    %924 = vmatprep.subr.mxu0 0.0
    %925 = vmatpush1.msra.mxu0 0.0
    %926 = vmatprep.subr.mxu0 0.0
    %927 = vmatpush1.msra.mxu0 0.0
    %928 = vmatprep.subr.mxu0 0.0
    %929 = vmatpush1.msra.mxu0 0.0
    %930 = vmatprep.mubr.f32.mxu0 0.0
    %931 = vmatmul.mubr.f32.gmra.mrb[0].mxu0 %v183
    %v932 = vpop.f32.mrb[0].mxu0
    %v933 = vadd.f32 %v864, %v932
    %v934 = vpop.f32.mrb[0].mxu0
    %935 = vmatprep.mubr.f32.mxu0 0.0
    %936 = vmatmul.mubr.f32.gmra.mrb[0].mxu0 %v186
    %v937 = vpop.f32.mrb[0].mxu0
    %v938 = vadd.f32 %v864, %v937
    %v939 = vpop.f32.mrb[0].mxu0
    %940 = vdwg.mxu0
    %s941 = scalar_lea.vmem %s3, 288
    %v942 = vld [vmem:[%s941] sm:$0xff]
    %v943 = vld [vmem:[%s941 + $0x8] sm:$0xff]
    %v944 = vld [vmem:[%s941 + $0x10] sm:$0xff]
    %v945 = vld [vmem:[%s941 + $0x18] sm:$0xff]
    %s946 = scalar_lea.vmem %s4, 9
    %v947 = vld [vmem:[%s946] sm:$0x1]
    %v949 = vlaneseq
    %v950 = vshrl.u32 %v949, 7
    %v951 = vsub.s32 0, %v950
    %v952 = vrot.slane %v947, %v951
    %954 = vmatprep.subr.mxu0 0.0
    %955 = vmatpush1.msra.mxu0 %v942
    %956 = vmatprep.subr.mxu0 0.0
    %957 = vmatpush1.msra.mxu0 %v943
    %958 = vmatprep.subr.mxu0 0.0
    %959 = vmatpush1.msra.mxu0 %v944
    %960 = vmatprep.subr.mxu0 0.0
    %961 = vmatpush1.msra.mxu0 %v945
    %962 = vmatprep.subr.mxu0 0.0
    %963 = vmatpush1.msra.mxu0 0.0
    %964 = vmatprep.subr.mxu0 0.0
    %965 = vmatpush1.msra.mxu0 0.0
    %966 = vmatprep.subr.mxu0 0.0
    %967 = vmatpush1.msra.mxu0 0.0
    %968 = vmatprep.subr.mxu0 0.0
    %969 = vmatpush1.msra.mxu0 0.0
    %970 = vmatprep.subr.mxu0 0.0
    %971 = vmatpush1.msra.mxu0 0.0
    %972 = vmatprep.subr.mxu0 0.0
    %973 = vmatpush1.msra.mxu0 0.0
    %974 = vmatprep.subr.mxu0 0.0
    %975 = vmatpush1.msra.mxu0 0.0
    %976 = vmatprep.subr.mxu0 0.0
    %977 = vmatpush1.msra.mxu0 0.0
    %978 = vmatprep.subr.mxu0 0.0
    %979 = vmatpush1.msra.mxu0 0.0
    %980 = vmatprep.subr.mxu0 0.0
    %981 = vmatpush1.msra.mxu0 0.0
    %982 = vmatprep.subr.mxu0 0.0
    %983 = vmatpush1.msra.mxu0 0.0
    %984 = vmatprep.subr.mxu0 0.0
    %985 = vmatpush1.msra.mxu0 0.0
    %986 = vmatprep.subr.mxu0 0.0
    %987 = vmatpush1.msra.mxu0 0.0
    %988 = vmatprep.subr.mxu0 0.0
    %989 = vmatpush1.msra.mxu0 0.0
    %990 = vmatprep.subr.mxu0 0.0
    %991 = vmatpush1.msra.mxu0 0.0
    %992 = vmatprep.subr.mxu0 0.0
    %993 = vmatpush1.msra.mxu0 0.0
    %994 = vmatprep.subr.mxu0 0.0
    %995 = vmatpush1.msra.mxu0 0.0
    %996 = vmatprep.subr.mxu0 0.0
    %997 = vmatpush1.msra.mxu0 0.0
    %998 = vmatprep.subr.mxu0 0.0
    %999 = vmatpush1.msra.mxu0 0.0
    %1000 = vmatprep.subr.mxu0 0.0
    %1001 = vmatpush1.msra.mxu0 0.0
    %1002 = vmatprep.subr.mxu0 0.0
    %1003 = vmatpush1.msra.mxu0 0.0
    %1004 = vmatprep.subr.mxu0 0.0
    %1005 = vmatpush1.msra.mxu0 0.0
    %1006 = vmatprep.subr.mxu0 0.0
    %1007 = vmatpush1.msra.mxu0 0.0
    %1008 = vmatprep.subr.mxu0 0.0
    %1009 = vmatpush1.msra.mxu0 0.0
    %1010 = vmatprep.subr.mxu0 0.0
    %1011 = vmatpush1.msra.mxu0 0.0
    %1012 = vmatprep.subr.mxu0 0.0
    %1013 = vmatpush1.msra.mxu0 0.0
    %1014 = vmatprep.subr.mxu0 0.0
    %1015 = vmatpush1.msra.mxu0 0.0
    %1016 = vmatprep.subr.mxu0 0.0
    %1017 = vmatpush1.msra.mxu0 0.0
    %1018 = vmatprep.mubr.f32.mxu0 0.0
    %1019 = vmatmul.mubr.f32.gmra.mrb[0].mxu0 %v183
    %v1020 = vpop.f32.mrb[0].mxu0
    %v1021 = vadd.f32 %v952, %v1020
    %v1022 = vpop.f32.mrb[0].mxu0
    %1023 = vmatprep.mubr.f32.mxu0 0.0
    %1024 = vmatmul.mubr.f32.gmra.mrb[0].mxu0 %v186
    %v1025 = vpop.f32.mrb[0].mxu0
    %v1026 = vadd.f32 %v952, %v1025
    %v1027 = vpop.f32.mrb[0].mxu0
    %1028 = vdwg.mxu0
    %v1030 = vsel %vm441, %v851, 0
    %v1033 = vsel %vm441, %v933, 0
    %1035 = vmatprep.subr.mxu0 0.0
    %1036 = vmatpush1.xpose.msra.mxu0 %v1033
    %1037 = vmatprep.subr.mxu0 0.0
    %1038 = vmatpush1.xpose.msra.mxu0 0.0
    %1039 = vmatprep.subr.mxu0 0.0
    %1040 = vmatpush1.xpose.msra.mxu0 0.0
    %1041 = vmatprep.subr.mxu0 0.0
    %1042 = vmatpush1.xpose.msra.mxu0 0.0
    %1043 = vmatprep.subr.mxu0 0.0
    %1044 = vmatpush1.xpose.msra.mxu0 0.0
    %1045 = vmatprep.subr.mxu0 0.0
    %1046 = vmatpush1.xpose.msra.mxu0 0.0
    %1047 = vmatprep.subr.mxu0 0.0
    %1048 = vmatpush1.xpose.msra.mxu0 0.0
    %1049 = vmatprep.subr.mxu0 0.0
    %1050 = vmatpush1.xpose.msra.mxu0 0.0
    %1051 = vmatprep.subr.mxu0 0.0
    %1052 = vmatpush1.xpose.msra.mxu0 0.0
    %1053 = vmatprep.subr.mxu0 0.0
    %1054 = vmatpush1.xpose.msra.mxu0 0.0
    %1055 = vmatprep.subr.mxu0 0.0
    %1056 = vmatpush1.xpose.msra.mxu0 0.0
    %1057 = vmatprep.subr.mxu0 0.0
    %1058 = vmatpush1.xpose.msra.mxu0 0.0
    %1059 = vmatprep.subr.mxu0 0.0
    %1060 = vmatpush1.xpose.msra.mxu0 0.0
    %1061 = vmatprep.subr.mxu0 0.0
    %1062 = vmatpush1.xpose.msra.mxu0 0.0
    %1063 = vmatprep.subr.mxu0 0.0
    %1064 = vmatpush1.xpose.msra.mxu0 0.0
    %1065 = vmatprep.subr.mxu0 0.0
    %1066 = vmatpush1.xpose.msra.mxu0 0.0
    %1067 = vmatprep.subr.mxu0 0.0
    %1068 = vmatpush1.xpose.msra.mxu0 0.0
    %1069 = vmatprep.subr.mxu0 0.0
    %1070 = vmatpush1.xpose.msra.mxu0 0.0
    %1071 = vmatprep.subr.mxu0 0.0
    %1072 = vmatpush1.xpose.msra.mxu0 0.0
    %1073 = vmatprep.subr.mxu0 0.0
    %1074 = vmatpush1.xpose.msra.mxu0 0.0
    %1075 = vmatprep.subr.mxu0 0.0
    %1076 = vmatpush1.xpose.msra.mxu0 0.0
    %1077 = vmatprep.subr.mxu0 0.0
    %1078 = vmatpush1.xpose.msra.mxu0 0.0
    %1079 = vmatprep.subr.mxu0 0.0
    %1080 = vmatpush1.xpose.msra.mxu0 0.0
    %1081 = vmatprep.subr.mxu0 0.0
    %1082 = vmatpush1.xpose.msra.mxu0 0.0
    %1083 = vmatprep.subr.mxu0 0.0
    %1084 = vmatpush1.xpose.msra.mxu0 0.0
    %1085 = vmatprep.subr.mxu0 0.0
    %1086 = vmatpush1.xpose.msra.mxu0 0.0
    %1087 = vmatprep.subr.mxu0 0.0
    %1088 = vmatpush1.xpose.msra.mxu0 0.0
    %1089 = vmatprep.subr.mxu0 0.0
    %1090 = vmatpush1.xpose.msra.mxu0 0.0
    %1091 = vmatprep.subr.mxu0 0.0
    %1092 = vmatpush1.xpose.msra.mxu0 0.0
    %1093 = vmatprep.subr.mxu0 0.0
    %1094 = vmatpush1.xpose.msra.mxu0 0.0
    %1095 = vmatprep.subr.mxu0 0.0
    %1096 = vmatpush1.xpose.msra.mxu0 0.0
    %1097 = vmatprep.subr.mxu0 0.0
    %1098 = vmatpush1.xpose.msra.mxu0 0.0
    %1099 = vmatprep.mubr.f32.mxu0 0.0
    %1100 = vmatmul.mubr.f32.gmra.mrb[0].mxu0 %v1030
    %v1101 = vpop.f32.mrb[0].mxu0
    %v1102 = vadd.f32 0.0, %v1101
    %v1103 = vpop.f32.mrb[0].mxu0
    %1104 = vdwg.mxu0
    %v1106 = vsel %vm441, %v852, 0
    %v1109 = vsel %vm441, %v938, 0
    %1111 = vmatprep.subr.mxu0 0.0
    %1112 = vmatpush1.xpose.msra.mxu0 %v1109
    %1113 = vmatprep.subr.mxu0 0.0
    %1114 = vmatpush1.xpose.msra.mxu0 0.0
    %1115 = vmatprep.subr.mxu0 0.0
    %1116 = vmatpush1.xpose.msra.mxu0 0.0
    %1117 = vmatprep.subr.mxu0 0.0
    %1118 = vmatpush1.xpose.msra.mxu0 0.0
    %1119 = vmatprep.subr.mxu0 0.0
    %1120 = vmatpush1.xpose.msra.mxu0 0.0
    %1121 = vmatprep.subr.mxu0 0.0
    %1122 = vmatpush1.xpose.msra.mxu0 0.0
    %1123 = vmatprep.subr.mxu0 0.0
    %1124 = vmatpush1.xpose.msra.mxu0 0.0
    %1125 = vmatprep.subr.mxu0 0.0
    %1126 = vmatpush1.xpose.msra.mxu0 0.0
    %1127 = vmatprep.subr.mxu0 0.0
    %1128 = vmatpush1.xpose.msra.mxu0 0.0
    %1129 = vmatprep.subr.mxu0 0.0
    %1130 = vmatpush1.xpose.msra.mxu0 0.0
    %1131 = vmatprep.subr.mxu0 0.0
    %1132 = vmatpush1.xpose.msra.mxu0 0.0
    %1133 = vmatprep.subr.mxu0 0.0
    %1134 = vmatpush1.xpose.msra.mxu0 0.0
    %1135 = vmatprep.subr.mxu0 0.0
    %1136 = vmatpush1.xpose.msra.mxu0 0.0
    %1137 = vmatprep.subr.mxu0 0.0
    %1138 = vmatpush1.xpose.msra.mxu0 0.0
    %1139 = vmatprep.subr.mxu0 0.0
    %1140 = vmatpush1.xpose.msra.mxu0 0.0
    %1141 = vmatprep.subr.mxu0 0.0
    %1142 = vmatpush1.xpose.msra.mxu0 0.0
    %1143 = vmatprep.subr.mxu0 0.0
    %1144 = vmatpush1.xpose.msra.mxu0 0.0
    %1145 = vmatprep.subr.mxu0 0.0
    %1146 = vmatpush1.xpose.msra.mxu0 0.0
    %1147 = vmatprep.subr.mxu0 0.0
    %1148 = vmatpush1.xpose.msra.mxu0 0.0
    %1149 = vmatprep.subr.mxu0 0.0
    %1150 = vmatpush1.xpose.msra.mxu0 0.0
    %1151 = vmatprep.subr.mxu0 0.0
    %1152 = vmatpush1.xpose.msra.mxu0 0.0
    %1153 = vmatprep.subr.mxu0 0.0
    %1154 = vmatpush1.xpose.msra.mxu0 0.0
    %1155 = vmatprep.subr.mxu0 0.0
    %1156 = vmatpush1.xpose.msra.mxu0 0.0
    %1157 = vmatprep.subr.mxu0 0.0
    %1158 = vmatpush1.xpose.msra.mxu0 0.0
    %1159 = vmatprep.subr.mxu0 0.0
    %1160 = vmatpush1.xpose.msra.mxu0 0.0
    %1161 = vmatprep.subr.mxu0 0.0
    %1162 = vmatpush1.xpose.msra.mxu0 0.0
    %1163 = vmatprep.subr.mxu0 0.0
    %1164 = vmatpush1.xpose.msra.mxu0 0.0
    %1165 = vmatprep.subr.mxu0 0.0
    %1166 = vmatpush1.xpose.msra.mxu0 0.0
    %1167 = vmatprep.subr.mxu0 0.0
    %1168 = vmatpush1.xpose.msra.mxu0 0.0
    %1169 = vmatprep.subr.mxu0 0.0
    %1170 = vmatpush1.xpose.msra.mxu0 0.0
    %1171 = vmatprep.subr.mxu0 0.0
    %1172 = vmatpush1.xpose.msra.mxu0 0.0
    %1173 = vmatprep.subr.mxu0 0.0
    %1174 = vmatpush1.xpose.msra.mxu0 0.0
    %1175 = vmatprep.mubr.f32.mxu0 0.0
    %1176 = vmatmul.mubr.f32.gmra.mrb[0].mxu0 %v1106
    %v1177 = vpop.f32.mrb[0].mxu0
    %v1178 = vadd.f32 0.0, %v1177
    %v1179 = vpop.f32.mrb[0].mxu0
    %1180 = vdwg.mxu0
    %v1181 = vsel %vm441, %v1102, -inf
    %1182 = vmax.xlane.f32.xlu0 %v1181
    %v1183 = vpop.xlane.xlu0 %1182
    %v1184 = vsel %vm441, %v1178, -inf
    %1185 = vmax.xlane.f32.xlu0 %v1184
    %v1186 = vpop.xlane.xlu0 %1185
    %v1187 = vsub.f32 %v1102, %v1183
    %v1188 = vsub.f32 %v1178, %v1186
    %v1189 = vmul.f32 %v1187, 1.442695
    %v1190 = vpow.pop %v1189
    %v1191 = vmul.f32 %v1188, 1.442695
    %v1192 = vpow.pop %v1191
    %v1193 = vsel %vm441, %v1190, 0.0
    %1194 = vadd.xlane.f32.xlu0 %v1193
    %v1195 = vpop.xlane.xlu0 %1194
    %v1196 = vsel %vm441, %v1192, 0.0
    %1197 = vadd.xlane.f32.xlu0 %v1196
    %v1198 = vpop.xlane.xlu0 %1197
    %v1199 = vrcp.pop %v1195
    %v1200 = vmul.f32 %v1190, %v1199
    %v1201 = vrcp.pop %v1198
    %v1202 = vmul.f32 %v1192, %v1201
    %v1204 = vsel %vm441, %v1200, 0
    %1206 = vmatprep.subr.mxu0 0.0
    %1207 = vmatpush1.msra.mxu0 %v1021
    %1208 = vmatprep.subr.mxu0 0.0
    %1209 = vmatpush1.msra.mxu0 0.0
    %1210 = vmatprep.subr.mxu0 0.0
    %1211 = vmatpush1.msra.mxu0 0.0
    %1212 = vmatprep.subr.mxu0 0.0
    %1213 = vmatpush1.msra.mxu0 0.0
    %1214 = vmatprep.subr.mxu0 0.0
    %1215 = vmatpush1.msra.mxu0 0.0
    %1216 = vmatprep.subr.mxu0 0.0
    %1217 = vmatpush1.msra.mxu0 0.0
    %1218 = vmatprep.subr.mxu0 0.0
    %1219 = vmatpush1.msra.mxu0 0.0
    %1220 = vmatprep.subr.mxu0 0.0
    %1221 = vmatpush1.msra.mxu0 0.0
    %1222 = vmatprep.subr.mxu0 0.0
    %1223 = vmatpush1.msra.mxu0 0.0
    %1224 = vmatprep.subr.mxu0 0.0
    %1225 = vmatpush1.msra.mxu0 0.0
    %1226 = vmatprep.subr.mxu0 0.0
    %1227 = vmatpush1.msra.mxu0 0.0
    %1228 = vmatprep.subr.mxu0 0.0
    %1229 = vmatpush1.msra.mxu0 0.0
    %1230 = vmatprep.subr.mxu0 0.0
    %1231 = vmatpush1.msra.mxu0 0.0
    %1232 = vmatprep.subr.mxu0 0.0
    %1233 = vmatpush1.msra.mxu0 0.0
    %1234 = vmatprep.subr.mxu0 0.0
    %1235 = vmatpush1.msra.mxu0 0.0
    %1236 = vmatprep.subr.mxu0 0.0
    %1237 = vmatpush1.msra.mxu0 0.0
    %1238 = vmatprep.subr.mxu0 0.0
    %1239 = vmatpush1.msra.mxu0 0.0
    %1240 = vmatprep.subr.mxu0 0.0
    %1241 = vmatpush1.msra.mxu0 0.0
    %1242 = vmatprep.subr.mxu0 0.0
    %1243 = vmatpush1.msra.mxu0 0.0
    %1244 = vmatprep.subr.mxu0 0.0
    %1245 = vmatpush1.msra.mxu0 0.0
    %1246 = vmatprep.subr.mxu0 0.0
    %1247 = vmatpush1.msra.mxu0 0.0
    %1248 = vmatprep.subr.mxu0 0.0
    %1249 = vmatpush1.msra.mxu0 0.0
    %1250 = vmatprep.subr.mxu0 0.0
    %1251 = vmatpush1.msra.mxu0 0.0
    %1252 = vmatprep.subr.mxu0 0.0
    %1253 = vmatpush1.msra.mxu0 0.0
    %1254 = vmatprep.subr.mxu0 0.0
    %1255 = vmatpush1.msra.mxu0 0.0
    %1256 = vmatprep.subr.mxu0 0.0
    %1257 = vmatpush1.msra.mxu0 0.0
    %1258 = vmatprep.subr.mxu0 0.0
    %1259 = vmatpush1.msra.mxu0 0.0
    %1260 = vmatprep.subr.mxu0 0.0
    %1261 = vmatpush1.msra.mxu0 0.0
    %1262 = vmatprep.subr.mxu0 0.0
    %1263 = vmatpush1.msra.mxu0 0.0
    %1264 = vmatprep.subr.mxu0 0.0
    %1265 = vmatpush1.msra.mxu0 0.0
    %1266 = vmatprep.subr.mxu0 0.0
    %1267 = vmatpush1.msra.mxu0 0.0
    %1268 = vmatprep.subr.mxu0 0.0
    %1269 = vmatpush1.msra.mxu0 0.0
    %1270 = vmatprep.mubr.f32.mxu0 0.0
    %1271 = vmatmul.mubr.f32.gmra.mrb[0].mxu0 %v1204
    %v1272 = vpop.f32.mrb[0].mxu0
    %v1273 = vadd.f32 0.0, %v1272
    %v1274 = vpop.f32.mrb[0].mxu0
    %1275 = vdwg.mxu0
    %v1277 = vsel %vm441, %v1202, 0
    %1279 = vmatprep.subr.mxu0 0.0
    %1280 = vmatpush1.msra.mxu0 %v1026
    %1281 = vmatprep.subr.mxu0 0.0
    %1282 = vmatpush1.msra.mxu0 0.0
    %1283 = vmatprep.subr.mxu0 0.0
    %1284 = vmatpush1.msra.mxu0 0.0
    %1285 = vmatprep.subr.mxu0 0.0
    %1286 = vmatpush1.msra.mxu0 0.0
    %1287 = vmatprep.subr.mxu0 0.0
    %1288 = vmatpush1.msra.mxu0 0.0
    %1289 = vmatprep.subr.mxu0 0.0
    %1290 = vmatpush1.msra.mxu0 0.0
    %1291 = vmatprep.subr.mxu0 0.0
    %1292 = vmatpush1.msra.mxu0 0.0
    %1293 = vmatprep.subr.mxu0 0.0
    %1294 = vmatpush1.msra.mxu0 0.0
    %1295 = vmatprep.subr.mxu0 0.0
    %1296 = vmatpush1.msra.mxu0 0.0
    %1297 = vmatprep.subr.mxu0 0.0
    %1298 = vmatpush1.msra.mxu0 0.0
    %1299 = vmatprep.subr.mxu0 0.0
    %1300 = vmatpush1.msra.mxu0 0.0
    %1301 = vmatprep.subr.mxu0 0.0
    %1302 = vmatpush1.msra.mxu0 0.0
    %1303 = vmatprep.subr.mxu0 0.0
    %1304 = vmatpush1.msra.mxu0 0.0
    %1305 = vmatprep.subr.mxu0 0.0
    %1306 = vmatpush1.msra.mxu0 0.0
    %1307 = vmatprep.subr.mxu0 0.0
    %1308 = vmatpush1.msra.mxu0 0.0
    %1309 = vmatprep.subr.mxu0 0.0
    %1310 = vmatpush1.msra.mxu0 0.0
    %1311 = vmatprep.subr.mxu0 0.0
    %1312 = vmatpush1.msra.mxu0 0.0
    %1313 = vmatprep.subr.mxu0 0.0
    %1314 = vmatpush1.msra.mxu0 0.0
    %1315 = vmatprep.subr.mxu0 0.0
    %1316 = vmatpush1.msra.mxu0 0.0
    %1317 = vmatprep.subr.mxu0 0.0
    %1318 = vmatpush1.msra.mxu0 0.0
    %1319 = vmatprep.subr.mxu0 0.0
    %1320 = vmatpush1.msra.mxu0 0.0
    %1321 = vmatprep.subr.mxu0 0.0
    %1322 = vmatpush1.msra.mxu0 0.0
    %1323 = vmatprep.subr.mxu0 0.0
    %1324 = vmatpush1.msra.mxu0 0.0
    %1325 = vmatprep.subr.mxu0 0.0
    %1326 = vmatpush1.msra.mxu0 0.0
    %1327 = vmatprep.subr.mxu0 0.0
    %1328 = vmatpush1.msra.mxu0 0.0
    %1329 = vmatprep.subr.mxu0 0.0
    %1330 = vmatpush1.msra.mxu0 0.0
    %1331 = vmatprep.subr.mxu0 0.0
    %1332 = vmatpush1.msra.mxu0 0.0
    %1333 = vmatprep.subr.mxu0 0.0
    %1334 = vmatpush1.msra.mxu0 0.0
    %1335 = vmatprep.subr.mxu0 0.0
    %1336 = vmatpush1.msra.mxu0 0.0
    %1337 = vmatprep.subr.mxu0 0.0
    %1338 = vmatpush1.msra.mxu0 0.0
    %1339 = vmatprep.subr.mxu0 0.0
    %1340 = vmatpush1.msra.mxu0 0.0
    %1341 = vmatprep.subr.mxu0 0.0
    %1342 = vmatpush1.msra.mxu0 0.0
    %1343 = vmatprep.mubr.f32.mxu0 0.0
    %1344 = vmatmul.mubr.f32.gmra.mrb[0].mxu0 %v1277
    %v1345 = vpop.f32.mrb[0].mxu0
    %v1346 = vadd.f32 0.0, %v1345
    %v1347 = vpop.f32.mrb[0].mxu0
    %1348 = vdwg.mxu0
    %s1349 = scalar_lea.vmem %s5, 8
    %v1350 = vld [vmem:[%s1349] sm:$0xff]
    %v1352 = vsel %vm441, %v1273, 0
    %v1355 = vsel %vm441, %v1346, 0
    %1357 = vmatprep.subr.mxu0 0.0
    %1358 = vmatpush1.msra.mxu0 %v1350
    %1359 = vmatprep.subr.mxu0 0.0
    %1360 = vmatpush1.msra.mxu0 0.0
    %1361 = vmatprep.subr.mxu0 0.0
    %1362 = vmatpush1.msra.mxu0 0.0
    %1363 = vmatprep.subr.mxu0 0.0
    %1364 = vmatpush1.msra.mxu0 0.0
    %1365 = vmatprep.subr.mxu0 0.0
    %1366 = vmatpush1.msra.mxu0 0.0
    %1367 = vmatprep.subr.mxu0 0.0
    %1368 = vmatpush1.msra.mxu0 0.0
    %1369 = vmatprep.subr.mxu0 0.0
    %1370 = vmatpush1.msra.mxu0 0.0
    %1371 = vmatprep.subr.mxu0 0.0
    %1372 = vmatpush1.msra.mxu0 0.0
    %1373 = vmatprep.subr.mxu0 0.0
    %1374 = vmatpush1.msra.mxu0 0.0
    %1375 = vmatprep.subr.mxu0 0.0
    %1376 = vmatpush1.msra.mxu0 0.0
    %1377 = vmatprep.subr.mxu0 0.0
    %1378 = vmatpush1.msra.mxu0 0.0
    %1379 = vmatprep.subr.mxu0 0.0
    %1380 = vmatpush1.msra.mxu0 0.0
    %1381 = vmatprep.subr.mxu0 0.0
    %1382 = vmatpush1.msra.mxu0 0.0
    %1383 = vmatprep.subr.mxu0 0.0
    %1384 = vmatpush1.msra.mxu0 0.0
    %1385 = vmatprep.subr.mxu0 0.0
    %1386 = vmatpush1.msra.mxu0 0.0
    %1387 = vmatprep.subr.mxu0 0.0
    %1388 = vmatpush1.msra.mxu0 0.0
    %1389 = vmatprep.subr.mxu0 0.0
    %1390 = vmatpush1.msra.mxu0 0.0
    %1391 = vmatprep.subr.mxu0 0.0
    %1392 = vmatpush1.msra.mxu0 0.0
    %1393 = vmatprep.subr.mxu0 0.0
    %1394 = vmatpush1.msra.mxu0 0.0
    %1395 = vmatprep.subr.mxu0 0.0
    %1396 = vmatpush1.msra.mxu0 0.0
    %1397 = vmatprep.subr.mxu0 0.0
    %1398 = vmatpush1.msra.mxu0 0.0
    %1399 = vmatprep.subr.mxu0 0.0
    %1400 = vmatpush1.msra.mxu0 0.0
    %1401 = vmatprep.subr.mxu0 0.0
    %1402 = vmatpush1.msra.mxu0 0.0
    %1403 = vmatprep.subr.mxu0 0.0
    %1404 = vmatpush1.msra.mxu0 0.0
    %1405 = vmatprep.subr.mxu0 0.0
    %1406 = vmatpush1.msra.mxu0 0.0
    %1407 = vmatprep.subr.mxu0 0.0
    %1408 = vmatpush1.msra.mxu0 0.0
    %1409 = vmatprep.subr.mxu0 0.0
    %1410 = vmatpush1.msra.mxu0 0.0
    %1411 = vmatprep.subr.mxu0 0.0
    %1412 = vmatpush1.msra.mxu0 0.0
    %1413 = vmatprep.subr.mxu0 0.0
    %1414 = vmatpush1.msra.mxu0 0.0
    %1415 = vmatprep.subr.mxu0 0.0
    %1416 = vmatpush1.msra.mxu0 0.0
    %1417 = vmatprep.subr.mxu0 0.0
    %1418 = vmatpush1.msra.mxu0 0.0
    %1419 = vmatprep.subr.mxu0 0.0
    %1420 = vmatpush1.msra.mxu0 0.0
    %1421 = vmatprep.mubr.f32.mxu0 0.0
    %1422 = vmatmul.mubr.f32.gmra.mrb[0].mxu0 %v1352
    %v1423 = vpop.f32.mrb[0].mxu0
    %v1424 = vadd.f32 0.0, %v1423
    %v1425 = vpop.f32.mrb[0].mxu0
    %1426 = vmatprep.mubr.f32.mxu0 0.0
    %1427 = vmatmul.mubr.f32.gmra.mrb[0].mxu0 %v1355
    %v1428 = vpop.f32.mrb[0].mxu0
    %v1429 = vadd.f32 0.0, %v1428
    %v1430 = vpop.f32.mrb[0].mxu0
    %1431 = vdwg.mxu0
    %v1433 = vsel %vm441, %v686, 0
    %v1436 = vsel %vm441, %v759, 0
    %1438 = vmatprep.subr.mxu0 0.0
    %1439 = vmatpush1.msra.mxu0 %v762
    %1440 = vmatprep.subr.mxu0 0.0
    %1441 = vmatpush1.msra.mxu0 0.0
    %1442 = vmatprep.subr.mxu0 0.0
    %1443 = vmatpush1.msra.mxu0 0.0
    %1444 = vmatprep.subr.mxu0 0.0
    %1445 = vmatpush1.msra.mxu0 0.0
    %1446 = vmatprep.subr.mxu0 0.0
    %1447 = vmatpush1.msra.mxu0 0.0
    %1448 = vmatprep.subr.mxu0 0.0
    %1449 = vmatpush1.msra.mxu0 0.0
    %1450 = vmatprep.subr.mxu0 0.0
    %1451 = vmatpush1.msra.mxu0 0.0
    %1452 = vmatprep.subr.mxu0 0.0
    %1453 = vmatpush1.msra.mxu0 0.0
    %1454 = vmatprep.subr.mxu0 0.0
    %1455 = vmatpush1.msra.mxu0 0.0
    %1456 = vmatprep.subr.mxu0 0.0
    %1457 = vmatpush1.msra.mxu0 0.0
    %1458 = vmatprep.subr.mxu0 0.0
    %1459 = vmatpush1.msra.mxu0 0.0
    %1460 = vmatprep.subr.mxu0 0.0
    %1461 = vmatpush1.msra.mxu0 0.0
    %1462 = vmatprep.subr.mxu0 0.0
    %1463 = vmatpush1.msra.mxu0 0.0
    %1464 = vmatprep.subr.mxu0 0.0
    %1465 = vmatpush1.msra.mxu0 0.0
    %1466 = vmatprep.subr.mxu0 0.0
    %1467 = vmatpush1.msra.mxu0 0.0
    %1468 = vmatprep.subr.mxu0 0.0
    %1469 = vmatpush1.msra.mxu0 0.0
    %1470 = vmatprep.subr.mxu0 0.0
    %1471 = vmatpush1.msra.mxu0 0.0
    %1472 = vmatprep.subr.mxu0 0.0
    %1473 = vmatpush1.msra.mxu0 0.0
    %1474 = vmatprep.subr.mxu0 0.0
    %1475 = vmatpush1.msra.mxu0 0.0
    %1476 = vmatprep.subr.mxu0 0.0
    %1477 = vmatpush1.msra.mxu0 0.0
    %1478 = vmatprep.subr.mxu0 0.0
    %1479 = vmatpush1.msra.mxu0 0.0
    %1480 = vmatprep.subr.mxu0 0.0
    %1481 = vmatpush1.msra.mxu0 0.0
    %1482 = vmatprep.subr.mxu0 0.0
    %1483 = vmatpush1.msra.mxu0 0.0
    %1484 = vmatprep.subr.mxu0 0.0
    %1485 = vmatpush1.msra.mxu0 0.0
    %1486 = vmatprep.subr.mxu0 0.0
    %1487 = vmatpush1.msra.mxu0 0.0
    %1488 = vmatprep.subr.mxu0 0.0
    %1489 = vmatpush1.msra.mxu0 0.0
    %1490 = vmatprep.subr.mxu0 0.0
    %1491 = vmatpush1.msra.mxu0 0.0
    %1492 = vmatprep.subr.mxu0 0.0
    %1493 = vmatpush1.msra.mxu0 0.0
    %1494 = vmatprep.subr.mxu0 0.0
    %1495 = vmatpush1.msra.mxu0 0.0
    %1496 = vmatprep.subr.mxu0 0.0
    %1497 = vmatpush1.msra.mxu0 0.0
    %1498 = vmatprep.subr.mxu0 0.0
    %1499 = vmatpush1.msra.mxu0 0.0
    %1500 = vmatprep.subr.mxu0 0.0
    %1501 = vmatpush1.msra.mxu0 0.0
    %1502 = vmatprep.mubr.f32.mxu0 0.0
    %1503 = vmatmul.mubr.f32.gmra.mrb[0].mxu0 %v1433
    %v1504 = vpop.f32.mrb[0].mxu0
    %v1505 = vadd.f32 %v1424, %v1504
    %v1506 = vpop.f32.mrb[0].mxu0
    %1507 = vmatprep.mubr.f32.mxu0 0.0
    %1508 = vmatmul.mubr.f32.gmra.mrb[0].mxu0 %v1436
    %v1509 = vpop.f32.mrb[0].mxu0
    %v1510 = vadd.f32 %v1429, %v1509
    %v1511 = vpop.f32.mrb[0].mxu0
    %1512 = vdwg.mxu0
    %s1513 = scalar_lea.vmem %s3, 64
    %v1514 = vld [vmem:[%s1513] sm:$0xff]
    %v1515 = vld [vmem:[%s1513 + $0x8] sm:$0xff]
    %v1516 = vld [vmem:[%s1513 + $0x10] sm:$0xff]
    %v1517 = vld [vmem:[%s1513 + $0x18] sm:$0xff]
    %s1518 = scalar_lea.vmem %s4, 2
    %v1519 = vld [vmem:[%s1518] sm:$0x1]
    %v1521 = vlaneseq
    %v1522 = vshrl.u32 %v1521, 7
    %v1523 = vsub.s32 0, %v1522
    %v1524 = vrot.slane %v1519, %v1523
    %1526 = vmatprep.subr.mxu0 0.0
    %1527 = vmatpush1.msra.mxu0 %v1514
    %1528 = vmatprep.subr.mxu0 0.0
    %1529 = vmatpush1.msra.mxu0 %v1515
    %1530 = vmatprep.subr.mxu0 0.0
    %1531 = vmatpush1.msra.mxu0 %v1516
    %1532 = vmatprep.subr.mxu0 0.0
    %1533 = vmatpush1.msra.mxu0 %v1517
    %1534 = vmatprep.subr.mxu0 0.0
    %1535 = vmatpush1.msra.mxu0 0.0
    %1536 = vmatprep.subr.mxu0 0.0
    %1537 = vmatpush1.msra.mxu0 0.0
    %1538 = vmatprep.subr.mxu0 0.0
    %1539 = vmatpush1.msra.mxu0 0.0
    %1540 = vmatprep.subr.mxu0 0.0
    %1541 = vmatpush1.msra.mxu0 0.0
    %1542 = vmatprep.subr.mxu0 0.0
    %1543 = vmatpush1.msra.mxu0 0.0
    %1544 = vmatprep.subr.mxu0 0.0
    %1545 = vmatpush1.msra.mxu0 0.0
    %1546 = vmatprep.subr.mxu0 0.0
    %1547 = vmatpush1.msra.mxu0 0.0
    %1548 = vmatprep.subr.mxu0 0.0
    %1549 = vmatpush1.msra.mxu0 0.0
    %1550 = vmatprep.subr.mxu0 0.0
    %1551 = vmatpush1.msra.mxu0 0.0
    %1552 = vmatprep.subr.mxu0 0.0
    %1553 = vmatpush1.msra.mxu0 0.0
    %1554 = vmatprep.subr.mxu0 0.0
    %1555 = vmatpush1.msra.mxu0 0.0
    %1556 = vmatprep.subr.mxu0 0.0
    %1557 = vmatpush1.msra.mxu0 0.0
    %1558 = vmatprep.subr.mxu0 0.0
    %1559 = vmatpush1.msra.mxu0 0.0
    %1560 = vmatprep.subr.mxu0 0.0
    %1561 = vmatpush1.msra.mxu0 0.0
    %1562 = vmatprep.subr.mxu0 0.0
    %1563 = vmatpush1.msra.mxu0 0.0
    %1564 = vmatprep.subr.mxu0 0.0
    %1565 = vmatpush1.msra.mxu0 0.0
    %1566 = vmatprep.subr.mxu0 0.0
    %1567 = vmatpush1.msra.mxu0 0.0
    %1568 = vmatprep.subr.mxu0 0.0
    %1569 = vmatpush1.msra.mxu0 0.0
    %1570 = vmatprep.subr.mxu0 0.0
    %1571 = vmatpush1.msra.mxu0 0.0
    %1572 = vmatprep.subr.mxu0 0.0
    %1573 = vmatpush1.msra.mxu0 0.0
    %1574 = vmatprep.subr.mxu0 0.0
    %1575 = vmatpush1.msra.mxu0 0.0
    %1576 = vmatprep.subr.mxu0 0.0
    %1577 = vmatpush1.msra.mxu0 0.0
    %1578 = vmatprep.subr.mxu0 0.0
    %1579 = vmatpush1.msra.mxu0 0.0
    %1580 = vmatprep.subr.mxu0 0.0
    %1581 = vmatpush1.msra.mxu0 0.0
    %1582 = vmatprep.subr.mxu0 0.0
    %1583 = vmatpush1.msra.mxu0 0.0
    %1584 = vmatprep.subr.mxu0 0.0
    %1585 = vmatpush1.msra.mxu0 0.0
    %1586 = vmatprep.subr.mxu0 0.0
    %1587 = vmatpush1.msra.mxu0 0.0
    %1588 = vmatprep.subr.mxu0 0.0
    %1589 = vmatpush1.msra.mxu0 0.0
    %1590 = vmatprep.mubr.f32.mxu0 0.0
    %1591 = vmatmul.mubr.f32.gmra.mrb[0].mxu0 %v183
    %v1592 = vpop.f32.mrb[0].mxu0
    %v1593 = vadd.f32 %v1524, %v1592
    %v1594 = vpop.f32.mrb[0].mxu0
    %1595 = vmatprep.mubr.f32.mxu0 0.0
    %1596 = vmatmul.mubr.f32.gmra.mrb[0].mxu0 %v186
    %v1597 = vpop.f32.mrb[0].mxu0
    %v1598 = vadd.f32 %v1524, %v1597
    %v1599 = vpop.f32.mrb[0].mxu0
    %1600 = vdwg.mxu0
    %v1601 = vmul.f32 %v1593, 0.35355338
    %v1602 = vmul.f32 %v1598, 0.35355338
    %s1603 = scalar_lea.vmem %s3, 192
    %v1604 = vld [vmem:[%s1603] sm:$0xff]
    %v1605 = vld [vmem:[%s1603 + $0x8] sm:$0xff]
    %v1606 = vld [vmem:[%s1603 + $0x10] sm:$0xff]
    %v1607 = vld [vmem:[%s1603 + $0x18] sm:$0xff]
    %s1608 = scalar_lea.vmem %s4, 6
    %v1609 = vld [vmem:[%s1608] sm:$0x1]
    %v1611 = vlaneseq
    %v1612 = vshrl.u32 %v1611, 7
    %v1613 = vsub.s32 0, %v1612
    %v1614 = vrot.slane %v1609, %v1613
    %1616 = vmatprep.subr.mxu0 0.0
    %1617 = vmatpush1.msra.mxu0 %v1604
    %1618 = vmatprep.subr.mxu0 0.0
    %1619 = vmatpush1.msra.mxu0 %v1605
    %1620 = vmatprep.subr.mxu0 0.0
    %1621 = vmatpush1.msra.mxu0 %v1606
    %1622 = vmatprep.subr.mxu0 0.0
    %1623 = vmatpush1.msra.mxu0 %v1607
    %1624 = vmatprep.subr.mxu0 0.0
    %1625 = vmatpush1.msra.mxu0 0.0
    %1626 = vmatprep.subr.mxu0 0.0
    %1627 = vmatpush1.msra.mxu0 0.0
    %1628 = vmatprep.subr.mxu0 0.0
    %1629 = vmatpush1.msra.mxu0 0.0
    %1630 = vmatprep.subr.mxu0 0.0
    %1631 = vmatpush1.msra.mxu0 0.0
    %1632 = vmatprep.subr.mxu0 0.0
    %1633 = vmatpush1.msra.mxu0 0.0
    %1634 = vmatprep.subr.mxu0 0.0
    %1635 = vmatpush1.msra.mxu0 0.0
    %1636 = vmatprep.subr.mxu0 0.0
    %1637 = vmatpush1.msra.mxu0 0.0
    %1638 = vmatprep.subr.mxu0 0.0
    %1639 = vmatpush1.msra.mxu0 0.0
    %1640 = vmatprep.subr.mxu0 0.0
    %1641 = vmatpush1.msra.mxu0 0.0
    %1642 = vmatprep.subr.mxu0 0.0
    %1643 = vmatpush1.msra.mxu0 0.0
    %1644 = vmatprep.subr.mxu0 0.0
    %1645 = vmatpush1.msra.mxu0 0.0
    %1646 = vmatprep.subr.mxu0 0.0
    %1647 = vmatpush1.msra.mxu0 0.0
    %1648 = vmatprep.subr.mxu0 0.0
    %1649 = vmatpush1.msra.mxu0 0.0
    %1650 = vmatprep.subr.mxu0 0.0
    %1651 = vmatpush1.msra.mxu0 0.0
    %1652 = vmatprep.subr.mxu0 0.0
    %1653 = vmatpush1.msra.mxu0 0.0
    %1654 = vmatprep.subr.mxu0 0.0
    %1655 = vmatpush1.msra.mxu0 0.0
    %1656 = vmatprep.subr.mxu0 0.0
    %1657 = vmatpush1.msra.mxu0 0.0
    %1658 = vmatprep.subr.mxu0 0.0
    %1659 = vmatpush1.msra.mxu0 0.0
    %1660 = vmatprep.subr.mxu0 0.0
    %1661 = vmatpush1.msra.mxu0 0.0
    %1662 = vmatprep.subr.mxu0 0.0
    %1663 = vmatpush1.msra.mxu0 0.0
    %1664 = vmatprep.subr.mxu0 0.0
    %1665 = vmatpush1.msra.mxu0 0.0
    %1666 = vmatprep.subr.mxu0 0.0
    %1667 = vmatpush1.msra.mxu0 0.0
    %1668 = vmatprep.subr.mxu0 0.0
    %1669 = vmatpush1.msra.mxu0 0.0
    %1670 = vmatprep.subr.mxu0 0.0
    %1671 = vmatpush1.msra.mxu0 0.0
    %1672 = vmatprep.subr.mxu0 0.0
    %1673 = vmatpush1.msra.mxu0 0.0
    %1674 = vmatprep.subr.mxu0 0.0
    %1675 = vmatpush1.msra.mxu0 0.0
    %1676 = vmatprep.subr.mxu0 0.0
    %1677 = vmatpush1.msra.mxu0 0.0
    %1678 = vmatprep.subr.mxu0 0.0
    %1679 = vmatpush1.msra.mxu0 0.0
    %1680 = vmatprep.mubr.f32.mxu0 0.0
    %1681 = vmatmul.mubr.f32.gmra.mrb[0].mxu0 %v183
    %v1682 = vpop.f32.mrb[0].mxu0
    %v1683 = vadd.f32 %v1614, %v1682
    %v1684 = vpop.f32.mrb[0].mxu0
    %1685 = vmatprep.mubr.f32.mxu0 0.0
    %1686 = vmatmul.mubr.f32.gmra.mrb[0].mxu0 %v186
    %v1687 = vpop.f32.mrb[0].mxu0
    %v1688 = vadd.f32 %v1614, %v1687
    %v1689 = vpop.f32.mrb[0].mxu0
    %1690 = vdwg.mxu0
    %s1691 = scalar_lea.vmem %s3, 320
    %v1692 = vld [vmem:[%s1691] sm:$0xff]
    %v1693 = vld [vmem:[%s1691 + $0x8] sm:$0xff]
    %v1694 = vld [vmem:[%s1691 + $0x10] sm:$0xff]
    %v1695 = vld [vmem:[%s1691 + $0x18] sm:$0xff]
    %s1696 = scalar_lea.vmem %s4, 10
    %v1697 = vld [vmem:[%s1696] sm:$0x1]
    %v1699 = vlaneseq
    %v1700 = vshrl.u32 %v1699, 7
    %v1701 = vsub.s32 0, %v1700
    %v1702 = vrot.slane %v1697, %v1701
    %1704 = vmatprep.subr.mxu0 0.0
    %1705 = vmatpush1.msra.mxu0 %v1692
    %1706 = vmatprep.subr.mxu0 0.0
    %1707 = vmatpush1.msra.mxu0 %v1693
    %1708 = vmatprep.subr.mxu0 0.0
    %1709 = vmatpush1.msra.mxu0 %v1694
    %1710 = vmatprep.subr.mxu0 0.0
    %1711 = vmatpush1.msra.mxu0 %v1695
    %1712 = vmatprep.subr.mxu0 0.0
    %1713 = vmatpush1.msra.mxu0 0.0
    %1714 = vmatprep.subr.mxu0 0.0
    %1715 = vmatpush1.msra.mxu0 0.0
    %1716 = vmatprep.subr.mxu0 0.0
    %1717 = vmatpush1.msra.mxu0 0.0
    %1718 = vmatprep.subr.mxu0 0.0
    %1719 = vmatpush1.msra.mxu0 0.0
    %1720 = vmatprep.subr.mxu0 0.0
    %1721 = vmatpush1.msra.mxu0 0.0
    %1722 = vmatprep.subr.mxu0 0.0
    %1723 = vmatpush1.msra.mxu0 0.0
    %1724 = vmatprep.subr.mxu0 0.0
    %1725 = vmatpush1.msra.mxu0 0.0
    %1726 = vmatprep.subr.mxu0 0.0
    %1727 = vmatpush1.msra.mxu0 0.0
    %1728 = vmatprep.subr.mxu0 0.0
    %1729 = vmatpush1.msra.mxu0 0.0
    %1730 = vmatprep.subr.mxu0 0.0
    %1731 = vmatpush1.msra.mxu0 0.0
    %1732 = vmatprep.subr.mxu0 0.0
    %1733 = vmatpush1.msra.mxu0 0.0
    %1734 = vmatprep.subr.mxu0 0.0
    %1735 = vmatpush1.msra.mxu0 0.0
    %1736 = vmatprep.subr.mxu0 0.0
    %1737 = vmatpush1.msra.mxu0 0.0
    %1738 = vmatprep.subr.mxu0 0.0
    %1739 = vmatpush1.msra.mxu0 0.0
    %1740 = vmatprep.subr.mxu0 0.0
    %1741 = vmatpush1.msra.mxu0 0.0
    %1742 = vmatprep.subr.mxu0 0.0
    %1743 = vmatpush1.msra.mxu0 0.0
    %1744 = vmatprep.subr.mxu0 0.0
    %1745 = vmatpush1.msra.mxu0 0.0
    %1746 = vmatprep.subr.mxu0 0.0
    %1747 = vmatpush1.msra.mxu0 0.0
    %1748 = vmatprep.subr.mxu0 0.0
    %1749 = vmatpush1.msra.mxu0 0.0
    %1750 = vmatprep.subr.mxu0 0.0
    %1751 = vmatpush1.msra.mxu0 0.0
    %1752 = vmatprep.subr.mxu0 0.0
    %1753 = vmatpush1.msra.mxu0 0.0
    %1754 = vmatprep.subr.mxu0 0.0
    %1755 = vmatpush1.msra.mxu0 0.0
    %1756 = vmatprep.subr.mxu0 0.0
    %1757 = vmatpush1.msra.mxu0 0.0
    %1758 = vmatprep.subr.mxu0 0.0
    %1759 = vmatpush1.msra.mxu0 0.0
    %1760 = vmatprep.subr.mxu0 0.0
    %1761 = vmatpush1.msra.mxu0 0.0
    %1762 = vmatprep.subr.mxu0 0.0
    %1763 = vmatpush1.msra.mxu0 0.0
    %1764 = vmatprep.subr.mxu0 0.0
    %1765 = vmatpush1.msra.mxu0 0.0
    %1766 = vmatprep.subr.mxu0 0.0
    %1767 = vmatpush1.msra.mxu0 0.0
    %1768 = vmatprep.mubr.f32.mxu0 0.0
    %1769 = vmatmul.mubr.f32.gmra.mrb[0].mxu0 %v183
    %v1770 = vpop.f32.mrb[0].mxu0
    %v1771 = vadd.f32 %v1702, %v1770
    %v1772 = vpop.f32.mrb[0].mxu0
    %1773 = vmatprep.mubr.f32.mxu0 0.0
    %1774 = vmatmul.mubr.f32.gmra.mrb[0].mxu0 %v186
    %v1775 = vpop.f32.mrb[0].mxu0
    %v1776 = vadd.f32 %v1702, %v1775
    %v1777 = vpop.f32.mrb[0].mxu0
    %1778 = vdwg.mxu0
    %v1780 = vsel %vm441, %v1601, 0
    %v1783 = vsel %vm441, %v1683, 0
    %1785 = vmatprep.subr.mxu0 0.0
    %1786 = vmatpush1.xpose.msra.mxu0 %v1783
    %1787 = vmatprep.subr.mxu0 0.0
    %1788 = vmatpush1.xpose.msra.mxu0 0.0
    %1789 = vmatprep.subr.mxu0 0.0
    %1790 = vmatpush1.xpose.msra.mxu0 0.0
    %1791 = vmatprep.subr.mxu0 0.0
    %1792 = vmatpush1.xpose.msra.mxu0 0.0
    %1793 = vmatprep.subr.mxu0 0.0
    %1794 = vmatpush1.xpose.msra.mxu0 0.0
    %1795 = vmatprep.subr.mxu0 0.0
    %1796 = vmatpush1.xpose.msra.mxu0 0.0
    %1797 = vmatprep.subr.mxu0 0.0
    %1798 = vmatpush1.xpose.msra.mxu0 0.0
    %1799 = vmatprep.subr.mxu0 0.0
    %1800 = vmatpush1.xpose.msra.mxu0 0.0
    %1801 = vmatprep.subr.mxu0 0.0
    %1802 = vmatpush1.xpose.msra.mxu0 0.0
    %1803 = vmatprep.subr.mxu0 0.0
    %1804 = vmatpush1.xpose.msra.mxu0 0.0
    %1805 = vmatprep.subr.mxu0 0.0
    %1806 = vmatpush1.xpose.msra.mxu0 0.0
    %1807 = vmatprep.subr.mxu0 0.0
    %1808 = vmatpush1.xpose.msra.mxu0 0.0
    %1809 = vmatprep.subr.mxu0 0.0
    %1810 = vmatpush1.xpose.msra.mxu0 0.0
    %1811 = vmatprep.subr.mxu0 0.0
    %1812 = vmatpush1.xpose.msra.mxu0 0.0
    %1813 = vmatprep.subr.mxu0 0.0
    %1814 = vmatpush1.xpose.msra.mxu0 0.0
    %1815 = vmatprep.subr.mxu0 0.0
    %1816 = vmatpush1.xpose.msra.mxu0 0.0
    %1817 = vmatprep.subr.mxu0 0.0
    %1818 = vmatpush1.xpose.msra.mxu0 0.0
    %1819 = vmatprep.subr.mxu0 0.0
    %1820 = vmatpush1.xpose.msra.mxu0 0.0
    %1821 = vmatprep.subr.mxu0 0.0
    %1822 = vmatpush1.xpose.msra.mxu0 0.0
    %1823 = vmatprep.subr.mxu0 0.0
    %1824 = vmatpush1.xpose.msra.mxu0 0.0
    %1825 = vmatprep.subr.mxu0 0.0
    %1826 = vmatpush1.xpose.msra.mxu0 0.0
    %1827 = vmatprep.subr.mxu0 0.0
    %1828 = vmatpush1.xpose.msra.mxu0 0.0
    %1829 = vmatprep.subr.mxu0 0.0
    %1830 = vmatpush1.xpose.msra.mxu0 0.0
    %1831 = vmatprep.subr.mxu0 0.0
    %1832 = vmatpush1.xpose.msra.mxu0 0.0
    %1833 = vmatprep.subr.mxu0 0.0
    %1834 = vmatpush1.xpose.msra.mxu0 0.0
    %1835 = vmatprep.subr.mxu0 0.0
    %1836 = vmatpush1.xpose.msra.mxu0 0.0
    %1837 = vmatprep.subr.mxu0 0.0
    %1838 = vmatpush1.xpose.msra.mxu0 0.0
    %1839 = vmatprep.subr.mxu0 0.0
    %1840 = vmatpush1.xpose.msra.mxu0 0.0
    %1841 = vmatprep.subr.mxu0 0.0
    %1842 = vmatpush1.xpose.msra.mxu0 0.0
    %1843 = vmatprep.subr.mxu0 0.0
    %1844 = vmatpush1.xpose.msra.mxu0 0.0
    %1845 = vmatprep.subr.mxu0 0.0
    %1846 = vmatpush1.xpose.msra.mxu0 0.0
    %1847 = vmatprep.subr.mxu0 0.0
    %1848 = vmatpush1.xpose.msra.mxu0 0.0
    %1849 = vmatprep.mubr.f32.mxu0 0.0
    %1850 = vmatmul.mubr.f32.gmra.mrb[0].mxu0 %v1780
    %v1851 = vpop.f32.mrb[0].mxu0
    %v1852 = vadd.f32 0.0, %v1851
    %v1853 = vpop.f32.mrb[0].mxu0
    %1854 = vdwg.mxu0
    %v1856 = vsel %vm441, %v1602, 0
    %v1859 = vsel %vm441, %v1688, 0
    %1861 = vmatprep.subr.mxu0 0.0
    %1862 = vmatpush1.xpose.msra.mxu0 %v1859
    %1863 = vmatprep.subr.mxu0 0.0
    %1864 = vmatpush1.xpose.msra.mxu0 0.0
    %1865 = vmatprep.subr.mxu0 0.0
    %1866 = vmatpush1.xpose.msra.mxu0 0.0
    %1867 = vmatprep.subr.mxu0 0.0
    %1868 = vmatpush1.xpose.msra.mxu0 0.0
    %1869 = vmatprep.subr.mxu0 0.0
    %1870 = vmatpush1.xpose.msra.mxu0 0.0
    %1871 = vmatprep.subr.mxu0 0.0
    %1872 = vmatpush1.xpose.msra.mxu0 0.0
    %1873 = vmatprep.subr.mxu0 0.0
    %1874 = vmatpush1.xpose.msra.mxu0 0.0
    %1875 = vmatprep.subr.mxu0 0.0
    %1876 = vmatpush1.xpose.msra.mxu0 0.0
    %1877 = vmatprep.subr.mxu0 0.0
    %1878 = vmatpush1.xpose.msra.mxu0 0.0
    %1879 = vmatprep.subr.mxu0 0.0
    %1880 = vmatpush1.xpose.msra.mxu0 0.0
    %1881 = vmatprep.subr.mxu0 0.0
    %1882 = vmatpush1.xpose.msra.mxu0 0.0
    %1883 = vmatprep.subr.mxu0 0.0
    %1884 = vmatpush1.xpose.msra.mxu0 0.0
    %1885 = vmatprep.subr.mxu0 0.0
    %1886 = vmatpush1.xpose.msra.mxu0 0.0
    %1887 = vmatprep.subr.mxu0 0.0
    %1888 = vmatpush1.xpose.msra.mxu0 0.0
    %1889 = vmatprep.subr.mxu0 0.0
    %1890 = vmatpush1.xpose.msra.mxu0 0.0
    %1891 = vmatprep.subr.mxu0 0.0
    %1892 = vmatpush1.xpose.msra.mxu0 0.0
    %1893 = vmatprep.subr.mxu0 0.0
    %1894 = vmatpush1.xpose.msra.mxu0 0.0
    %1895 = vmatprep.subr.mxu0 0.0
    %1896 = vmatpush1.xpose.msra.mxu0 0.0
    %1897 = vmatprep.subr.mxu0 0.0
    %1898 = vmatpush1.xpose.msra.mxu0 0.0
    %1899 = vmatprep.subr.mxu0 0.0
    %1900 = vmatpush1.xpose.msra.mxu0 0.0
    %1901 = vmatprep.subr.mxu0 0.0
    %1902 = vmatpush1.xpose.msra.mxu0 0.0
    %1903 = vmatprep.subr.mxu0 0.0
    %1904 = vmatpush1.xpose.msra.mxu0 0.0
    %1905 = vmatprep.subr.mxu0 0.0
    %1906 = vmatpush1.xpose.msra.mxu0 0.0
    %1907 = vmatprep.subr.mxu0 0.0
    %1908 = vmatpush1.xpose.msra.mxu0 0.0
    %1909 = vmatprep.subr.mxu0 0.0
    %1910 = vmatpush1.xpose.msra.mxu0 0.0
    %1911 = vmatprep.subr.mxu0 0.0
    %1912 = vmatpush1.xpose.msra.mxu0 0.0
    %1913 = vmatprep.subr.mxu0 0.0
    %1914 = vmatpush1.xpose.msra.mxu0 0.0
    %1915 = vmatprep.subr.mxu0 0.0
    %1916 = vmatpush1.xpose.msra.mxu0 0.0
    %1917 = vmatprep.subr.mxu0 0.0
    %1918 = vmatpush1.xpose.msra.mxu0 0.0
    %1919 = vmatprep.subr.mxu0 0.0
    %1920 = vmatpush1.xpose.msra.mxu0 0.0
    %1921 = vmatprep.subr.mxu0 0.0
    %1922 = vmatpush1.xpose.msra.mxu0 0.0
    %1923 = vmatprep.subr.mxu0 0.0
    %1924 = vmatpush1.xpose.msra.mxu0 0.0
    %1925 = vmatprep.mubr.f32.mxu0 0.0
    %1926 = vmatmul.mubr.f32.gmra.mrb[0].mxu0 %v1856
    %v1927 = vpop.f32.mrb[0].mxu0
    %v1928 = vadd.f32 0.0, %v1927
    %v1929 = vpop.f32.mrb[0].mxu0
    %1930 = vdwg.mxu0
    %v1931 = vsel %vm441, %v1852, -inf
    %1932 = vmax.xlane.f32.xlu0 %v1931
    %v1933 = vpop.xlane.xlu0 %1932
    %v1934 = vsel %vm441, %v1928, -inf
    %1935 = vmax.xlane.f32.xlu0 %v1934
    %v1936 = vpop.xlane.xlu0 %1935
    %v1937 = vsub.f32 %v1852, %v1933
    %v1938 = vsub.f32 %v1928, %v1936
    %v1939 = vmul.f32 %v1937, 1.442695
    %v1940 = vpow.pop %v1939
    %v1941 = vmul.f32 %v1938, 1.442695
    %v1942 = vpow.pop %v1941
    %v1943 = vsel %vm441, %v1940, 0.0
    %1944 = vadd.xlane.f32.xlu0 %v1943
    %v1945 = vpop.xlane.xlu0 %1944
    %v1946 = vsel %vm441, %v1942, 0.0
    %1947 = vadd.xlane.f32.xlu0 %v1946
    %v1948 = vpop.xlane.xlu0 %1947
    %v1949 = vrcp.pop %v1945
    %v1950 = vmul.f32 %v1940, %v1949
    %v1951 = vrcp.pop %v1948
    %v1952 = vmul.f32 %v1942, %v1951
    %v1954 = vsel %vm441, %v1950, 0
    %1956 = vmatprep.subr.mxu0 0.0
    %1957 = vmatpush1.msra.mxu0 %v1771
    %1958 = vmatprep.subr.mxu0 0.0
    %1959 = vmatpush1.msra.mxu0 0.0
    %1960 = vmatprep.subr.mxu0 0.0
    %1961 = vmatpush1.msra.mxu0 0.0
    %1962 = vmatprep.subr.mxu0 0.0
    %1963 = vmatpush1.msra.mxu0 0.0
    %1964 = vmatprep.subr.mxu0 0.0
    %1965 = vmatpush1.msra.mxu0 0.0
    %1966 = vmatprep.subr.mxu0 0.0
    %1967 = vmatpush1.msra.mxu0 0.0
    %1968 = vmatprep.subr.mxu0 0.0
    %1969 = vmatpush1.msra.mxu0 0.0
    %1970 = vmatprep.subr.mxu0 0.0
    %1971 = vmatpush1.msra.mxu0 0.0
    %1972 = vmatprep.subr.mxu0 0.0
    %1973 = vmatpush1.msra.mxu0 0.0
    %1974 = vmatprep.subr.mxu0 0.0
    %1975 = vmatpush1.msra.mxu0 0.0
    %1976 = vmatprep.subr.mxu0 0.0
    %1977 = vmatpush1.msra.mxu0 0.0
    %1978 = vmatprep.subr.mxu0 0.0
    %1979 = vmatpush1.msra.mxu0 0.0
    %1980 = vmatprep.subr.mxu0 0.0
    %1981 = vmatpush1.msra.mxu0 0.0
    %1982 = vmatprep.subr.mxu0 0.0
    %1983 = vmatpush1.msra.mxu0 0.0
    %1984 = vmatprep.subr.mxu0 0.0
    %1985 = vmatpush1.msra.mxu0 0.0
    %1986 = vmatprep.subr.mxu0 0.0
    %1987 = vmatpush1.msra.mxu0 0.0
    %1988 = vmatprep.subr.mxu0 0.0
    %1989 = vmatpush1.msra.mxu0 0.0
    %1990 = vmatprep.subr.mxu0 0.0
    %1991 = vmatpush1.msra.mxu0 0.0
    %1992 = vmatprep.subr.mxu0 0.0
    %1993 = vmatpush1.msra.mxu0 0.0
    %1994 = vmatprep.subr.mxu0 0.0
    %1995 = vmatpush1.msra.mxu0 0.0
    %1996 = vmatprep.subr.mxu0 0.0
    %1997 = vmatpush1.msra.mxu0 0.0
    %1998 = vmatprep.subr.mxu0 0.0
    %1999 = vmatpush1.msra.mxu0 0.0
    %2000 = vmatprep.subr.mxu0 0.0
    %2001 = vmatpush1.msra.mxu0 0.0
    %2002 = vmatprep.subr.mxu0 0.0
    %2003 = vmatpush1.msra.mxu0 0.0
    %2004 = vmatprep.subr.mxu0 0.0
    %2005 = vmatpush1.msra.mxu0 0.0
    %2006 = vmatprep.subr.mxu0 0.0
    %2007 = vmatpush1.msra.mxu0 0.0
    %2008 = vmatprep.subr.mxu0 0.0
    %2009 = vmatpush1.msra.mxu0 0.0
    %2010 = vmatprep.subr.mxu0 0.0
    %2011 = vmatpush1.msra.mxu0 0.0
    %2012 = vmatprep.subr.mxu0 0.0
    %2013 = vmatpush1.msra.mxu0 0.0
    %2014 = vmatprep.subr.mxu0 0.0
    %2015 = vmatpush1.msra.mxu0 0.0
    %2016 = vmatprep.subr.mxu0 0.0
    %2017 = vmatpush1.msra.mxu0 0.0
    %2018 = vmatprep.subr.mxu0 0.0
    %2019 = vmatpush1.msra.mxu0 0.0
    %2020 = vmatprep.mubr.f32.mxu0 0.0
    %2021 = vmatmul.mubr.f32.gmra.mrb[0].mxu0 %v1954
    %v2022 = vpop.f32.mrb[0].mxu0
    %v2023 = vadd.f32 0.0, %v2022
    %v2024 = vpop.f32.mrb[0].mxu0
    %2025 = vdwg.mxu0
    %v2027 = vsel %vm441, %v1952, 0
    %2029 = vmatprep.subr.mxu0 0.0
    %2030 = vmatpush1.msra.mxu0 %v1776
    %2031 = vmatprep.subr.mxu0 0.0
    %2032 = vmatpush1.msra.mxu0 0.0
    %2033 = vmatprep.subr.mxu0 0.0
    %2034 = vmatpush1.msra.mxu0 0.0
    %2035 = vmatprep.subr.mxu0 0.0
    %2036 = vmatpush1.msra.mxu0 0.0
    %2037 = vmatprep.subr.mxu0 0.0
    %2038 = vmatpush1.msra.mxu0 0.0
    %2039 = vmatprep.subr.mxu0 0.0
    %2040 = vmatpush1.msra.mxu0 0.0
    %2041 = vmatprep.subr.mxu0 0.0
    %2042 = vmatpush1.msra.mxu0 0.0
    %2043 = vmatprep.subr.mxu0 0.0
    %2044 = vmatpush1.msra.mxu0 0.0
    %2045 = vmatprep.subr.mxu0 0.0
    %2046 = vmatpush1.msra.mxu0 0.0
    %2047 = vmatprep.subr.mxu0 0.0
    %2048 = vmatpush1.msra.mxu0 0.0
    %2049 = vmatprep.subr.mxu0 0.0
    %2050 = vmatpush1.msra.mxu0 0.0
    %2051 = vmatprep.subr.mxu0 0.0
    %2052 = vmatpush1.msra.mxu0 0.0
    %2053 = vmatprep.subr.mxu0 0.0
    %2054 = vmatpush1.msra.mxu0 0.0
    %2055 = vmatprep.subr.mxu0 0.0
    %2056 = vmatpush1.msra.mxu0 0.0
    %2057 = vmatprep.subr.mxu0 0.0
    %2058 = vmatpush1.msra.mxu0 0.0
    %2059 = vmatprep.subr.mxu0 0.0
    %2060 = vmatpush1.msra.mxu0 0.0
    %2061 = vmatprep.subr.mxu0 0.0
    %2062 = vmatpush1.msra.mxu0 0.0
    %2063 = vmatprep.subr.mxu0 0.0
    %2064 = vmatpush1.msra.mxu0 0.0
    %2065 = vmatprep.subr.mxu0 0.0
    %2066 = vmatpush1.msra.mxu0 0.0
    %2067 = vmatprep.subr.mxu0 0.0
    %2068 = vmatpush1.msra.mxu0 0.0
    %2069 = vmatprep.subr.mxu0 0.0
    %2070 = vmatpush1.msra.mxu0 0.0
    %2071 = vmatprep.subr.mxu0 0.0
    %2072 = vmatpush1.msra.mxu0 0.0
    %2073 = vmatprep.subr.mxu0 0.0
    %2074 = vmatpush1.msra.mxu0 0.0
    %2075 = vmatprep.subr.mxu0 0.0
    %2076 = vmatpush1.msra.mxu0 0.0
    %2077 = vmatprep.subr.mxu0 0.0
    %2078 = vmatpush1.msra.mxu0 0.0
    %2079 = vmatprep.subr.mxu0 0.0
    %2080 = vmatpush1.msra.mxu0 0.0
    %2081 = vmatprep.subr.mxu0 0.0
    %2082 = vmatpush1.msra.mxu0 0.0
    %2083 = vmatprep.subr.mxu0 0.0
    %2084 = vmatpush1.msra.mxu0 0.0
    %2085 = vmatprep.subr.mxu0 0.0
    %2086 = vmatpush1.msra.mxu0 0.0
    %2087 = vmatprep.subr.mxu0 0.0
    %2088 = vmatpush1.msra.mxu0 0.0
    %2089 = vmatprep.subr.mxu0 0.0
    %2090 = vmatpush1.msra.mxu0 0.0
    %2091 = vmatprep.subr.mxu0 0.0
    %2092 = vmatpush1.msra.mxu0 0.0
    %2093 = vmatprep.mubr.f32.mxu0 0.0
    %2094 = vmatmul.mubr.f32.gmra.mrb[0].mxu0 %v2027
    %v2095 = vpop.f32.mrb[0].mxu0
    %v2096 = vadd.f32 0.0, %v2095
    %v2097 = vpop.f32.mrb[0].mxu0
    %2098 = vdwg.mxu0
    %s2099 = scalar_lea.vmem %s5, 16
    %v2100 = vld [vmem:[%s2099] sm:$0xff]
    %v2102 = vsel %vm441, %v2023, 0
    %v2105 = vsel %vm441, %v2096, 0
    %2107 = vmatprep.subr.mxu0 0.0
    %2108 = vmatpush1.msra.mxu0 %v2100
    %2109 = vmatprep.subr.mxu0 0.0
    %2110 = vmatpush1.msra.mxu0 0.0
    %2111 = vmatprep.subr.mxu0 0.0
    %2112 = vmatpush1.msra.mxu0 0.0
    %2113 = vmatprep.subr.mxu0 0.0
    %2114 = vmatpush1.msra.mxu0 0.0
    %2115 = vmatprep.subr.mxu0 0.0
    %2116 = vmatpush1.msra.mxu0 0.0
    %2117 = vmatprep.subr.mxu0 0.0
    %2118 = vmatpush1.msra.mxu0 0.0
    %2119 = vmatprep.subr.mxu0 0.0
    %2120 = vmatpush1.msra.mxu0 0.0
    %2121 = vmatprep.subr.mxu0 0.0
    %2122 = vmatpush1.msra.mxu0 0.0
    %2123 = vmatprep.subr.mxu0 0.0
    %2124 = vmatpush1.msra.mxu0 0.0
    %2125 = vmatprep.subr.mxu0 0.0
    %2126 = vmatpush1.msra.mxu0 0.0
    %2127 = vmatprep.subr.mxu0 0.0
    %2128 = vmatpush1.msra.mxu0 0.0
    %2129 = vmatprep.subr.mxu0 0.0
    %2130 = vmatpush1.msra.mxu0 0.0
    %2131 = vmatprep.subr.mxu0 0.0
    %2132 = vmatpush1.msra.mxu0 0.0
    %2133 = vmatprep.subr.mxu0 0.0
    %2134 = vmatpush1.msra.mxu0 0.0
    %2135 = vmatprep.subr.mxu0 0.0
    %2136 = vmatpush1.msra.mxu0 0.0
    %2137 = vmatprep.subr.mxu0 0.0
    %2138 = vmatpush1.msra.mxu0 0.0
    %2139 = vmatprep.subr.mxu0 0.0
    %2140 = vmatpush1.msra.mxu0 0.0
    %2141 = vmatprep.subr.mxu0 0.0
    %2142 = vmatpush1.msra.mxu0 0.0
    %2143 = vmatprep.subr.mxu0 0.0
    %2144 = vmatpush1.msra.mxu0 0.0
    %2145 = vmatprep.subr.mxu0 0.0
    %2146 = vmatpush1.msra.mxu0 0.0
    %2147 = vmatprep.subr.mxu0 0.0
    %2148 = vmatpush1.msra.mxu0 0.0
    %2149 = vmatprep.subr.mxu0 0.0
    %2150 = vmatpush1.msra.mxu0 0.0
    %2151 = vmatprep.subr.mxu0 0.0
    %2152 = vmatpush1.msra.mxu0 0.0
    %2153 = vmatprep.subr.mxu0 0.0
    %2154 = vmatpush1.msra.mxu0 0.0
    %2155 = vmatprep.subr.mxu0 0.0
    %2156 = vmatpush1.msra.mxu0 0.0
    %2157 = vmatprep.subr.mxu0 0.0
    %2158 = vmatpush1.msra.mxu0 0.0
    %2159 = vmatprep.subr.mxu0 0.0
    %2160 = vmatpush1.msra.mxu0 0.0
    %2161 = vmatprep.subr.mxu0 0.0
    %2162 = vmatpush1.msra.mxu0 0.0
    %2163 = vmatprep.subr.mxu0 0.0
    %2164 = vmatpush1.msra.mxu0 0.0
    %2165 = vmatprep.subr.mxu0 0.0
    %2166 = vmatpush1.msra.mxu0 0.0
    %2167 = vmatprep.subr.mxu0 0.0
    %2168 = vmatpush1.msra.mxu0 0.0
    %2169 = vmatprep.subr.mxu0 0.0
    %2170 = vmatpush1.msra.mxu0 0.0
    %2171 = vmatprep.mubr.f32.mxu0 0.0
    %2172 = vmatmul.mubr.f32.gmra.mrb[0].mxu0 %v2102
    %v2173 = vpop.f32.mrb[0].mxu0
    %v2174 = vadd.f32 0.0, %v2173
    %v2175 = vpop.f32.mrb[0].mxu0
    %2176 = vmatprep.mubr.f32.mxu0 0.0
    %2177 = vmatmul.mubr.f32.gmra.mrb[0].mxu0 %v2105
    %v2178 = vpop.f32.mrb[0].mxu0
    %v2179 = vadd.f32 0.0, %v2178
    %v2180 = vpop.f32.mrb[0].mxu0
    %2181 = vdwg.mxu0
    %v2182 = vadd.f32 %v1505, %v2174
    %v2183 = vadd.f32 %v1510, %v2179
    %s2184 = scalar_lea.vmem %s3, 96
    %v2185 = vld [vmem:[%s2184] sm:$0xff]
    %v2186 = vld [vmem:[%s2184 + $0x8] sm:$0xff]
    %v2187 = vld [vmem:[%s2184 + $0x10] sm:$0xff]
    %v2188 = vld [vmem:[%s2184 + $0x18] sm:$0xff]
    %s2189 = scalar_lea.vmem %s4, 3
    %v2190 = vld [vmem:[%s2189] sm:$0x1]
    %v2192 = vlaneseq
    %v2193 = vshrl.u32 %v2192, 7
    %v2194 = vsub.s32 0, %v2193
    %v2195 = vrot.slane %v2190, %v2194
    %2197 = vmatprep.subr.mxu0 0.0
    %2198 = vmatpush1.msra.mxu0 %v2185
    %2199 = vmatprep.subr.mxu0 0.0
    %2200 = vmatpush1.msra.mxu0 %v2186
    %2201 = vmatprep.subr.mxu0 0.0
    %2202 = vmatpush1.msra.mxu0 %v2187
    %2203 = vmatprep.subr.mxu0 0.0
    %2204 = vmatpush1.msra.mxu0 %v2188
    %2205 = vmatprep.subr.mxu0 0.0
    %2206 = vmatpush1.msra.mxu0 0.0
    %2207 = vmatprep.subr.mxu0 0.0
    %2208 = vmatpush1.msra.mxu0 0.0
    %2209 = vmatprep.subr.mxu0 0.0
    %2210 = vmatpush1.msra.mxu0 0.0
    %2211 = vmatprep.subr.mxu0 0.0
    %2212 = vmatpush1.msra.mxu0 0.0
    %2213 = vmatprep.subr.mxu0 0.0
    %2214 = vmatpush1.msra.mxu0 0.0
    %2215 = vmatprep.subr.mxu0 0.0
    %2216 = vmatpush1.msra.mxu0 0.0
    %2217 = vmatprep.subr.mxu0 0.0
    %2218 = vmatpush1.msra.mxu0 0.0
    %2219 = vmatprep.subr.mxu0 0.0
    %2220 = vmatpush1.msra.mxu0 0.0
    %2221 = vmatprep.subr.mxu0 0.0
    %2222 = vmatpush1.msra.mxu0 0.0
    %2223 = vmatprep.subr.mxu0 0.0
    %2224 = vmatpush1.msra.mxu0 0.0
    %2225 = vmatprep.subr.mxu0 0.0
    %2226 = vmatpush1.msra.mxu0 0.0
    %2227 = vmatprep.subr.mxu0 0.0
    %2228 = vmatpush1.msra.mxu0 0.0
    %2229 = vmatprep.subr.mxu0 0.0
    %2230 = vmatpush1.msra.mxu0 0.0
    %2231 = vmatprep.subr.mxu0 0.0
    %2232 = vmatpush1.msra.mxu0 0.0
    %2233 = vmatprep.subr.mxu0 0.0
    %2234 = vmatpush1.msra.mxu0 0.0
    %2235 = vmatprep.subr.mxu0 0.0
    %2236 = vmatpush1.msra.mxu0 0.0
    %2237 = vmatprep.subr.mxu0 0.0
    %2238 = vmatpush1.msra.mxu0 0.0
    %2239 = vmatprep.subr.mxu0 0.0
    %2240 = vmatpush1.msra.mxu0 0.0
    %2241 = vmatprep.subr.mxu0 0.0
    %2242 = vmatpush1.msra.mxu0 0.0
    %2243 = vmatprep.subr.mxu0 0.0
    %2244 = vmatpush1.msra.mxu0 0.0
    %2245 = vmatprep.subr.mxu0 0.0
    %2246 = vmatpush1.msra.mxu0 0.0
    %2247 = vmatprep.subr.mxu0 0.0
    %2248 = vmatpush1.msra.mxu0 0.0
    %2249 = vmatprep.subr.mxu0 0.0
    %2250 = vmatpush1.msra.mxu0 0.0
    %2251 = vmatprep.subr.mxu0 0.0
    %2252 = vmatpush1.msra.mxu0 0.0
    %2253 = vmatprep.subr.mxu0 0.0
    %2254 = vmatpush1.msra.mxu0 0.0
    %2255 = vmatprep.subr.mxu0 0.0
    %2256 = vmatpush1.msra.mxu0 0.0
    %2257 = vmatprep.subr.mxu0 0.0
    %2258 = vmatpush1.msra.mxu0 0.0
    %2259 = vmatprep.subr.mxu0 0.0
    %2260 = vmatpush1.msra.mxu0 0.0
    %2261 = vmatprep.mubr.f32.mxu0 0.0
    %2262 = vmatmul.mubr.f32.gmra.mrb[0].mxu0 %v183
    %v2263 = vpop.f32.mrb[0].mxu0
    %v2264 = vadd.f32 %v2195, %v2263
    %v2265 = vpop.f32.mrb[0].mxu0
    %2266 = vmatprep.mubr.f32.mxu0 0.0
    %2267 = vmatmul.mubr.f32.gmra.mrb[0].mxu0 %v186
    %v2268 = vpop.f32.mrb[0].mxu0
    %v2269 = vadd.f32 %v2195, %v2268
    %v2270 = vpop.f32.mrb[0].mxu0
    %2271 = vdwg.mxu0
    %v2272 = vmul.f32 %v2264, 0.35355338
    %v2273 = vmul.f32 %v2269, 0.35355338
    %s2274 = scalar_lea.vmem %s3, 224
    %v2275 = vld [vmem:[%s2274] sm:$0xff]
    %v2276 = vld [vmem:[%s2274 + $0x8] sm:$0xff]
    %v2277 = vld [vmem:[%s2274 + $0x10] sm:$0xff]
    %v2278 = vld [vmem:[%s2274 + $0x18] sm:$0xff]
    %s2279 = scalar_lea.vmem %s4, 7
    %v2280 = vld [vmem:[%s2279] sm:$0x1]
    %v2282 = vlaneseq
    %v2283 = vshrl.u32 %v2282, 7
    %v2284 = vsub.s32 0, %v2283
    %v2285 = vrot.slane %v2280, %v2284
    %2287 = vmatprep.subr.mxu0 0.0
    %2288 = vmatpush1.msra.mxu0 %v2275
    %2289 = vmatprep.subr.mxu0 0.0
    %2290 = vmatpush1.msra.mxu0 %v2276
    %2291 = vmatprep.subr.mxu0 0.0
    %2292 = vmatpush1.msra.mxu0 %v2277
    %2293 = vmatprep.subr.mxu0 0.0
    %2294 = vmatpush1.msra.mxu0 %v2278
    %2295 = vmatprep.subr.mxu0 0.0
    %2296 = vmatpush1.msra.mxu0 0.0
    %2297 = vmatprep.subr.mxu0 0.0
    %2298 = vmatpush1.msra.mxu0 0.0
    %2299 = vmatprep.subr.mxu0 0.0
    %2300 = vmatpush1.msra.mxu0 0.0
    %2301 = vmatprep.subr.mxu0 0.0
    %2302 = vmatpush1.msra.mxu0 0.0
    %2303 = vmatprep.subr.mxu0 0.0
    %2304 = vmatpush1.msra.mxu0 0.0
    %2305 = vmatprep.subr.mxu0 0.0
    %2306 = vmatpush1.msra.mxu0 0.0
    %2307 = vmatprep.subr.mxu0 0.0
    %2308 = vmatpush1.msra.mxu0 0.0
    %2309 = vmatprep.subr.mxu0 0.0
    %2310 = vmatpush1.msra.mxu0 0.0
    %2311 = vmatprep.subr.mxu0 0.0
    %2312 = vmatpush1.msra.mxu0 0.0
    %2313 = vmatprep.subr.mxu0 0.0
    %2314 = vmatpush1.msra.mxu0 0.0
    %2315 = vmatprep.subr.mxu0 0.0
    %2316 = vmatpush1.msra.mxu0 0.0
    %2317 = vmatprep.subr.mxu0 0.0
    %2318 = vmatpush1.msra.mxu0 0.0
    %2319 = vmatprep.subr.mxu0 0.0
    %2320 = vmatpush1.msra.mxu0 0.0
    %2321 = vmatprep.subr.mxu0 0.0
    %2322 = vmatpush1.msra.mxu0 0.0
    %2323 = vmatprep.subr.mxu0 0.0
    %2324 = vmatpush1.msra.mxu0 0.0
    %2325 = vmatprep.subr.mxu0 0.0
    %2326 = vmatpush1.msra.mxu0 0.0
    %2327 = vmatprep.subr.mxu0 0.0
    %2328 = vmatpush1.msra.mxu0 0.0
    %2329 = vmatprep.subr.mxu0 0.0
    %2330 = vmatpush1.msra.mxu0 0.0
    %2331 = vmatprep.subr.mxu0 0.0
    %2332 = vmatpush1.msra.mxu0 0.0
    %2333 = vmatprep.subr.mxu0 0.0
    %2334 = vmatpush1.msra.mxu0 0.0
    %2335 = vmatprep.subr.mxu0 0.0
    %2336 = vmatpush1.msra.mxu0 0.0
    %2337 = vmatprep.subr.mxu0 0.0
    %2338 = vmatpush1.msra.mxu0 0.0
    %2339 = vmatprep.subr.mxu0 0.0
    %2340 = vmatpush1.msra.mxu0 0.0
    %2341 = vmatprep.subr.mxu0 0.0
    %2342 = vmatpush1.msra.mxu0 0.0
    %2343 = vmatprep.subr.mxu0 0.0
    %2344 = vmatpush1.msra.mxu0 0.0
    %2345 = vmatprep.subr.mxu0 0.0
    %2346 = vmatpush1.msra.mxu0 0.0
    %2347 = vmatprep.subr.mxu0 0.0
    %2348 = vmatpush1.msra.mxu0 0.0
    %2349 = vmatprep.subr.mxu0 0.0
    %2350 = vmatpush1.msra.mxu0 0.0
    %2351 = vmatprep.mubr.f32.mxu0 0.0
    %2352 = vmatmul.mubr.f32.gmra.mrb[0].mxu0 %v183
    %v2353 = vpop.f32.mrb[0].mxu0
    %v2354 = vadd.f32 %v2285, %v2353
    %v2355 = vpop.f32.mrb[0].mxu0
    %2356 = vmatprep.mubr.f32.mxu0 0.0
    %2357 = vmatmul.mubr.f32.gmra.mrb[0].mxu0 %v186
    %v2358 = vpop.f32.mrb[0].mxu0
    %v2359 = vadd.f32 %v2285, %v2358
    %v2360 = vpop.f32.mrb[0].mxu0
    %2361 = vdwg.mxu0
    %s2362 = scalar_lea.vmem %s3, 352
    %v2363 = vld [vmem:[%s2362] sm:$0xff]
    %v2364 = vld [vmem:[%s2362 + $0x8] sm:$0xff]
    %v2365 = vld [vmem:[%s2362 + $0x10] sm:$0xff]
    %v2366 = vld [vmem:[%s2362 + $0x18] sm:$0xff]
    %s2367 = scalar_lea.vmem %s4, 11
    %v2368 = vld [vmem:[%s2367] sm:$0x1]
    %v2370 = vlaneseq
    %v2371 = vshrl.u32 %v2370, 7
    %v2372 = vsub.s32 0, %v2371
    %v2373 = vrot.slane %v2368, %v2372
    %2375 = vmatprep.subr.mxu0 0.0
    %2376 = vmatpush1.msra.mxu0 %v2363
    %2377 = vmatprep.subr.mxu0 0.0
    %2378 = vmatpush1.msra.mxu0 %v2364
    %2379 = vmatprep.subr.mxu0 0.0
    %2380 = vmatpush1.msra.mxu0 %v2365
    %2381 = vmatprep.subr.mxu0 0.0
    %2382 = vmatpush1.msra.mxu0 %v2366
    %2383 = vmatprep.subr.mxu0 0.0
    %2384 = vmatpush1.msra.mxu0 0.0
    %2385 = vmatprep.subr.mxu0 0.0
    %2386 = vmatpush1.msra.mxu0 0.0
    %2387 = vmatprep.subr.mxu0 0.0
    %2388 = vmatpush1.msra.mxu0 0.0
    %2389 = vmatprep.subr.mxu0 0.0
    %2390 = vmatpush1.msra.mxu0 0.0
    %2391 = vmatprep.subr.mxu0 0.0
    %2392 = vmatpush1.msra.mxu0 0.0
    %2393 = vmatprep.subr.mxu0 0.0
    %2394 = vmatpush1.msra.mxu0 0.0
    %2395 = vmatprep.subr.mxu0 0.0
    %2396 = vmatpush1.msra.mxu0 0.0
    %2397 = vmatprep.subr.mxu0 0.0
    %2398 = vmatpush1.msra.mxu0 0.0
    %2399 = vmatprep.subr.mxu0 0.0
    %2400 = vmatpush1.msra.mxu0 0.0
    %2401 = vmatprep.subr.mxu0 0.0
    %2402 = vmatpush1.msra.mxu0 0.0
    %2403 = vmatprep.subr.mxu0 0.0
    %2404 = vmatpush1.msra.mxu0 0.0
    %2405 = vmatprep.subr.mxu0 0.0
    %2406 = vmatpush1.msra.mxu0 0.0
    %2407 = vmatprep.subr.mxu0 0.0
    %2408 = vmatpush1.msra.mxu0 0.0
    %2409 = vmatprep.subr.mxu0 0.0
    %2410 = vmatpush1.msra.mxu0 0.0
    %2411 = vmatprep.subr.mxu0 0.0
    %2412 = vmatpush1.msra.mxu0 0.0
    %2413 = vmatprep.subr.mxu0 0.0
    %2414 = vmatpush1.msra.mxu0 0.0
    %2415 = vmatprep.subr.mxu0 0.0
    %2416 = vmatpush1.msra.mxu0 0.0
    %2417 = vmatprep.subr.mxu0 0.0
    %2418 = vmatpush1.msra.mxu0 0.0
    %2419 = vmatprep.subr.mxu0 0.0
    %2420 = vmatpush1.msra.mxu0 0.0
    %2421 = vmatprep.subr.mxu0 0.0
    %2422 = vmatpush1.msra.mxu0 0.0
    %2423 = vmatprep.subr.mxu0 0.0
    %2424 = vmatpush1.msra.mxu0 0.0
    %2425 = vmatprep.subr.mxu0 0.0
    %2426 = vmatpush1.msra.mxu0 0.0
    %2427 = vmatprep.subr.mxu0 0.0
    %2428 = vmatpush1.msra.mxu0 0.0
    %2429 = vmatprep.subr.mxu0 0.0
    %2430 = vmatpush1.msra.mxu0 0.0
    %2431 = vmatprep.subr.mxu0 0.0
    %2432 = vmatpush1.msra.mxu0 0.0
    %2433 = vmatprep.subr.mxu0 0.0
    %2434 = vmatpush1.msra.mxu0 0.0
    %2435 = vmatprep.subr.mxu0 0.0
    %2436 = vmatpush1.msra.mxu0 0.0
    %2437 = vmatprep.subr.mxu0 0.0
    %2438 = vmatpush1.msra.mxu0 0.0
    %2439 = vmatprep.mubr.f32.mxu0 0.0
    %2440 = vmatmul.mubr.f32.gmra.mrb[0].mxu0 %v183
    %v2441 = vpop.f32.mrb[0].mxu0
    %v2442 = vadd.f32 %v2373, %v2441
    %v2443 = vpop.f32.mrb[0].mxu0
    %2444 = vmatprep.mubr.f32.mxu0 0.0
    %2445 = vmatmul.mubr.f32.gmra.mrb[0].mxu0 %v186
    %v2446 = vpop.f32.mrb[0].mxu0
    %v2447 = vadd.f32 %v2373, %v2446
    %v2448 = vpop.f32.mrb[0].mxu0
    %2449 = vdwg.mxu0
    %v2451 = vsel %vm441, %v2272, 0
    %v2454 = vsel %vm441, %v2354, 0
    %2456 = vmatprep.subr.mxu0 0.0
    %2457 = vmatpush1.xpose.msra.mxu0 %v2454
    %2458 = vmatprep.subr.mxu0 0.0
    %2459 = vmatpush1.xpose.msra.mxu0 0.0
    %2460 = vmatprep.subr.mxu0 0.0
    %2461 = vmatpush1.xpose.msra.mxu0 0.0
    %2462 = vmatprep.subr.mxu0 0.0
    %2463 = vmatpush1.xpose.msra.mxu0 0.0
    %2464 = vmatprep.subr.mxu0 0.0
    %2465 = vmatpush1.xpose.msra.mxu0 0.0
    %2466 = vmatprep.subr.mxu0 0.0
    %2467 = vmatpush1.xpose.msra.mxu0 0.0
    %2468 = vmatprep.subr.mxu0 0.0
    %2469 = vmatpush1.xpose.msra.mxu0 0.0
    %2470 = vmatprep.subr.mxu0 0.0
    %2471 = vmatpush1.xpose.msra.mxu0 0.0
    %2472 = vmatprep.subr.mxu0 0.0
    %2473 = vmatpush1.xpose.msra.mxu0 0.0
    %2474 = vmatprep.subr.mxu0 0.0
    %2475 = vmatpush1.xpose.msra.mxu0 0.0
    %2476 = vmatprep.subr.mxu0 0.0
    %2477 = vmatpush1.xpose.msra.mxu0 0.0
    %2478 = vmatprep.subr.mxu0 0.0
    %2479 = vmatpush1.xpose.msra.mxu0 0.0
    %2480 = vmatprep.subr.mxu0 0.0
    %2481 = vmatpush1.xpose.msra.mxu0 0.0
    %2482 = vmatprep.subr.mxu0 0.0
    %2483 = vmatpush1.xpose.msra.mxu0 0.0
    %2484 = vmatprep.subr.mxu0 0.0
    %2485 = vmatpush1.xpose.msra.mxu0 0.0
    %2486 = vmatprep.subr.mxu0 0.0
    %2487 = vmatpush1.xpose.msra.mxu0 0.0
    %2488 = vmatprep.subr.mxu0 0.0
    %2489 = vmatpush1.xpose.msra.mxu0 0.0
    %2490 = vmatprep.subr.mxu0 0.0
    %2491 = vmatpush1.xpose.msra.mxu0 0.0
    %2492 = vmatprep.subr.mxu0 0.0
    %2493 = vmatpush1.xpose.msra.mxu0 0.0
    %2494 = vmatprep.subr.mxu0 0.0
    %2495 = vmatpush1.xpose.msra.mxu0 0.0
    %2496 = vmatprep.subr.mxu0 0.0
    %2497 = vmatpush1.xpose.msra.mxu0 0.0
    %2498 = vmatprep.subr.mxu0 0.0
    %2499 = vmatpush1.xpose.msra.mxu0 0.0
    %2500 = vmatprep.subr.mxu0 0.0
    %2501 = vmatpush1.xpose.msra.mxu0 0.0
    %2502 = vmatprep.subr.mxu0 0.0
    %2503 = vmatpush1.xpose.msra.mxu0 0.0
    %2504 = vmatprep.subr.mxu0 0.0
    %2505 = vmatpush1.xpose.msra.mxu0 0.0
    %2506 = vmatprep.subr.mxu0 0.0
    %2507 = vmatpush1.xpose.msra.mxu0 0.0
    %2508 = vmatprep.subr.mxu0 0.0
    %2509 = vmatpush1.xpose.msra.mxu0 0.0
    %2510 = vmatprep.subr.mxu0 0.0
    %2511 = vmatpush1.xpose.msra.mxu0 0.0
    %2512 = vmatprep.subr.mxu0 0.0
    %2513 = vmatpush1.xpose.msra.mxu0 0.0
    %2514 = vmatprep.subr.mxu0 0.0
    %2515 = vmatpush1.xpose.msra.mxu0 0.0
    %2516 = vmatprep.subr.mxu0 0.0
    %2517 = vmatpush1.xpose.msra.mxu0 0.0
    %2518 = vmatprep.subr.mxu0 0.0
    %2519 = vmatpush1.xpose.msra.mxu0 0.0
    %2520 = vmatprep.mubr.f32.mxu0 0.0
    %2521 = vmatmul.mubr.f32.gmra.mrb[0].mxu0 %v2451
    %v2522 = vpop.f32.mrb[0].mxu0
    %v2523 = vadd.f32 0.0, %v2522
    %v2524 = vpop.f32.mrb[0].mxu0
    %2525 = vdwg.mxu0
    %v2527 = vsel %vm441, %v2273, 0
    %v2530 = vsel %vm441, %v2359, 0
    %2532 = vmatprep.subr.mxu0 0.0
    %2533 = vmatpush1.xpose.msra.mxu0 %v2530
    %2534 = vmatprep.subr.mxu0 0.0
    %2535 = vmatpush1.xpose.msra.mxu0 0.0
    %2536 = vmatprep.subr.mxu0 0.0
    %2537 = vmatpush1.xpose.msra.mxu0 0.0
    %2538 = vmatprep.subr.mxu0 0.0
    %2539 = vmatpush1.xpose.msra.mxu0 0.0
    %2540 = vmatprep.subr.mxu0 0.0
    %2541 = vmatpush1.xpose.msra.mxu0 0.0
    %2542 = vmatprep.subr.mxu0 0.0
    %2543 = vmatpush1.xpose.msra.mxu0 0.0
    %2544 = vmatprep.subr.mxu0 0.0
    %2545 = vmatpush1.xpose.msra.mxu0 0.0
    %2546 = vmatprep.subr.mxu0 0.0
    %2547 = vmatpush1.xpose.msra.mxu0 0.0
    %2548 = vmatprep.subr.mxu0 0.0
    %2549 = vmatpush1.xpose.msra.mxu0 0.0
    %2550 = vmatprep.subr.mxu0 0.0
    %2551 = vmatpush1.xpose.msra.mxu0 0.0
    %2552 = vmatprep.subr.mxu0 0.0
    %2553 = vmatpush1.xpose.msra.mxu0 0.0
    %2554 = vmatprep.subr.mxu0 0.0
    %2555 = vmatpush1.xpose.msra.mxu0 0.0
    %2556 = vmatprep.subr.mxu0 0.0
    %2557 = vmatpush1.xpose.msra.mxu0 0.0
    %2558 = vmatprep.subr.mxu0 0.0
    %2559 = vmatpush1.xpose.msra.mxu0 0.0
    %2560 = vmatprep.subr.mxu0 0.0
    %2561 = vmatpush1.xpose.msra.mxu0 0.0
    %2562 = vmatprep.subr.mxu0 0.0
    %2563 = vmatpush1.xpose.msra.mxu0 0.0
    %2564 = vmatprep.subr.mxu0 0.0
    %2565 = vmatpush1.xpose.msra.mxu0 0.0
    %2566 = vmatprep.subr.mxu0 0.0
    %2567 = vmatpush1.xpose.msra.mxu0 0.0
    %2568 = vmatprep.subr.mxu0 0.0
    %2569 = vmatpush1.xpose.msra.mxu0 0.0
    %2570 = vmatprep.subr.mxu0 0.0
    %2571 = vmatpush1.xpose.msra.mxu0 0.0
    %2572 = vmatprep.subr.mxu0 0.0
    %2573 = vmatpush1.xpose.msra.mxu0 0.0
    %2574 = vmatprep.subr.mxu0 0.0
    %2575 = vmatpush1.xpose.msra.mxu0 0.0
    %2576 = vmatprep.subr.mxu0 0.0
    %2577 = vmatpush1.xpose.msra.mxu0 0.0
    %2578 = vmatprep.subr.mxu0 0.0
    %2579 = vmatpush1.xpose.msra.mxu0 0.0
    %2580 = vmatprep.subr.mxu0 0.0
    %2581 = vmatpush1.xpose.msra.mxu0 0.0
    %2582 = vmatprep.subr.mxu0 0.0
    %2583 = vmatpush1.xpose.msra.mxu0 0.0
    %2584 = vmatprep.subr.mxu0 0.0
    %2585 = vmatpush1.xpose.msra.mxu0 0.0
    %2586 = vmatprep.subr.mxu0 0.0
    %2587 = vmatpush1.xpose.msra.mxu0 0.0
    %2588 = vmatprep.subr.mxu0 0.0
    %2589 = vmatpush1.xpose.msra.mxu0 0.0
    %2590 = vmatprep.subr.mxu0 0.0
    %2591 = vmatpush1.xpose.msra.mxu0 0.0
    %2592 = vmatprep.subr.mxu0 0.0
    %2593 = vmatpush1.xpose.msra.mxu0 0.0
    %2594 = vmatprep.subr.mxu0 0.0
    %2595 = vmatpush1.xpose.msra.mxu0 0.0
    %2596 = vmatprep.mubr.f32.mxu0 0.0
    %2597 = vmatmul.mubr.f32.gmra.mrb[0].mxu0 %v2527
    %v2598 = vpop.f32.mrb[0].mxu0
    %v2599 = vadd.f32 0.0, %v2598
    %v2600 = vpop.f32.mrb[0].mxu0
    %2601 = vdwg.mxu0
    %v2602 = vsel %vm441, %v2523, -inf
    %2603 = vmax.xlane.f32.xlu0 %v2602
    %v2604 = vpop.xlane.xlu0 %2603
    %v2605 = vsel %vm441, %v2599, -inf
    %2606 = vmax.xlane.f32.xlu0 %v2605
    %v2607 = vpop.xlane.xlu0 %2606
    %v2608 = vsub.f32 %v2523, %v2604
    %v2609 = vsub.f32 %v2599, %v2607
    %v2610 = vmul.f32 %v2608, 1.442695
    %v2611 = vpow.pop %v2610
    %v2612 = vmul.f32 %v2609, 1.442695
    %v2613 = vpow.pop %v2612
    %v2614 = vsel %vm441, %v2611, 0.0
    %2615 = vadd.xlane.f32.xlu0 %v2614
    %v2616 = vpop.xlane.xlu0 %2615
    %v2617 = vsel %vm441, %v2613, 0.0
    %2618 = vadd.xlane.f32.xlu0 %v2617
    %v2619 = vpop.xlane.xlu0 %2618
    %v2620 = vrcp.pop %v2616
    %v2621 = vmul.f32 %v2611, %v2620
    %v2622 = vrcp.pop %v2619
    %v2623 = vmul.f32 %v2613, %v2622
    %v2625 = vsel %vm441, %v2621, 0
    %2627 = vmatprep.subr.mxu0 0.0
    %2628 = vmatpush1.msra.mxu0 %v2442
    %2629 = vmatprep.subr.mxu0 0.0
    %2630 = vmatpush1.msra.mxu0 0.0
    %2631 = vmatprep.subr.mxu0 0.0
    %2632 = vmatpush1.msra.mxu0 0.0
    %2633 = vmatprep.subr.mxu0 0.0
    %2634 = vmatpush1.msra.mxu0 0.0
    %2635 = vmatprep.subr.mxu0 0.0
    %2636 = vmatpush1.msra.mxu0 0.0
    %2637 = vmatprep.subr.mxu0 0.0
    %2638 = vmatpush1.msra.mxu0 0.0
    %2639 = vmatprep.subr.mxu0 0.0
    %2640 = vmatpush1.msra.mxu0 0.0
    %2641 = vmatprep.subr.mxu0 0.0
    %2642 = vmatpush1.msra.mxu0 0.0
    %2643 = vmatprep.subr.mxu0 0.0
    %2644 = vmatpush1.msra.mxu0 0.0
    %2645 = vmatprep.subr.mxu0 0.0
    %2646 = vmatpush1.msra.mxu0 0.0
    %2647 = vmatprep.subr.mxu0 0.0
    %2648 = vmatpush1.msra.mxu0 0.0
    %2649 = vmatprep.subr.mxu0 0.0
    %2650 = vmatpush1.msra.mxu0 0.0
    %2651 = vmatprep.subr.mxu0 0.0
    %2652 = vmatpush1.msra.mxu0 0.0
    %2653 = vmatprep.subr.mxu0 0.0
    %2654 = vmatpush1.msra.mxu0 0.0
    %2655 = vmatprep.subr.mxu0 0.0
    %2656 = vmatpush1.msra.mxu0 0.0
    %2657 = vmatprep.subr.mxu0 0.0
    %2658 = vmatpush1.msra.mxu0 0.0
    %2659 = vmatprep.subr.mxu0 0.0
    %2660 = vmatpush1.msra.mxu0 0.0
    %2661 = vmatprep.subr.mxu0 0.0
    %2662 = vmatpush1.msra.mxu0 0.0
    %2663 = vmatprep.subr.mxu0 0.0
    %2664 = vmatpush1.msra.mxu0 0.0
    %2665 = vmatprep.subr.mxu0 0.0
    %2666 = vmatpush1.msra.mxu0 0.0
    %2667 = vmatprep.subr.mxu0 0.0
    %2668 = vmatpush1.msra.mxu0 0.0
    %2669 = vmatprep.subr.mxu0 0.0
    %2670 = vmatpush1.msra.mxu0 0.0
    %2671 = vmatprep.subr.mxu0 0.0
    %2672 = vmatpush1.msra.mxu0 0.0
    %2673 = vmatprep.subr.mxu0 0.0
    %2674 = vmatpush1.msra.mxu0 0.0
    %2675 = vmatprep.subr.mxu0 0.0
    %2676 = vmatpush1.msra.mxu0 0.0
    %2677 = vmatprep.subr.mxu0 0.0
    %2678 = vmatpush1.msra.mxu0 0.0
    %2679 = vmatprep.subr.mxu0 0.0
    %2680 = vmatpush1.msra.mxu0 0.0
    %2681 = vmatprep.subr.mxu0 0.0
    %2682 = vmatpush1.msra.mxu0 0.0
    %2683 = vmatprep.subr.mxu0 0.0
    %2684 = vmatpush1.msra.mxu0 0.0
    %2685 = vmatprep.subr.mxu0 0.0
    %2686 = vmatpush1.msra.mxu0 0.0
    %2687 = vmatprep.subr.mxu0 0.0
    %2688 = vmatpush1.msra.mxu0 0.0
    %2689 = vmatprep.subr.mxu0 0.0
    %2690 = vmatpush1.msra.mxu0 0.0
    %2691 = vmatprep.mubr.f32.mxu0 0.0
    %2692 = vmatmul.mubr.f32.gmra.mrb[0].mxu0 %v2625
    %v2693 = vpop.f32.mrb[0].mxu0
    %v2694 = vadd.f32 0.0, %v2693
    %v2695 = vpop.f32.mrb[0].mxu0
    %2696 = vdwg.mxu0
    %v2698 = vsel %vm441, %v2623, 0
    %2700 = vmatprep.subr.mxu0 0.0
    %2701 = vmatpush1.msra.mxu0 %v2447
    %2702 = vmatprep.subr.mxu0 0.0
    %2703 = vmatpush1.msra.mxu0 0.0
    %2704 = vmatprep.subr.mxu0 0.0
    %2705 = vmatpush1.msra.mxu0 0.0
    %2706 = vmatprep.subr.mxu0 0.0
    %2707 = vmatpush1.msra.mxu0 0.0
    %2708 = vmatprep.subr.mxu0 0.0
    %2709 = vmatpush1.msra.mxu0 0.0
    %2710 = vmatprep.subr.mxu0 0.0
    %2711 = vmatpush1.msra.mxu0 0.0
    %2712 = vmatprep.subr.mxu0 0.0
    %2713 = vmatpush1.msra.mxu0 0.0
    %2714 = vmatprep.subr.mxu0 0.0
    %2715 = vmatpush1.msra.mxu0 0.0
    %2716 = vmatprep.subr.mxu0 0.0
    %2717 = vmatpush1.msra.mxu0 0.0
    %2718 = vmatprep.subr.mxu0 0.0
    %2719 = vmatpush1.msra.mxu0 0.0
    %2720 = vmatprep.subr.mxu0 0.0
    %2721 = vmatpush1.msra.mxu0 0.0
    %2722 = vmatprep.subr.mxu0 0.0
    %2723 = vmatpush1.msra.mxu0 0.0
    %2724 = vmatprep.subr.mxu0 0.0
    %2725 = vmatpush1.msra.mxu0 0.0
    %2726 = vmatprep.subr.mxu0 0.0
    %2727 = vmatpush1.msra.mxu0 0.0
    %2728 = vmatprep.subr.mxu0 0.0
    %2729 = vmatpush1.msra.mxu0 0.0
    %2730 = vmatprep.subr.mxu0 0.0
    %2731 = vmatpush1.msra.mxu0 0.0
    %2732 = vmatprep.subr.mxu0 0.0
    %2733 = vmatpush1.msra.mxu0 0.0
    %2734 = vmatprep.subr.mxu0 0.0
    %2735 = vmatpush1.msra.mxu0 0.0
    %2736 = vmatprep.subr.mxu0 0.0
    %2737 = vmatpush1.msra.mxu0 0.0
    %2738 = vmatprep.subr.mxu0 0.0
    %2739 = vmatpush1.msra.mxu0 0.0
    %2740 = vmatprep.subr.mxu0 0.0
    %2741 = vmatpush1.msra.mxu0 0.0
    %2742 = vmatprep.subr.mxu0 0.0
    %2743 = vmatpush1.msra.mxu0 0.0
    %2744 = vmatprep.subr.mxu0 0.0
    %2745 = vmatpush1.msra.mxu0 0.0
    %2746 = vmatprep.subr.mxu0 0.0
    %2747 = vmatpush1.msra.mxu0 0.0
    %2748 = vmatprep.subr.mxu0 0.0
    %2749 = vmatpush1.msra.mxu0 0.0
    %2750 = vmatprep.subr.mxu0 0.0
    %2751 = vmatpush1.msra.mxu0 0.0
    %2752 = vmatprep.subr.mxu0 0.0
    %2753 = vmatpush1.msra.mxu0 0.0
    %2754 = vmatprep.subr.mxu0 0.0
    %2755 = vmatpush1.msra.mxu0 0.0
    %2756 = vmatprep.subr.mxu0 0.0
    %2757 = vmatpush1.msra.mxu0 0.0
    %2758 = vmatprep.subr.mxu0 0.0
    %2759 = vmatpush1.msra.mxu0 0.0
    %2760 = vmatprep.subr.mxu0 0.0
    %2761 = vmatpush1.msra.mxu0 0.0
    %2762 = vmatprep.subr.mxu0 0.0
    %2763 = vmatpush1.msra.mxu0 0.0
    %2764 = vmatprep.mubr.f32.mxu0 0.0
    %2765 = vmatmul.mubr.f32.gmra.mrb[0].mxu0 %v2698
    %v2766 = vpop.f32.mrb[0].mxu0
    %v2767 = vadd.f32 0.0, %v2766
    %v2768 = vpop.f32.mrb[0].mxu0
    %2769 = vdwg.mxu0
    %s2770 = scalar_lea.vmem %s5, 24
    %v2771 = vld [vmem:[%s2770] sm:$0xff]
    %v2773 = vsel %vm441, %v2694, 0
    %v2776 = vsel %vm441, %v2767, 0
    %2778 = vmatprep.subr.mxu0 0.0
    %2779 = vmatpush1.msra.mxu0 %v2771
    %2780 = vmatprep.subr.mxu0 0.0
    %2781 = vmatpush1.msra.mxu0 0.0
    %2782 = vmatprep.subr.mxu0 0.0
    %2783 = vmatpush1.msra.mxu0 0.0
    %2784 = vmatprep.subr.mxu0 0.0
    %2785 = vmatpush1.msra.mxu0 0.0
    %2786 = vmatprep.subr.mxu0 0.0
    %2787 = vmatpush1.msra.mxu0 0.0
    %2788 = vmatprep.subr.mxu0 0.0
    %2789 = vmatpush1.msra.mxu0 0.0
    %2790 = vmatprep.subr.mxu0 0.0
    %2791 = vmatpush1.msra.mxu0 0.0
    %2792 = vmatprep.subr.mxu0 0.0
    %2793 = vmatpush1.msra.mxu0 0.0
    %2794 = vmatprep.subr.mxu0 0.0
    %2795 = vmatpush1.msra.mxu0 0.0
    %2796 = vmatprep.subr.mxu0 0.0
    %2797 = vmatpush1.msra.mxu0 0.0
    %2798 = vmatprep.subr.mxu0 0.0
    %2799 = vmatpush1.msra.mxu0 0.0
    %2800 = vmatprep.subr.mxu0 0.0
    %2801 = vmatpush1.msra.mxu0 0.0
    %2802 = vmatprep.subr.mxu0 0.0
    %2803 = vmatpush1.msra.mxu0 0.0
    %2804 = vmatprep.subr.mxu0 0.0
    %2805 = vmatpush1.msra.mxu0 0.0
    %2806 = vmatprep.subr.mxu0 0.0
    %2807 = vmatpush1.msra.mxu0 0.0
    %2808 = vmatprep.subr.mxu0 0.0
    %2809 = vmatpush1.msra.mxu0 0.0
    %2810 = vmatprep.subr.mxu0 0.0
    %2811 = vmatpush1.msra.mxu0 0.0
    %2812 = vmatprep.subr.mxu0 0.0
    %2813 = vmatpush1.msra.mxu0 0.0
    %2814 = vmatprep.subr.mxu0 0.0
    %2815 = vmatpush1.msra.mxu0 0.0
    %2816 = vmatprep.subr.mxu0 0.0
    %2817 = vmatpush1.msra.mxu0 0.0
    %2818 = vmatprep.subr.mxu0 0.0
    %2819 = vmatpush1.msra.mxu0 0.0
    %2820 = vmatprep.subr.mxu0 0.0
    %2821 = vmatpush1.msra.mxu0 0.0
    %2822 = vmatprep.subr.mxu0 0.0
    %2823 = vmatpush1.msra.mxu0 0.0
    %2824 = vmatprep.subr.mxu0 0.0
    %2825 = vmatpush1.msra.mxu0 0.0
    %2826 = vmatprep.subr.mxu0 0.0
    %2827 = vmatpush1.msra.mxu0 0.0
    %2828 = vmatprep.subr.mxu0 0.0
    %2829 = vmatpush1.msra.mxu0 0.0
    %2830 = vmatprep.subr.mxu0 0.0
    %2831 = vmatpush1.msra.mxu0 0.0
    %2832 = vmatprep.subr.mxu0 0.0
    %2833 = vmatpush1.msra.mxu0 0.0
    %2834 = vmatprep.subr.mxu0 0.0
    %2835 = vmatpush1.msra.mxu0 0.0
    %2836 = vmatprep.subr.mxu0 0.0
    %2837 = vmatpush1.msra.mxu0 0.0
    %2838 = vmatprep.subr.mxu0 0.0
    %2839 = vmatpush1.msra.mxu0 0.0
    %2840 = vmatprep.subr.mxu0 0.0
    %2841 = vmatpush1.msra.mxu0 0.0
    %2842 = vmatprep.mubr.f32.mxu0 0.0
    %2843 = vmatmul.mubr.f32.gmra.mrb[0].mxu0 %v2773
    %v2844 = vpop.f32.mrb[0].mxu0
    %v2845 = vadd.f32 0.0, %v2844
    %v2846 = vpop.f32.mrb[0].mxu0
    %2847 = vmatprep.mubr.f32.mxu0 0.0
    %2848 = vmatmul.mubr.f32.gmra.mrb[0].mxu0 %v2776
    %v2849 = vpop.f32.mrb[0].mxu0
    %v2850 = vadd.f32 0.0, %v2849
    %v2851 = vpop.f32.mrb[0].mxu0
    %2852 = vdwg.mxu0
    %v2853 = vadd.f32 %v2182, %v2845
    %v2854 = vadd.f32 %v2183, %v2850
    %v2855 = vadd.f32 %v161, %v2853
    %v2856 = vadd.f32 %v166, %v2854
    %v2857 = vlaneseq
    %v2858 = vshrl.u32 %v2857, 7
    %v2859 = vsub.s32 0, %v2858
    %v2860 = vrot.slane %v169, %v2859
    %v2861 = vadd.f32 %v2855, %v2860
    %v2862 = vadd.f32 %v2856, %v2860
    %v2863 = vsel %vm181, %v2861, 0.0
    %2864 = vadd.xlane.f32.xlu0 %v2863
    %v2865 = vpop.xlane.xlu0 %2864
    %v2866 = vsel %vm181, %v2862, 0.0
    %2867 = vadd.xlane.f32.xlu0 %v2866
    %v2868 = vpop.xlane.xlu0 %2867
    %v2869 = vrcp.pop 32.0
    %v2870 = vmul.f32 %v2865, %v2869
    %v2871 = vmul.f32 %v2868, %v2869
    %v2872 = vsub.f32 %v2861, %v2870
    %v2873 = vsub.f32 %v2862, %v2871
    %v2874 = vmul.f32 %v2872, %v2872
    %v2875 = vmul.f32 %v2873, %v2873
    %v2876 = vsel %vm181, %v2874, 0.0
    %2877 = vadd.xlane.f32.xlu0 %v2876
    %v2878 = vpop.xlane.xlu0 %2877
    %v2879 = vsel %vm181, %v2875, 0.0
    %2880 = vadd.xlane.f32.xlu0 %v2879
    %v2881 = vpop.xlane.xlu0 %2880
    %v2882 = vmul.f32 %v2878, %v2869
    %v2883 = vmul.f32 %v2881, %v2869
    %v2884 = vadd.f32 %v2882, 1e-05
    %v2885 = vadd.f32 %v2883, 1e-05
    %v2886 = vrsqrt.pop %v2884
    %v2887 = vrsqrt.pop %v2885
    %v2888 = vmul.f32 %v2872, %v2886
    %v2889 = vmul.f32 %v2873, %v2887
    %v2890 = vlaneseq
    %v2891 = vshrl.u32 %v2890, 7
    %v2892 = vsub.s32 4, %v2891
    %v2893 = vrot.slane %v169, %v2892
    %v2894 = vmul.f32 %v2888, %v2893
    %v2895 = vmul.f32 %v2889, %v2893
    %v2896 = vlaneseq
    %v2897 = vshrl.u32 %v2896, 7
    %v2898 = vsub.s32 5, %v2897
    %v2899 = vrot.slane %v169, %v2898
    %v2900 = vadd.f32 %v2894, %v2899
    %v2901 = vadd.f32 %v2895, %v2899
    %v2902 = vld [vmem:[%s6] sm:$0xff]
    %v2903 = vld [vmem:[%s6 + $0x8] sm:$0xff]
    %v2904 = vld [vmem:[%s6 + $0x10] sm:$0xff]
    %v2905 = vld [vmem:[%s6 + $0x18] sm:$0xff]
    %v2906 = vld [vmem:[%s7] sm:$0x1]
    %v2908 = vlaneseq
    %v2909 = vshrl.u32 %v2908, 7
    %v2910 = vsub.s32 0, %v2909
    %v2911 = vrot.slane %v2906, %v2910
    %v2914 = vsel %vm181, %v2900, 0
    %v2917 = vsel %vm181, %v2901, 0
    %2919 = vmatprep.subr.mxu0 0.0
    %2920 = vmatpush1.msra.mxu0 %v2902
    %2921 = vmatprep.subr.mxu0 0.0
    %2922 = vmatpush1.msra.mxu0 %v2903
    %2923 = vmatprep.subr.mxu0 0.0
    %2924 = vmatpush1.msra.mxu0 %v2904
    %2925 = vmatprep.subr.mxu0 0.0
    %2926 = vmatpush1.msra.mxu0 %v2905
    %2927 = vmatprep.subr.mxu0 0.0
    %2928 = vmatpush1.msra.mxu0 0.0
    %2929 = vmatprep.subr.mxu0 0.0
    %2930 = vmatpush1.msra.mxu0 0.0
    %2931 = vmatprep.subr.mxu0 0.0
    %2932 = vmatpush1.msra.mxu0 0.0
    %2933 = vmatprep.subr.mxu0 0.0
    %2934 = vmatpush1.msra.mxu0 0.0
    %2935 = vmatprep.subr.mxu0 0.0
    %2936 = vmatpush1.msra.mxu0 0.0
    %2937 = vmatprep.subr.mxu0 0.0
    %2938 = vmatpush1.msra.mxu0 0.0
    %2939 = vmatprep.subr.mxu0 0.0
    %2940 = vmatpush1.msra.mxu0 0.0
    %2941 = vmatprep.subr.mxu0 0.0
    %2942 = vmatpush1.msra.mxu0 0.0
    %2943 = vmatprep.subr.mxu0 0.0
    %2944 = vmatpush1.msra.mxu0 0.0
    %2945 = vmatprep.subr.mxu0 0.0
    %2946 = vmatpush1.msra.mxu0 0.0
    %2947 = vmatprep.subr.mxu0 0.0
    %2948 = vmatpush1.msra.mxu0 0.0
    %2949 = vmatprep.subr.mxu0 0.0
    %2950 = vmatpush1.msra.mxu0 0.0
    %2951 = vmatprep.subr.mxu0 0.0
    %2952 = vmatpush1.msra.mxu0 0.0
    %2953 = vmatprep.subr.mxu0 0.0
    %2954 = vmatpush1.msra.mxu0 0.0
    %2955 = vmatprep.subr.mxu0 0.0
    %2956 = vmatpush1.msra.mxu0 0.0
    %2957 = vmatprep.subr.mxu0 0.0
    %2958 = vmatpush1.msra.mxu0 0.0
    %2959 = vmatprep.subr.mxu0 0.0
    %2960 = vmatpush1.msra.mxu0 0.0
    %2961 = vmatprep.subr.mxu0 0.0
    %2962 = vmatpush1.msra.mxu0 0.0
    %2963 = vmatprep.subr.mxu0 0.0
    %2964 = vmatpush1.msra.mxu0 0.0
    %2965 = vmatprep.subr.mxu0 0.0
    %2966 = vmatpush1.msra.mxu0 0.0
    %2967 = vmatprep.subr.mxu0 0.0
    %2968 = vmatpush1.msra.mxu0 0.0
    %2969 = vmatprep.subr.mxu0 0.0
    %2970 = vmatpush1.msra.mxu0 0.0
    %2971 = vmatprep.subr.mxu0 0.0
    %2972 = vmatpush1.msra.mxu0 0.0
    %2973 = vmatprep.subr.mxu0 0.0
    %2974 = vmatpush1.msra.mxu0 0.0
    %2975 = vmatprep.subr.mxu0 0.0
    %2976 = vmatpush1.msra.mxu0 0.0
    %2977 = vmatprep.subr.mxu0 0.0
    %2978 = vmatpush1.msra.mxu0 0.0
    %2979 = vmatprep.subr.mxu0 0.0
    %2980 = vmatpush1.msra.mxu0 0.0
    %2981 = vmatprep.subr.mxu0 0.0
    %2982 = vmatpush1.msra.mxu0 0.0
    %2983 = vmatprep.mubr.f32.mxu0 0.0
    %2984 = vmatmul.mubr.f32.gmra.mrb[0].mxu0 %v2914
    %v2985 = vpop.f32.mrb[0].mxu0
    %v2986 = vadd.f32 %v2911, %v2985
    %v2987 = vpop.f32.mrb[0].mxu0
    %2988 = vmatprep.mubr.f32.mxu0 0.0
    %2989 = vmatmul.mubr.f32.gmra.mrb[0].mxu0 %v2917
    %v2990 = vpop.f32.mrb[0].mxu0
    %v2991 = vadd.f32 %v2911, %v2990
    %v2992 = vpop.f32.mrb[0].mxu0
    %2993 = vdwg.mxu0
    %v2994 = vmax.f32 %v2986, 0.0
    %v2995 = vmax.f32 %v2991, 0.0
    %v2996 = vld [vmem:[%s8] sm:$0xff]
    %v2997 = vld [vmem:[%s8 + $0x8] sm:$0xff]
    %v2998 = vld [vmem:[%s8 + $0x10] sm:$0xff]
    %v2999 = vld [vmem:[%s8 + $0x18] sm:$0xff]
    %v3000 = vld [vmem:[%s8 + $0x20] sm:$0xff]
    %v3001 = vld [vmem:[%s8 + $0x28] sm:$0xff]
    %v3002 = vld [vmem:[%s8 + $0x30] sm:$0xff]
    %v3003 = vld [vmem:[%s8 + $0x38] sm:$0xff]
    %v3004 = vlaneseq
    %v3005 = vshrl.u32 %v3004, 7
    %v3006 = vsub.s32 1, %v3005
    %v3007 = vrot.slane %v169, %v3006
    %vm3008 = vcmask 523264
    %v3010 = vsel %vm3008, %v2994, 0
    %v3013 = vsel %vm3008, %v2995, 0
    %3015 = vmatprep.subr.mxu0 0.0
    %3016 = vmatpush1.msra.mxu0 %v2996
    %3017 = vmatprep.subr.mxu0 0.0
    %3018 = vmatpush1.msra.mxu0 %v2997
    %3019 = vmatprep.subr.mxu0 0.0
    %3020 = vmatpush1.msra.mxu0 %v2998
    %3021 = vmatprep.subr.mxu0 0.0
    %3022 = vmatpush1.msra.mxu0 %v2999
    %3023 = vmatprep.subr.mxu0 0.0
    %3024 = vmatpush1.msra.mxu0 %v3000
    %3025 = vmatprep.subr.mxu0 0.0
    %3026 = vmatpush1.msra.mxu0 %v3001
    %3027 = vmatprep.subr.mxu0 0.0
    %3028 = vmatpush1.msra.mxu0 %v3002
    %3029 = vmatprep.subr.mxu0 0.0
    %3030 = vmatpush1.msra.mxu0 %v3003
    %3031 = vmatprep.subr.mxu0 0.0
    %3032 = vmatpush1.msra.mxu0 0.0
    %3033 = vmatprep.subr.mxu0 0.0
    %3034 = vmatpush1.msra.mxu0 0.0
    %3035 = vmatprep.subr.mxu0 0.0
    %3036 = vmatpush1.msra.mxu0 0.0
    %3037 = vmatprep.subr.mxu0 0.0
    %3038 = vmatpush1.msra.mxu0 0.0
    %3039 = vmatprep.subr.mxu0 0.0
    %3040 = vmatpush1.msra.mxu0 0.0
    %3041 = vmatprep.subr.mxu0 0.0
    %3042 = vmatpush1.msra.mxu0 0.0
    %3043 = vmatprep.subr.mxu0 0.0
    %3044 = vmatpush1.msra.mxu0 0.0
    %3045 = vmatprep.subr.mxu0 0.0
    %3046 = vmatpush1.msra.mxu0 0.0
    %3047 = vmatprep.subr.mxu0 0.0
    %3048 = vmatpush1.msra.mxu0 0.0
    %3049 = vmatprep.subr.mxu0 0.0
    %3050 = vmatpush1.msra.mxu0 0.0
    %3051 = vmatprep.subr.mxu0 0.0
    %3052 = vmatpush1.msra.mxu0 0.0
    %3053 = vmatprep.subr.mxu0 0.0
    %3054 = vmatpush1.msra.mxu0 0.0
    %3055 = vmatprep.subr.mxu0 0.0
    %3056 = vmatpush1.msra.mxu0 0.0
    %3057 = vmatprep.subr.mxu0 0.0
    %3058 = vmatpush1.msra.mxu0 0.0
    %3059 = vmatprep.subr.mxu0 0.0
    %3060 = vmatpush1.msra.mxu0 0.0
    %3061 = vmatprep.subr.mxu0 0.0
    %3062 = vmatpush1.msra.mxu0 0.0
    %3063 = vmatprep.subr.mxu0 0.0
    %3064 = vmatpush1.msra.mxu0 0.0
    %3065 = vmatprep.subr.mxu0 0.0
    %3066 = vmatpush1.msra.mxu0 0.0
    %3067 = vmatprep.subr.mxu0 0.0
    %3068 = vmatpush1.msra.mxu0 0.0
    %3069 = vmatprep.subr.mxu0 0.0
    %3070 = vmatpush1.msra.mxu0 0.0
    %3071 = vmatprep.subr.mxu0 0.0
    %3072 = vmatpush1.msra.mxu0 0.0
    %3073 = vmatprep.subr.mxu0 0.0
    %3074 = vmatpush1.msra.mxu0 0.0
    %3075 = vmatprep.subr.mxu0 0.0
    %3076 = vmatpush1.msra.mxu0 0.0
    %3077 = vmatprep.subr.mxu0 0.0
    %3078 = vmatpush1.msra.mxu0 0.0
    %3079 = vmatprep.mubr.f32.mxu0 0.0
    %3080 = vmatmul.mubr.f32.gmra.mrb[0].mxu0 %v3010
    %v3081 = vpop.f32.mrb[0].mxu0
    %v3082 = vadd.f32 %v3007, %v3081
    %v3083 = vpop.f32.mrb[0].mxu0
    %3084 = vmatprep.mubr.f32.mxu0 0.0
    %3085 = vmatmul.mubr.f32.gmra.mrb[0].mxu0 %v3013
    %v3086 = vpop.f32.mrb[0].mxu0
    %v3087 = vadd.f32 %v3007, %v3086
    %v3088 = vpop.f32.mrb[0].mxu0
    %3089 = vdwg.mxu0
    %v3090 = vadd.f32 %v2900, %v3082
    %v3091 = vadd.f32 %v2901, %v3087
    %v3092 = vsel %vm181, %v3090, 0.0
    %3093 = vadd.xlane.f32.xlu0 %v3092
    %v3094 = vpop.xlane.xlu0 %3093
    %v3095 = vsel %vm181, %v3091, 0.0
    %3096 = vadd.xlane.f32.xlu0 %v3095
    %v3097 = vpop.xlane.xlu0 %3096
    %v3098 = vmul.f32 %v3094, %v2869
    %v3099 = vmul.f32 %v3097, %v2869
    %v3100 = vsub.f32 %v3090, %v3098
    %v3101 = vsub.f32 %v3091, %v3099
    %v3102 = vmul.f32 %v3100, %v3100
    %v3103 = vmul.f32 %v3101, %v3101
    %v3104 = vsel %vm181, %v3102, 0.0
    %3105 = vadd.xlane.f32.xlu0 %v3104
    %v3106 = vpop.xlane.xlu0 %3105
    %v3107 = vsel %vm181, %v3103, 0.0
    %3108 = vadd.xlane.f32.xlu0 %v3107
    %v3109 = vpop.xlane.xlu0 %3108
    %v3110 = vmul.f32 %v3106, %v2869
    %v3111 = vmul.f32 %v3109, %v2869
    %v3112 = vadd.f32 %v3110, 1e-05
    %v3113 = vadd.f32 %v3111, 1e-05
    %v3114 = vrsqrt.pop %v3112
    %v3115 = vrsqrt.pop %v3113
    %v3116 = vmul.f32 %v3100, %v3114
    %v3117 = vmul.f32 %v3101, %v3115
    %v3118 = vlaneseq
    %v3119 = vshrl.u32 %v3118, 7
    %v3120 = vsub.s32 6, %v3119
    %v3121 = vrot.slane %v169, %v3120
    %v3122 = vmul.f32 %v3116, %v3121
    %v3123 = vmul.f32 %v3117, %v3121
    %v3124 = vlaneseq
    %v3125 = vshrl.u32 %v3124, 7
    %v3126 = vsub.s32 7, %v3125
    %v3127 = vrot.slane %v169, %v3126
    %v3128 = vadd.f32 %v3122, %v3127
    %v3129 = vadd.f32 %v3123, %v3127
    %v3130 = vld [vmem:[%s9] sm:$0xff]
    %v3131 = vld [vmem:[%s9 + $0x8] sm:$0xff]
    %v3132 = vld [vmem:[%s9 + $0x10] sm:$0xff]
    %v3133 = vld [vmem:[%s9 + $0x18] sm:$0xff]
    %v3134 = vld [vmem:[%s10] sm:$0x1]
    %v3136 = vlaneseq
    %v3137 = vshrl.u32 %v3136, 7
    %v3138 = vsub.s32 0, %v3137
    %v3139 = vrot.slane %v3134, %v3138
    %v3142 = vsel %vm181, %v3128, 0
    %v3145 = vsel %vm181, %v3129, 0
    %3147 = vmatprep.subr.mxu0 0.0
    %3148 = vmatpush1.msra.mxu0 %v3130
    %3149 = vmatprep.subr.mxu0 0.0
    %3150 = vmatpush1.msra.mxu0 %v3131
    %3151 = vmatprep.subr.mxu0 0.0
    %3152 = vmatpush1.msra.mxu0 %v3132
    %3153 = vmatprep.subr.mxu0 0.0
    %3154 = vmatpush1.msra.mxu0 %v3133
    %3155 = vmatprep.subr.mxu0 0.0
    %3156 = vmatpush1.msra.mxu0 0.0
    %3157 = vmatprep.subr.mxu0 0.0
    %3158 = vmatpush1.msra.mxu0 0.0
    %3159 = vmatprep.subr.mxu0 0.0
    %3160 = vmatpush1.msra.mxu0 0.0
    %3161 = vmatprep.subr.mxu0 0.0
    %3162 = vmatpush1.msra.mxu0 0.0
    %3163 = vmatprep.subr.mxu0 0.0
    %3164 = vmatpush1.msra.mxu0 0.0
    %3165 = vmatprep.subr.mxu0 0.0
    %3166 = vmatpush1.msra.mxu0 0.0
    %3167 = vmatprep.subr.mxu0 0.0
    %3168 = vmatpush1.msra.mxu0 0.0
    %3169 = vmatprep.subr.mxu0 0.0
    %3170 = vmatpush1.msra.mxu0 0.0
    %3171 = vmatprep.subr.mxu0 0.0
    %3172 = vmatpush1.msra.mxu0 0.0
    %3173 = vmatprep.subr.mxu0 0.0
    %3174 = vmatpush1.msra.mxu0 0.0
    %3175 = vmatprep.subr.mxu0 0.0
    %3176 = vmatpush1.msra.mxu0 0.0
    %3177 = vmatprep.subr.mxu0 0.0
    %3178 = vmatpush1.msra.mxu0 0.0
    %3179 = vmatprep.subr.mxu0 0.0
    %3180 = vmatpush1.msra.mxu0 0.0
    %3181 = vmatprep.subr.mxu0 0.0
    %3182 = vmatpush1.msra.mxu0 0.0
    %3183 = vmatprep.subr.mxu0 0.0
    %3184 = vmatpush1.msra.mxu0 0.0
    %3185 = vmatprep.subr.mxu0 0.0
    %3186 = vmatpush1.msra.mxu0 0.0
    %3187 = vmatprep.subr.mxu0 0.0
    %3188 = vmatpush1.msra.mxu0 0.0
    %3189 = vmatprep.subr.mxu0 0.0
    %3190 = vmatpush1.msra.mxu0 0.0
    %3191 = vmatprep.subr.mxu0 0.0
    %3192 = vmatpush1.msra.mxu0 0.0
    %3193 = vmatprep.subr.mxu0 0.0
    %3194 = vmatpush1.msra.mxu0 0.0
    %3195 = vmatprep.subr.mxu0 0.0
    %3196 = vmatpush1.msra.mxu0 0.0
    %3197 = vmatprep.subr.mxu0 0.0
    %3198 = vmatpush1.msra.mxu0 0.0
    %3199 = vmatprep.subr.mxu0 0.0
    %3200 = vmatpush1.msra.mxu0 0.0
    %3201 = vmatprep.subr.mxu0 0.0
    %3202 = vmatpush1.msra.mxu0 0.0
    %3203 = vmatprep.subr.mxu0 0.0
    %3204 = vmatpush1.msra.mxu0 0.0
    %3205 = vmatprep.subr.mxu0 0.0
    %3206 = vmatpush1.msra.mxu0 0.0
    %3207 = vmatprep.subr.mxu0 0.0
    %3208 = vmatpush1.msra.mxu0 0.0
    %3209 = vmatprep.subr.mxu0 0.0
    %3210 = vmatpush1.msra.mxu0 0.0
    %3211 = vmatprep.mubr.f32.mxu0 0.0
    %3212 = vmatmul.mubr.f32.gmra.mrb[0].mxu0 %v3142
    %v3213 = vpop.f32.mrb[0].mxu0
    %v3214 = vadd.f32 %v3139, %v3213
    %v3215 = vpop.f32.mrb[0].mxu0
    %3216 = vmatprep.mubr.f32.mxu0 0.0
    %3217 = vmatmul.mubr.f32.gmra.mrb[0].mxu0 %v3145
    %v3218 = vpop.f32.mrb[0].mxu0
    %v3219 = vadd.f32 %v3139, %v3218
    %v3220 = vpop.f32.mrb[0].mxu0
    %3221 = vdwg.mxu0
    %v3222 = vmax.f32 %v3214, 0.0
    %v3223 = vmax.f32 %v3219, 0.0
    %v3224 = vld [vmem:[%s11] sm:$0xff]
    %v3225 = vld [vmem:[%s11 + $0x8] sm:$0xff]
    %v3226 = vlaneseq
    %v3227 = vshrl.u32 %v3226, 7
    %v3228 = vsub.s32 2, %v3227
    %v3229 = vrot.slane %v169, %v3228
    %vm3230 = vcmask 130048
    %v3232 = vsel %vm3230, %v3222, 0
    %v3235 = vsel %vm3230, %v3223, 0
    %3237 = vmatprep.subr.mxu0 0.0
    %3238 = vmatpush1.msra.mxu0 %v3224
    %3239 = vmatprep.subr.mxu0 0.0
    %3240 = vmatpush1.msra.mxu0 %v3225
    %3241 = vmatprep.subr.mxu0 0.0
    %3242 = vmatpush1.msra.mxu0 0.0
    %3243 = vmatprep.subr.mxu0 0.0
    %3244 = vmatpush1.msra.mxu0 0.0
    %3245 = vmatprep.subr.mxu0 0.0
    %3246 = vmatpush1.msra.mxu0 0.0
    %3247 = vmatprep.subr.mxu0 0.0
    %3248 = vmatpush1.msra.mxu0 0.0
    %3249 = vmatprep.subr.mxu0 0.0
    %3250 = vmatpush1.msra.mxu0 0.0
    %3251 = vmatprep.subr.mxu0 0.0
    %3252 = vmatpush1.msra.mxu0 0.0
    %3253 = vmatprep.subr.mxu0 0.0
    %3254 = vmatpush1.msra.mxu0 0.0
    %3255 = vmatprep.subr.mxu0 0.0
    %3256 = vmatpush1.msra.mxu0 0.0
    %3257 = vmatprep.subr.mxu0 0.0
    %3258 = vmatpush1.msra.mxu0 0.0
    %3259 = vmatprep.subr.mxu0 0.0
    %3260 = vmatpush1.msra.mxu0 0.0
    %3261 = vmatprep.subr.mxu0 0.0
    %3262 = vmatpush1.msra.mxu0 0.0
    %3263 = vmatprep.subr.mxu0 0.0
    %3264 = vmatpush1.msra.mxu0 0.0
    %3265 = vmatprep.subr.mxu0 0.0
    %3266 = vmatpush1.msra.mxu0 0.0
    %3267 = vmatprep.subr.mxu0 0.0
    %3268 = vmatpush1.msra.mxu0 0.0
    %3269 = vmatprep.subr.mxu0 0.0
    %3270 = vmatpush1.msra.mxu0 0.0
    %3271 = vmatprep.subr.mxu0 0.0
    %3272 = vmatpush1.msra.mxu0 0.0
    %3273 = vmatprep.subr.mxu0 0.0
    %3274 = vmatpush1.msra.mxu0 0.0
    %3275 = vmatprep.subr.mxu0 0.0
    %3276 = vmatpush1.msra.mxu0 0.0
    %3277 = vmatprep.subr.mxu0 0.0
    %3278 = vmatpush1.msra.mxu0 0.0
    %3279 = vmatprep.subr.mxu0 0.0
    %3280 = vmatpush1.msra.mxu0 0.0
    %3281 = vmatprep.subr.mxu0 0.0
    %3282 = vmatpush1.msra.mxu0 0.0
    %3283 = vmatprep.subr.mxu0 0.0
    %3284 = vmatpush1.msra.mxu0 0.0
    %3285 = vmatprep.subr.mxu0 0.0
    %3286 = vmatpush1.msra.mxu0 0.0
    %3287 = vmatprep.subr.mxu0 0.0
    %3288 = vmatpush1.msra.mxu0 0.0
    %3289 = vmatprep.subr.mxu0 0.0
    %3290 = vmatpush1.msra.mxu0 0.0
    %3291 = vmatprep.subr.mxu0 0.0
    %3292 = vmatpush1.msra.mxu0 0.0
    %3293 = vmatprep.subr.mxu0 0.0
    %3294 = vmatpush1.msra.mxu0 0.0
    %3295 = vmatprep.subr.mxu0 0.0
    %3296 = vmatpush1.msra.mxu0 0.0
    %3297 = vmatprep.subr.mxu0 0.0
    %3298 = vmatpush1.msra.mxu0 0.0
    %3299 = vmatprep.subr.mxu0 0.0
    %3300 = vmatpush1.msra.mxu0 0.0
    %3301 = vmatprep.mubr.f32.mxu0 0.0
    %3302 = vmatmul.mubr.f32.gmra.mrb[0].mxu0 %v3232
    %v3303 = vpop.f32.mrb[0].mxu0
    %v3304 = vadd.f32 %v3229, %v3303
    %v3305 = vpop.f32.mrb[0].mxu0
    %3306 = vmatprep.mubr.f32.mxu0 0.0
    %3307 = vmatmul.mubr.f32.gmra.mrb[0].mxu0 %v3235
    %v3308 = vpop.f32.mrb[0].mxu0
    %v3309 = vadd.f32 %v3229, %v3308
    %v3310 = vpop.f32.mrb[0].mxu0
    %3311 = vdwg.mxu0
    %v3312 = vadd.f32 %v3128, %v3304
    %v3313 = vadd.f32 %v3129, %v3309
    %v3314 = vld [vmem:[%s12] sm:$0xff]
    %v3315 = vld [vmem:[%s12 + $0x8] sm:$0xff]
    %v3316 = vld [vmem:[%s12 + $0x10] sm:$0xff]
    %v3317 = vld [vmem:[%s12 + $0x18] sm:$0xff]
    %v3318 = vld [vmem:[%s13] sm:$0x1]
    %v3320 = vlaneseq
    %v3321 = vshrl.u32 %v3320, 7
    %v3322 = vsub.s32 0, %v3321
    %v3323 = vrot.slane %v3318, %v3322
    %v3326 = vsel %vm181, %v3312, 0
    %v3329 = vsel %vm181, %v3313, 0
    %3331 = vmatprep.subr.mxu0 0.0
    %3332 = vmatpush1.msra.mxu0 %v3314
    %3333 = vmatprep.subr.mxu0 0.0
    %3334 = vmatpush1.msra.mxu0 %v3315
    %3335 = vmatprep.subr.mxu0 0.0
    %3336 = vmatpush1.msra.mxu0 %v3316
    %3337 = vmatprep.subr.mxu0 0.0
    %3338 = vmatpush1.msra.mxu0 %v3317
    %3339 = vmatprep.subr.mxu0 0.0
    %3340 = vmatpush1.msra.mxu0 0.0
    %3341 = vmatprep.subr.mxu0 0.0
    %3342 = vmatpush1.msra.mxu0 0.0
    %3343 = vmatprep.subr.mxu0 0.0
    %3344 = vmatpush1.msra.mxu0 0.0
    %3345 = vmatprep.subr.mxu0 0.0
    %3346 = vmatpush1.msra.mxu0 0.0
    %3347 = vmatprep.subr.mxu0 0.0
    %3348 = vmatpush1.msra.mxu0 0.0
    %3349 = vmatprep.subr.mxu0 0.0
    %3350 = vmatpush1.msra.mxu0 0.0
    %3351 = vmatprep.subr.mxu0 0.0
    %3352 = vmatpush1.msra.mxu0 0.0
    %3353 = vmatprep.subr.mxu0 0.0
    %3354 = vmatpush1.msra.mxu0 0.0
    %3355 = vmatprep.subr.mxu0 0.0
    %3356 = vmatpush1.msra.mxu0 0.0
    %3357 = vmatprep.subr.mxu0 0.0
    %3358 = vmatpush1.msra.mxu0 0.0
    %3359 = vmatprep.subr.mxu0 0.0
    %3360 = vmatpush1.msra.mxu0 0.0
    %3361 = vmatprep.subr.mxu0 0.0
    %3362 = vmatpush1.msra.mxu0 0.0
    %3363 = vmatprep.subr.mxu0 0.0
    %3364 = vmatpush1.msra.mxu0 0.0
    %3365 = vmatprep.subr.mxu0 0.0
    %3366 = vmatpush1.msra.mxu0 0.0
    %3367 = vmatprep.subr.mxu0 0.0
    %3368 = vmatpush1.msra.mxu0 0.0
    %3369 = vmatprep.subr.mxu0 0.0
    %3370 = vmatpush1.msra.mxu0 0.0
    %3371 = vmatprep.subr.mxu0 0.0
    %3372 = vmatpush1.msra.mxu0 0.0
    %3373 = vmatprep.subr.mxu0 0.0
    %3374 = vmatpush1.msra.mxu0 0.0
    %3375 = vmatprep.subr.mxu0 0.0
    %3376 = vmatpush1.msra.mxu0 0.0
    %3377 = vmatprep.subr.mxu0 0.0
    %3378 = vmatpush1.msra.mxu0 0.0
    %3379 = vmatprep.subr.mxu0 0.0
    %3380 = vmatpush1.msra.mxu0 0.0
    %3381 = vmatprep.subr.mxu0 0.0
    %3382 = vmatpush1.msra.mxu0 0.0
    %3383 = vmatprep.subr.mxu0 0.0
    %3384 = vmatpush1.msra.mxu0 0.0
    %3385 = vmatprep.subr.mxu0 0.0
    %3386 = vmatpush1.msra.mxu0 0.0
    %3387 = vmatprep.subr.mxu0 0.0
    %3388 = vmatpush1.msra.mxu0 0.0
    %3389 = vmatprep.subr.mxu0 0.0
    %3390 = vmatpush1.msra.mxu0 0.0
    %3391 = vmatprep.subr.mxu0 0.0
    %3392 = vmatpush1.msra.mxu0 0.0
    %3393 = vmatprep.subr.mxu0 0.0
    %3394 = vmatpush1.msra.mxu0 0.0
    %3395 = vmatprep.mubr.f32.mxu0 0.0
    %3396 = vmatmul.mubr.f32.gmra.mrb[0].mxu0 %v3326
    %v3397 = vpop.f32.mrb[0].mxu0
    %v3398 = vadd.f32 %v3323, %v3397
    %v3399 = vpop.f32.mrb[0].mxu0
    %3400 = vmatprep.mubr.f32.mxu0 0.0
    %3401 = vmatmul.mubr.f32.gmra.mrb[0].mxu0 %v3329
    %v3402 = vpop.f32.mrb[0].mxu0
    %v3403 = vadd.f32 %v3323, %v3402
    %v3404 = vpop.f32.mrb[0].mxu0
    %3405 = vdwg.mxu0
    %v3406 = vmax.f32 %v3398, 0.0
    %v3407 = vmax.f32 %v3403, 0.0
    %v3408 = vld [vmem:[%s14] sm:$0xff]
    %v3409 = vld [vmem:[%s14 + $0x8] sm:$0xff]
    %v3410 = vlaneseq
    %v3411 = vshrl.u32 %v3410, 7
    %v3412 = vsub.s32 3, %v3411
    %v3413 = vrot.slane %v169, %v3412
    %v3415 = vsel %vm3230, %v3406, 0
    %v3418 = vsel %vm3230, %v3407, 0
    %3420 = vmatprep.subr.mxu0 0.0
    %3421 = vmatpush1.msra.mxu0 %v3408
    %3422 = vmatprep.subr.mxu0 0.0
    %3423 = vmatpush1.msra.mxu0 %v3409
    %3424 = vmatprep.subr.mxu0 0.0
    %3425 = vmatpush1.msra.mxu0 0.0
    %3426 = vmatprep.subr.mxu0 0.0
    %3427 = vmatpush1.msra.mxu0 0.0
    %3428 = vmatprep.subr.mxu0 0.0
    %3429 = vmatpush1.msra.mxu0 0.0
    %3430 = vmatprep.subr.mxu0 0.0
    %3431 = vmatpush1.msra.mxu0 0.0
    %3432 = vmatprep.subr.mxu0 0.0
    %3433 = vmatpush1.msra.mxu0 0.0
    %3434 = vmatprep.subr.mxu0 0.0
    %3435 = vmatpush1.msra.mxu0 0.0
    %3436 = vmatprep.subr.mxu0 0.0
    %3437 = vmatpush1.msra.mxu0 0.0
    %3438 = vmatprep.subr.mxu0 0.0
    %3439 = vmatpush1.msra.mxu0 0.0
    %3440 = vmatprep.subr.mxu0 0.0
    %3441 = vmatpush1.msra.mxu0 0.0
    %3442 = vmatprep.subr.mxu0 0.0
    %3443 = vmatpush1.msra.mxu0 0.0
    %3444 = vmatprep.subr.mxu0 0.0
    %3445 = vmatpush1.msra.mxu0 0.0
    %3446 = vmatprep.subr.mxu0 0.0
    %3447 = vmatpush1.msra.mxu0 0.0
    %3448 = vmatprep.subr.mxu0 0.0
    %3449 = vmatpush1.msra.mxu0 0.0
    %3450 = vmatprep.subr.mxu0 0.0
    %3451 = vmatpush1.msra.mxu0 0.0
    %3452 = vmatprep.subr.mxu0 0.0
    %3453 = vmatpush1.msra.mxu0 0.0
    %3454 = vmatprep.subr.mxu0 0.0
    %3455 = vmatpush1.msra.mxu0 0.0
    %3456 = vmatprep.subr.mxu0 0.0
    %3457 = vmatpush1.msra.mxu0 0.0
    %3458 = vmatprep.subr.mxu0 0.0
    %3459 = vmatpush1.msra.mxu0 0.0
    %3460 = vmatprep.subr.mxu0 0.0
    %3461 = vmatpush1.msra.mxu0 0.0
    %3462 = vmatprep.subr.mxu0 0.0
    %3463 = vmatpush1.msra.mxu0 0.0
    %3464 = vmatprep.subr.mxu0 0.0
    %3465 = vmatpush1.msra.mxu0 0.0
    %3466 = vmatprep.subr.mxu0 0.0
    %3467 = vmatpush1.msra.mxu0 0.0
    %3468 = vmatprep.subr.mxu0 0.0
    %3469 = vmatpush1.msra.mxu0 0.0
    %3470 = vmatprep.subr.mxu0 0.0
    %3471 = vmatpush1.msra.mxu0 0.0
    %3472 = vmatprep.subr.mxu0 0.0
    %3473 = vmatpush1.msra.mxu0 0.0
    %3474 = vmatprep.subr.mxu0 0.0
    %3475 = vmatpush1.msra.mxu0 0.0
    %3476 = vmatprep.subr.mxu0 0.0
    %3477 = vmatpush1.msra.mxu0 0.0
    %3478 = vmatprep.subr.mxu0 0.0
    %3479 = vmatpush1.msra.mxu0 0.0
    %3480 = vmatprep.subr.mxu0 0.0
    %3481 = vmatpush1.msra.mxu0 0.0
    %3482 = vmatprep.subr.mxu0 0.0
    %3483 = vmatpush1.msra.mxu0 0.0
    %3484 = vmatprep.mubr.f32.mxu0 0.0
    %3485 = vmatmul.mubr.f32.gmra.mrb[0].mxu0 %v3415
    %v3486 = vpop.f32.mrb[0].mxu0
    %v3487 = vadd.f32 %v3413, %v3486
    %v3488 = vpop.f32.mrb[0].mxu0
    %3489 = vmatprep.mubr.f32.mxu0 0.0
    %3490 = vmatmul.mubr.f32.gmra.mrb[0].mxu0 %v3418
    %v3491 = vpop.f32.mrb[0].mxu0
    %v3492 = vadd.f32 %v3413, %v3491
    %v3493 = vpop.f32.mrb[0].mxu0
    %3494 = vdwg.mxu0
    %v3495 = vadd.f32 %v3312, %v3487
    %v3496 = vadd.f32 %v3313, %v3492
    %s3497 = scalar_lea.vmem %s15, 8
    %v3498 = vld [vmem:[%s3497] sm:$0xff]
    %s3499 = scalar_lea.vmem %s3, 384
    %v3500 = vld [vmem:[%s3499] sm:$0xff]
    %v3501 = vld [vmem:[%s3499 + $0x8] sm:$0xff]
    %v3502 = vld [vmem:[%s3499 + $0x10] sm:$0xff]
    %v3503 = vld [vmem:[%s3499 + $0x18] sm:$0xff]
    %s3504 = scalar_lea.vmem %s4, 12
    %v3505 = vld [vmem:[%s3504] sm:$0x1]
    %v3507 = vlaneseq
    %v3508 = vshrl.u32 %v3507, 7
    %v3509 = vsub.s32 0, %v3508
    %v3510 = vrot.slane %v3505, %v3509
    %v3513 = vsel %vm181, %v3495, 0
    %v3516 = vsel %vm181, %v3496, 0
    %3518 = vmatprep.subr.mxu0 0.0
    %3519 = vmatpush1.msra.mxu0 %v3500
    %3520 = vmatprep.subr.mxu0 0.0
    %3521 = vmatpush1.msra.mxu0 %v3501
    %3522 = vmatprep.subr.mxu0 0.0
    %3523 = vmatpush1.msra.mxu0 %v3502
    %3524 = vmatprep.subr.mxu0 0.0
    %3525 = vmatpush1.msra.mxu0 %v3503
    %3526 = vmatprep.subr.mxu0 0.0
    %3527 = vmatpush1.msra.mxu0 0.0
    %3528 = vmatprep.subr.mxu0 0.0
    %3529 = vmatpush1.msra.mxu0 0.0
    %3530 = vmatprep.subr.mxu0 0.0
    %3531 = vmatpush1.msra.mxu0 0.0
    %3532 = vmatprep.subr.mxu0 0.0
    %3533 = vmatpush1.msra.mxu0 0.0
    %3534 = vmatprep.subr.mxu0 0.0
    %3535 = vmatpush1.msra.mxu0 0.0
    %3536 = vmatprep.subr.mxu0 0.0
    %3537 = vmatpush1.msra.mxu0 0.0
    %3538 = vmatprep.subr.mxu0 0.0
    %3539 = vmatpush1.msra.mxu0 0.0
    %3540 = vmatprep.subr.mxu0 0.0
    %3541 = vmatpush1.msra.mxu0 0.0
    %3542 = vmatprep.subr.mxu0 0.0
    %3543 = vmatpush1.msra.mxu0 0.0
    %3544 = vmatprep.subr.mxu0 0.0
    %3545 = vmatpush1.msra.mxu0 0.0
    %3546 = vmatprep.subr.mxu0 0.0
    %3547 = vmatpush1.msra.mxu0 0.0
    %3548 = vmatprep.subr.mxu0 0.0
    %3549 = vmatpush1.msra.mxu0 0.0
    %3550 = vmatprep.subr.mxu0 0.0
    %3551 = vmatpush1.msra.mxu0 0.0
    %3552 = vmatprep.subr.mxu0 0.0
    %3553 = vmatpush1.msra.mxu0 0.0
    %3554 = vmatprep.subr.mxu0 0.0
    %3555 = vmatpush1.msra.mxu0 0.0
    %3556 = vmatprep.subr.mxu0 0.0
    %3557 = vmatpush1.msra.mxu0 0.0
    %3558 = vmatprep.subr.mxu0 0.0
    %3559 = vmatpush1.msra.mxu0 0.0
    %3560 = vmatprep.subr.mxu0 0.0
    %3561 = vmatpush1.msra.mxu0 0.0
    %3562 = vmatprep.subr.mxu0 0.0
    %3563 = vmatpush1.msra.mxu0 0.0
    %3564 = vmatprep.subr.mxu0 0.0
    %3565 = vmatpush1.msra.mxu0 0.0
    %3566 = vmatprep.subr.mxu0 0.0
    %3567 = vmatpush1.msra.mxu0 0.0
    %3568 = vmatprep.subr.mxu0 0.0
    %3569 = vmatpush1.msra.mxu0 0.0
    %3570 = vmatprep.subr.mxu0 0.0
    %3571 = vmatpush1.msra.mxu0 0.0
    %3572 = vmatprep.subr.mxu0 0.0
    %3573 = vmatpush1.msra.mxu0 0.0
    %3574 = vmatprep.subr.mxu0 0.0
    %3575 = vmatpush1.msra.mxu0 0.0
    %3576 = vmatprep.subr.mxu0 0.0
    %3577 = vmatpush1.msra.mxu0 0.0
    %3578 = vmatprep.subr.mxu0 0.0
    %3579 = vmatpush1.msra.mxu0 0.0
    %3580 = vmatprep.subr.mxu0 0.0
    %3581 = vmatpush1.msra.mxu0 0.0
    %3582 = vmatprep.mubr.f32.mxu0 0.0
    %3583 = vmatmul.mubr.f32.gmra.mrb[0].mxu0 %v3513
    %v3584 = vpop.f32.mrb[0].mxu0
    %v3585 = vadd.f32 %v3510, %v3584
    %v3586 = vpop.f32.mrb[0].mxu0
    %3587 = vmatprep.mubr.f32.mxu0 0.0
    %3588 = vmatmul.mubr.f32.gmra.mrb[0].mxu0 %v3516
    %v3589 = vpop.f32.mrb[0].mxu0
    %v3590 = vadd.f32 %v3510, %v3589
    %v3591 = vpop.f32.mrb[0].mxu0
    %3592 = vdwg.mxu0
    %v3593 = vmul.f32 %v3585, 0.35355338
    %v3594 = vmul.f32 %v3590, 0.35355338
    %s3595 = scalar_lea.vmem %s3, 512
    %v3596 = vld [vmem:[%s3595] sm:$0xff]
    %v3597 = vld [vmem:[%s3595 + $0x8] sm:$0xff]
    %v3598 = vld [vmem:[%s3595 + $0x10] sm:$0xff]
    %v3599 = vld [vmem:[%s3595 + $0x18] sm:$0xff]
    %s3600 = scalar_lea.vmem %s4, 16
    %v3601 = vld [vmem:[%s3600] sm:$0x1]
    %v3603 = vlaneseq
    %v3604 = vshrl.u32 %v3603, 7
    %v3605 = vsub.s32 0, %v3604
    %v3606 = vrot.slane %v3601, %v3605
    %3608 = vmatprep.subr.mxu0 0.0
    %3609 = vmatpush1.msra.mxu0 %v3596
    %3610 = vmatprep.subr.mxu0 0.0
    %3611 = vmatpush1.msra.mxu0 %v3597
    %3612 = vmatprep.subr.mxu0 0.0
    %3613 = vmatpush1.msra.mxu0 %v3598
    %3614 = vmatprep.subr.mxu0 0.0
    %3615 = vmatpush1.msra.mxu0 %v3599
    %3616 = vmatprep.subr.mxu0 0.0
    %3617 = vmatpush1.msra.mxu0 0.0
    %3618 = vmatprep.subr.mxu0 0.0
    %3619 = vmatpush1.msra.mxu0 0.0
    %3620 = vmatprep.subr.mxu0 0.0
    %3621 = vmatpush1.msra.mxu0 0.0
    %3622 = vmatprep.subr.mxu0 0.0
    %3623 = vmatpush1.msra.mxu0 0.0
    %3624 = vmatprep.subr.mxu0 0.0
    %3625 = vmatpush1.msra.mxu0 0.0
    %3626 = vmatprep.subr.mxu0 0.0
    %3627 = vmatpush1.msra.mxu0 0.0
    %3628 = vmatprep.subr.mxu0 0.0
    %3629 = vmatpush1.msra.mxu0 0.0
    %3630 = vmatprep.subr.mxu0 0.0
    %3631 = vmatpush1.msra.mxu0 0.0
    %3632 = vmatprep.subr.mxu0 0.0
    %3633 = vmatpush1.msra.mxu0 0.0
    %3634 = vmatprep.subr.mxu0 0.0
    %3635 = vmatpush1.msra.mxu0 0.0
    %3636 = vmatprep.subr.mxu0 0.0
    %3637 = vmatpush1.msra.mxu0 0.0
    %3638 = vmatprep.subr.mxu0 0.0
    %3639 = vmatpush1.msra.mxu0 0.0
    %3640 = vmatprep.subr.mxu0 0.0
    %3641 = vmatpush1.msra.mxu0 0.0
    %3642 = vmatprep.subr.mxu0 0.0
    %3643 = vmatpush1.msra.mxu0 0.0
    %3644 = vmatprep.subr.mxu0 0.0
    %3645 = vmatpush1.msra.mxu0 0.0
    %3646 = vmatprep.subr.mxu0 0.0
    %3647 = vmatpush1.msra.mxu0 0.0
    %3648 = vmatprep.subr.mxu0 0.0
    %3649 = vmatpush1.msra.mxu0 0.0
    %3650 = vmatprep.subr.mxu0 0.0
    %3651 = vmatpush1.msra.mxu0 0.0
    %3652 = vmatprep.subr.mxu0 0.0
    %3653 = vmatpush1.msra.mxu0 0.0
    %3654 = vmatprep.subr.mxu0 0.0
    %3655 = vmatpush1.msra.mxu0 0.0
    %3656 = vmatprep.subr.mxu0 0.0
    %3657 = vmatpush1.msra.mxu0 0.0
    %3658 = vmatprep.subr.mxu0 0.0
    %3659 = vmatpush1.msra.mxu0 0.0
    %3660 = vmatprep.subr.mxu0 0.0
    %3661 = vmatpush1.msra.mxu0 0.0
    %3662 = vmatprep.subr.mxu0 0.0
    %3663 = vmatpush1.msra.mxu0 0.0
    %3664 = vmatprep.subr.mxu0 0.0
    %3665 = vmatpush1.msra.mxu0 0.0
    %3666 = vmatprep.subr.mxu0 0.0
    %3667 = vmatpush1.msra.mxu0 0.0
    %3668 = vmatprep.subr.mxu0 0.0
    %3669 = vmatpush1.msra.mxu0 0.0
    %3670 = vmatprep.subr.mxu0 0.0
    %3671 = vmatpush1.msra.mxu0 0.0
    %3672 = vmatprep.mubr.f32.mxu0 0.0
    %3673 = vmatmul.mubr.f32.gmra.mrb[0].mxu0 %v3513
    %v3674 = vpop.f32.mrb[0].mxu0
    %v3675 = vadd.f32 %v3606, %v3674
    %v3676 = vpop.f32.mrb[0].mxu0
    %3677 = vmatprep.mubr.f32.mxu0 0.0
    %3678 = vmatmul.mubr.f32.gmra.mrb[0].mxu0 %v3516
    %v3679 = vpop.f32.mrb[0].mxu0
    %v3680 = vadd.f32 %v3606, %v3679
    %v3681 = vpop.f32.mrb[0].mxu0
    %3682 = vdwg.mxu0
    %s3683 = scalar_lea.vmem %s3, 640
    %v3684 = vld [vmem:[%s3683] sm:$0xff]
    %v3685 = vld [vmem:[%s3683 + $0x8] sm:$0xff]
    %v3686 = vld [vmem:[%s3683 + $0x10] sm:$0xff]
    %v3687 = vld [vmem:[%s3683 + $0x18] sm:$0xff]
    %s3688 = scalar_lea.vmem %s4, 20
    %v3689 = vld [vmem:[%s3688] sm:$0x1]
    %v3691 = vlaneseq
    %v3692 = vshrl.u32 %v3691, 7
    %v3693 = vsub.s32 0, %v3692
    %v3694 = vrot.slane %v3689, %v3693
    %3696 = vmatprep.subr.mxu0 0.0
    %3697 = vmatpush1.msra.mxu0 %v3684
    %3698 = vmatprep.subr.mxu0 0.0
    %3699 = vmatpush1.msra.mxu0 %v3685
    %3700 = vmatprep.subr.mxu0 0.0
    %3701 = vmatpush1.msra.mxu0 %v3686
    %3702 = vmatprep.subr.mxu0 0.0
    %3703 = vmatpush1.msra.mxu0 %v3687
    %3704 = vmatprep.subr.mxu0 0.0
    %3705 = vmatpush1.msra.mxu0 0.0
    %3706 = vmatprep.subr.mxu0 0.0
    %3707 = vmatpush1.msra.mxu0 0.0
    %3708 = vmatprep.subr.mxu0 0.0
    %3709 = vmatpush1.msra.mxu0 0.0
    %3710 = vmatprep.subr.mxu0 0.0
    %3711 = vmatpush1.msra.mxu0 0.0
    %3712 = vmatprep.subr.mxu0 0.0
    %3713 = vmatpush1.msra.mxu0 0.0
    %3714 = vmatprep.subr.mxu0 0.0
    %3715 = vmatpush1.msra.mxu0 0.0
    %3716 = vmatprep.subr.mxu0 0.0
    %3717 = vmatpush1.msra.mxu0 0.0
    %3718 = vmatprep.subr.mxu0 0.0
    %3719 = vmatpush1.msra.mxu0 0.0
    %3720 = vmatprep.subr.mxu0 0.0
    %3721 = vmatpush1.msra.mxu0 0.0
    %3722 = vmatprep.subr.mxu0 0.0
    %3723 = vmatpush1.msra.mxu0 0.0
    %3724 = vmatprep.subr.mxu0 0.0
    %3725 = vmatpush1.msra.mxu0 0.0
    %3726 = vmatprep.subr.mxu0 0.0
    %3727 = vmatpush1.msra.mxu0 0.0
    %3728 = vmatprep.subr.mxu0 0.0
    %3729 = vmatpush1.msra.mxu0 0.0
    %3730 = vmatprep.subr.mxu0 0.0
    %3731 = vmatpush1.msra.mxu0 0.0
    %3732 = vmatprep.subr.mxu0 0.0
    %3733 = vmatpush1.msra.mxu0 0.0
    %3734 = vmatprep.subr.mxu0 0.0
    %3735 = vmatpush1.msra.mxu0 0.0
    %3736 = vmatprep.subr.mxu0 0.0
    %3737 = vmatpush1.msra.mxu0 0.0
    %3738 = vmatprep.subr.mxu0 0.0
    %3739 = vmatpush1.msra.mxu0 0.0
    %3740 = vmatprep.subr.mxu0 0.0
    %3741 = vmatpush1.msra.mxu0 0.0
    %3742 = vmatprep.subr.mxu0 0.0
    %3743 = vmatpush1.msra.mxu0 0.0
    %3744 = vmatprep.subr.mxu0 0.0
    %3745 = vmatpush1.msra.mxu0 0.0
    %3746 = vmatprep.subr.mxu0 0.0
    %3747 = vmatpush1.msra.mxu0 0.0
    %3748 = vmatprep.subr.mxu0 0.0
    %3749 = vmatpush1.msra.mxu0 0.0
    %3750 = vmatprep.subr.mxu0 0.0
    %3751 = vmatpush1.msra.mxu0 0.0
    %3752 = vmatprep.subr.mxu0 0.0
    %3753 = vmatpush1.msra.mxu0 0.0
    %3754 = vmatprep.subr.mxu0 0.0
    %3755 = vmatpush1.msra.mxu0 0.0
    %3756 = vmatprep.subr.mxu0 0.0
    %3757 = vmatpush1.msra.mxu0 0.0
    %3758 = vmatprep.subr.mxu0 0.0
    %3759 = vmatpush1.msra.mxu0 0.0
    %3760 = vmatprep.mubr.f32.mxu0 0.0
    %3761 = vmatmul.mubr.f32.gmra.mrb[0].mxu0 %v3513
    %v3762 = vpop.f32.mrb[0].mxu0
    %v3763 = vadd.f32 %v3694, %v3762
    %v3764 = vpop.f32.mrb[0].mxu0
    %3765 = vmatprep.mubr.f32.mxu0 0.0
    %3766 = vmatmul.mubr.f32.gmra.mrb[0].mxu0 %v3516
    %v3767 = vpop.f32.mrb[0].mxu0
    %v3768 = vadd.f32 %v3694, %v3767
    %v3769 = vpop.f32.mrb[0].mxu0
    %3770 = vdwg.mxu0
    %v3772 = vsel %vm441, %v3593, 0
    %v3775 = vsel %vm441, %v3675, 0
    %3777 = vmatprep.subr.mxu0 0.0
    %3778 = vmatpush1.xpose.msra.mxu0 %v3775
    %3779 = vmatprep.subr.mxu0 0.0
    %3780 = vmatpush1.xpose.msra.mxu0 0.0
    %3781 = vmatprep.subr.mxu0 0.0
    %3782 = vmatpush1.xpose.msra.mxu0 0.0
    %3783 = vmatprep.subr.mxu0 0.0
    %3784 = vmatpush1.xpose.msra.mxu0 0.0
    %3785 = vmatprep.subr.mxu0 0.0
    %3786 = vmatpush1.xpose.msra.mxu0 0.0
    %3787 = vmatprep.subr.mxu0 0.0
    %3788 = vmatpush1.xpose.msra.mxu0 0.0
    %3789 = vmatprep.subr.mxu0 0.0
    %3790 = vmatpush1.xpose.msra.mxu0 0.0
    %3791 = vmatprep.subr.mxu0 0.0
    %3792 = vmatpush1.xpose.msra.mxu0 0.0
    %3793 = vmatprep.subr.mxu0 0.0
    %3794 = vmatpush1.xpose.msra.mxu0 0.0
    %3795 = vmatprep.subr.mxu0 0.0
    %3796 = vmatpush1.xpose.msra.mxu0 0.0
    %3797 = vmatprep.subr.mxu0 0.0
    %3798 = vmatpush1.xpose.msra.mxu0 0.0
    %3799 = vmatprep.subr.mxu0 0.0
    %3800 = vmatpush1.xpose.msra.mxu0 0.0
    %3801 = vmatprep.subr.mxu0 0.0
    %3802 = vmatpush1.xpose.msra.mxu0 0.0
    %3803 = vmatprep.subr.mxu0 0.0
    %3804 = vmatpush1.xpose.msra.mxu0 0.0
    %3805 = vmatprep.subr.mxu0 0.0
    %3806 = vmatpush1.xpose.msra.mxu0 0.0
    %3807 = vmatprep.subr.mxu0 0.0
    %3808 = vmatpush1.xpose.msra.mxu0 0.0
    %3809 = vmatprep.subr.mxu0 0.0
    %3810 = vmatpush1.xpose.msra.mxu0 0.0
    %3811 = vmatprep.subr.mxu0 0.0
    %3812 = vmatpush1.xpose.msra.mxu0 0.0
    %3813 = vmatprep.subr.mxu0 0.0
    %3814 = vmatpush1.xpose.msra.mxu0 0.0
    %3815 = vmatprep.subr.mxu0 0.0
    %3816 = vmatpush1.xpose.msra.mxu0 0.0
    %3817 = vmatprep.subr.mxu0 0.0
    %3818 = vmatpush1.xpose.msra.mxu0 0.0
    %3819 = vmatprep.subr.mxu0 0.0
    %3820 = vmatpush1.xpose.msra.mxu0 0.0
    %3821 = vmatprep.subr.mxu0 0.0
    %3822 = vmatpush1.xpose.msra.mxu0 0.0
    %3823 = vmatprep.subr.mxu0 0.0
    %3824 = vmatpush1.xpose.msra.mxu0 0.0
    %3825 = vmatprep.subr.mxu0 0.0
    %3826 = vmatpush1.xpose.msra.mxu0 0.0
    %3827 = vmatprep.subr.mxu0 0.0
    %3828 = vmatpush1.xpose.msra.mxu0 0.0
    %3829 = vmatprep.subr.mxu0 0.0
    %3830 = vmatpush1.xpose.msra.mxu0 0.0
    %3831 = vmatprep.subr.mxu0 0.0
    %3832 = vmatpush1.xpose.msra.mxu0 0.0
    %3833 = vmatprep.subr.mxu0 0.0
    %3834 = vmatpush1.xpose.msra.mxu0 0.0
    %3835 = vmatprep.subr.mxu0 0.0
    %3836 = vmatpush1.xpose.msra.mxu0 0.0
    %3837 = vmatprep.subr.mxu0 0.0
    %3838 = vmatpush1.xpose.msra.mxu0 0.0
    %3839 = vmatprep.subr.mxu0 0.0
    %3840 = vmatpush1.xpose.msra.mxu0 0.0
    %3841 = vmatprep.mubr.f32.mxu0 0.0
    %3842 = vmatmul.mubr.f32.gmra.mrb[0].mxu0 %v3772
    %v3843 = vpop.f32.mrb[0].mxu0
    %v3844 = vadd.f32 0.0, %v3843
    %v3845 = vpop.f32.mrb[0].mxu0
    %3846 = vdwg.mxu0
    %v3848 = vsel %vm441, %v3594, 0
    %v3851 = vsel %vm441, %v3680, 0
    %3853 = vmatprep.subr.mxu0 0.0
    %3854 = vmatpush1.xpose.msra.mxu0 %v3851
    %3855 = vmatprep.subr.mxu0 0.0
    %3856 = vmatpush1.xpose.msra.mxu0 0.0
    %3857 = vmatprep.subr.mxu0 0.0
    %3858 = vmatpush1.xpose.msra.mxu0 0.0
    %3859 = vmatprep.subr.mxu0 0.0
    %3860 = vmatpush1.xpose.msra.mxu0 0.0
    %3861 = vmatprep.subr.mxu0 0.0
    %3862 = vmatpush1.xpose.msra.mxu0 0.0
    %3863 = vmatprep.subr.mxu0 0.0
    %3864 = vmatpush1.xpose.msra.mxu0 0.0
    %3865 = vmatprep.subr.mxu0 0.0
    %3866 = vmatpush1.xpose.msra.mxu0 0.0
    %3867 = vmatprep.subr.mxu0 0.0
    %3868 = vmatpush1.xpose.msra.mxu0 0.0
    %3869 = vmatprep.subr.mxu0 0.0
    %3870 = vmatpush1.xpose.msra.mxu0 0.0
    %3871 = vmatprep.subr.mxu0 0.0
    %3872 = vmatpush1.xpose.msra.mxu0 0.0
    %3873 = vmatprep.subr.mxu0 0.0
    %3874 = vmatpush1.xpose.msra.mxu0 0.0
    %3875 = vmatprep.subr.mxu0 0.0
    %3876 = vmatpush1.xpose.msra.mxu0 0.0
    %3877 = vmatprep.subr.mxu0 0.0
    %3878 = vmatpush1.xpose.msra.mxu0 0.0
    %3879 = vmatprep.subr.mxu0 0.0
    %3880 = vmatpush1.xpose.msra.mxu0 0.0
    %3881 = vmatprep.subr.mxu0 0.0
    %3882 = vmatpush1.xpose.msra.mxu0 0.0
    %3883 = vmatprep.subr.mxu0 0.0
    %3884 = vmatpush1.xpose.msra.mxu0 0.0
    %3885 = vmatprep.subr.mxu0 0.0
    %3886 = vmatpush1.xpose.msra.mxu0 0.0
    %3887 = vmatprep.subr.mxu0 0.0
    %3888 = vmatpush1.xpose.msra.mxu0 0.0
    %3889 = vmatprep.subr.mxu0 0.0
    %3890 = vmatpush1.xpose.msra.mxu0 0.0
    %3891 = vmatprep.subr.mxu0 0.0
    %3892 = vmatpush1.xpose.msra.mxu0 0.0
    %3893 = vmatprep.subr.mxu0 0.0
    %3894 = vmatpush1.xpose.msra.mxu0 0.0
    %3895 = vmatprep.subr.mxu0 0.0
    %3896 = vmatpush1.xpose.msra.mxu0 0.0
    %3897 = vmatprep.subr.mxu0 0.0
    %3898 = vmatpush1.xpose.msra.mxu0 0.0
    %3899 = vmatprep.subr.mxu0 0.0
    %3900 = vmatpush1.xpose.msra.mxu0 0.0
    %3901 = vmatprep.subr.mxu0 0.0
    %3902 = vmatpush1.xpose.msra.mxu0 0.0
    %3903 = vmatprep.subr.mxu0 0.0
    %3904 = vmatpush1.xpose.msra.mxu0 0.0
    %3905 = vmatprep.subr.mxu0 0.0
    %3906 = vmatpush1.xpose.msra.mxu0 0.0
    %3907 = vmatprep.subr.mxu0 0.0
    %3908 = vmatpush1.xpose.msra.mxu0 0.0
    %3909 = vmatprep.subr.mxu0 0.0
    %3910 = vmatpush1.xpose.msra.mxu0 0.0
    %3911 = vmatprep.subr.mxu0 0.0
    %3912 = vmatpush1.xpose.msra.mxu0 0.0
    %3913 = vmatprep.subr.mxu0 0.0
    %3914 = vmatpush1.xpose.msra.mxu0 0.0
    %3915 = vmatprep.subr.mxu0 0.0
    %3916 = vmatpush1.xpose.msra.mxu0 0.0
    %3917 = vmatprep.mubr.f32.mxu0 0.0
    %3918 = vmatmul.mubr.f32.gmra.mrb[0].mxu0 %v3848
    %v3919 = vpop.f32.mrb[0].mxu0
    %v3920 = vadd.f32 0.0, %v3919
    %v3921 = vpop.f32.mrb[0].mxu0
    %3922 = vdwg.mxu0
    %v3923 = vsel %vm441, %v3844, -inf
    %3924 = vmax.xlane.f32.xlu0 %v3923
    %v3925 = vpop.xlane.xlu0 %3924
    %v3926 = vsel %vm441, %v3920, -inf
    %3927 = vmax.xlane.f32.xlu0 %v3926
    %v3928 = vpop.xlane.xlu0 %3927
    %v3929 = vsub.f32 %v3844, %v3925
    %v3930 = vsub.f32 %v3920, %v3928
    %v3931 = vmul.f32 %v3929, 1.442695
    %v3932 = vpow.pop %v3931
    %v3933 = vmul.f32 %v3930, 1.442695
    %v3934 = vpow.pop %v3933
    %v3935 = vsel %vm441, %v3932, 0.0
    %3936 = vadd.xlane.f32.xlu0 %v3935
    %v3937 = vpop.xlane.xlu0 %3936
    %v3938 = vsel %vm441, %v3934, 0.0
    %3939 = vadd.xlane.f32.xlu0 %v3938
    %v3940 = vpop.xlane.xlu0 %3939
    %v3941 = vrcp.pop %v3937
    %v3942 = vmul.f32 %v3932, %v3941
    %v3943 = vrcp.pop %v3940
    %v3944 = vmul.f32 %v3934, %v3943
    %v3946 = vsel %vm441, %v3942, 0
    %3948 = vmatprep.subr.mxu0 0.0
    %3949 = vmatpush1.msra.mxu0 %v3763
    %3950 = vmatprep.subr.mxu0 0.0
    %3951 = vmatpush1.msra.mxu0 0.0
    %3952 = vmatprep.subr.mxu0 0.0
    %3953 = vmatpush1.msra.mxu0 0.0
    %3954 = vmatprep.subr.mxu0 0.0
    %3955 = vmatpush1.msra.mxu0 0.0
    %3956 = vmatprep.subr.mxu0 0.0
    %3957 = vmatpush1.msra.mxu0 0.0
    %3958 = vmatprep.subr.mxu0 0.0
    %3959 = vmatpush1.msra.mxu0 0.0
    %3960 = vmatprep.subr.mxu0 0.0
    %3961 = vmatpush1.msra.mxu0 0.0
    %3962 = vmatprep.subr.mxu0 0.0
    %3963 = vmatpush1.msra.mxu0 0.0
    %3964 = vmatprep.subr.mxu0 0.0
    %3965 = vmatpush1.msra.mxu0 0.0
    %3966 = vmatprep.subr.mxu0 0.0
    %3967 = vmatpush1.msra.mxu0 0.0
    %3968 = vmatprep.subr.mxu0 0.0
    %3969 = vmatpush1.msra.mxu0 0.0
    %3970 = vmatprep.subr.mxu0 0.0
    %3971 = vmatpush1.msra.mxu0 0.0
    %3972 = vmatprep.subr.mxu0 0.0
    %3973 = vmatpush1.msra.mxu0 0.0
    %3974 = vmatprep.subr.mxu0 0.0
    %3975 = vmatpush1.msra.mxu0 0.0
    %3976 = vmatprep.subr.mxu0 0.0
    %3977 = vmatpush1.msra.mxu0 0.0
    %3978 = vmatprep.subr.mxu0 0.0
    %3979 = vmatpush1.msra.mxu0 0.0
    %3980 = vmatprep.subr.mxu0 0.0
    %3981 = vmatpush1.msra.mxu0 0.0
    %3982 = vmatprep.subr.mxu0 0.0
    %3983 = vmatpush1.msra.mxu0 0.0
    %3984 = vmatprep.subr.mxu0 0.0
    %3985 = vmatpush1.msra.mxu0 0.0
    %3986 = vmatprep.subr.mxu0 0.0
    %3987 = vmatpush1.msra.mxu0 0.0
    %3988 = vmatprep.subr.mxu0 0.0
    %3989 = vmatpush1.msra.mxu0 0.0
    %3990 = vmatprep.subr.mxu0 0.0
    %3991 = vmatpush1.msra.mxu0 0.0
    %3992 = vmatprep.subr.mxu0 0.0
    %3993 = vmatpush1.msra.mxu0 0.0
    %3994 = vmatprep.subr.mxu0 0.0
    %3995 = vmatpush1.msra.mxu0 0.0
    %3996 = vmatprep.subr.mxu0 0.0
    %3997 = vmatpush1.msra.mxu0 0.0
    %3998 = vmatprep.subr.mxu0 0.0
    %3999 = vmatpush1.msra.mxu0 0.0
    %4000 = vmatprep.subr.mxu0 0.0
    %4001 = vmatpush1.msra.mxu0 0.0
    %4002 = vmatprep.subr.mxu0 0.0
    %4003 = vmatpush1.msra.mxu0 0.0
    %4004 = vmatprep.subr.mxu0 0.0
    %4005 = vmatpush1.msra.mxu0 0.0
    %4006 = vmatprep.subr.mxu0 0.0
    %4007 = vmatpush1.msra.mxu0 0.0
    %4008 = vmatprep.subr.mxu0 0.0
    %4009 = vmatpush1.msra.mxu0 0.0
    %4010 = vmatprep.subr.mxu0 0.0
    %4011 = vmatpush1.msra.mxu0 0.0
    %4012 = vmatprep.mubr.f32.mxu0 0.0
    %4013 = vmatmul.mubr.f32.gmra.mrb[0].mxu0 %v3946
    %v4014 = vpop.f32.mrb[0].mxu0
    %v4015 = vadd.f32 0.0, %v4014
    %v4016 = vpop.f32.mrb[0].mxu0
    %4017 = vdwg.mxu0
    %v4019 = vsel %vm441, %v3944, 0
    %4021 = vmatprep.subr.mxu0 0.0
    %4022 = vmatpush1.msra.mxu0 %v3768
    %4023 = vmatprep.subr.mxu0 0.0
    %4024 = vmatpush1.msra.mxu0 0.0
    %4025 = vmatprep.subr.mxu0 0.0
    %4026 = vmatpush1.msra.mxu0 0.0
    %4027 = vmatprep.subr.mxu0 0.0
    %4028 = vmatpush1.msra.mxu0 0.0
    %4029 = vmatprep.subr.mxu0 0.0
    %4030 = vmatpush1.msra.mxu0 0.0
    %4031 = vmatprep.subr.mxu0 0.0
    %4032 = vmatpush1.msra.mxu0 0.0
    %4033 = vmatprep.subr.mxu0 0.0
    %4034 = vmatpush1.msra.mxu0 0.0
    %4035 = vmatprep.subr.mxu0 0.0
    %4036 = vmatpush1.msra.mxu0 0.0
    %4037 = vmatprep.subr.mxu0 0.0
    %4038 = vmatpush1.msra.mxu0 0.0
    %4039 = vmatprep.subr.mxu0 0.0
    %4040 = vmatpush1.msra.mxu0 0.0
    %4041 = vmatprep.subr.mxu0 0.0
    %4042 = vmatpush1.msra.mxu0 0.0
    %4043 = vmatprep.subr.mxu0 0.0
    %4044 = vmatpush1.msra.mxu0 0.0
    %4045 = vmatprep.subr.mxu0 0.0
    %4046 = vmatpush1.msra.mxu0 0.0
    %4047 = vmatprep.subr.mxu0 0.0
    %4048 = vmatpush1.msra.mxu0 0.0
    %4049 = vmatprep.subr.mxu0 0.0
    %4050 = vmatpush1.msra.mxu0 0.0
    %4051 = vmatprep.subr.mxu0 0.0
    %4052 = vmatpush1.msra.mxu0 0.0
    %4053 = vmatprep.subr.mxu0 0.0
    %4054 = vmatpush1.msra.mxu0 0.0
    %4055 = vmatprep.subr.mxu0 0.0
    %4056 = vmatpush1.msra.mxu0 0.0
    %4057 = vmatprep.subr.mxu0 0.0
    %4058 = vmatpush1.msra.mxu0 0.0
    %4059 = vmatprep.subr.mxu0 0.0
    %4060 = vmatpush1.msra.mxu0 0.0
    %4061 = vmatprep.subr.mxu0 0.0
    %4062 = vmatpush1.msra.mxu0 0.0
    %4063 = vmatprep.subr.mxu0 0.0
    %4064 = vmatpush1.msra.mxu0 0.0
    %4065 = vmatprep.subr.mxu0 0.0
    %4066 = vmatpush1.msra.mxu0 0.0
    %4067 = vmatprep.subr.mxu0 0.0
    %4068 = vmatpush1.msra.mxu0 0.0
    %4069 = vmatprep.subr.mxu0 0.0
    %4070 = vmatpush1.msra.mxu0 0.0
    %4071 = vmatprep.subr.mxu0 0.0
    %4072 = vmatpush1.msra.mxu0 0.0
    %4073 = vmatprep.subr.mxu0 0.0
    %4074 = vmatpush1.msra.mxu0 0.0
    %4075 = vmatprep.subr.mxu0 0.0
    %4076 = vmatpush1.msra.mxu0 0.0
    %4077 = vmatprep.subr.mxu0 0.0
    %4078 = vmatpush1.msra.mxu0 0.0
    %4079 = vmatprep.subr.mxu0 0.0
    %4080 = vmatpush1.msra.mxu0 0.0
    %4081 = vmatprep.subr.mxu0 0.0
    %4082 = vmatpush1.msra.mxu0 0.0
    %4083 = vmatprep.subr.mxu0 0.0
    %4084 = vmatpush1.msra.mxu0 0.0
    %4085 = vmatprep.mubr.f32.mxu0 0.0
    %4086 = vmatmul.mubr.f32.gmra.mrb[0].mxu0 %v4019
    %v4087 = vpop.f32.mrb[0].mxu0
    %v4088 = vadd.f32 0.0, %v4087
    %v4089 = vpop.f32.mrb[0].mxu0
    %4090 = vdwg.mxu0
    %s4091 = scalar_lea.vmem %s5, 32
    %v4092 = vld [vmem:[%s4091] sm:$0xff]
    %s4093 = scalar_lea.vmem %s3, 416
    %v4094 = vld [vmem:[%s4093] sm:$0xff]
    %v4095 = vld [vmem:[%s4093 + $0x8] sm:$0xff]
    %v4096 = vld [vmem:[%s4093 + $0x10] sm:$0xff]
    %v4097 = vld [vmem:[%s4093 + $0x18] sm:$0xff]
    %s4098 = scalar_lea.vmem %s4, 13
    %v4099 = vld [vmem:[%s4098] sm:$0x1]
    %v4101 = vlaneseq
    %v4102 = vshrl.u32 %v4101, 7
    %v4103 = vsub.s32 0, %v4102
    %v4104 = vrot.slane %v4099, %v4103
    %4106 = vmatprep.subr.mxu0 0.0
    %4107 = vmatpush1.msra.mxu0 %v4094
    %4108 = vmatprep.subr.mxu0 0.0
    %4109 = vmatpush1.msra.mxu0 %v4095
    %4110 = vmatprep.subr.mxu0 0.0
    %4111 = vmatpush1.msra.mxu0 %v4096
    %4112 = vmatprep.subr.mxu0 0.0
    %4113 = vmatpush1.msra.mxu0 %v4097
    %4114 = vmatprep.subr.mxu0 0.0
    %4115 = vmatpush1.msra.mxu0 0.0
    %4116 = vmatprep.subr.mxu0 0.0
    %4117 = vmatpush1.msra.mxu0 0.0
    %4118 = vmatprep.subr.mxu0 0.0
    %4119 = vmatpush1.msra.mxu0 0.0
    %4120 = vmatprep.subr.mxu0 0.0
    %4121 = vmatpush1.msra.mxu0 0.0
    %4122 = vmatprep.subr.mxu0 0.0
    %4123 = vmatpush1.msra.mxu0 0.0
    %4124 = vmatprep.subr.mxu0 0.0
    %4125 = vmatpush1.msra.mxu0 0.0
    %4126 = vmatprep.subr.mxu0 0.0
    %4127 = vmatpush1.msra.mxu0 0.0
    %4128 = vmatprep.subr.mxu0 0.0
    %4129 = vmatpush1.msra.mxu0 0.0
    %4130 = vmatprep.subr.mxu0 0.0
    %4131 = vmatpush1.msra.mxu0 0.0
    %4132 = vmatprep.subr.mxu0 0.0
    %4133 = vmatpush1.msra.mxu0 0.0
    %4134 = vmatprep.subr.mxu0 0.0
    %4135 = vmatpush1.msra.mxu0 0.0
    %4136 = vmatprep.subr.mxu0 0.0
    %4137 = vmatpush1.msra.mxu0 0.0
    %4138 = vmatprep.subr.mxu0 0.0
    %4139 = vmatpush1.msra.mxu0 0.0
    %4140 = vmatprep.subr.mxu0 0.0
    %4141 = vmatpush1.msra.mxu0 0.0
    %4142 = vmatprep.subr.mxu0 0.0
    %4143 = vmatpush1.msra.mxu0 0.0
    %4144 = vmatprep.subr.mxu0 0.0
    %4145 = vmatpush1.msra.mxu0 0.0
    %4146 = vmatprep.subr.mxu0 0.0
    %4147 = vmatpush1.msra.mxu0 0.0
    %4148 = vmatprep.subr.mxu0 0.0
    %4149 = vmatpush1.msra.mxu0 0.0
    %4150 = vmatprep.subr.mxu0 0.0
    %4151 = vmatpush1.msra.mxu0 0.0
    %4152 = vmatprep.subr.mxu0 0.0
    %4153 = vmatpush1.msra.mxu0 0.0
    %4154 = vmatprep.subr.mxu0 0.0
    %4155 = vmatpush1.msra.mxu0 0.0
    %4156 = vmatprep.subr.mxu0 0.0
    %4157 = vmatpush1.msra.mxu0 0.0
    %4158 = vmatprep.subr.mxu0 0.0
    %4159 = vmatpush1.msra.mxu0 0.0
    %4160 = vmatprep.subr.mxu0 0.0
    %4161 = vmatpush1.msra.mxu0 0.0
    %4162 = vmatprep.subr.mxu0 0.0
    %4163 = vmatpush1.msra.mxu0 0.0
    %4164 = vmatprep.subr.mxu0 0.0
    %4165 = vmatpush1.msra.mxu0 0.0
    %4166 = vmatprep.subr.mxu0 0.0
    %4167 = vmatpush1.msra.mxu0 0.0
    %4168 = vmatprep.subr.mxu0 0.0
    %4169 = vmatpush1.msra.mxu0 0.0
    %4170 = vmatprep.mubr.f32.mxu0 0.0
    %4171 = vmatmul.mubr.f32.gmra.mrb[0].mxu0 %v3513
    %v4172 = vpop.f32.mrb[0].mxu0
    %v4173 = vadd.f32 %v4104, %v4172
    %v4174 = vpop.f32.mrb[0].mxu0
    %4175 = vmatprep.mubr.f32.mxu0 0.0
    %4176 = vmatmul.mubr.f32.gmra.mrb[0].mxu0 %v3516
    %v4177 = vpop.f32.mrb[0].mxu0
    %v4178 = vadd.f32 %v4104, %v4177
    %v4179 = vpop.f32.mrb[0].mxu0
    %4180 = vdwg.mxu0
    %v4181 = vmul.f32 %v4173, 0.35355338
    %v4182 = vmul.f32 %v4178, 0.35355338
    %s4183 = scalar_lea.vmem %s3, 544
    %v4184 = vld [vmem:[%s4183] sm:$0xff]
    %v4185 = vld [vmem:[%s4183 + $0x8] sm:$0xff]
    %v4186 = vld [vmem:[%s4183 + $0x10] sm:$0xff]
    %v4187 = vld [vmem:[%s4183 + $0x18] sm:$0xff]
    %s4188 = scalar_lea.vmem %s4, 17
    %v4189 = vld [vmem:[%s4188] sm:$0x1]
    %v4191 = vlaneseq
    %v4192 = vshrl.u32 %v4191, 7
    %v4193 = vsub.s32 0, %v4192
    %v4194 = vrot.slane %v4189, %v4193
    %4196 = vmatprep.subr.mxu0 0.0
    %4197 = vmatpush1.msra.mxu0 %v4184
    %4198 = vmatprep.subr.mxu0 0.0
    %4199 = vmatpush1.msra.mxu0 %v4185
    %4200 = vmatprep.subr.mxu0 0.0
    %4201 = vmatpush1.msra.mxu0 %v4186
    %4202 = vmatprep.subr.mxu0 0.0
    %4203 = vmatpush1.msra.mxu0 %v4187
    %4204 = vmatprep.subr.mxu0 0.0
    %4205 = vmatpush1.msra.mxu0 0.0
    %4206 = vmatprep.subr.mxu0 0.0
    %4207 = vmatpush1.msra.mxu0 0.0
    %4208 = vmatprep.subr.mxu0 0.0
    %4209 = vmatpush1.msra.mxu0 0.0
    %4210 = vmatprep.subr.mxu0 0.0
    %4211 = vmatpush1.msra.mxu0 0.0
    %4212 = vmatprep.subr.mxu0 0.0
    %4213 = vmatpush1.msra.mxu0 0.0
    %4214 = vmatprep.subr.mxu0 0.0
    %4215 = vmatpush1.msra.mxu0 0.0
    %4216 = vmatprep.subr.mxu0 0.0
    %4217 = vmatpush1.msra.mxu0 0.0
    %4218 = vmatprep.subr.mxu0 0.0
    %4219 = vmatpush1.msra.mxu0 0.0
    %4220 = vmatprep.subr.mxu0 0.0
    %4221 = vmatpush1.msra.mxu0 0.0
    %4222 = vmatprep.subr.mxu0 0.0
    %4223 = vmatpush1.msra.mxu0 0.0
    %4224 = vmatprep.subr.mxu0 0.0
    %4225 = vmatpush1.msra.mxu0 0.0
    %4226 = vmatprep.subr.mxu0 0.0
    %4227 = vmatpush1.msra.mxu0 0.0
    %4228 = vmatprep.subr.mxu0 0.0
    %4229 = vmatpush1.msra.mxu0 0.0
    %4230 = vmatprep.subr.mxu0 0.0
    %4231 = vmatpush1.msra.mxu0 0.0
    %4232 = vmatprep.subr.mxu0 0.0
    %4233 = vmatpush1.msra.mxu0 0.0
    %4234 = vmatprep.subr.mxu0 0.0
    %4235 = vmatpush1.msra.mxu0 0.0
    %4236 = vmatprep.subr.mxu0 0.0
    %4237 = vmatpush1.msra.mxu0 0.0
    %4238 = vmatprep.subr.mxu0 0.0
    %4239 = vmatpush1.msra.mxu0 0.0
    %4240 = vmatprep.subr.mxu0 0.0
    %4241 = vmatpush1.msra.mxu0 0.0
    %4242 = vmatprep.subr.mxu0 0.0
    %4243 = vmatpush1.msra.mxu0 0.0
    %4244 = vmatprep.subr.mxu0 0.0
    %4245 = vmatpush1.msra.mxu0 0.0
    %4246 = vmatprep.subr.mxu0 0.0
    %4247 = vmatpush1.msra.mxu0 0.0
    %4248 = vmatprep.subr.mxu0 0.0
    %4249 = vmatpush1.msra.mxu0 0.0
    %4250 = vmatprep.subr.mxu0 0.0
    %4251 = vmatpush1.msra.mxu0 0.0
    %4252 = vmatprep.subr.mxu0 0.0
    %4253 = vmatpush1.msra.mxu0 0.0
    %4254 = vmatprep.subr.mxu0 0.0
    %4255 = vmatpush1.msra.mxu0 0.0
    %4256 = vmatprep.subr.mxu0 0.0
    %4257 = vmatpush1.msra.mxu0 0.0
    %4258 = vmatprep.subr.mxu0 0.0
    %4259 = vmatpush1.msra.mxu0 0.0
    %4260 = vmatprep.mubr.f32.mxu0 0.0
    %4261 = vmatmul.mubr.f32.gmra.mrb[0].mxu0 %v3513
    %v4262 = vpop.f32.mrb[0].mxu0
    %v4263 = vadd.f32 %v4194, %v4262
    %v4264 = vpop.f32.mrb[0].mxu0
    %4265 = vmatprep.mubr.f32.mxu0 0.0
    %4266 = vmatmul.mubr.f32.gmra.mrb[0].mxu0 %v3516
    %v4267 = vpop.f32.mrb[0].mxu0
    %v4268 = vadd.f32 %v4194, %v4267
    %v4269 = vpop.f32.mrb[0].mxu0
    %4270 = vdwg.mxu0
    %s4271 = scalar_lea.vmem %s3, 672
    %v4272 = vld [vmem:[%s4271] sm:$0xff]
    %v4273 = vld [vmem:[%s4271 + $0x8] sm:$0xff]
    %v4274 = vld [vmem:[%s4271 + $0x10] sm:$0xff]
    %v4275 = vld [vmem:[%s4271 + $0x18] sm:$0xff]
    %s4276 = scalar_lea.vmem %s4, 21
    %v4277 = vld [vmem:[%s4276] sm:$0x1]
    %v4279 = vlaneseq
    %v4280 = vshrl.u32 %v4279, 7
    %v4281 = vsub.s32 0, %v4280
    %v4282 = vrot.slane %v4277, %v4281
    %4284 = vmatprep.subr.mxu0 0.0
    %4285 = vmatpush1.msra.mxu0 %v4272
    %4286 = vmatprep.subr.mxu0 0.0
    %4287 = vmatpush1.msra.mxu0 %v4273
    %4288 = vmatprep.subr.mxu0 0.0
    %4289 = vmatpush1.msra.mxu0 %v4274
    %4290 = vmatprep.subr.mxu0 0.0
    %4291 = vmatpush1.msra.mxu0 %v4275
    %4292 = vmatprep.subr.mxu0 0.0
    %4293 = vmatpush1.msra.mxu0 0.0
    %4294 = vmatprep.subr.mxu0 0.0
    %4295 = vmatpush1.msra.mxu0 0.0
    %4296 = vmatprep.subr.mxu0 0.0
    %4297 = vmatpush1.msra.mxu0 0.0
    %4298 = vmatprep.subr.mxu0 0.0
    %4299 = vmatpush1.msra.mxu0 0.0
    %4300 = vmatprep.subr.mxu0 0.0
    %4301 = vmatpush1.msra.mxu0 0.0
    %4302 = vmatprep.subr.mxu0 0.0
    %4303 = vmatpush1.msra.mxu0 0.0
    %4304 = vmatprep.subr.mxu0 0.0
    %4305 = vmatpush1.msra.mxu0 0.0
    %4306 = vmatprep.subr.mxu0 0.0
    %4307 = vmatpush1.msra.mxu0 0.0
    %4308 = vmatprep.subr.mxu0 0.0
    %4309 = vmatpush1.msra.mxu0 0.0
    %4310 = vmatprep.subr.mxu0 0.0
    %4311 = vmatpush1.msra.mxu0 0.0
    %4312 = vmatprep.subr.mxu0 0.0
    %4313 = vmatpush1.msra.mxu0 0.0
    %4314 = vmatprep.subr.mxu0 0.0
    %4315 = vmatpush1.msra.mxu0 0.0
    %4316 = vmatprep.subr.mxu0 0.0
    %4317 = vmatpush1.msra.mxu0 0.0
    %4318 = vmatprep.subr.mxu0 0.0
    %4319 = vmatpush1.msra.mxu0 0.0
    %4320 = vmatprep.subr.mxu0 0.0
    %4321 = vmatpush1.msra.mxu0 0.0
    %4322 = vmatprep.subr.mxu0 0.0
    %4323 = vmatpush1.msra.mxu0 0.0
    %4324 = vmatprep.subr.mxu0 0.0
    %4325 = vmatpush1.msra.mxu0 0.0
    %4326 = vmatprep.subr.mxu0 0.0
    %4327 = vmatpush1.msra.mxu0 0.0
    %4328 = vmatprep.subr.mxu0 0.0
    %4329 = vmatpush1.msra.mxu0 0.0
    %4330 = vmatprep.subr.mxu0 0.0
    %4331 = vmatpush1.msra.mxu0 0.0
    %4332 = vmatprep.subr.mxu0 0.0
    %4333 = vmatpush1.msra.mxu0 0.0
    %4334 = vmatprep.subr.mxu0 0.0
    %4335 = vmatpush1.msra.mxu0 0.0
    %4336 = vmatprep.subr.mxu0 0.0
    %4337 = vmatpush1.msra.mxu0 0.0
    %4338 = vmatprep.subr.mxu0 0.0
    %4339 = vmatpush1.msra.mxu0 0.0
    %4340 = vmatprep.subr.mxu0 0.0
    %4341 = vmatpush1.msra.mxu0 0.0
    %4342 = vmatprep.subr.mxu0 0.0
    %4343 = vmatpush1.msra.mxu0 0.0
    %4344 = vmatprep.subr.mxu0 0.0
    %4345 = vmatpush1.msra.mxu0 0.0
    %4346 = vmatprep.subr.mxu0 0.0
    %4347 = vmatpush1.msra.mxu0 0.0
    %4348 = vmatprep.mubr.f32.mxu0 0.0
    %4349 = vmatmul.mubr.f32.gmra.mrb[0].mxu0 %v3513
    %v4350 = vpop.f32.mrb[0].mxu0
    %v4351 = vadd.f32 %v4282, %v4350
    %v4352 = vpop.f32.mrb[0].mxu0
    %4353 = vmatprep.mubr.f32.mxu0 0.0
    %4354 = vmatmul.mubr.f32.gmra.mrb[0].mxu0 %v3516
    %v4355 = vpop.f32.mrb[0].mxu0
    %v4356 = vadd.f32 %v4282, %v4355
    %v4357 = vpop.f32.mrb[0].mxu0
    %4358 = vdwg.mxu0
    %v4360 = vsel %vm441, %v4181, 0
    %v4363 = vsel %vm441, %v4263, 0
    %4365 = vmatprep.subr.mxu0 0.0
    %4366 = vmatpush1.xpose.msra.mxu0 %v4363
    %4367 = vmatprep.subr.mxu0 0.0
    %4368 = vmatpush1.xpose.msra.mxu0 0.0
    %4369 = vmatprep.subr.mxu0 0.0
    %4370 = vmatpush1.xpose.msra.mxu0 0.0
    %4371 = vmatprep.subr.mxu0 0.0
    %4372 = vmatpush1.xpose.msra.mxu0 0.0
    %4373 = vmatprep.subr.mxu0 0.0
    %4374 = vmatpush1.xpose.msra.mxu0 0.0
    %4375 = vmatprep.subr.mxu0 0.0
    %4376 = vmatpush1.xpose.msra.mxu0 0.0
    %4377 = vmatprep.subr.mxu0 0.0
    %4378 = vmatpush1.xpose.msra.mxu0 0.0
    %4379 = vmatprep.subr.mxu0 0.0
    %4380 = vmatpush1.xpose.msra.mxu0 0.0
    %4381 = vmatprep.subr.mxu0 0.0
    %4382 = vmatpush1.xpose.msra.mxu0 0.0
    %4383 = vmatprep.subr.mxu0 0.0
    %4384 = vmatpush1.xpose.msra.mxu0 0.0
    %4385 = vmatprep.subr.mxu0 0.0
    %4386 = vmatpush1.xpose.msra.mxu0 0.0
    %4387 = vmatprep.subr.mxu0 0.0
    %4388 = vmatpush1.xpose.msra.mxu0 0.0
    %4389 = vmatprep.subr.mxu0 0.0
    %4390 = vmatpush1.xpose.msra.mxu0 0.0
    %4391 = vmatprep.subr.mxu0 0.0
    %4392 = vmatpush1.xpose.msra.mxu0 0.0
    %4393 = vmatprep.subr.mxu0 0.0
    %4394 = vmatpush1.xpose.msra.mxu0 0.0
    %4395 = vmatprep.subr.mxu0 0.0
    %4396 = vmatpush1.xpose.msra.mxu0 0.0
    %4397 = vmatprep.subr.mxu0 0.0
    %4398 = vmatpush1.xpose.msra.mxu0 0.0
    %4399 = vmatprep.subr.mxu0 0.0
    %4400 = vmatpush1.xpose.msra.mxu0 0.0
    %4401 = vmatprep.subr.mxu0 0.0
    %4402 = vmatpush1.xpose.msra.mxu0 0.0
    %4403 = vmatprep.subr.mxu0 0.0
    %4404 = vmatpush1.xpose.msra.mxu0 0.0
    %4405 = vmatprep.subr.mxu0 0.0
    %4406 = vmatpush1.xpose.msra.mxu0 0.0
    %4407 = vmatprep.subr.mxu0 0.0
    %4408 = vmatpush1.xpose.msra.mxu0 0.0
    %4409 = vmatprep.subr.mxu0 0.0
    %4410 = vmatpush1.xpose.msra.mxu0 0.0
    %4411 = vmatprep.subr.mxu0 0.0
    %4412 = vmatpush1.xpose.msra.mxu0 0.0
    %4413 = vmatprep.subr.mxu0 0.0
    %4414 = vmatpush1.xpose.msra.mxu0 0.0
    %4415 = vmatprep.subr.mxu0 0.0
    %4416 = vmatpush1.xpose.msra.mxu0 0.0
    %4417 = vmatprep.subr.mxu0 0.0
    %4418 = vmatpush1.xpose.msra.mxu0 0.0
    %4419 = vmatprep.subr.mxu0 0.0
    %4420 = vmatpush1.xpose.msra.mxu0 0.0
    %4421 = vmatprep.subr.mxu0 0.0
    %4422 = vmatpush1.xpose.msra.mxu0 0.0
    %4423 = vmatprep.subr.mxu0 0.0
    %4424 = vmatpush1.xpose.msra.mxu0 0.0
    %4425 = vmatprep.subr.mxu0 0.0
    %4426 = vmatpush1.xpose.msra.mxu0 0.0
    %4427 = vmatprep.subr.mxu0 0.0
    %4428 = vmatpush1.xpose.msra.mxu0 0.0
    %4429 = vmatprep.mubr.f32.mxu0 0.0
    %4430 = vmatmul.mubr.f32.gmra.mrb[0].mxu0 %v4360
    %v4431 = vpop.f32.mrb[0].mxu0
    %v4432 = vadd.f32 0.0, %v4431
    %v4433 = vpop.f32.mrb[0].mxu0
    %4434 = vdwg.mxu0
    %v4436 = vsel %vm441, %v4182, 0
    %v4439 = vsel %vm441, %v4268, 0
    %4441 = vmatprep.subr.mxu0 0.0
    %4442 = vmatpush1.xpose.msra.mxu0 %v4439
    %4443 = vmatprep.subr.mxu0 0.0
    %4444 = vmatpush1.xpose.msra.mxu0 0.0
    %4445 = vmatprep.subr.mxu0 0.0
    %4446 = vmatpush1.xpose.msra.mxu0 0.0
    %4447 = vmatprep.subr.mxu0 0.0
    %4448 = vmatpush1.xpose.msra.mxu0 0.0
    %4449 = vmatprep.subr.mxu0 0.0
    %4450 = vmatpush1.xpose.msra.mxu0 0.0
    %4451 = vmatprep.subr.mxu0 0.0
    %4452 = vmatpush1.xpose.msra.mxu0 0.0
    %4453 = vmatprep.subr.mxu0 0.0
    %4454 = vmatpush1.xpose.msra.mxu0 0.0
    %4455 = vmatprep.subr.mxu0 0.0
    %4456 = vmatpush1.xpose.msra.mxu0 0.0
    %4457 = vmatprep.subr.mxu0 0.0
    %4458 = vmatpush1.xpose.msra.mxu0 0.0
    %4459 = vmatprep.subr.mxu0 0.0
    %4460 = vmatpush1.xpose.msra.mxu0 0.0
    %4461 = vmatprep.subr.mxu0 0.0
    %4462 = vmatpush1.xpose.msra.mxu0 0.0
    %4463 = vmatprep.subr.mxu0 0.0
    %4464 = vmatpush1.xpose.msra.mxu0 0.0
    %4465 = vmatprep.subr.mxu0 0.0
    %4466 = vmatpush1.xpose.msra.mxu0 0.0
    %4467 = vmatprep.subr.mxu0 0.0
    %4468 = vmatpush1.xpose.msra.mxu0 0.0
    %4469 = vmatprep.subr.mxu0 0.0
    %4470 = vmatpush1.xpose.msra.mxu0 0.0
    %4471 = vmatprep.subr.mxu0 0.0
    %4472 = vmatpush1.xpose.msra.mxu0 0.0
    %4473 = vmatprep.subr.mxu0 0.0
    %4474 = vmatpush1.xpose.msra.mxu0 0.0
    %4475 = vmatprep.subr.mxu0 0.0
    %4476 = vmatpush1.xpose.msra.mxu0 0.0
    %4477 = vmatprep.subr.mxu0 0.0
    %4478 = vmatpush1.xpose.msra.mxu0 0.0
    %4479 = vmatprep.subr.mxu0 0.0
    %4480 = vmatpush1.xpose.msra.mxu0 0.0
    %4481 = vmatprep.subr.mxu0 0.0
    %4482 = vmatpush1.xpose.msra.mxu0 0.0
    %4483 = vmatprep.subr.mxu0 0.0
    %4484 = vmatpush1.xpose.msra.mxu0 0.0
    %4485 = vmatprep.subr.mxu0 0.0
    %4486 = vmatpush1.xpose.msra.mxu0 0.0
    %4487 = vmatprep.subr.mxu0 0.0
    %4488 = vmatpush1.xpose.msra.mxu0 0.0
    %4489 = vmatprep.subr.mxu0 0.0
    %4490 = vmatpush1.xpose.msra.mxu0 0.0
    %4491 = vmatprep.subr.mxu0 0.0
    %4492 = vmatpush1.xpose.msra.mxu0 0.0
    %4493 = vmatprep.subr.mxu0 0.0
    %4494 = vmatpush1.xpose.msra.mxu0 0.0
    %4495 = vmatprep.subr.mxu0 0.0
    %4496 = vmatpush1.xpose.msra.mxu0 0.0
    %4497 = vmatprep.subr.mxu0 0.0
    %4498 = vmatpush1.xpose.msra.mxu0 0.0
    %4499 = vmatprep.subr.mxu0 0.0
    %4500 = vmatpush1.xpose.msra.mxu0 0.0
    %4501 = vmatprep.subr.mxu0 0.0
    %4502 = vmatpush1.xpose.msra.mxu0 0.0
    %4503 = vmatprep.subr.mxu0 0.0
    %4504 = vmatpush1.xpose.msra.mxu0 0.0
    %4505 = vmatprep.mubr.f32.mxu0 0.0
    %4506 = vmatmul.mubr.f32.gmra.mrb[0].mxu0 %v4436
    %v4507 = vpop.f32.mrb[0].mxu0
    %v4508 = vadd.f32 0.0, %v4507
    %v4509 = vpop.f32.mrb[0].mxu0
    %4510 = vdwg.mxu0
    %v4511 = vsel %vm441, %v4432, -inf
    %4512 = vmax.xlane.f32.xlu0 %v4511
    %v4513 = vpop.xlane.xlu0 %4512
    %v4514 = vsel %vm441, %v4508, -inf
    %4515 = vmax.xlane.f32.xlu0 %v4514
    %v4516 = vpop.xlane.xlu0 %4515
    %v4517 = vsub.f32 %v4432, %v4513
    %v4518 = vsub.f32 %v4508, %v4516
    %v4519 = vmul.f32 %v4517, 1.442695
    %v4520 = vpow.pop %v4519
    %v4521 = vmul.f32 %v4518, 1.442695
    %v4522 = vpow.pop %v4521
    %v4523 = vsel %vm441, %v4520, 0.0
    %4524 = vadd.xlane.f32.xlu0 %v4523
    %v4525 = vpop.xlane.xlu0 %4524
    %v4526 = vsel %vm441, %v4522, 0.0
    %4527 = vadd.xlane.f32.xlu0 %v4526
    %v4528 = vpop.xlane.xlu0 %4527
    %v4529 = vrcp.pop %v4525
    %v4530 = vmul.f32 %v4520, %v4529
    %v4531 = vrcp.pop %v4528
    %v4532 = vmul.f32 %v4522, %v4531
    %v4534 = vsel %vm441, %v4530, 0
    %4536 = vmatprep.subr.mxu0 0.0
    %4537 = vmatpush1.msra.mxu0 %v4351
    %4538 = vmatprep.subr.mxu0 0.0
    %4539 = vmatpush1.msra.mxu0 0.0
    %4540 = vmatprep.subr.mxu0 0.0
    %4541 = vmatpush1.msra.mxu0 0.0
    %4542 = vmatprep.subr.mxu0 0.0
    %4543 = vmatpush1.msra.mxu0 0.0
    %4544 = vmatprep.subr.mxu0 0.0
    %4545 = vmatpush1.msra.mxu0 0.0
    %4546 = vmatprep.subr.mxu0 0.0
    %4547 = vmatpush1.msra.mxu0 0.0
    %4548 = vmatprep.subr.mxu0 0.0
    %4549 = vmatpush1.msra.mxu0 0.0
    %4550 = vmatprep.subr.mxu0 0.0
    %4551 = vmatpush1.msra.mxu0 0.0
    %4552 = vmatprep.subr.mxu0 0.0
    %4553 = vmatpush1.msra.mxu0 0.0
    %4554 = vmatprep.subr.mxu0 0.0
    %4555 = vmatpush1.msra.mxu0 0.0
    %4556 = vmatprep.subr.mxu0 0.0
    %4557 = vmatpush1.msra.mxu0 0.0
    %4558 = vmatprep.subr.mxu0 0.0
    %4559 = vmatpush1.msra.mxu0 0.0
    %4560 = vmatprep.subr.mxu0 0.0
    %4561 = vmatpush1.msra.mxu0 0.0
    %4562 = vmatprep.subr.mxu0 0.0
    %4563 = vmatpush1.msra.mxu0 0.0
    %4564 = vmatprep.subr.mxu0 0.0
    %4565 = vmatpush1.msra.mxu0 0.0
    %4566 = vmatprep.subr.mxu0 0.0
    %4567 = vmatpush1.msra.mxu0 0.0
    %4568 = vmatprep.subr.mxu0 0.0
    %4569 = vmatpush1.msra.mxu0 0.0
    %4570 = vmatprep.subr.mxu0 0.0
    %4571 = vmatpush1.msra.mxu0 0.0
    %4572 = vmatprep.subr.mxu0 0.0
    %4573 = vmatpush1.msra.mxu0 0.0
    %4574 = vmatprep.subr.mxu0 0.0
    %4575 = vmatpush1.msra.mxu0 0.0
    %4576 = vmatprep.subr.mxu0 0.0
    %4577 = vmatpush1.msra.mxu0 0.0
    %4578 = vmatprep.subr.mxu0 0.0
    %4579 = vmatpush1.msra.mxu0 0.0
    %4580 = vmatprep.subr.mxu0 0.0
    %4581 = vmatpush1.msra.mxu0 0.0
    %4582 = vmatprep.subr.mxu0 0.0
    %4583 = vmatpush1.msra.mxu0 0.0
    %4584 = vmatprep.subr.mxu0 0.0
    %4585 = vmatpush1.msra.mxu0 0.0
    %4586 = vmatprep.subr.mxu0 0.0
    %4587 = vmatpush1.msra.mxu0 0.0
    %4588 = vmatprep.subr.mxu0 0.0
    %4589 = vmatpush1.msra.mxu0 0.0
    %4590 = vmatprep.subr.mxu0 0.0
    %4591 = vmatpush1.msra.mxu0 0.0
    %4592 = vmatprep.subr.mxu0 0.0
    %4593 = vmatpush1.msra.mxu0 0.0
    %4594 = vmatprep.subr.mxu0 0.0
    %4595 = vmatpush1.msra.mxu0 0.0
    %4596 = vmatprep.subr.mxu0 0.0
    %4597 = vmatpush1.msra.mxu0 0.0
    %4598 = vmatprep.subr.mxu0 0.0
    %4599 = vmatpush1.msra.mxu0 0.0
    %4600 = vmatprep.mubr.f32.mxu0 0.0
    %4601 = vmatmul.mubr.f32.gmra.mrb[0].mxu0 %v4534
    %v4602 = vpop.f32.mrb[0].mxu0
    %v4603 = vadd.f32 0.0, %v4602
    %v4604 = vpop.f32.mrb[0].mxu0
    %4605 = vdwg.mxu0
    %v4607 = vsel %vm441, %v4532, 0
    %4609 = vmatprep.subr.mxu0 0.0
    %4610 = vmatpush1.msra.mxu0 %v4356
    %4611 = vmatprep.subr.mxu0 0.0
    %4612 = vmatpush1.msra.mxu0 0.0
    %4613 = vmatprep.subr.mxu0 0.0
    %4614 = vmatpush1.msra.mxu0 0.0
    %4615 = vmatprep.subr.mxu0 0.0
    %4616 = vmatpush1.msra.mxu0 0.0
    %4617 = vmatprep.subr.mxu0 0.0
    %4618 = vmatpush1.msra.mxu0 0.0
    %4619 = vmatprep.subr.mxu0 0.0
    %4620 = vmatpush1.msra.mxu0 0.0
    %4621 = vmatprep.subr.mxu0 0.0
    %4622 = vmatpush1.msra.mxu0 0.0
    %4623 = vmatprep.subr.mxu0 0.0
    %4624 = vmatpush1.msra.mxu0 0.0
    %4625 = vmatprep.subr.mxu0 0.0
    %4626 = vmatpush1.msra.mxu0 0.0
    %4627 = vmatprep.subr.mxu0 0.0
    %4628 = vmatpush1.msra.mxu0 0.0
    %4629 = vmatprep.subr.mxu0 0.0
    %4630 = vmatpush1.msra.mxu0 0.0
    %4631 = vmatprep.subr.mxu0 0.0
    %4632 = vmatpush1.msra.mxu0 0.0
    %4633 = vmatprep.subr.mxu0 0.0
    %4634 = vmatpush1.msra.mxu0 0.0
    %4635 = vmatprep.subr.mxu0 0.0
    %4636 = vmatpush1.msra.mxu0 0.0
    %4637 = vmatprep.subr.mxu0 0.0
    %4638 = vmatpush1.msra.mxu0 0.0
    %4639 = vmatprep.subr.mxu0 0.0
    %4640 = vmatpush1.msra.mxu0 0.0
    %4641 = vmatprep.subr.mxu0 0.0
    %4642 = vmatpush1.msra.mxu0 0.0
    %4643 = vmatprep.subr.mxu0 0.0
    %4644 = vmatpush1.msra.mxu0 0.0
    %4645 = vmatprep.subr.mxu0 0.0
    %4646 = vmatpush1.msra.mxu0 0.0
    %4647 = vmatprep.subr.mxu0 0.0
    %4648 = vmatpush1.msra.mxu0 0.0
    %4649 = vmatprep.subr.mxu0 0.0
    %4650 = vmatpush1.msra.mxu0 0.0
    %4651 = vmatprep.subr.mxu0 0.0
    %4652 = vmatpush1.msra.mxu0 0.0
    %4653 = vmatprep.subr.mxu0 0.0
    %4654 = vmatpush1.msra.mxu0 0.0
    %4655 = vmatprep.subr.mxu0 0.0
    %4656 = vmatpush1.msra.mxu0 0.0
    %4657 = vmatprep.subr.mxu0 0.0
    %4658 = vmatpush1.msra.mxu0 0.0
    %4659 = vmatprep.subr.mxu0 0.0
    %4660 = vmatpush1.msra.mxu0 0.0
    %4661 = vmatprep.subr.mxu0 0.0
    %4662 = vmatpush1.msra.mxu0 0.0
    %4663 = vmatprep.subr.mxu0 0.0
    %4664 = vmatpush1.msra.mxu0 0.0
    %4665 = vmatprep.subr.mxu0 0.0
    %4666 = vmatpush1.msra.mxu0 0.0
    %4667 = vmatprep.subr.mxu0 0.0
    %4668 = vmatpush1.msra.mxu0 0.0
    %4669 = vmatprep.subr.mxu0 0.0
    %4670 = vmatpush1.msra.mxu0 0.0
    %4671 = vmatprep.subr.mxu0 0.0
    %4672 = vmatpush1.msra.mxu0 0.0
    %4673 = vmatprep.mubr.f32.mxu0 0.0
    %4674 = vmatmul.mubr.f32.gmra.mrb[0].mxu0 %v4607
    %v4675 = vpop.f32.mrb[0].mxu0
    %v4676 = vadd.f32 0.0, %v4675
    %v4677 = vpop.f32.mrb[0].mxu0
    %4678 = vdwg.mxu0
    %s4679 = scalar_lea.vmem %s5, 40
    %v4680 = vld [vmem:[%s4679] sm:$0xff]
    %v4682 = vsel %vm441, %v4603, 0
    %v4685 = vsel %vm441, %v4676, 0
    %4687 = vmatprep.subr.mxu0 0.0
    %4688 = vmatpush1.msra.mxu0 %v4680
    %4689 = vmatprep.subr.mxu0 0.0
    %4690 = vmatpush1.msra.mxu0 0.0
    %4691 = vmatprep.subr.mxu0 0.0
    %4692 = vmatpush1.msra.mxu0 0.0
    %4693 = vmatprep.subr.mxu0 0.0
    %4694 = vmatpush1.msra.mxu0 0.0
    %4695 = vmatprep.subr.mxu0 0.0
    %4696 = vmatpush1.msra.mxu0 0.0
    %4697 = vmatprep.subr.mxu0 0.0
    %4698 = vmatpush1.msra.mxu0 0.0
    %4699 = vmatprep.subr.mxu0 0.0
    %4700 = vmatpush1.msra.mxu0 0.0
    %4701 = vmatprep.subr.mxu0 0.0
    %4702 = vmatpush1.msra.mxu0 0.0
    %4703 = vmatprep.subr.mxu0 0.0
    %4704 = vmatpush1.msra.mxu0 0.0
    %4705 = vmatprep.subr.mxu0 0.0
    %4706 = vmatpush1.msra.mxu0 0.0
    %4707 = vmatprep.subr.mxu0 0.0
    %4708 = vmatpush1.msra.mxu0 0.0
    %4709 = vmatprep.subr.mxu0 0.0
    %4710 = vmatpush1.msra.mxu0 0.0
    %4711 = vmatprep.subr.mxu0 0.0
    %4712 = vmatpush1.msra.mxu0 0.0
    %4713 = vmatprep.subr.mxu0 0.0
    %4714 = vmatpush1.msra.mxu0 0.0
    %4715 = vmatprep.subr.mxu0 0.0
    %4716 = vmatpush1.msra.mxu0 0.0
    %4717 = vmatprep.subr.mxu0 0.0
    %4718 = vmatpush1.msra.mxu0 0.0
    %4719 = vmatprep.subr.mxu0 0.0
    %4720 = vmatpush1.msra.mxu0 0.0
    %4721 = vmatprep.subr.mxu0 0.0
    %4722 = vmatpush1.msra.mxu0 0.0
    %4723 = vmatprep.subr.mxu0 0.0
    %4724 = vmatpush1.msra.mxu0 0.0
    %4725 = vmatprep.subr.mxu0 0.0
    %4726 = vmatpush1.msra.mxu0 0.0
    %4727 = vmatprep.subr.mxu0 0.0
    %4728 = vmatpush1.msra.mxu0 0.0
    %4729 = vmatprep.subr.mxu0 0.0
    %4730 = vmatpush1.msra.mxu0 0.0
    %4731 = vmatprep.subr.mxu0 0.0
    %4732 = vmatpush1.msra.mxu0 0.0
    %4733 = vmatprep.subr.mxu0 0.0
    %4734 = vmatpush1.msra.mxu0 0.0
    %4735 = vmatprep.subr.mxu0 0.0
    %4736 = vmatpush1.msra.mxu0 0.0
    %4737 = vmatprep.subr.mxu0 0.0
    %4738 = vmatpush1.msra.mxu0 0.0
    %4739 = vmatprep.subr.mxu0 0.0
    %4740 = vmatpush1.msra.mxu0 0.0
    %4741 = vmatprep.subr.mxu0 0.0
    %4742 = vmatpush1.msra.mxu0 0.0
    %4743 = vmatprep.subr.mxu0 0.0
    %4744 = vmatpush1.msra.mxu0 0.0
    %4745 = vmatprep.subr.mxu0 0.0
    %4746 = vmatpush1.msra.mxu0 0.0
    %4747 = vmatprep.subr.mxu0 0.0
    %4748 = vmatpush1.msra.mxu0 0.0
    %4749 = vmatprep.subr.mxu0 0.0
    %4750 = vmatpush1.msra.mxu0 0.0
    %4751 = vmatprep.mubr.f32.mxu0 0.0
    %4752 = vmatmul.mubr.f32.gmra.mrb[0].mxu0 %v4682
    %v4753 = vpop.f32.mrb[0].mxu0
    %v4754 = vadd.f32 0.0, %v4753
    %v4755 = vpop.f32.mrb[0].mxu0
    %4756 = vmatprep.mubr.f32.mxu0 0.0
    %4757 = vmatmul.mubr.f32.gmra.mrb[0].mxu0 %v4685
    %v4758 = vpop.f32.mrb[0].mxu0
    %v4759 = vadd.f32 0.0, %v4758
    %v4760 = vpop.f32.mrb[0].mxu0
    %4761 = vdwg.mxu0
    %v4763 = vsel %vm441, %v4015, 0
    %v4766 = vsel %vm441, %v4088, 0
    %4768 = vmatprep.subr.mxu0 0.0
    %4769 = vmatpush1.msra.mxu0 %v4092
    %4770 = vmatprep.subr.mxu0 0.0
    %4771 = vmatpush1.msra.mxu0 0.0
    %4772 = vmatprep.subr.mxu0 0.0
    %4773 = vmatpush1.msra.mxu0 0.0
    %4774 = vmatprep.subr.mxu0 0.0
    %4775 = vmatpush1.msra.mxu0 0.0
    %4776 = vmatprep.subr.mxu0 0.0
    %4777 = vmatpush1.msra.mxu0 0.0
    %4778 = vmatprep.subr.mxu0 0.0
    %4779 = vmatpush1.msra.mxu0 0.0
    %4780 = vmatprep.subr.mxu0 0.0
    %4781 = vmatpush1.msra.mxu0 0.0
    %4782 = vmatprep.subr.mxu0 0.0
    %4783 = vmatpush1.msra.mxu0 0.0
    %4784 = vmatprep.subr.mxu0 0.0
    %4785 = vmatpush1.msra.mxu0 0.0
    %4786 = vmatprep.subr.mxu0 0.0
    %4787 = vmatpush1.msra.mxu0 0.0
    %4788 = vmatprep.subr.mxu0 0.0
    %4789 = vmatpush1.msra.mxu0 0.0
    %4790 = vmatprep.subr.mxu0 0.0
    %4791 = vmatpush1.msra.mxu0 0.0
    %4792 = vmatprep.subr.mxu0 0.0
    %4793 = vmatpush1.msra.mxu0 0.0
    %4794 = vmatprep.subr.mxu0 0.0
    %4795 = vmatpush1.msra.mxu0 0.0
    %4796 = vmatprep.subr.mxu0 0.0
    %4797 = vmatpush1.msra.mxu0 0.0
    %4798 = vmatprep.subr.mxu0 0.0
    %4799 = vmatpush1.msra.mxu0 0.0
    %4800 = vmatprep.subr.mxu0 0.0
    %4801 = vmatpush1.msra.mxu0 0.0
    %4802 = vmatprep.subr.mxu0 0.0
    %4803 = vmatpush1.msra.mxu0 0.0
    %4804 = vmatprep.subr.mxu0 0.0
    %4805 = vmatpush1.msra.mxu0 0.0
    %4806 = vmatprep.subr.mxu0 0.0
    %4807 = vmatpush1.msra.mxu0 0.0
    %4808 = vmatprep.subr.mxu0 0.0
    %4809 = vmatpush1.msra.mxu0 0.0
    %4810 = vmatprep.subr.mxu0 0.0
    %4811 = vmatpush1.msra.mxu0 0.0
    %4812 = vmatprep.subr.mxu0 0.0
    %4813 = vmatpush1.msra.mxu0 0.0
    %4814 = vmatprep.subr.mxu0 0.0
    %4815 = vmatpush1.msra.mxu0 0.0
    %4816 = vmatprep.subr.mxu0 0.0
    %4817 = vmatpush1.msra.mxu0 0.0
    %4818 = vmatprep.subr.mxu0 0.0
    %4819 = vmatpush1.msra.mxu0 0.0
    %4820 = vmatprep.subr.mxu0 0.0
    %4821 = vmatpush1.msra.mxu0 0.0
    %4822 = vmatprep.subr.mxu0 0.0
    %4823 = vmatpush1.msra.mxu0 0.0
    %4824 = vmatprep.subr.mxu0 0.0
    %4825 = vmatpush1.msra.mxu0 0.0
    %4826 = vmatprep.subr.mxu0 0.0
    %4827 = vmatpush1.msra.mxu0 0.0
    %4828 = vmatprep.subr.mxu0 0.0
    %4829 = vmatpush1.msra.mxu0 0.0
    %4830 = vmatprep.subr.mxu0 0.0
    %4831 = vmatpush1.msra.mxu0 0.0
    %4832 = vmatprep.mubr.f32.mxu0 0.0
    %4833 = vmatmul.mubr.f32.gmra.mrb[0].mxu0 %v4763
    %v4834 = vpop.f32.mrb[0].mxu0
    %v4835 = vadd.f32 %v4754, %v4834
    %v4836 = vpop.f32.mrb[0].mxu0
    %4837 = vmatprep.mubr.f32.mxu0 0.0
    %4838 = vmatmul.mubr.f32.gmra.mrb[0].mxu0 %v4766
    %v4839 = vpop.f32.mrb[0].mxu0
    %v4840 = vadd.f32 %v4759, %v4839
    %v4841 = vpop.f32.mrb[0].mxu0
    %4842 = vdwg.mxu0
    %s4843 = scalar_lea.vmem %s3, 448
    %v4844 = vld [vmem:[%s4843] sm:$0xff]
    %v4845 = vld [vmem:[%s4843 + $0x8] sm:$0xff]
    %v4846 = vld [vmem:[%s4843 + $0x10] sm:$0xff]
    %v4847 = vld [vmem:[%s4843 + $0x18] sm:$0xff]
    %s4848 = scalar_lea.vmem %s4, 14
    %v4849 = vld [vmem:[%s4848] sm:$0x1]
    %v4851 = vlaneseq
    %v4852 = vshrl.u32 %v4851, 7
    %v4853 = vsub.s32 0, %v4852
    %v4854 = vrot.slane %v4849, %v4853
    %4856 = vmatprep.subr.mxu0 0.0
    %4857 = vmatpush1.msra.mxu0 %v4844
    %4858 = vmatprep.subr.mxu0 0.0
    %4859 = vmatpush1.msra.mxu0 %v4845
    %4860 = vmatprep.subr.mxu0 0.0
    %4861 = vmatpush1.msra.mxu0 %v4846
    %4862 = vmatprep.subr.mxu0 0.0
    %4863 = vmatpush1.msra.mxu0 %v4847
    %4864 = vmatprep.subr.mxu0 0.0
    %4865 = vmatpush1.msra.mxu0 0.0
    %4866 = vmatprep.subr.mxu0 0.0
    %4867 = vmatpush1.msra.mxu0 0.0
    %4868 = vmatprep.subr.mxu0 0.0
    %4869 = vmatpush1.msra.mxu0 0.0
    %4870 = vmatprep.subr.mxu0 0.0
    %4871 = vmatpush1.msra.mxu0 0.0
    %4872 = vmatprep.subr.mxu0 0.0
    %4873 = vmatpush1.msra.mxu0 0.0
    %4874 = vmatprep.subr.mxu0 0.0
    %4875 = vmatpush1.msra.mxu0 0.0
    %4876 = vmatprep.subr.mxu0 0.0
    %4877 = vmatpush1.msra.mxu0 0.0
    %4878 = vmatprep.subr.mxu0 0.0
    %4879 = vmatpush1.msra.mxu0 0.0
    %4880 = vmatprep.subr.mxu0 0.0
    %4881 = vmatpush1.msra.mxu0 0.0
    %4882 = vmatprep.subr.mxu0 0.0
    %4883 = vmatpush1.msra.mxu0 0.0
    %4884 = vmatprep.subr.mxu0 0.0
    %4885 = vmatpush1.msra.mxu0 0.0
    %4886 = vmatprep.subr.mxu0 0.0
    %4887 = vmatpush1.msra.mxu0 0.0
    %4888 = vmatprep.subr.mxu0 0.0
    %4889 = vmatpush1.msra.mxu0 0.0
    %4890 = vmatprep.subr.mxu0 0.0
    %4891 = vmatpush1.msra.mxu0 0.0
    %4892 = vmatprep.subr.mxu0 0.0
    %4893 = vmatpush1.msra.mxu0 0.0
    %4894 = vmatprep.subr.mxu0 0.0
    %4895 = vmatpush1.msra.mxu0 0.0
    %4896 = vmatprep.subr.mxu0 0.0
    %4897 = vmatpush1.msra.mxu0 0.0
    %4898 = vmatprep.subr.mxu0 0.0
    %4899 = vmatpush1.msra.mxu0 0.0
    %4900 = vmatprep.subr.mxu0 0.0
    %4901 = vmatpush1.msra.mxu0 0.0
    %4902 = vmatprep.subr.mxu0 0.0
    %4903 = vmatpush1.msra.mxu0 0.0
    %4904 = vmatprep.subr.mxu0 0.0
    %4905 = vmatpush1.msra.mxu0 0.0
    %4906 = vmatprep.subr.mxu0 0.0
    %4907 = vmatpush1.msra.mxu0 0.0
    %4908 = vmatprep.subr.mxu0 0.0
    %4909 = vmatpush1.msra.mxu0 0.0
    %4910 = vmatprep.subr.mxu0 0.0
    %4911 = vmatpush1.msra.mxu0 0.0
    %4912 = vmatprep.subr.mxu0 0.0
    %4913 = vmatpush1.msra.mxu0 0.0
    %4914 = vmatprep.subr.mxu0 0.0
    %4915 = vmatpush1.msra.mxu0 0.0
    %4916 = vmatprep.subr.mxu0 0.0
    %4917 = vmatpush1.msra.mxu0 0.0
    %4918 = vmatprep.subr.mxu0 0.0
    %4919 = vmatpush1.msra.mxu0 0.0
    %4920 = vmatprep.mubr.f32.mxu0 0.0
    %4921 = vmatmul.mubr.f32.gmra.mrb[0].mxu0 %v3513
    %v4922 = vpop.f32.mrb[0].mxu0
    %v4923 = vadd.f32 %v4854, %v4922
    %v4924 = vpop.f32.mrb[0].mxu0
    %4925 = vmatprep.mubr.f32.mxu0 0.0
    %4926 = vmatmul.mubr.f32.gmra.mrb[0].mxu0 %v3516
    %v4927 = vpop.f32.mrb[0].mxu0
    %v4928 = vadd.f32 %v4854, %v4927
    %v4929 = vpop.f32.mrb[0].mxu0
    %4930 = vdwg.mxu0
    %v4931 = vmul.f32 %v4923, 0.35355338
    %v4932 = vmul.f32 %v4928, 0.35355338
    %s4933 = scalar_lea.vmem %s3, 576
    %v4934 = vld [vmem:[%s4933] sm:$0xff]
    %v4935 = vld [vmem:[%s4933 + $0x8] sm:$0xff]
    %v4936 = vld [vmem:[%s4933 + $0x10] sm:$0xff]
    %v4937 = vld [vmem:[%s4933 + $0x18] sm:$0xff]
    %s4938 = scalar_lea.vmem %s4, 18
    %v4939 = vld [vmem:[%s4938] sm:$0x1]
    %v4941 = vlaneseq
    %v4942 = vshrl.u32 %v4941, 7
    %v4943 = vsub.s32 0, %v4942
    %v4944 = vrot.slane %v4939, %v4943
    %4946 = vmatprep.subr.mxu0 0.0
    %4947 = vmatpush1.msra.mxu0 %v4934
    %4948 = vmatprep.subr.mxu0 0.0
    %4949 = vmatpush1.msra.mxu0 %v4935
    %4950 = vmatprep.subr.mxu0 0.0
    %4951 = vmatpush1.msra.mxu0 %v4936
    %4952 = vmatprep.subr.mxu0 0.0
    %4953 = vmatpush1.msra.mxu0 %v4937
    %4954 = vmatprep.subr.mxu0 0.0
    %4955 = vmatpush1.msra.mxu0 0.0
    %4956 = vmatprep.subr.mxu0 0.0
    %4957 = vmatpush1.msra.mxu0 0.0
    %4958 = vmatprep.subr.mxu0 0.0
    %4959 = vmatpush1.msra.mxu0 0.0
    %4960 = vmatprep.subr.mxu0 0.0
    %4961 = vmatpush1.msra.mxu0 0.0
    %4962 = vmatprep.subr.mxu0 0.0
    %4963 = vmatpush1.msra.mxu0 0.0
    %4964 = vmatprep.subr.mxu0 0.0
    %4965 = vmatpush1.msra.mxu0 0.0
    %4966 = vmatprep.subr.mxu0 0.0
    %4967 = vmatpush1.msra.mxu0 0.0
    %4968 = vmatprep.subr.mxu0 0.0
    %4969 = vmatpush1.msra.mxu0 0.0
    %4970 = vmatprep.subr.mxu0 0.0
    %4971 = vmatpush1.msra.mxu0 0.0
    %4972 = vmatprep.subr.mxu0 0.0
    %4973 = vmatpush1.msra.mxu0 0.0
    %4974 = vmatprep.subr.mxu0 0.0
    %4975 = vmatpush1.msra.mxu0 0.0
    %4976 = vmatprep.subr.mxu0 0.0
    %4977 = vmatpush1.msra.mxu0 0.0
    %4978 = vmatprep.subr.mxu0 0.0
    %4979 = vmatpush1.msra.mxu0 0.0
    %4980 = vmatprep.subr.mxu0 0.0
    %4981 = vmatpush1.msra.mxu0 0.0
    %4982 = vmatprep.subr.mxu0 0.0
    %4983 = vmatpush1.msra.mxu0 0.0
    %4984 = vmatprep.subr.mxu0 0.0
    %4985 = vmatpush1.msra.mxu0 0.0
    %4986 = vmatprep.subr.mxu0 0.0
    %4987 = vmatpush1.msra.mxu0 0.0
    %4988 = vmatprep.subr.mxu0 0.0
    %4989 = vmatpush1.msra.mxu0 0.0
    %4990 = vmatprep.subr.mxu0 0.0
    %4991 = vmatpush1.msra.mxu0 0.0
    %4992 = vmatprep.subr.mxu0 0.0
    %4993 = vmatpush1.msra.mxu0 0.0
    %4994 = vmatprep.subr.mxu0 0.0
    %4995 = vmatpush1.msra.mxu0 0.0
    %4996 = vmatprep.subr.mxu0 0.0
    %4997 = vmatpush1.msra.mxu0 0.0
    %4998 = vmatprep.subr.mxu0 0.0
    %4999 = vmatpush1.msra.mxu0 0.0
    %5000 = vmatprep.subr.mxu0 0.0
    %5001 = vmatpush1.msra.mxu0 0.0
    %5002 = vmatprep.subr.mxu0 0.0
    %5003 = vmatpush1.msra.mxu0 0.0
    %5004 = vmatprep.subr.mxu0 0.0
    %5005 = vmatpush1.msra.mxu0 0.0
    %5006 = vmatprep.subr.mxu0 0.0
    %5007 = vmatpush1.msra.mxu0 0.0
    %5008 = vmatprep.subr.mxu0 0.0
    %5009 = vmatpush1.msra.mxu0 0.0
    %5010 = vmatprep.mubr.f32.mxu0 0.0
    %5011 = vmatmul.mubr.f32.gmra.mrb[0].mxu0 %v3513
    %v5012 = vpop.f32.mrb[0].mxu0
    %v5013 = vadd.f32 %v4944, %v5012
    %v5014 = vpop.f32.mrb[0].mxu0
    %5015 = vmatprep.mubr.f32.mxu0 0.0
    %5016 = vmatmul.mubr.f32.gmra.mrb[0].mxu0 %v3516
    %v5017 = vpop.f32.mrb[0].mxu0
    %v5018 = vadd.f32 %v4944, %v5017
    %v5019 = vpop.f32.mrb[0].mxu0
    %5020 = vdwg.mxu0
    %s5021 = scalar_lea.vmem %s3, 704
    %v5022 = vld [vmem:[%s5021] sm:$0xff]
    %v5023 = vld [vmem:[%s5021 + $0x8] sm:$0xff]
    %v5024 = vld [vmem:[%s5021 + $0x10] sm:$0xff]
    %v5025 = vld [vmem:[%s5021 + $0x18] sm:$0xff]
    %s5026 = scalar_lea.vmem %s4, 22
    %v5027 = vld [vmem:[%s5026] sm:$0x1]
    %v5029 = vlaneseq
    %v5030 = vshrl.u32 %v5029, 7
    %v5031 = vsub.s32 0, %v5030
    %v5032 = vrot.slane %v5027, %v5031
    %5034 = vmatprep.subr.mxu0 0.0
    %5035 = vmatpush1.msra.mxu0 %v5022
    %5036 = vmatprep.subr.mxu0 0.0
    %5037 = vmatpush1.msra.mxu0 %v5023
    %5038 = vmatprep.subr.mxu0 0.0
    %5039 = vmatpush1.msra.mxu0 %v5024
    %5040 = vmatprep.subr.mxu0 0.0
    %5041 = vmatpush1.msra.mxu0 %v5025
    %5042 = vmatprep.subr.mxu0 0.0
    %5043 = vmatpush1.msra.mxu0 0.0
    %5044 = vmatprep.subr.mxu0 0.0
    %5045 = vmatpush1.msra.mxu0 0.0
    %5046 = vmatprep.subr.mxu0 0.0
    %5047 = vmatpush1.msra.mxu0 0.0
    %5048 = vmatprep.subr.mxu0 0.0
    %5049 = vmatpush1.msra.mxu0 0.0
    %5050 = vmatprep.subr.mxu0 0.0
    %5051 = vmatpush1.msra.mxu0 0.0
    %5052 = vmatprep.subr.mxu0 0.0
    %5053 = vmatpush1.msra.mxu0 0.0
    %5054 = vmatprep.subr.mxu0 0.0
    %5055 = vmatpush1.msra.mxu0 0.0
    %5056 = vmatprep.subr.mxu0 0.0
    %5057 = vmatpush1.msra.mxu0 0.0
    %5058 = vmatprep.subr.mxu0 0.0
    %5059 = vmatpush1.msra.mxu0 0.0
    %5060 = vmatprep.subr.mxu0 0.0
    %5061 = vmatpush1.msra.mxu0 0.0
    %5062 = vmatprep.subr.mxu0 0.0
    %5063 = vmatpush1.msra.mxu0 0.0
    %5064 = vmatprep.subr.mxu0 0.0
    %5065 = vmatpush1.msra.mxu0 0.0
    %5066 = vmatprep.subr.mxu0 0.0
    %5067 = vmatpush1.msra.mxu0 0.0
    %5068 = vmatprep.subr.mxu0 0.0
    %5069 = vmatpush1.msra.mxu0 0.0
    %5070 = vmatprep.subr.mxu0 0.0
    %5071 = vmatpush1.msra.mxu0 0.0
    %5072 = vmatprep.subr.mxu0 0.0
    %5073 = vmatpush1.msra.mxu0 0.0
    %5074 = vmatprep.subr.mxu0 0.0
    %5075 = vmatpush1.msra.mxu0 0.0
    %5076 = vmatprep.subr.mxu0 0.0
    %5077 = vmatpush1.msra.mxu0 0.0
    %5078 = vmatprep.subr.mxu0 0.0
    %5079 = vmatpush1.msra.mxu0 0.0
    %5080 = vmatprep.subr.mxu0 0.0
    %5081 = vmatpush1.msra.mxu0 0.0
    %5082 = vmatprep.subr.mxu0 0.0
    %5083 = vmatpush1.msra.mxu0 0.0
    %5084 = vmatprep.subr.mxu0 0.0
    %5085 = vmatpush1.msra.mxu0 0.0
    %5086 = vmatprep.subr.mxu0 0.0
    %5087 = vmatpush1.msra.mxu0 0.0
    %5088 = vmatprep.subr.mxu0 0.0
    %5089 = vmatpush1.msra.mxu0 0.0
    %5090 = vmatprep.subr.mxu0 0.0
    %5091 = vmatpush1.msra.mxu0 0.0
    %5092 = vmatprep.subr.mxu0 0.0
    %5093 = vmatpush1.msra.mxu0 0.0
    %5094 = vmatprep.subr.mxu0 0.0
    %5095 = vmatpush1.msra.mxu0 0.0
    %5096 = vmatprep.subr.mxu0 0.0
    %5097 = vmatpush1.msra.mxu0 0.0
    %5098 = vmatprep.mubr.f32.mxu0 0.0
    %5099 = vmatmul.mubr.f32.gmra.mrb[0].mxu0 %v3513
    %v5100 = vpop.f32.mrb[0].mxu0
    %v5101 = vadd.f32 %v5032, %v5100
    %v5102 = vpop.f32.mrb[0].mxu0
    %5103 = vmatprep.mubr.f32.mxu0 0.0
    %5104 = vmatmul.mubr.f32.gmra.mrb[0].mxu0 %v3516
    %v5105 = vpop.f32.mrb[0].mxu0
    %v5106 = vadd.f32 %v5032, %v5105
    %v5107 = vpop.f32.mrb[0].mxu0
    %5108 = vdwg.mxu0
    %v5110 = vsel %vm441, %v4931, 0
    %v5113 = vsel %vm441, %v5013, 0
    %5115 = vmatprep.subr.mxu0 0.0
    %5116 = vmatpush1.xpose.msra.mxu0 %v5113
    %5117 = vmatprep.subr.mxu0 0.0
    %5118 = vmatpush1.xpose.msra.mxu0 0.0
    %5119 = vmatprep.subr.mxu0 0.0
    %5120 = vmatpush1.xpose.msra.mxu0 0.0
    %5121 = vmatprep.subr.mxu0 0.0
    %5122 = vmatpush1.xpose.msra.mxu0 0.0
    %5123 = vmatprep.subr.mxu0 0.0
    %5124 = vmatpush1.xpose.msra.mxu0 0.0
    %5125 = vmatprep.subr.mxu0 0.0
    %5126 = vmatpush1.xpose.msra.mxu0 0.0
    %5127 = vmatprep.subr.mxu0 0.0
    %5128 = vmatpush1.xpose.msra.mxu0 0.0
    %5129 = vmatprep.subr.mxu0 0.0
    %5130 = vmatpush1.xpose.msra.mxu0 0.0
    %5131 = vmatprep.subr.mxu0 0.0
    %5132 = vmatpush1.xpose.msra.mxu0 0.0
    %5133 = vmatprep.subr.mxu0 0.0
    %5134 = vmatpush1.xpose.msra.mxu0 0.0
    %5135 = vmatprep.subr.mxu0 0.0
    %5136 = vmatpush1.xpose.msra.mxu0 0.0
    %5137 = vmatprep.subr.mxu0 0.0
    %5138 = vmatpush1.xpose.msra.mxu0 0.0
    %5139 = vmatprep.subr.mxu0 0.0
    %5140 = vmatpush1.xpose.msra.mxu0 0.0
    %5141 = vmatprep.subr.mxu0 0.0
    %5142 = vmatpush1.xpose.msra.mxu0 0.0
    %5143 = vmatprep.subr.mxu0 0.0
    %5144 = vmatpush1.xpose.msra.mxu0 0.0
    %5145 = vmatprep.subr.mxu0 0.0
    %5146 = vmatpush1.xpose.msra.mxu0 0.0
    %5147 = vmatprep.subr.mxu0 0.0
    %5148 = vmatpush1.xpose.msra.mxu0 0.0
    %5149 = vmatprep.subr.mxu0 0.0
    %5150 = vmatpush1.xpose.msra.mxu0 0.0
    %5151 = vmatprep.subr.mxu0 0.0
    %5152 = vmatpush1.xpose.msra.mxu0 0.0
    %5153 = vmatprep.subr.mxu0 0.0
    %5154 = vmatpush1.xpose.msra.mxu0 0.0
    %5155 = vmatprep.subr.mxu0 0.0
    %5156 = vmatpush1.xpose.msra.mxu0 0.0
    %5157 = vmatprep.subr.mxu0 0.0
    %5158 = vmatpush1.xpose.msra.mxu0 0.0
    %5159 = vmatprep.subr.mxu0 0.0
    %5160 = vmatpush1.xpose.msra.mxu0 0.0
    %5161 = vmatprep.subr.mxu0 0.0
    %5162 = vmatpush1.xpose.msra.mxu0 0.0
    %5163 = vmatprep.subr.mxu0 0.0
    %5164 = vmatpush1.xpose.msra.mxu0 0.0
    %5165 = vmatprep.subr.mxu0 0.0
    %5166 = vmatpush1.xpose.msra.mxu0 0.0
    %5167 = vmatprep.subr.mxu0 0.0
    %5168 = vmatpush1.xpose.msra.mxu0 0.0
    %5169 = vmatprep.subr.mxu0 0.0
    %5170 = vmatpush1.xpose.msra.mxu0 0.0
    %5171 = vmatprep.subr.mxu0 0.0
    %5172 = vmatpush1.xpose.msra.mxu0 0.0
    %5173 = vmatprep.subr.mxu0 0.0
    %5174 = vmatpush1.xpose.msra.mxu0 0.0
    %5175 = vmatprep.subr.mxu0 0.0
    %5176 = vmatpush1.xpose.msra.mxu0 0.0
    %5177 = vmatprep.subr.mxu0 0.0
    %5178 = vmatpush1.xpose.msra.mxu0 0.0
    %5179 = vmatprep.mubr.f32.mxu0 0.0
    %5180 = vmatmul.mubr.f32.gmra.mrb[0].mxu0 %v5110
    %v5181 = vpop.f32.mrb[0].mxu0
    %v5182 = vadd.f32 0.0, %v5181
    %v5183 = vpop.f32.mrb[0].mxu0
    %5184 = vdwg.mxu0
    %v5186 = vsel %vm441, %v4932, 0
    %v5189 = vsel %vm441, %v5018, 0
    %5191 = vmatprep.subr.mxu0 0.0
    %5192 = vmatpush1.xpose.msra.mxu0 %v5189
    %5193 = vmatprep.subr.mxu0 0.0
    %5194 = vmatpush1.xpose.msra.mxu0 0.0
    %5195 = vmatprep.subr.mxu0 0.0
    %5196 = vmatpush1.xpose.msra.mxu0 0.0
    %5197 = vmatprep.subr.mxu0 0.0
    %5198 = vmatpush1.xpose.msra.mxu0 0.0
    %5199 = vmatprep.subr.mxu0 0.0
    %5200 = vmatpush1.xpose.msra.mxu0 0.0
    %5201 = vmatprep.subr.mxu0 0.0
    %5202 = vmatpush1.xpose.msra.mxu0 0.0
    %5203 = vmatprep.subr.mxu0 0.0
    %5204 = vmatpush1.xpose.msra.mxu0 0.0
    %5205 = vmatprep.subr.mxu0 0.0
    %5206 = vmatpush1.xpose.msra.mxu0 0.0
    %5207 = vmatprep.subr.mxu0 0.0
    %5208 = vmatpush1.xpose.msra.mxu0 0.0
    %5209 = vmatprep.subr.mxu0 0.0
    %5210 = vmatpush1.xpose.msra.mxu0 0.0
    %5211 = vmatprep.subr.mxu0 0.0
    %5212 = vmatpush1.xpose.msra.mxu0 0.0
    %5213 = vmatprep.subr.mxu0 0.0
    %5214 = vmatpush1.xpose.msra.mxu0 0.0
    %5215 = vmatprep.subr.mxu0 0.0
    %5216 = vmatpush1.xpose.msra.mxu0 0.0
    %5217 = vmatprep.subr.mxu0 0.0
    %5218 = vmatpush1.xpose.msra.mxu0 0.0
    %5219 = vmatprep.subr.mxu0 0.0
    %5220 = vmatpush1.xpose.msra.mxu0 0.0
    %5221 = vmatprep.subr.mxu0 0.0
    %5222 = vmatpush1.xpose.msra.mxu0 0.0
    %5223 = vmatprep.subr.mxu0 0.0
    %5224 = vmatpush1.xpose.msra.mxu0 0.0
    %5225 = vmatprep.subr.mxu0 0.0
    %5226 = vmatpush1.xpose.msra.mxu0 0.0
    %5227 = vmatprep.subr.mxu0 0.0
    %5228 = vmatpush1.xpose.msra.mxu0 0.0
    %5229 = vmatprep.subr.mxu0 0.0
    %5230 = vmatpush1.xpose.msra.mxu0 0.0
    %5231 = vmatprep.subr.mxu0 0.0
    %5232 = vmatpush1.xpose.msra.mxu0 0.0
    %5233 = vmatprep.subr.mxu0 0.0
    %5234 = vmatpush1.xpose.msra.mxu0 0.0
    %5235 = vmatprep.subr.mxu0 0.0
    %5236 = vmatpush1.xpose.msra.mxu0 0.0
    %5237 = vmatprep.subr.mxu0 0.0
    %5238 = vmatpush1.xpose.msra.mxu0 0.0
    %5239 = vmatprep.subr.mxu0 0.0
    %5240 = vmatpush1.xpose.msra.mxu0 0.0
    %5241 = vmatprep.subr.mxu0 0.0
    %5242 = vmatpush1.xpose.msra.mxu0 0.0
    %5243 = vmatprep.subr.mxu0 0.0
    %5244 = vmatpush1.xpose.msra.mxu0 0.0
    %5245 = vmatprep.subr.mxu0 0.0
    %5246 = vmatpush1.xpose.msra.mxu0 0.0
    %5247 = vmatprep.subr.mxu0 0.0
    %5248 = vmatpush1.xpose.msra.mxu0 0.0
    %5249 = vmatprep.subr.mxu0 0.0
    %5250 = vmatpush1.xpose.msra.mxu0 0.0
    %5251 = vmatprep.subr.mxu0 0.0
    %5252 = vmatpush1.xpose.msra.mxu0 0.0
    %5253 = vmatprep.subr.mxu0 0.0
    %5254 = vmatpush1.xpose.msra.mxu0 0.0
    %5255 = vmatprep.mubr.f32.mxu0 0.0
    %5256 = vmatmul.mubr.f32.gmra.mrb[0].mxu0 %v5186
    %v5257 = vpop.f32.mrb[0].mxu0
    %v5258 = vadd.f32 0.0, %v5257
    %v5259 = vpop.f32.mrb[0].mxu0
    %5260 = vdwg.mxu0
    %v5261 = vsel %vm441, %v5182, -inf
    %5262 = vmax.xlane.f32.xlu0 %v5261
    %v5263 = vpop.xlane.xlu0 %5262
    %v5264 = vsel %vm441, %v5258, -inf
    %5265 = vmax.xlane.f32.xlu0 %v5264
    %v5266 = vpop.xlane.xlu0 %5265
    %v5267 = vsub.f32 %v5182, %v5263
    %v5268 = vsub.f32 %v5258, %v5266
    %v5269 = vmul.f32 %v5267, 1.442695
    %v5270 = vpow.pop %v5269
    %v5271 = vmul.f32 %v5268, 1.442695
    %v5272 = vpow.pop %v5271
    %v5273 = vsel %vm441, %v5270, 0.0
    %5274 = vadd.xlane.f32.xlu0 %v5273
    %v5275 = vpop.xlane.xlu0 %5274
    %v5276 = vsel %vm441, %v5272, 0.0
    %5277 = vadd.xlane.f32.xlu0 %v5276
    %v5278 = vpop.xlane.xlu0 %5277
    %v5279 = vrcp.pop %v5275
    %v5280 = vmul.f32 %v5270, %v5279
    %v5281 = vrcp.pop %v5278
    %v5282 = vmul.f32 %v5272, %v5281
    %v5284 = vsel %vm441, %v5280, 0
    %5286 = vmatprep.subr.mxu0 0.0
    %5287 = vmatpush1.msra.mxu0 %v5101
    %5288 = vmatprep.subr.mxu0 0.0
    %5289 = vmatpush1.msra.mxu0 0.0
    %5290 = vmatprep.subr.mxu0 0.0
    %5291 = vmatpush1.msra.mxu0 0.0
    %5292 = vmatprep.subr.mxu0 0.0
    %5293 = vmatpush1.msra.mxu0 0.0
    %5294 = vmatprep.subr.mxu0 0.0
    %5295 = vmatpush1.msra.mxu0 0.0
    %5296 = vmatprep.subr.mxu0 0.0
    %5297 = vmatpush1.msra.mxu0 0.0
    %5298 = vmatprep.subr.mxu0 0.0
    %5299 = vmatpush1.msra.mxu0 0.0
    %5300 = vmatprep.subr.mxu0 0.0
    %5301 = vmatpush1.msra.mxu0 0.0
    %5302 = vmatprep.subr.mxu0 0.0
    %5303 = vmatpush1.msra.mxu0 0.0
    %5304 = vmatprep.subr.mxu0 0.0
    %5305 = vmatpush1.msra.mxu0 0.0
    %5306 = vmatprep.subr.mxu0 0.0
    %5307 = vmatpush1.msra.mxu0 0.0
    %5308 = vmatprep.subr.mxu0 0.0
    %5309 = vmatpush1.msra.mxu0 0.0
    %5310 = vmatprep.subr.mxu0 0.0
    %5311 = vmatpush1.msra.mxu0 0.0
    %5312 = vmatprep.subr.mxu0 0.0
    %5313 = vmatpush1.msra.mxu0 0.0
    %5314 = vmatprep.subr.mxu0 0.0
    %5315 = vmatpush1.msra.mxu0 0.0
    %5316 = vmatprep.subr.mxu0 0.0
    %5317 = vmatpush1.msra.mxu0 0.0
    %5318 = vmatprep.subr.mxu0 0.0
    %5319 = vmatpush1.msra.mxu0 0.0
    %5320 = vmatprep.subr.mxu0 0.0
    %5321 = vmatpush1.msra.mxu0 0.0
    %5322 = vmatprep.subr.mxu0 0.0
    %5323 = vmatpush1.msra.mxu0 0.0
    %5324 = vmatprep.subr.mxu0 0.0
    %5325 = vmatpush1.msra.mxu0 0.0
    %5326 = vmatprep.subr.mxu0 0.0
    %5327 = vmatpush1.msra.mxu0 0.0
    %5328 = vmatprep.subr.mxu0 0.0
    %5329 = vmatpush1.msra.mxu0 0.0
    %5330 = vmatprep.subr.mxu0 0.0
    %5331 = vmatpush1.msra.mxu0 0.0
    %5332 = vmatprep.subr.mxu0 0.0
    %5333 = vmatpush1.msra.mxu0 0.0
    %5334 = vmatprep.subr.mxu0 0.0
    %5335 = vmatpush1.msra.mxu0 0.0
    %5336 = vmatprep.subr.mxu0 0.0
    %5337 = vmatpush1.msra.mxu0 0.0
    %5338 = vmatprep.subr.mxu0 0.0
    %5339 = vmatpush1.msra.mxu0 0.0
    %5340 = vmatprep.subr.mxu0 0.0
    %5341 = vmatpush1.msra.mxu0 0.0
    %5342 = vmatprep.subr.mxu0 0.0
    %5343 = vmatpush1.msra.mxu0 0.0
    %5344 = vmatprep.subr.mxu0 0.0
    %5345 = vmatpush1.msra.mxu0 0.0
    %5346 = vmatprep.subr.mxu0 0.0
    %5347 = vmatpush1.msra.mxu0 0.0
    %5348 = vmatprep.subr.mxu0 0.0
    %5349 = vmatpush1.msra.mxu0 0.0
    %5350 = vmatprep.mubr.f32.mxu0 0.0
    %5351 = vmatmul.mubr.f32.gmra.mrb[0].mxu0 %v5284
    %v5352 = vpop.f32.mrb[0].mxu0
    %v5353 = vadd.f32 0.0, %v5352
    %v5354 = vpop.f32.mrb[0].mxu0
    %5355 = vdwg.mxu0
    %v5357 = vsel %vm441, %v5282, 0
    %5359 = vmatprep.subr.mxu0 0.0
    %5360 = vmatpush1.msra.mxu0 %v5106
    %5361 = vmatprep.subr.mxu0 0.0
    %5362 = vmatpush1.msra.mxu0 0.0
    %5363 = vmatprep.subr.mxu0 0.0
    %5364 = vmatpush1.msra.mxu0 0.0
    %5365 = vmatprep.subr.mxu0 0.0
    %5366 = vmatpush1.msra.mxu0 0.0
    %5367 = vmatprep.subr.mxu0 0.0
    %5368 = vmatpush1.msra.mxu0 0.0
    %5369 = vmatprep.subr.mxu0 0.0
    %5370 = vmatpush1.msra.mxu0 0.0
    %5371 = vmatprep.subr.mxu0 0.0
    %5372 = vmatpush1.msra.mxu0 0.0
    %5373 = vmatprep.subr.mxu0 0.0
    %5374 = vmatpush1.msra.mxu0 0.0
    %5375 = vmatprep.subr.mxu0 0.0
    %5376 = vmatpush1.msra.mxu0 0.0
    %5377 = vmatprep.subr.mxu0 0.0
    %5378 = vmatpush1.msra.mxu0 0.0
    %5379 = vmatprep.subr.mxu0 0.0
    %5380 = vmatpush1.msra.mxu0 0.0
    %5381 = vmatprep.subr.mxu0 0.0
    %5382 = vmatpush1.msra.mxu0 0.0
    %5383 = vmatprep.subr.mxu0 0.0
    %5384 = vmatpush1.msra.mxu0 0.0
    %5385 = vmatprep.subr.mxu0 0.0
    %5386 = vmatpush1.msra.mxu0 0.0
    %5387 = vmatprep.subr.mxu0 0.0
    %5388 = vmatpush1.msra.mxu0 0.0
    %5389 = vmatprep.subr.mxu0 0.0
    %5390 = vmatpush1.msra.mxu0 0.0
    %5391 = vmatprep.subr.mxu0 0.0
    %5392 = vmatpush1.msra.mxu0 0.0
    %5393 = vmatprep.subr.mxu0 0.0
    %5394 = vmatpush1.msra.mxu0 0.0
    %5395 = vmatprep.subr.mxu0 0.0
    %5396 = vmatpush1.msra.mxu0 0.0
    %5397 = vmatprep.subr.mxu0 0.0
    %5398 = vmatpush1.msra.mxu0 0.0
    %5399 = vmatprep.subr.mxu0 0.0
    %5400 = vmatpush1.msra.mxu0 0.0
    %5401 = vmatprep.subr.mxu0 0.0
    %5402 = vmatpush1.msra.mxu0 0.0
    %5403 = vmatprep.subr.mxu0 0.0
    %5404 = vmatpush1.msra.mxu0 0.0
    %5405 = vmatprep.subr.mxu0 0.0
    %5406 = vmatpush1.msra.mxu0 0.0
    %5407 = vmatprep.subr.mxu0 0.0
    %5408 = vmatpush1.msra.mxu0 0.0
    %5409 = vmatprep.subr.mxu0 0.0
    %5410 = vmatpush1.msra.mxu0 0.0
    %5411 = vmatprep.subr.mxu0 0.0
    %5412 = vmatpush1.msra.mxu0 0.0
    %5413 = vmatprep.subr.mxu0 0.0
    %5414 = vmatpush1.msra.mxu0 0.0
    %5415 = vmatprep.subr.mxu0 0.0
    %5416 = vmatpush1.msra.mxu0 0.0
    %5417 = vmatprep.subr.mxu0 0.0
    %5418 = vmatpush1.msra.mxu0 0.0
    %5419 = vmatprep.subr.mxu0 0.0
    %5420 = vmatpush1.msra.mxu0 0.0
    %5421 = vmatprep.subr.mxu0 0.0
    %5422 = vmatpush1.msra.mxu0 0.0
    %5423 = vmatprep.mubr.f32.mxu0 0.0
    %5424 = vmatmul.mubr.f32.gmra.mrb[0].mxu0 %v5357
    %v5425 = vpop.f32.mrb[0].mxu0
    %v5426 = vadd.f32 0.0, %v5425
    %v5427 = vpop.f32.mrb[0].mxu0
    %5428 = vdwg.mxu0
    %s5429 = scalar_lea.vmem %s5, 48
    %v5430 = vld [vmem:[%s5429] sm:$0xff]
    %v5432 = vsel %vm441, %v5353, 0
    %v5435 = vsel %vm441, %v5426, 0
    %5437 = vmatprep.subr.mxu0 0.0
    %5438 = vmatpush1.msra.mxu0 %v5430
    %5439 = vmatprep.subr.mxu0 0.0
    %5440 = vmatpush1.msra.mxu0 0.0
    %5441 = vmatprep.subr.mxu0 0.0
    %5442 = vmatpush1.msra.mxu0 0.0
    %5443 = vmatprep.subr.mxu0 0.0
    %5444 = vmatpush1.msra.mxu0 0.0
    %5445 = vmatprep.subr.mxu0 0.0
    %5446 = vmatpush1.msra.mxu0 0.0
    %5447 = vmatprep.subr.mxu0 0.0
    %5448 = vmatpush1.msra.mxu0 0.0
    %5449 = vmatprep.subr.mxu0 0.0
    %5450 = vmatpush1.msra.mxu0 0.0
    %5451 = vmatprep.subr.mxu0 0.0
    %5452 = vmatpush1.msra.mxu0 0.0
    %5453 = vmatprep.subr.mxu0 0.0
    %5454 = vmatpush1.msra.mxu0 0.0
    %5455 = vmatprep.subr.mxu0 0.0
    %5456 = vmatpush1.msra.mxu0 0.0
    %5457 = vmatprep.subr.mxu0 0.0
    %5458 = vmatpush1.msra.mxu0 0.0
    %5459 = vmatprep.subr.mxu0 0.0
    %5460 = vmatpush1.msra.mxu0 0.0
    %5461 = vmatprep.subr.mxu0 0.0
    %5462 = vmatpush1.msra.mxu0 0.0
    %5463 = vmatprep.subr.mxu0 0.0
    %5464 = vmatpush1.msra.mxu0 0.0
    %5465 = vmatprep.subr.mxu0 0.0
    %5466 = vmatpush1.msra.mxu0 0.0
    %5467 = vmatprep.subr.mxu0 0.0
    %5468 = vmatpush1.msra.mxu0 0.0
    %5469 = vmatprep.subr.mxu0 0.0
    %5470 = vmatpush1.msra.mxu0 0.0
    %5471 = vmatprep.subr.mxu0 0.0
    %5472 = vmatpush1.msra.mxu0 0.0
    %5473 = vmatprep.subr.mxu0 0.0
    %5474 = vmatpush1.msra.mxu0 0.0
    %5475 = vmatprep.subr.mxu0 0.0
    %5476 = vmatpush1.msra.mxu0 0.0
    %5477 = vmatprep.subr.mxu0 0.0
    %5478 = vmatpush1.msra.mxu0 0.0
    %5479 = vmatprep.subr.mxu0 0.0
    %5480 = vmatpush1.msra.mxu0 0.0
    %5481 = vmatprep.subr.mxu0 0.0
    %5482 = vmatpush1.msra.mxu0 0.0
    %5483 = vmatprep.subr.mxu0 0.0
    %5484 = vmatpush1.msra.mxu0 0.0
    %5485 = vmatprep.subr.mxu0 0.0
    %5486 = vmatpush1.msra.mxu0 0.0
    %5487 = vmatprep.subr.mxu0 0.0
    %5488 = vmatpush1.msra.mxu0 0.0
    %5489 = vmatprep.subr.mxu0 0.0
    %5490 = vmatpush1.msra.mxu0 0.0
    %5491 = vmatprep.subr.mxu0 0.0
    %5492 = vmatpush1.msra.mxu0 0.0
    %5493 = vmatprep.subr.mxu0 0.0
    %5494 = vmatpush1.msra.mxu0 0.0
    %5495 = vmatprep.subr.mxu0 0.0
    %5496 = vmatpush1.msra.mxu0 0.0
    %5497 = vmatprep.subr.mxu0 0.0
    %5498 = vmatpush1.msra.mxu0 0.0
    %5499 = vmatprep.subr.mxu0 0.0
    %5500 = vmatpush1.msra.mxu0 0.0
    %5501 = vmatprep.mubr.f32.mxu0 0.0
    %5502 = vmatmul.mubr.f32.gmra.mrb[0].mxu0 %v5432
    %v5503 = vpop.f32.mrb[0].mxu0
    %v5504 = vadd.f32 0.0, %v5503
    %v5505 = vpop.f32.mrb[0].mxu0
    %5506 = vmatprep.mubr.f32.mxu0 0.0
    %5507 = vmatmul.mubr.f32.gmra.mrb[0].mxu0 %v5435
    %v5508 = vpop.f32.mrb[0].mxu0
    %v5509 = vadd.f32 0.0, %v5508
    %v5510 = vpop.f32.mrb[0].mxu0
    %5511 = vdwg.mxu0
    %v5512 = vadd.f32 %v4835, %v5504
    %v5513 = vadd.f32 %v4840, %v5509
    %s5514 = scalar_lea.vmem %s3, 480
    %v5515 = vld [vmem:[%s5514] sm:$0xff]
    %v5516 = vld [vmem:[%s5514 + $0x8] sm:$0xff]
    %v5517 = vld [vmem:[%s5514 + $0x10] sm:$0xff]
    %v5518 = vld [vmem:[%s5514 + $0x18] sm:$0xff]
    %s5519 = scalar_lea.vmem %s4, 15
    %v5520 = vld [vmem:[%s5519] sm:$0x1]
    %v5522 = vlaneseq
    %v5523 = vshrl.u32 %v5522, 7
    %v5524 = vsub.s32 0, %v5523
    %v5525 = vrot.slane %v5520, %v5524
    %5527 = vmatprep.subr.mxu0 0.0
    %5528 = vmatpush1.msra.mxu0 %v5515
    %5529 = vmatprep.subr.mxu0 0.0
    %5530 = vmatpush1.msra.mxu0 %v5516
    %5531 = vmatprep.subr.mxu0 0.0
    %5532 = vmatpush1.msra.mxu0 %v5517
    %5533 = vmatprep.subr.mxu0 0.0
    %5534 = vmatpush1.msra.mxu0 %v5518
    %5535 = vmatprep.subr.mxu0 0.0
    %5536 = vmatpush1.msra.mxu0 0.0
    %5537 = vmatprep.subr.mxu0 0.0
    %5538 = vmatpush1.msra.mxu0 0.0
    %5539 = vmatprep.subr.mxu0 0.0
    %5540 = vmatpush1.msra.mxu0 0.0
    %5541 = vmatprep.subr.mxu0 0.0
    %5542 = vmatpush1.msra.mxu0 0.0
    %5543 = vmatprep.subr.mxu0 0.0
    %5544 = vmatpush1.msra.mxu0 0.0
    %5545 = vmatprep.subr.mxu0 0.0
    %5546 = vmatpush1.msra.mxu0 0.0
    %5547 = vmatprep.subr.mxu0 0.0
    %5548 = vmatpush1.msra.mxu0 0.0
    %5549 = vmatprep.subr.mxu0 0.0
    %5550 = vmatpush1.msra.mxu0 0.0
    %5551 = vmatprep.subr.mxu0 0.0
    %5552 = vmatpush1.msra.mxu0 0.0
    %5553 = vmatprep.subr.mxu0 0.0
    %5554 = vmatpush1.msra.mxu0 0.0
    %5555 = vmatprep.subr.mxu0 0.0
    %5556 = vmatpush1.msra.mxu0 0.0
    %5557 = vmatprep.subr.mxu0 0.0
    %5558 = vmatpush1.msra.mxu0 0.0
    %5559 = vmatprep.subr.mxu0 0.0
    %5560 = vmatpush1.msra.mxu0 0.0
    %5561 = vmatprep.subr.mxu0 0.0
    %5562 = vmatpush1.msra.mxu0 0.0
    %5563 = vmatprep.subr.mxu0 0.0
    %5564 = vmatpush1.msra.mxu0 0.0
    %5565 = vmatprep.subr.mxu0 0.0
    %5566 = vmatpush1.msra.mxu0 0.0
    %5567 = vmatprep.subr.mxu0 0.0
    %5568 = vmatpush1.msra.mxu0 0.0
    %5569 = vmatprep.subr.mxu0 0.0
    %5570 = vmatpush1.msra.mxu0 0.0
    %5571 = vmatprep.subr.mxu0 0.0
    %5572 = vmatpush1.msra.mxu0 0.0
    %5573 = vmatprep.subr.mxu0 0.0
    %5574 = vmatpush1.msra.mxu0 0.0
    %5575 = vmatprep.subr.mxu0 0.0
    %5576 = vmatpush1.msra.mxu0 0.0
    %5577 = vmatprep.subr.mxu0 0.0
    %5578 = vmatpush1.msra.mxu0 0.0
    %5579 = vmatprep.subr.mxu0 0.0
    %5580 = vmatpush1.msra.mxu0 0.0
    %5581 = vmatprep.subr.mxu0 0.0
    %5582 = vmatpush1.msra.mxu0 0.0
    %5583 = vmatprep.subr.mxu0 0.0
    %5584 = vmatpush1.msra.mxu0 0.0
    %5585 = vmatprep.subr.mxu0 0.0
    %5586 = vmatpush1.msra.mxu0 0.0
    %5587 = vmatprep.subr.mxu0 0.0
    %5588 = vmatpush1.msra.mxu0 0.0
    %5589 = vmatprep.subr.mxu0 0.0
    %5590 = vmatpush1.msra.mxu0 0.0
    %5591 = vmatprep.mubr.f32.mxu0 0.0
    %5592 = vmatmul.mubr.f32.gmra.mrb[0].mxu0 %v3513
    %v5593 = vpop.f32.mrb[0].mxu0
    %v5594 = vadd.f32 %v5525, %v5593
    %v5595 = vpop.f32.mrb[0].mxu0
    %5596 = vmatprep.mubr.f32.mxu0 0.0
    %5597 = vmatmul.mubr.f32.gmra.mrb[0].mxu0 %v3516
    %v5598 = vpop.f32.mrb[0].mxu0
    %v5599 = vadd.f32 %v5525, %v5598
    %v5600 = vpop.f32.mrb[0].mxu0
    %5601 = vdwg.mxu0
    %v5602 = vmul.f32 %v5594, 0.35355338
    %v5603 = vmul.f32 %v5599, 0.35355338
    %s5604 = scalar_lea.vmem %s3, 608
    %v5605 = vld [vmem:[%s5604] sm:$0xff]
    %v5606 = vld [vmem:[%s5604 + $0x8] sm:$0xff]
    %v5607 = vld [vmem:[%s5604 + $0x10] sm:$0xff]
    %v5608 = vld [vmem:[%s5604 + $0x18] sm:$0xff]
    %s5609 = scalar_lea.vmem %s4, 19
    %v5610 = vld [vmem:[%s5609] sm:$0x1]
    %v5612 = vlaneseq
    %v5613 = vshrl.u32 %v5612, 7
    %v5614 = vsub.s32 0, %v5613
    %v5615 = vrot.slane %v5610, %v5614
    %5617 = vmatprep.subr.mxu0 0.0
    %5618 = vmatpush1.msra.mxu0 %v5605
    %5619 = vmatprep.subr.mxu0 0.0
    %5620 = vmatpush1.msra.mxu0 %v5606
    %5621 = vmatprep.subr.mxu0 0.0
    %5622 = vmatpush1.msra.mxu0 %v5607
    %5623 = vmatprep.subr.mxu0 0.0
    %5624 = vmatpush1.msra.mxu0 %v5608
    %5625 = vmatprep.subr.mxu0 0.0
    %5626 = vmatpush1.msra.mxu0 0.0
    %5627 = vmatprep.subr.mxu0 0.0
    %5628 = vmatpush1.msra.mxu0 0.0
    %5629 = vmatprep.subr.mxu0 0.0
    %5630 = vmatpush1.msra.mxu0 0.0
    %5631 = vmatprep.subr.mxu0 0.0
    %5632 = vmatpush1.msra.mxu0 0.0
    %5633 = vmatprep.subr.mxu0 0.0
    %5634 = vmatpush1.msra.mxu0 0.0
    %5635 = vmatprep.subr.mxu0 0.0
    %5636 = vmatpush1.msra.mxu0 0.0
    %5637 = vmatprep.subr.mxu0 0.0
    %5638 = vmatpush1.msra.mxu0 0.0
    %5639 = vmatprep.subr.mxu0 0.0
    %5640 = vmatpush1.msra.mxu0 0.0
    %5641 = vmatprep.subr.mxu0 0.0
    %5642 = vmatpush1.msra.mxu0 0.0
    %5643 = vmatprep.subr.mxu0 0.0
    %5644 = vmatpush1.msra.mxu0 0.0
    %5645 = vmatprep.subr.mxu0 0.0
    %5646 = vmatpush1.msra.mxu0 0.0
    %5647 = vmatprep.subr.mxu0 0.0
    %5648 = vmatpush1.msra.mxu0 0.0
    %5649 = vmatprep.subr.mxu0 0.0
    %5650 = vmatpush1.msra.mxu0 0.0
    %5651 = vmatprep.subr.mxu0 0.0
    %5652 = vmatpush1.msra.mxu0 0.0
    %5653 = vmatprep.subr.mxu0 0.0
    %5654 = vmatpush1.msra.mxu0 0.0
    %5655 = vmatprep.subr.mxu0 0.0
    %5656 = vmatpush1.msra.mxu0 0.0
    %5657 = vmatprep.subr.mxu0 0.0
    %5658 = vmatpush1.msra.mxu0 0.0
    %5659 = vmatprep.subr.mxu0 0.0
    %5660 = vmatpush1.msra.mxu0 0.0
    %5661 = vmatprep.subr.mxu0 0.0
    %5662 = vmatpush1.msra.mxu0 0.0
    %5663 = vmatprep.subr.mxu0 0.0
    %5664 = vmatpush1.msra.mxu0 0.0
    %5665 = vmatprep.subr.mxu0 0.0
    %5666 = vmatpush1.msra.mxu0 0.0
    %5667 = vmatprep.subr.mxu0 0.0
    %5668 = vmatpush1.msra.mxu0 0.0
    %5669 = vmatprep.subr.mxu0 0.0
    %5670 = vmatpush1.msra.mxu0 0.0
    %5671 = vmatprep.subr.mxu0 0.0
    %5672 = vmatpush1.msra.mxu0 0.0
    %5673 = vmatprep.subr.mxu0 0.0
    %5674 = vmatpush1.msra.mxu0 0.0
    %5675 = vmatprep.subr.mxu0 0.0
    %5676 = vmatpush1.msra.mxu0 0.0
    %5677 = vmatprep.subr.mxu0 0.0
    %5678 = vmatpush1.msra.mxu0 0.0
    %5679 = vmatprep.subr.mxu0 0.0
    %5680 = vmatpush1.msra.mxu0 0.0
    %5681 = vmatprep.mubr.f32.mxu0 0.0
    %5682 = vmatmul.mubr.f32.gmra.mrb[0].mxu0 %v3513
    %v5683 = vpop.f32.mrb[0].mxu0
    %v5684 = vadd.f32 %v5615, %v5683
    %v5685 = vpop.f32.mrb[0].mxu0
    %5686 = vmatprep.mubr.f32.mxu0 0.0
    %5687 = vmatmul.mubr.f32.gmra.mrb[0].mxu0 %v3516
    %v5688 = vpop.f32.mrb[0].mxu0
    %v5689 = vadd.f32 %v5615, %v5688
    %v5690 = vpop.f32.mrb[0].mxu0
    %5691 = vdwg.mxu0
    %s5692 = scalar_lea.vmem %s3, 736
    %v5693 = vld [vmem:[%s5692] sm:$0xff]
    %v5694 = vld [vmem:[%s5692 + $0x8] sm:$0xff]
    %v5695 = vld [vmem:[%s5692 + $0x10] sm:$0xff]
    %v5696 = vld [vmem:[%s5692 + $0x18] sm:$0xff]
    %s5697 = scalar_lea.vmem %s4, 23
    %v5698 = vld [vmem:[%s5697] sm:$0x1]
    %v5700 = vlaneseq
    %v5701 = vshrl.u32 %v5700, 7
    %v5702 = vsub.s32 0, %v5701
    %v5703 = vrot.slane %v5698, %v5702
    %5705 = vmatprep.subr.mxu0 0.0
    %5706 = vmatpush1.msra.mxu0 %v5693
    %5707 = vmatprep.subr.mxu0 0.0
    %5708 = vmatpush1.msra.mxu0 %v5694
    %5709 = vmatprep.subr.mxu0 0.0
    %5710 = vmatpush1.msra.mxu0 %v5695
    %5711 = vmatprep.subr.mxu0 0.0
    %5712 = vmatpush1.msra.mxu0 %v5696
    %5713 = vmatprep.subr.mxu0 0.0
    %5714 = vmatpush1.msra.mxu0 0.0
    %5715 = vmatprep.subr.mxu0 0.0
    %5716 = vmatpush1.msra.mxu0 0.0
    %5717 = vmatprep.subr.mxu0 0.0
    %5718 = vmatpush1.msra.mxu0 0.0
    %5719 = vmatprep.subr.mxu0 0.0
    %5720 = vmatpush1.msra.mxu0 0.0
    %5721 = vmatprep.subr.mxu0 0.0
    %5722 = vmatpush1.msra.mxu0 0.0
    %5723 = vmatprep.subr.mxu0 0.0
    %5724 = vmatpush1.msra.mxu0 0.0
    %5725 = vmatprep.subr.mxu0 0.0
    %5726 = vmatpush1.msra.mxu0 0.0
    %5727 = vmatprep.subr.mxu0 0.0
    %5728 = vmatpush1.msra.mxu0 0.0
    %5729 = vmatprep.subr.mxu0 0.0
    %5730 = vmatpush1.msra.mxu0 0.0
    %5731 = vmatprep.subr.mxu0 0.0
    %5732 = vmatpush1.msra.mxu0 0.0
    %5733 = vmatprep.subr.mxu0 0.0
    %5734 = vmatpush1.msra.mxu0 0.0
    %5735 = vmatprep.subr.mxu0 0.0
    %5736 = vmatpush1.msra.mxu0 0.0
    %5737 = vmatprep.subr.mxu0 0.0
    %5738 = vmatpush1.msra.mxu0 0.0
    %5739 = vmatprep.subr.mxu0 0.0
    %5740 = vmatpush1.msra.mxu0 0.0
    %5741 = vmatprep.subr.mxu0 0.0
    %5742 = vmatpush1.msra.mxu0 0.0
    %5743 = vmatprep.subr.mxu0 0.0
    %5744 = vmatpush1.msra.mxu0 0.0
    %5745 = vmatprep.subr.mxu0 0.0
    %5746 = vmatpush1.msra.mxu0 0.0
    %5747 = vmatprep.subr.mxu0 0.0
    %5748 = vmatpush1.msra.mxu0 0.0
    %5749 = vmatprep.subr.mxu0 0.0
    %5750 = vmatpush1.msra.mxu0 0.0
    %5751 = vmatprep.subr.mxu0 0.0
    %5752 = vmatpush1.msra.mxu0 0.0
    %5753 = vmatprep.subr.mxu0 0.0
    %5754 = vmatpush1.msra.mxu0 0.0
    %5755 = vmatprep.subr.mxu0 0.0
    %5756 = vmatpush1.msra.mxu0 0.0
    %5757 = vmatprep.subr.mxu0 0.0
    %5758 = vmatpush1.msra.mxu0 0.0
    %5759 = vmatprep.subr.mxu0 0.0
    %5760 = vmatpush1.msra.mxu0 0.0
    %5761 = vmatprep.subr.mxu0 0.0
    %5762 = vmatpush1.msra.mxu0 0.0
    %5763 = vmatprep.subr.mxu0 0.0
    %5764 = vmatpush1.msra.mxu0 0.0
    %5765 = vmatprep.subr.mxu0 0.0
    %5766 = vmatpush1.msra.mxu0 0.0
    %5767 = vmatprep.subr.mxu0 0.0
    %5768 = vmatpush1.msra.mxu0 0.0
    %5769 = vmatprep.mubr.f32.mxu0 0.0
    %5770 = vmatmul.mubr.f32.gmra.mrb[0].mxu0 %v3513
    %v5771 = vpop.f32.mrb[0].mxu0
    %v5772 = vadd.f32 %v5703, %v5771
    %v5773 = vpop.f32.mrb[0].mxu0
    %5774 = vmatprep.mubr.f32.mxu0 0.0
    %5775 = vmatmul.mubr.f32.gmra.mrb[0].mxu0 %v3516
    %v5776 = vpop.f32.mrb[0].mxu0
    %v5777 = vadd.f32 %v5703, %v5776
    %v5778 = vpop.f32.mrb[0].mxu0
    %5779 = vdwg.mxu0
    %v5781 = vsel %vm441, %v5602, 0
    %v5784 = vsel %vm441, %v5684, 0
    %5786 = vmatprep.subr.mxu0 0.0
    %5787 = vmatpush1.xpose.msra.mxu0 %v5784
    %5788 = vmatprep.subr.mxu0 0.0
    %5789 = vmatpush1.xpose.msra.mxu0 0.0
    %5790 = vmatprep.subr.mxu0 0.0
    %5791 = vmatpush1.xpose.msra.mxu0 0.0
    %5792 = vmatprep.subr.mxu0 0.0
    %5793 = vmatpush1.xpose.msra.mxu0 0.0
    %5794 = vmatprep.subr.mxu0 0.0
    %5795 = vmatpush1.xpose.msra.mxu0 0.0
    %5796 = vmatprep.subr.mxu0 0.0
    %5797 = vmatpush1.xpose.msra.mxu0 0.0
    %5798 = vmatprep.subr.mxu0 0.0
    %5799 = vmatpush1.xpose.msra.mxu0 0.0
    %5800 = vmatprep.subr.mxu0 0.0
    %5801 = vmatpush1.xpose.msra.mxu0 0.0
    %5802 = vmatprep.subr.mxu0 0.0
    %5803 = vmatpush1.xpose.msra.mxu0 0.0
    %5804 = vmatprep.subr.mxu0 0.0
    %5805 = vmatpush1.xpose.msra.mxu0 0.0
    %5806 = vmatprep.subr.mxu0 0.0
    %5807 = vmatpush1.xpose.msra.mxu0 0.0
    %5808 = vmatprep.subr.mxu0 0.0
    %5809 = vmatpush1.xpose.msra.mxu0 0.0
    %5810 = vmatprep.subr.mxu0 0.0
    %5811 = vmatpush1.xpose.msra.mxu0 0.0
    %5812 = vmatprep.subr.mxu0 0.0
    %5813 = vmatpush1.xpose.msra.mxu0 0.0
    %5814 = vmatprep.subr.mxu0 0.0
    %5815 = vmatpush1.xpose.msra.mxu0 0.0
    %5816 = vmatprep.subr.mxu0 0.0
    %5817 = vmatpush1.xpose.msra.mxu0 0.0
    %5818 = vmatprep.subr.mxu0 0.0
    %5819 = vmatpush1.xpose.msra.mxu0 0.0
    %5820 = vmatprep.subr.mxu0 0.0
    %5821 = vmatpush1.xpose.msra.mxu0 0.0
    %5822 = vmatprep.subr.mxu0 0.0
    %5823 = vmatpush1.xpose.msra.mxu0 0.0
    %5824 = vmatprep.subr.mxu0 0.0
    %5825 = vmatpush1.xpose.msra.mxu0 0.0
    %5826 = vmatprep.subr.mxu0 0.0
    %5827 = vmatpush1.xpose.msra.mxu0 0.0
    %5828 = vmatprep.subr.mxu0 0.0
    %5829 = vmatpush1.xpose.msra.mxu0 0.0
    %5830 = vmatprep.subr.mxu0 0.0
    %5831 = vmatpush1.xpose.msra.mxu0 0.0
    %5832 = vmatprep.subr.mxu0 0.0
    %5833 = vmatpush1.xpose.msra.mxu0 0.0
    %5834 = vmatprep.subr.mxu0 0.0
    %5835 = vmatpush1.xpose.msra.mxu0 0.0
    %5836 = vmatprep.subr.mxu0 0.0
    %5837 = vmatpush1.xpose.msra.mxu0 0.0
    %5838 = vmatprep.subr.mxu0 0.0
    %5839 = vmatpush1.xpose.msra.mxu0 0.0
    %5840 = vmatprep.subr.mxu0 0.0
    %5841 = vmatpush1.xpose.msra.mxu0 0.0
    %5842 = vmatprep.subr.mxu0 0.0
    %5843 = vmatpush1.xpose.msra.mxu0 0.0
    %5844 = vmatprep.subr.mxu0 0.0
    %5845 = vmatpush1.xpose.msra.mxu0 0.0
    %5846 = vmatprep.subr.mxu0 0.0
    %5847 = vmatpush1.xpose.msra.mxu0 0.0
    %5848 = vmatprep.subr.mxu0 0.0
    %5849 = vmatpush1.xpose.msra.mxu0 0.0
    %5850 = vmatprep.mubr.f32.mxu0 0.0
    %5851 = vmatmul.mubr.f32.gmra.mrb[0].mxu0 %v5781
    %v5852 = vpop.f32.mrb[0].mxu0
    %v5853 = vadd.f32 0.0, %v5852
    %v5854 = vpop.f32.mrb[0].mxu0
    %5855 = vdwg.mxu0
    %v5857 = vsel %vm441, %v5603, 0
    %v5860 = vsel %vm441, %v5689, 0
    %5862 = vmatprep.subr.mxu0 0.0
    %5863 = vmatpush1.xpose.msra.mxu0 %v5860
    %5864 = vmatprep.subr.mxu0 0.0
    %5865 = vmatpush1.xpose.msra.mxu0 0.0
    %5866 = vmatprep.subr.mxu0 0.0
    %5867 = vmatpush1.xpose.msra.mxu0 0.0
    %5868 = vmatprep.subr.mxu0 0.0
    %5869 = vmatpush1.xpose.msra.mxu0 0.0
    %5870 = vmatprep.subr.mxu0 0.0
    %5871 = vmatpush1.xpose.msra.mxu0 0.0
    %5872 = vmatprep.subr.mxu0 0.0
    %5873 = vmatpush1.xpose.msra.mxu0 0.0
    %5874 = vmatprep.subr.mxu0 0.0
    %5875 = vmatpush1.xpose.msra.mxu0 0.0
    %5876 = vmatprep.subr.mxu0 0.0
    %5877 = vmatpush1.xpose.msra.mxu0 0.0
    %5878 = vmatprep.subr.mxu0 0.0
    %5879 = vmatpush1.xpose.msra.mxu0 0.0
    %5880 = vmatprep.subr.mxu0 0.0
    %5881 = vmatpush1.xpose.msra.mxu0 0.0
    %5882 = vmatprep.subr.mxu0 0.0
    %5883 = vmatpush1.xpose.msra.mxu0 0.0
    %5884 = vmatprep.subr.mxu0 0.0
    %5885 = vmatpush1.xpose.msra.mxu0 0.0
    %5886 = vmatprep.subr.mxu0 0.0
    %5887 = vmatpush1.xpose.msra.mxu0 0.0
    %5888 = vmatprep.subr.mxu0 0.0
    %5889 = vmatpush1.xpose.msra.mxu0 0.0
    %5890 = vmatprep.subr.mxu0 0.0
    %5891 = vmatpush1.xpose.msra.mxu0 0.0
    %5892 = vmatprep.subr.mxu0 0.0
    %5893 = vmatpush1.xpose.msra.mxu0 0.0
    %5894 = vmatprep.subr.mxu0 0.0
    %5895 = vmatpush1.xpose.msra.mxu0 0.0
    %5896 = vmatprep.subr.mxu0 0.0
    %5897 = vmatpush1.xpose.msra.mxu0 0.0
    %5898 = vmatprep.subr.mxu0 0.0
    %5899 = vmatpush1.xpose.msra.mxu0 0.0
    %5900 = vmatprep.subr.mxu0 0.0
    %5901 = vmatpush1.xpose.msra.mxu0 0.0
    %5902 = vmatprep.subr.mxu0 0.0
    %5903 = vmatpush1.xpose.msra.mxu0 0.0
    %5904 = vmatprep.subr.mxu0 0.0
    %5905 = vmatpush1.xpose.msra.mxu0 0.0
    %5906 = vmatprep.subr.mxu0 0.0
    %5907 = vmatpush1.xpose.msra.mxu0 0.0
    %5908 = vmatprep.subr.mxu0 0.0
    %5909 = vmatpush1.xpose.msra.mxu0 0.0
    %5910 = vmatprep.subr.mxu0 0.0
    %5911 = vmatpush1.xpose.msra.mxu0 0.0
    %5912 = vmatprep.subr.mxu0 0.0
    %5913 = vmatpush1.xpose.msra.mxu0 0.0
    %5914 = vmatprep.subr.mxu0 0.0
    %5915 = vmatpush1.xpose.msra.mxu0 0.0
    %5916 = vmatprep.subr.mxu0 0.0
    %5917 = vmatpush1.xpose.msra.mxu0 0.0
    %5918 = vmatprep.subr.mxu0 0.0
    %5919 = vmatpush1.xpose.msra.mxu0 0.0
    %5920 = vmatprep.subr.mxu0 0.0
    %5921 = vmatpush1.xpose.msra.mxu0 0.0
    %5922 = vmatprep.subr.mxu0 0.0
    %5923 = vmatpush1.xpose.msra.mxu0 0.0
    %5924 = vmatprep.subr.mxu0 0.0
    %5925 = vmatpush1.xpose.msra.mxu0 0.0
    %5926 = vmatprep.mubr.f32.mxu0 0.0
    %5927 = vmatmul.mubr.f32.gmra.mrb[0].mxu0 %v5857
    %v5928 = vpop.f32.mrb[0].mxu0
    %v5929 = vadd.f32 0.0, %v5928
    %v5930 = vpop.f32.mrb[0].mxu0
    %5931 = vdwg.mxu0
    %v5932 = vsel %vm441, %v5853, -inf
    %5933 = vmax.xlane.f32.xlu0 %v5932
    %v5934 = vpop.xlane.xlu0 %5933
    %v5935 = vsel %vm441, %v5929, -inf
    %5936 = vmax.xlane.f32.xlu0 %v5935
    %v5937 = vpop.xlane.xlu0 %5936
    %v5938 = vsub.f32 %v5853, %v5934
    %v5939 = vsub.f32 %v5929, %v5937
    %v5940 = vmul.f32 %v5938, 1.442695
    %v5941 = vpow.pop %v5940
    %v5942 = vmul.f32 %v5939, 1.442695
    %v5943 = vpow.pop %v5942
    %v5944 = vsel %vm441, %v5941, 0.0
    %5945 = vadd.xlane.f32.xlu0 %v5944
    %v5946 = vpop.xlane.xlu0 %5945
    %v5947 = vsel %vm441, %v5943, 0.0
    %5948 = vadd.xlane.f32.xlu0 %v5947
    %v5949 = vpop.xlane.xlu0 %5948
    %v5950 = vrcp.pop %v5946
    %v5951 = vmul.f32 %v5941, %v5950
    %v5952 = vrcp.pop %v5949
    %v5953 = vmul.f32 %v5943, %v5952
    %v5955 = vsel %vm441, %v5951, 0
    %5957 = vmatprep.subr.mxu0 0.0
    %5958 = vmatpush1.msra.mxu0 %v5772
    %5959 = vmatprep.subr.mxu0 0.0
    %5960 = vmatpush1.msra.mxu0 0.0
    %5961 = vmatprep.subr.mxu0 0.0
    %5962 = vmatpush1.msra.mxu0 0.0
    %5963 = vmatprep.subr.mxu0 0.0
    %5964 = vmatpush1.msra.mxu0 0.0
    %5965 = vmatprep.subr.mxu0 0.0
    %5966 = vmatpush1.msra.mxu0 0.0
    %5967 = vmatprep.subr.mxu0 0.0
    %5968 = vmatpush1.msra.mxu0 0.0
    %5969 = vmatprep.subr.mxu0 0.0
    %5970 = vmatpush1.msra.mxu0 0.0
    %5971 = vmatprep.subr.mxu0 0.0
    %5972 = vmatpush1.msra.mxu0 0.0
    %5973 = vmatprep.subr.mxu0 0.0
    %5974 = vmatpush1.msra.mxu0 0.0
    %5975 = vmatprep.subr.mxu0 0.0
    %5976 = vmatpush1.msra.mxu0 0.0
    %5977 = vmatprep.subr.mxu0 0.0
    %5978 = vmatpush1.msra.mxu0 0.0
    %5979 = vmatprep.subr.mxu0 0.0
    %5980 = vmatpush1.msra.mxu0 0.0
    %5981 = vmatprep.subr.mxu0 0.0
    %5982 = vmatpush1.msra.mxu0 0.0
    %5983 = vmatprep.subr.mxu0 0.0
    %5984 = vmatpush1.msra.mxu0 0.0
    %5985 = vmatprep.subr.mxu0 0.0
    %5986 = vmatpush1.msra.mxu0 0.0
    %5987 = vmatprep.subr.mxu0 0.0
    %5988 = vmatpush1.msra.mxu0 0.0
    %5989 = vmatprep.subr.mxu0 0.0
    %5990 = vmatpush1.msra.mxu0 0.0
    %5991 = vmatprep.subr.mxu0 0.0
    %5992 = vmatpush1.msra.mxu0 0.0
    %5993 = vmatprep.subr.mxu0 0.0
    %5994 = vmatpush1.msra.mxu0 0.0
    %5995 = vmatprep.subr.mxu0 0.0
    %5996 = vmatpush1.msra.mxu0 0.0
    %5997 = vmatprep.subr.mxu0 0.0
    %5998 = vmatpush1.msra.mxu0 0.0
    %5999 = vmatprep.subr.mxu0 0.0
    %6000 = vmatpush1.msra.mxu0 0.0
    %6001 = vmatprep.subr.mxu0 0.0
    %6002 = vmatpush1.msra.mxu0 0.0
    %6003 = vmatprep.subr.mxu0 0.0
    %6004 = vmatpush1.msra.mxu0 0.0
    %6005 = vmatprep.subr.mxu0 0.0
    %6006 = vmatpush1.msra.mxu0 0.0
    %6007 = vmatprep.subr.mxu0 0.0
    %6008 = vmatpush1.msra.mxu0 0.0
    %6009 = vmatprep.subr.mxu0 0.0
    %6010 = vmatpush1.msra.mxu0 0.0
    %6011 = vmatprep.subr.mxu0 0.0
    %6012 = vmatpush1.msra.mxu0 0.0
    %6013 = vmatprep.subr.mxu0 0.0
    %6014 = vmatpush1.msra.mxu0 0.0
    %6015 = vmatprep.subr.mxu0 0.0
    %6016 = vmatpush1.msra.mxu0 0.0
    %6017 = vmatprep.subr.mxu0 0.0
    %6018 = vmatpush1.msra.mxu0 0.0
    %6019 = vmatprep.subr.mxu0 0.0
    %6020 = vmatpush1.msra.mxu0 0.0
    %6021 = vmatprep.mubr.f32.mxu0 0.0
    %6022 = vmatmul.mubr.f32.gmra.mrb[0].mxu0 %v5955
    %v6023 = vpop.f32.mrb[0].mxu0
    %v6024 = vadd.f32 0.0, %v6023
    %v6025 = vpop.f32.mrb[0].mxu0
    %6026 = vdwg.mxu0
    %v6028 = vsel %vm441, %v5953, 0
    %6030 = vmatprep.subr.mxu0 0.0
    %6031 = vmatpush1.msra.mxu0 %v5777
    %6032 = vmatprep.subr.mxu0 0.0
    %6033 = vmatpush1.msra.mxu0 0.0
    %6034 = vmatprep.subr.mxu0 0.0
    %6035 = vmatpush1.msra.mxu0 0.0
    %6036 = vmatprep.subr.mxu0 0.0
    %6037 = vmatpush1.msra.mxu0 0.0
    %6038 = vmatprep.subr.mxu0 0.0
    %6039 = vmatpush1.msra.mxu0 0.0
    %6040 = vmatprep.subr.mxu0 0.0
    %6041 = vmatpush1.msra.mxu0 0.0
    %6042 = vmatprep.subr.mxu0 0.0
    %6043 = vmatpush1.msra.mxu0 0.0
    %6044 = vmatprep.subr.mxu0 0.0
    %6045 = vmatpush1.msra.mxu0 0.0
    %6046 = vmatprep.subr.mxu0 0.0
    %6047 = vmatpush1.msra.mxu0 0.0
    %6048 = vmatprep.subr.mxu0 0.0
    %6049 = vmatpush1.msra.mxu0 0.0
    %6050 = vmatprep.subr.mxu0 0.0
    %6051 = vmatpush1.msra.mxu0 0.0
    %6052 = vmatprep.subr.mxu0 0.0
    %6053 = vmatpush1.msra.mxu0 0.0
    %6054 = vmatprep.subr.mxu0 0.0
    %6055 = vmatpush1.msra.mxu0 0.0
    %6056 = vmatprep.subr.mxu0 0.0
    %6057 = vmatpush1.msra.mxu0 0.0
    %6058 = vmatprep.subr.mxu0 0.0
    %6059 = vmatpush1.msra.mxu0 0.0
    %6060 = vmatprep.subr.mxu0 0.0
    %6061 = vmatpush1.msra.mxu0 0.0
    %6062 = vmatprep.subr.mxu0 0.0
    %6063 = vmatpush1.msra.mxu0 0.0
    %6064 = vmatprep.subr.mxu0 0.0
    %6065 = vmatpush1.msra.mxu0 0.0
    %6066 = vmatprep.subr.mxu0 0.0
    %6067 = vmatpush1.msra.mxu0 0.0
    %6068 = vmatprep.subr.mxu0 0.0
    %6069 = vmatpush1.msra.mxu0 0.0
    %6070 = vmatprep.subr.mxu0 0.0
    %6071 = vmatpush1.msra.mxu0 0.0
    %6072 = vmatprep.subr.mxu0 0.0
    %6073 = vmatpush1.msra.mxu0 0.0
    %6074 = vmatprep.subr.mxu0 0.0
    %6075 = vmatpush1.msra.mxu0 0.0
    %6076 = vmatprep.subr.mxu0 0.0
    %6077 = vmatpush1.msra.mxu0 0.0
    %6078 = vmatprep.subr.mxu0 0.0
    %6079 = vmatpush1.msra.mxu0 0.0
    %6080 = vmatprep.subr.mxu0 0.0
    %6081 = vmatpush1.msra.mxu0 0.0
    %6082 = vmatprep.subr.mxu0 0.0
    %6083 = vmatpush1.msra.mxu0 0.0
    %6084 = vmatprep.subr.mxu0 0.0
    %6085 = vmatpush1.msra.mxu0 0.0
    %6086 = vmatprep.subr.mxu0 0.0
    %6087 = vmatpush1.msra.mxu0 0.0
    %6088 = vmatprep.subr.mxu0 0.0
    %6089 = vmatpush1.msra.mxu0 0.0
    %6090 = vmatprep.subr.mxu0 0.0
    %6091 = vmatpush1.msra.mxu0 0.0
    %6092 = vmatprep.subr.mxu0 0.0
    %6093 = vmatpush1.msra.mxu0 0.0
    %6094 = vmatprep.mubr.f32.mxu0 0.0
    %6095 = vmatmul.mubr.f32.gmra.mrb[0].mxu0 %v6028
    %v6096 = vpop.f32.mrb[0].mxu0
    %v6097 = vadd.f32 0.0, %v6096
    %v6098 = vpop.f32.mrb[0].mxu0
    %6099 = vdwg.mxu0
    %s6100 = scalar_lea.vmem %s5, 56
    %v6101 = vld [vmem:[%s6100] sm:$0xff]
    %v6103 = vsel %vm441, %v6024, 0
    %v6106 = vsel %vm441, %v6097, 0
    %6108 = vmatprep.subr.mxu0 0.0
    %6109 = vmatpush1.msra.mxu0 %v6101
    %6110 = vmatprep.subr.mxu0 0.0
    %6111 = vmatpush1.msra.mxu0 0.0
    %6112 = vmatprep.subr.mxu0 0.0
    %6113 = vmatpush1.msra.mxu0 0.0
    %6114 = vmatprep.subr.mxu0 0.0
    %6115 = vmatpush1.msra.mxu0 0.0
    %6116 = vmatprep.subr.mxu0 0.0
    %6117 = vmatpush1.msra.mxu0 0.0
    %6118 = vmatprep.subr.mxu0 0.0
    %6119 = vmatpush1.msra.mxu0 0.0
    %6120 = vmatprep.subr.mxu0 0.0
    %6121 = vmatpush1.msra.mxu0 0.0
    %6122 = vmatprep.subr.mxu0 0.0
    %6123 = vmatpush1.msra.mxu0 0.0
    %6124 = vmatprep.subr.mxu0 0.0
    %6125 = vmatpush1.msra.mxu0 0.0
    %6126 = vmatprep.subr.mxu0 0.0
    %6127 = vmatpush1.msra.mxu0 0.0
    %6128 = vmatprep.subr.mxu0 0.0
    %6129 = vmatpush1.msra.mxu0 0.0
    %6130 = vmatprep.subr.mxu0 0.0
    %6131 = vmatpush1.msra.mxu0 0.0
    %6132 = vmatprep.subr.mxu0 0.0
    %6133 = vmatpush1.msra.mxu0 0.0
    %6134 = vmatprep.subr.mxu0 0.0
    %6135 = vmatpush1.msra.mxu0 0.0
    %6136 = vmatprep.subr.mxu0 0.0
    %6137 = vmatpush1.msra.mxu0 0.0
    %6138 = vmatprep.subr.mxu0 0.0
    %6139 = vmatpush1.msra.mxu0 0.0
    %6140 = vmatprep.subr.mxu0 0.0
    %6141 = vmatpush1.msra.mxu0 0.0
    %6142 = vmatprep.subr.mxu0 0.0
    %6143 = vmatpush1.msra.mxu0 0.0
    %6144 = vmatprep.subr.mxu0 0.0
    %6145 = vmatpush1.msra.mxu0 0.0
    %6146 = vmatprep.subr.mxu0 0.0
    %6147 = vmatpush1.msra.mxu0 0.0
    %6148 = vmatprep.subr.mxu0 0.0
    %6149 = vmatpush1.msra.mxu0 0.0
    %6150 = vmatprep.subr.mxu0 0.0
    %6151 = vmatpush1.msra.mxu0 0.0
    %6152 = vmatprep.subr.mxu0 0.0
    %6153 = vmatpush1.msra.mxu0 0.0
    %6154 = vmatprep.subr.mxu0 0.0
    %6155 = vmatpush1.msra.mxu0 0.0
    %6156 = vmatprep.subr.mxu0 0.0
    %6157 = vmatpush1.msra.mxu0 0.0
    %6158 = vmatprep.subr.mxu0 0.0
    %6159 = vmatpush1.msra.mxu0 0.0
    %6160 = vmatprep.subr.mxu0 0.0
    %6161 = vmatpush1.msra.mxu0 0.0
    %6162 = vmatprep.subr.mxu0 0.0
    %6163 = vmatpush1.msra.mxu0 0.0
    %6164 = vmatprep.subr.mxu0 0.0
    %6165 = vmatpush1.msra.mxu0 0.0
    %6166 = vmatprep.subr.mxu0 0.0
    %6167 = vmatpush1.msra.mxu0 0.0
    %6168 = vmatprep.subr.mxu0 0.0
    %6169 = vmatpush1.msra.mxu0 0.0
    %6170 = vmatprep.subr.mxu0 0.0
    %6171 = vmatpush1.msra.mxu0 0.0
    %6172 = vmatprep.mubr.f32.mxu0 0.0
    %6173 = vmatmul.mubr.f32.gmra.mrb[0].mxu0 %v6103
    %v6174 = vpop.f32.mrb[0].mxu0
    %v6175 = vadd.f32 0.0, %v6174
    %v6176 = vpop.f32.mrb[0].mxu0
    %6177 = vmatprep.mubr.f32.mxu0 0.0
    %6178 = vmatmul.mubr.f32.gmra.mrb[0].mxu0 %v6106
    %v6179 = vpop.f32.mrb[0].mxu0
    %v6180 = vadd.f32 0.0, %v6179
    %v6181 = vpop.f32.mrb[0].mxu0
    %6182 = vdwg.mxu0
    %v6183 = vadd.f32 %v5512, %v6175
    %v6184 = vadd.f32 %v5513, %v6180
    %v6185 = vadd.f32 %v3495, %v6183
    %v6186 = vadd.f32 %v3496, %v6184
    %v6187 = vlaneseq
    %v6188 = vshrl.u32 %v6187, 7
    %v6189 = vsub.s32 0, %v6188
    %v6190 = vrot.slane %v3498, %v6189
    %v6191 = vadd.f32 %v6185, %v6190
    %v6192 = vadd.f32 %v6186, %v6190
    %v6193 = vsel %vm181, %v6191, 0.0
    %6194 = vadd.xlane.f32.xlu0 %v6193
    %v6195 = vpop.xlane.xlu0 %6194
    %v6196 = vsel %vm181, %v6192, 0.0
    %6197 = vadd.xlane.f32.xlu0 %v6196
    %v6198 = vpop.xlane.xlu0 %6197
    %v6199 = vmul.f32 %v6195, %v2869
    %v6200 = vmul.f32 %v6198, %v2869
    %v6201 = vsub.f32 %v6191, %v6199
    %v6202 = vsub.f32 %v6192, %v6200
    %v6203 = vmul.f32 %v6201, %v6201
    %v6204 = vmul.f32 %v6202, %v6202
    %v6205 = vsel %vm181, %v6203, 0.0
    %6206 = vadd.xlane.f32.xlu0 %v6205
    %v6207 = vpop.xlane.xlu0 %6206
    %v6208 = vsel %vm181, %v6204, 0.0
    %6209 = vadd.xlane.f32.xlu0 %v6208
    %v6210 = vpop.xlane.xlu0 %6209
    %v6211 = vmul.f32 %v6207, %v2869
    %v6212 = vmul.f32 %v6210, %v2869
    %v6213 = vadd.f32 %v6211, 1e-05
    %v6214 = vadd.f32 %v6212, 1e-05
    %v6215 = vrsqrt.pop %v6213
    %v6216 = vrsqrt.pop %v6214
    %v6217 = vmul.f32 %v6201, %v6215
    %v6218 = vmul.f32 %v6202, %v6216
    %v6219 = vlaneseq
    %v6220 = vshrl.u32 %v6219, 7
    %v6221 = vsub.s32 4, %v6220
    %v6222 = vrot.slane %v3498, %v6221
    %v6223 = vmul.f32 %v6217, %v6222
    %v6224 = vmul.f32 %v6218, %v6222
    %v6225 = vlaneseq
    %v6226 = vshrl.u32 %v6225, 7
    %v6227 = vsub.s32 5, %v6226
    %v6228 = vrot.slane %v3498, %v6227
    %v6229 = vadd.f32 %v6223, %v6228
    %v6230 = vadd.f32 %v6224, %v6228
    %s6231 = scalar_lea.vmem %s6, 32
    %v6232 = vld [vmem:[%s6231] sm:$0xff]
    %v6233 = vld [vmem:[%s6231 + $0x8] sm:$0xff]
    %v6234 = vld [vmem:[%s6231 + $0x10] sm:$0xff]
    %v6235 = vld [vmem:[%s6231 + $0x18] sm:$0xff]
    %s6236 = scalar_lea.vmem %s7, 1
    %v6237 = vld [vmem:[%s6236] sm:$0x1]
    %v6239 = vlaneseq
    %v6240 = vshrl.u32 %v6239, 7
    %v6241 = vsub.s32 0, %v6240
    %v6242 = vrot.slane %v6237, %v6241
    %v6245 = vsel %vm181, %v6229, 0
    %v6248 = vsel %vm181, %v6230, 0
    %6250 = vmatprep.subr.mxu0 0.0
    %6251 = vmatpush1.msra.mxu0 %v6232
    %6252 = vmatprep.subr.mxu0 0.0
    %6253 = vmatpush1.msra.mxu0 %v6233
    %6254 = vmatprep.subr.mxu0 0.0
    %6255 = vmatpush1.msra.mxu0 %v6234
    %6256 = vmatprep.subr.mxu0 0.0
    %6257 = vmatpush1.msra.mxu0 %v6235
    %6258 = vmatprep.subr.mxu0 0.0
    %6259 = vmatpush1.msra.mxu0 0.0
    %6260 = vmatprep.subr.mxu0 0.0
    %6261 = vmatpush1.msra.mxu0 0.0
    %6262 = vmatprep.subr.mxu0 0.0
    %6263 = vmatpush1.msra.mxu0 0.0
    %6264 = vmatprep.subr.mxu0 0.0
    %6265 = vmatpush1.msra.mxu0 0.0
    %6266 = vmatprep.subr.mxu0 0.0
    %6267 = vmatpush1.msra.mxu0 0.0
    %6268 = vmatprep.subr.mxu0 0.0
    %6269 = vmatpush1.msra.mxu0 0.0
    %6270 = vmatprep.subr.mxu0 0.0
    %6271 = vmatpush1.msra.mxu0 0.0
    %6272 = vmatprep.subr.mxu0 0.0
    %6273 = vmatpush1.msra.mxu0 0.0
    %6274 = vmatprep.subr.mxu0 0.0
    %6275 = vmatpush1.msra.mxu0 0.0
    %6276 = vmatprep.subr.mxu0 0.0
    %6277 = vmatpush1.msra.mxu0 0.0
    %6278 = vmatprep.subr.mxu0 0.0
    %6279 = vmatpush1.msra.mxu0 0.0
    %6280 = vmatprep.subr.mxu0 0.0
    %6281 = vmatpush1.msra.mxu0 0.0
    %6282 = vmatprep.subr.mxu0 0.0
    %6283 = vmatpush1.msra.mxu0 0.0
    %6284 = vmatprep.subr.mxu0 0.0
    %6285 = vmatpush1.msra.mxu0 0.0
    %6286 = vmatprep.subr.mxu0 0.0
    %6287 = vmatpush1.msra.mxu0 0.0
    %6288 = vmatprep.subr.mxu0 0.0
    %6289 = vmatpush1.msra.mxu0 0.0
    %6290 = vmatprep.subr.mxu0 0.0
    %6291 = vmatpush1.msra.mxu0 0.0
    %6292 = vmatprep.subr.mxu0 0.0
    %6293 = vmatpush1.msra.mxu0 0.0
    %6294 = vmatprep.subr.mxu0 0.0
    %6295 = vmatpush1.msra.mxu0 0.0
    %6296 = vmatprep.subr.mxu0 0.0
    %6297 = vmatpush1.msra.mxu0 0.0
    %6298 = vmatprep.subr.mxu0 0.0
    %6299 = vmatpush1.msra.mxu0 0.0
    %6300 = vmatprep.subr.mxu0 0.0
    %6301 = vmatpush1.msra.mxu0 0.0
    %6302 = vmatprep.subr.mxu0 0.0
    %6303 = vmatpush1.msra.mxu0 0.0
    %6304 = vmatprep.subr.mxu0 0.0
    %6305 = vmatpush1.msra.mxu0 0.0
    %6306 = vmatprep.subr.mxu0 0.0
    %6307 = vmatpush1.msra.mxu0 0.0
    %6308 = vmatprep.subr.mxu0 0.0
    %6309 = vmatpush1.msra.mxu0 0.0
    %6310 = vmatprep.subr.mxu0 0.0
    %6311 = vmatpush1.msra.mxu0 0.0
    %6312 = vmatprep.subr.mxu0 0.0
    %6313 = vmatpush1.msra.mxu0 0.0
    %6314 = vmatprep.mubr.f32.mxu0 0.0
    %6315 = vmatmul.mubr.f32.gmra.mrb[0].mxu0 %v6245
    %v6316 = vpop.f32.mrb[0].mxu0
    %v6317 = vadd.f32 %v6242, %v6316
    %v6318 = vpop.f32.mrb[0].mxu0
    %6319 = vmatprep.mubr.f32.mxu0 0.0
    %6320 = vmatmul.mubr.f32.gmra.mrb[0].mxu0 %v6248
    %v6321 = vpop.f32.mrb[0].mxu0
    %v6322 = vadd.f32 %v6242, %v6321
    %v6323 = vpop.f32.mrb[0].mxu0
    %6324 = vdwg.mxu0
    %v6325 = vmax.f32 %v6317, 0.0
    %v6326 = vmax.f32 %v6322, 0.0
    %s6327 = scalar_lea.vmem %s8, 64
    %v6328 = vld [vmem:[%s6327] sm:$0xff]
    %v6329 = vld [vmem:[%s6327 + $0x8] sm:$0xff]
    %v6330 = vld [vmem:[%s6327 + $0x10] sm:$0xff]
    %v6331 = vld [vmem:[%s6327 + $0x18] sm:$0xff]
    %v6332 = vld [vmem:[%s6327 + $0x20] sm:$0xff]
    %v6333 = vld [vmem:[%s6327 + $0x28] sm:$0xff]
    %v6334 = vld [vmem:[%s6327 + $0x30] sm:$0xff]
    %v6335 = vld [vmem:[%s6327 + $0x38] sm:$0xff]
    %v6336 = vlaneseq
    %v6337 = vshrl.u32 %v6336, 7
    %v6338 = vsub.s32 1, %v6337
    %v6339 = vrot.slane %v3498, %v6338
    %v6341 = vsel %vm3008, %v6325, 0
    %v6344 = vsel %vm3008, %v6326, 0
    %6346 = vmatprep.subr.mxu0 0.0
    %6347 = vmatpush1.msra.mxu0 %v6328
    %6348 = vmatprep.subr.mxu0 0.0
    %6349 = vmatpush1.msra.mxu0 %v6329
    %6350 = vmatprep.subr.mxu0 0.0
    %6351 = vmatpush1.msra.mxu0 %v6330
    %6352 = vmatprep.subr.mxu0 0.0
    %6353 = vmatpush1.msra.mxu0 %v6331
    %6354 = vmatprep.subr.mxu0 0.0
    %6355 = vmatpush1.msra.mxu0 %v6332
    %6356 = vmatprep.subr.mxu0 0.0
    %6357 = vmatpush1.msra.mxu0 %v6333
    %6358 = vmatprep.subr.mxu0 0.0
    %6359 = vmatpush1.msra.mxu0 %v6334
    %6360 = vmatprep.subr.mxu0 0.0
    %6361 = vmatpush1.msra.mxu0 %v6335
    %6362 = vmatprep.subr.mxu0 0.0
    %6363 = vmatpush1.msra.mxu0 0.0
    %6364 = vmatprep.subr.mxu0 0.0
    %6365 = vmatpush1.msra.mxu0 0.0
    %6366 = vmatprep.subr.mxu0 0.0
    %6367 = vmatpush1.msra.mxu0 0.0
    %6368 = vmatprep.subr.mxu0 0.0
    %6369 = vmatpush1.msra.mxu0 0.0
    %6370 = vmatprep.subr.mxu0 0.0
    %6371 = vmatpush1.msra.mxu0 0.0
    %6372 = vmatprep.subr.mxu0 0.0
    %6373 = vmatpush1.msra.mxu0 0.0
    %6374 = vmatprep.subr.mxu0 0.0
    %6375 = vmatpush1.msra.mxu0 0.0
    %6376 = vmatprep.subr.mxu0 0.0
    %6377 = vmatpush1.msra.mxu0 0.0
    %6378 = vmatprep.subr.mxu0 0.0
    %6379 = vmatpush1.msra.mxu0 0.0
    %6380 = vmatprep.subr.mxu0 0.0
    %6381 = vmatpush1.msra.mxu0 0.0
    %6382 = vmatprep.subr.mxu0 0.0
    %6383 = vmatpush1.msra.mxu0 0.0
    %6384 = vmatprep.subr.mxu0 0.0
    %6385 = vmatpush1.msra.mxu0 0.0
    %6386 = vmatprep.subr.mxu0 0.0
    %6387 = vmatpush1.msra.mxu0 0.0
    %6388 = vmatprep.subr.mxu0 0.0
    %6389 = vmatpush1.msra.mxu0 0.0
    %6390 = vmatprep.subr.mxu0 0.0
    %6391 = vmatpush1.msra.mxu0 0.0
    %6392 = vmatprep.subr.mxu0 0.0
    %6393 = vmatpush1.msra.mxu0 0.0
    %6394 = vmatprep.subr.mxu0 0.0
    %6395 = vmatpush1.msra.mxu0 0.0
    %6396 = vmatprep.subr.mxu0 0.0
    %6397 = vmatpush1.msra.mxu0 0.0
    %6398 = vmatprep.subr.mxu0 0.0
    %6399 = vmatpush1.msra.mxu0 0.0
    %6400 = vmatprep.subr.mxu0 0.0
    %6401 = vmatpush1.msra.mxu0 0.0
    %6402 = vmatprep.subr.mxu0 0.0
    %6403 = vmatpush1.msra.mxu0 0.0
    %6404 = vmatprep.subr.mxu0 0.0
    %6405 = vmatpush1.msra.mxu0 0.0
    %6406 = vmatprep.subr.mxu0 0.0
    %6407 = vmatpush1.msra.mxu0 0.0
    %6408 = vmatprep.subr.mxu0 0.0
    %6409 = vmatpush1.msra.mxu0 0.0
    %6410 = vmatprep.mubr.f32.mxu0 0.0
    %6411 = vmatmul.mubr.f32.gmra.mrb[0].mxu0 %v6341
    %v6412 = vpop.f32.mrb[0].mxu0
    %v6413 = vadd.f32 %v6339, %v6412
    %v6414 = vpop.f32.mrb[0].mxu0
    %6415 = vmatprep.mubr.f32.mxu0 0.0
    %6416 = vmatmul.mubr.f32.gmra.mrb[0].mxu0 %v6344
    %v6417 = vpop.f32.mrb[0].mxu0
    %v6418 = vadd.f32 %v6339, %v6417
    %v6419 = vpop.f32.mrb[0].mxu0
    %6420 = vdwg.mxu0
    %v6421 = vadd.f32 %v6229, %v6413
    %v6422 = vadd.f32 %v6230, %v6418
    %v6423 = vsel %vm181, %v6421, 0.0
    %6424 = vadd.xlane.f32.xlu0 %v6423
    %v6425 = vpop.xlane.xlu0 %6424
    %v6426 = vsel %vm181, %v6422, 0.0
    %6427 = vadd.xlane.f32.xlu0 %v6426
    %v6428 = vpop.xlane.xlu0 %6427
    %v6429 = vmul.f32 %v6425, %v2869
    %v6430 = vmul.f32 %v6428, %v2869
    %v6431 = vsub.f32 %v6421, %v6429
    %v6432 = vsub.f32 %v6422, %v6430
    %v6433 = vmul.f32 %v6431, %v6431
    %v6434 = vmul.f32 %v6432, %v6432
    %v6435 = vsel %vm181, %v6433, 0.0
    %6436 = vadd.xlane.f32.xlu0 %v6435
    %v6437 = vpop.xlane.xlu0 %6436
    %v6438 = vsel %vm181, %v6434, 0.0
    %6439 = vadd.xlane.f32.xlu0 %v6438
    %v6440 = vpop.xlane.xlu0 %6439
    %v6441 = vmul.f32 %v6437, %v2869
    %v6442 = vmul.f32 %v6440, %v2869
    %v6443 = vadd.f32 %v6441, 1e-05
    %v6444 = vadd.f32 %v6442, 1e-05
    %v6445 = vrsqrt.pop %v6443
    %v6446 = vrsqrt.pop %v6444
    %v6447 = vmul.f32 %v6431, %v6445
    %v6448 = vmul.f32 %v6432, %v6446
    %v6449 = vlaneseq
    %v6450 = vshrl.u32 %v6449, 7
    %v6451 = vsub.s32 6, %v6450
    %v6452 = vrot.slane %v3498, %v6451
    %v6453 = vmul.f32 %v6447, %v6452
    %v6454 = vmul.f32 %v6448, %v6452
    %v6455 = vlaneseq
    %v6456 = vshrl.u32 %v6455, 7
    %v6457 = vsub.s32 7, %v6456
    %v6458 = vrot.slane %v3498, %v6457
    %v6459 = vadd.f32 %v6453, %v6458
    %v6460 = vadd.f32 %v6454, %v6458
    %s6461 = scalar_lea.vmem %s9, 32
    %v6462 = vld [vmem:[%s6461] sm:$0xff]
    %v6463 = vld [vmem:[%s6461 + $0x8] sm:$0xff]
    %v6464 = vld [vmem:[%s6461 + $0x10] sm:$0xff]
    %v6465 = vld [vmem:[%s6461 + $0x18] sm:$0xff]
    %s6466 = scalar_lea.vmem %s10, 1
    %v6467 = vld [vmem:[%s6466] sm:$0x1]
    %v6469 = vlaneseq
    %v6470 = vshrl.u32 %v6469, 7
    %v6471 = vsub.s32 0, %v6470
    %v6472 = vrot.slane %v6467, %v6471
    %v6475 = vsel %vm181, %v6459, 0
    %v6478 = vsel %vm181, %v6460, 0
    %6480 = vmatprep.subr.mxu0 0.0
    %6481 = vmatpush1.msra.mxu0 %v6462
    %6482 = vmatprep.subr.mxu0 0.0
    %6483 = vmatpush1.msra.mxu0 %v6463
    %6484 = vmatprep.subr.mxu0 0.0
    %6485 = vmatpush1.msra.mxu0 %v6464
    %6486 = vmatprep.subr.mxu0 0.0
    %6487 = vmatpush1.msra.mxu0 %v6465
    %6488 = vmatprep.subr.mxu0 0.0
    %6489 = vmatpush1.msra.mxu0 0.0
    %6490 = vmatprep.subr.mxu0 0.0
    %6491 = vmatpush1.msra.mxu0 0.0
    %6492 = vmatprep.subr.mxu0 0.0
    %6493 = vmatpush1.msra.mxu0 0.0
    %6494 = vmatprep.subr.mxu0 0.0
    %6495 = vmatpush1.msra.mxu0 0.0
    %6496 = vmatprep.subr.mxu0 0.0
    %6497 = vmatpush1.msra.mxu0 0.0
    %6498 = vmatprep.subr.mxu0 0.0
    %6499 = vmatpush1.msra.mxu0 0.0
    %6500 = vmatprep.subr.mxu0 0.0
    %6501 = vmatpush1.msra.mxu0 0.0
    %6502 = vmatprep.subr.mxu0 0.0
    %6503 = vmatpush1.msra.mxu0 0.0
    %6504 = vmatprep.subr.mxu0 0.0
    %6505 = vmatpush1.msra.mxu0 0.0
    %6506 = vmatprep.subr.mxu0 0.0
    %6507 = vmatpush1.msra.mxu0 0.0
    %6508 = vmatprep.subr.mxu0 0.0
    %6509 = vmatpush1.msra.mxu0 0.0
    %6510 = vmatprep.subr.mxu0 0.0
    %6511 = vmatpush1.msra.mxu0 0.0
    %6512 = vmatprep.subr.mxu0 0.0
    %6513 = vmatpush1.msra.mxu0 0.0
    %6514 = vmatprep.subr.mxu0 0.0
    %6515 = vmatpush1.msra.mxu0 0.0
    %6516 = vmatprep.subr.mxu0 0.0
    %6517 = vmatpush1.msra.mxu0 0.0
    %6518 = vmatprep.subr.mxu0 0.0
    %6519 = vmatpush1.msra.mxu0 0.0
    %6520 = vmatprep.subr.mxu0 0.0
    %6521 = vmatpush1.msra.mxu0 0.0
    %6522 = vmatprep.subr.mxu0 0.0
    %6523 = vmatpush1.msra.mxu0 0.0
    %6524 = vmatprep.subr.mxu0 0.0
    %6525 = vmatpush1.msra.mxu0 0.0
    %6526 = vmatprep.subr.mxu0 0.0
    %6527 = vmatpush1.msra.mxu0 0.0
    %6528 = vmatprep.subr.mxu0 0.0
    %6529 = vmatpush1.msra.mxu0 0.0
    %6530 = vmatprep.subr.mxu0 0.0
    %6531 = vmatpush1.msra.mxu0 0.0
    %6532 = vmatprep.subr.mxu0 0.0
    %6533 = vmatpush1.msra.mxu0 0.0
    %6534 = vmatprep.subr.mxu0 0.0
    %6535 = vmatpush1.msra.mxu0 0.0
    %6536 = vmatprep.subr.mxu0 0.0
    %6537 = vmatpush1.msra.mxu0 0.0
    %6538 = vmatprep.subr.mxu0 0.0
    %6539 = vmatpush1.msra.mxu0 0.0
    %6540 = vmatprep.subr.mxu0 0.0
    %6541 = vmatpush1.msra.mxu0 0.0
    %6542 = vmatprep.subr.mxu0 0.0
    %6543 = vmatpush1.msra.mxu0 0.0
    %6544 = vmatprep.mubr.f32.mxu0 0.0
    %6545 = vmatmul.mubr.f32.gmra.mrb[0].mxu0 %v6475
    %v6546 = vpop.f32.mrb[0].mxu0
    %v6547 = vadd.f32 %v6472, %v6546
    %v6548 = vpop.f32.mrb[0].mxu0
    %6549 = vmatprep.mubr.f32.mxu0 0.0
    %6550 = vmatmul.mubr.f32.gmra.mrb[0].mxu0 %v6478
    %v6551 = vpop.f32.mrb[0].mxu0
    %v6552 = vadd.f32 %v6472, %v6551
    %v6553 = vpop.f32.mrb[0].mxu0
    %6554 = vdwg.mxu0
    %v6555 = vmax.f32 %v6547, 0.0
    %v6556 = vmax.f32 %v6552, 0.0
    %s6557 = scalar_lea.vmem %s11, 16
    %v6558 = vld [vmem:[%s6557] sm:$0xff]
    %v6559 = vld [vmem:[%s6557 + $0x8] sm:$0xff]
    %v6560 = vlaneseq
    %v6561 = vshrl.u32 %v6560, 7
    %v6562 = vsub.s32 2, %v6561
    %v6563 = vrot.slane %v3498, %v6562
    %v6565 = vsel %vm3230, %v6555, 0
    %v6568 = vsel %vm3230, %v6556, 0
    %6570 = vmatprep.subr.mxu0 0.0
    %6571 = vmatpush1.msra.mxu0 %v6558
    %6572 = vmatprep.subr.mxu0 0.0
    %6573 = vmatpush1.msra.mxu0 %v6559
    %6574 = vmatprep.subr.mxu0 0.0
    %6575 = vmatpush1.msra.mxu0 0.0
    %6576 = vmatprep.subr.mxu0 0.0
    %6577 = vmatpush1.msra.mxu0 0.0
    %6578 = vmatprep.subr.mxu0 0.0
    %6579 = vmatpush1.msra.mxu0 0.0
    %6580 = vmatprep.subr.mxu0 0.0
    %6581 = vmatpush1.msra.mxu0 0.0
    %6582 = vmatprep.subr.mxu0 0.0
    %6583 = vmatpush1.msra.mxu0 0.0
    %6584 = vmatprep.subr.mxu0 0.0
    %6585 = vmatpush1.msra.mxu0 0.0
    %6586 = vmatprep.subr.mxu0 0.0
    %6587 = vmatpush1.msra.mxu0 0.0
    %6588 = vmatprep.subr.mxu0 0.0
    %6589 = vmatpush1.msra.mxu0 0.0
    %6590 = vmatprep.subr.mxu0 0.0
    %6591 = vmatpush1.msra.mxu0 0.0
    %6592 = vmatprep.subr.mxu0 0.0
    %6593 = vmatpush1.msra.mxu0 0.0
    %6594 = vmatprep.subr.mxu0 0.0
    %6595 = vmatpush1.msra.mxu0 0.0
    %6596 = vmatprep.subr.mxu0 0.0
    %6597 = vmatpush1.msra.mxu0 0.0
    %6598 = vmatprep.subr.mxu0 0.0
    %6599 = vmatpush1.msra.mxu0 0.0
    %6600 = vmatprep.subr.mxu0 0.0
    %6601 = vmatpush1.msra.mxu0 0.0
    %6602 = vmatprep.subr.mxu0 0.0
    %6603 = vmatpush1.msra.mxu0 0.0
    %6604 = vmatprep.subr.mxu0 0.0
    %6605 = vmatpush1.msra.mxu0 0.0
    %6606 = vmatprep.subr.mxu0 0.0
    %6607 = vmatpush1.msra.mxu0 0.0
    %6608 = vmatprep.subr.mxu0 0.0
    %6609 = vmatpush1.msra.mxu0 0.0
    %6610 = vmatprep.subr.mxu0 0.0
    %6611 = vmatpush1.msra.mxu0 0.0
    %6612 = vmatprep.subr.mxu0 0.0
    %6613 = vmatpush1.msra.mxu0 0.0
    %6614 = vmatprep.subr.mxu0 0.0
    %6615 = vmatpush1.msra.mxu0 0.0
    %6616 = vmatprep.subr.mxu0 0.0
    %6617 = vmatpush1.msra.mxu0 0.0
    %6618 = vmatprep.subr.mxu0 0.0
    %6619 = vmatpush1.msra.mxu0 0.0
    %6620 = vmatprep.subr.mxu0 0.0
    %6621 = vmatpush1.msra.mxu0 0.0
    %6622 = vmatprep.subr.mxu0 0.0
    %6623 = vmatpush1.msra.mxu0 0.0
    %6624 = vmatprep.subr.mxu0 0.0
    %6625 = vmatpush1.msra.mxu0 0.0
    %6626 = vmatprep.subr.mxu0 0.0
    %6627 = vmatpush1.msra.mxu0 0.0
    %6628 = vmatprep.subr.mxu0 0.0
    %6629 = vmatpush1.msra.mxu0 0.0
    %6630 = vmatprep.subr.mxu0 0.0
    %6631 = vmatpush1.msra.mxu0 0.0
    %6632 = vmatprep.subr.mxu0 0.0
    %6633 = vmatpush1.msra.mxu0 0.0
    %6634 = vmatprep.mubr.f32.mxu0 0.0
    %6635 = vmatmul.mubr.f32.gmra.mrb[0].mxu0 %v6565
    %v6636 = vpop.f32.mrb[0].mxu0
    %v6637 = vadd.f32 %v6563, %v6636
    %v6638 = vpop.f32.mrb[0].mxu0
    %6639 = vmatprep.mubr.f32.mxu0 0.0
    %6640 = vmatmul.mubr.f32.gmra.mrb[0].mxu0 %v6568
    %v6641 = vpop.f32.mrb[0].mxu0
    %v6642 = vadd.f32 %v6563, %v6641
    %v6643 = vpop.f32.mrb[0].mxu0
    %6644 = vdwg.mxu0
    %v6645 = vadd.f32 %v6459, %v6637
    %v6646 = vadd.f32 %v6460, %v6642
    %s6647 = scalar_lea.vmem %s12, 32
    %v6648 = vld [vmem:[%s6647] sm:$0xff]
    %v6649 = vld [vmem:[%s6647 + $0x8] sm:$0xff]
    %v6650 = vld [vmem:[%s6647 + $0x10] sm:$0xff]
    %v6651 = vld [vmem:[%s6647 + $0x18] sm:$0xff]
    %s6652 = scalar_lea.vmem %s13, 1
    %v6653 = vld [vmem:[%s6652] sm:$0x1]
    %v6655 = vlaneseq
    %v6656 = vshrl.u32 %v6655, 7
    %v6657 = vsub.s32 0, %v6656
    %v6658 = vrot.slane %v6653, %v6657
    %v6661 = vsel %vm181, %v6645, 0
    %v6664 = vsel %vm181, %v6646, 0
    %6666 = vmatprep.subr.mxu0 0.0
    %6667 = vmatpush1.msra.mxu0 %v6648
    %6668 = vmatprep.subr.mxu0 0.0
    %6669 = vmatpush1.msra.mxu0 %v6649
    %6670 = vmatprep.subr.mxu0 0.0
    %6671 = vmatpush1.msra.mxu0 %v6650
    %6672 = vmatprep.subr.mxu0 0.0
    %6673 = vmatpush1.msra.mxu0 %v6651
    %6674 = vmatprep.subr.mxu0 0.0
    %6675 = vmatpush1.msra.mxu0 0.0
    %6676 = vmatprep.subr.mxu0 0.0
    %6677 = vmatpush1.msra.mxu0 0.0
    %6678 = vmatprep.subr.mxu0 0.0
    %6679 = vmatpush1.msra.mxu0 0.0
    %6680 = vmatprep.subr.mxu0 0.0
    %6681 = vmatpush1.msra.mxu0 0.0
    %6682 = vmatprep.subr.mxu0 0.0
    %6683 = vmatpush1.msra.mxu0 0.0
    %6684 = vmatprep.subr.mxu0 0.0
    %6685 = vmatpush1.msra.mxu0 0.0
    %6686 = vmatprep.subr.mxu0 0.0
    %6687 = vmatpush1.msra.mxu0 0.0
    %6688 = vmatprep.subr.mxu0 0.0
    %6689 = vmatpush1.msra.mxu0 0.0
    %6690 = vmatprep.subr.mxu0 0.0
    %6691 = vmatpush1.msra.mxu0 0.0
    %6692 = vmatprep.subr.mxu0 0.0
    %6693 = vmatpush1.msra.mxu0 0.0
    %6694 = vmatprep.subr.mxu0 0.0
    %6695 = vmatpush1.msra.mxu0 0.0
    %6696 = vmatprep.subr.mxu0 0.0
    %6697 = vmatpush1.msra.mxu0 0.0
    %6698 = vmatprep.subr.mxu0 0.0
    %6699 = vmatpush1.msra.mxu0 0.0
    %6700 = vmatprep.subr.mxu0 0.0
    %6701 = vmatpush1.msra.mxu0 0.0
    %6702 = vmatprep.subr.mxu0 0.0
    %6703 = vmatpush1.msra.mxu0 0.0
    %6704 = vmatprep.subr.mxu0 0.0
    %6705 = vmatpush1.msra.mxu0 0.0
    %6706 = vmatprep.subr.mxu0 0.0
    %6707 = vmatpush1.msra.mxu0 0.0
    %6708 = vmatprep.subr.mxu0 0.0
    %6709 = vmatpush1.msra.mxu0 0.0
    %6710 = vmatprep.subr.mxu0 0.0
    %6711 = vmatpush1.msra.mxu0 0.0
    %6712 = vmatprep.subr.mxu0 0.0
    %6713 = vmatpush1.msra.mxu0 0.0
    %6714 = vmatprep.subr.mxu0 0.0
    %6715 = vmatpush1.msra.mxu0 0.0
    %6716 = vmatprep.subr.mxu0 0.0
    %6717 = vmatpush1.msra.mxu0 0.0
    %6718 = vmatprep.subr.mxu0 0.0
    %6719 = vmatpush1.msra.mxu0 0.0
    %6720 = vmatprep.subr.mxu0 0.0
    %6721 = vmatpush1.msra.mxu0 0.0
    %6722 = vmatprep.subr.mxu0 0.0
    %6723 = vmatpush1.msra.mxu0 0.0
    %6724 = vmatprep.subr.mxu0 0.0
    %6725 = vmatpush1.msra.mxu0 0.0
    %6726 = vmatprep.subr.mxu0 0.0
    %6727 = vmatpush1.msra.mxu0 0.0
    %6728 = vmatprep.subr.mxu0 0.0
    %6729 = vmatpush1.msra.mxu0 0.0
    %6730 = vmatprep.mubr.f32.mxu0 0.0
    %6731 = vmatmul.mubr.f32.gmra.mrb[0].mxu0 %v6661
    %v6732 = vpop.f32.mrb[0].mxu0
    %v6733 = vadd.f32 %v6658, %v6732
    %v6734 = vpop.f32.mrb[0].mxu0
    %6735 = vmatprep.mubr.f32.mxu0 0.0
    %6736 = vmatmul.mubr.f32.gmra.mrb[0].mxu0 %v6664
    %v6737 = vpop.f32.mrb[0].mxu0
    %v6738 = vadd.f32 %v6658, %v6737
    %v6739 = vpop.f32.mrb[0].mxu0
    %6740 = vdwg.mxu0
    %v6741 = vmax.f32 %v6733, 0.0
    %v6742 = vmax.f32 %v6738, 0.0
    %s6743 = scalar_lea.vmem %s14, 16
    %v6744 = vld [vmem:[%s6743] sm:$0xff]
    %v6745 = vld [vmem:[%s6743 + $0x8] sm:$0xff]
    %v6746 = vlaneseq
    %v6747 = vshrl.u32 %v6746, 7
    %v6748 = vsub.s32 3, %v6747
    %v6749 = vrot.slane %v3498, %v6748
    %v6751 = vsel %vm3230, %v6741, 0
    %v6754 = vsel %vm3230, %v6742, 0
    %6756 = vmatprep.subr.mxu0 0.0
    %6757 = vmatpush1.msra.mxu0 %v6744
    %6758 = vmatprep.subr.mxu0 0.0
    %6759 = vmatpush1.msra.mxu0 %v6745
    %6760 = vmatprep.subr.mxu0 0.0
    %6761 = vmatpush1.msra.mxu0 0.0
    %6762 = vmatprep.subr.mxu0 0.0
    %6763 = vmatpush1.msra.mxu0 0.0
    %6764 = vmatprep.subr.mxu0 0.0
    %6765 = vmatpush1.msra.mxu0 0.0
    %6766 = vmatprep.subr.mxu0 0.0
    %6767 = vmatpush1.msra.mxu0 0.0
    %6768 = vmatprep.subr.mxu0 0.0
    %6769 = vmatpush1.msra.mxu0 0.0
    %6770 = vmatprep.subr.mxu0 0.0
    %6771 = vmatpush1.msra.mxu0 0.0
    %6772 = vmatprep.subr.mxu0 0.0
    %6773 = vmatpush1.msra.mxu0 0.0
    %6774 = vmatprep.subr.mxu0 0.0
    %6775 = vmatpush1.msra.mxu0 0.0
    %6776 = vmatprep.subr.mxu0 0.0
    %6777 = vmatpush1.msra.mxu0 0.0
    %6778 = vmatprep.subr.mxu0 0.0
    %6779 = vmatpush1.msra.mxu0 0.0
    %6780 = vmatprep.subr.mxu0 0.0
    %6781 = vmatpush1.msra.mxu0 0.0
    %6782 = vmatprep.subr.mxu0 0.0
    %6783 = vmatpush1.msra.mxu0 0.0
    %6784 = vmatprep.subr.mxu0 0.0
    %6785 = vmatpush1.msra.mxu0 0.0
    %6786 = vmatprep.subr.mxu0 0.0
    %6787 = vmatpush1.msra.mxu0 0.0
    %6788 = vmatprep.subr.mxu0 0.0
    %6789 = vmatpush1.msra.mxu0 0.0
    %6790 = vmatprep.subr.mxu0 0.0
    %6791 = vmatpush1.msra.mxu0 0.0
    %6792 = vmatprep.subr.mxu0 0.0
    %6793 = vmatpush1.msra.mxu0 0.0
    %6794 = vmatprep.subr.mxu0 0.0
    %6795 = vmatpush1.msra.mxu0 0.0
    %6796 = vmatprep.subr.mxu0 0.0
    %6797 = vmatpush1.msra.mxu0 0.0
    %6798 = vmatprep.subr.mxu0 0.0
    %6799 = vmatpush1.msra.mxu0 0.0
    %6800 = vmatprep.subr.mxu0 0.0
    %6801 = vmatpush1.msra.mxu0 0.0
    %6802 = vmatprep.subr.mxu0 0.0
    %6803 = vmatpush1.msra.mxu0 0.0
    %6804 = vmatprep.subr.mxu0 0.0
    %6805 = vmatpush1.msra.mxu0 0.0
    %6806 = vmatprep.subr.mxu0 0.0
    %6807 = vmatpush1.msra.mxu0 0.0
    %6808 = vmatprep.subr.mxu0 0.0
    %6809 = vmatpush1.msra.mxu0 0.0
    %6810 = vmatprep.subr.mxu0 0.0
    %6811 = vmatpush1.msra.mxu0 0.0
    %6812 = vmatprep.subr.mxu0 0.0
    %6813 = vmatpush1.msra.mxu0 0.0
    %6814 = vmatprep.subr.mxu0 0.0
    %6815 = vmatpush1.msra.mxu0 0.0
    %6816 = vmatprep.subr.mxu0 0.0
    %6817 = vmatpush1.msra.mxu0 0.0
    %6818 = vmatprep.subr.mxu0 0.0
    %6819 = vmatpush1.msra.mxu0 0.0
    %6820 = vmatprep.mubr.f32.mxu0 0.0
    %6821 = vmatmul.mubr.f32.gmra.mrb[0].mxu0 %v6751
    %v6822 = vpop.f32.mrb[0].mxu0
    %v6823 = vadd.f32 %v6749, %v6822
    %v6824 = vpop.f32.mrb[0].mxu0
    %6825 = vmatprep.mubr.f32.mxu0 0.0
    %6826 = vmatmul.mubr.f32.gmra.mrb[0].mxu0 %v6754
    %v6827 = vpop.f32.mrb[0].mxu0
    %v6828 = vadd.f32 %v6749, %v6827
    %v6829 = vpop.f32.mrb[0].mxu0
    %6830 = vdwg.mxu0
    %v6831 = vadd.f32 %v6645, %v6823
    %v6832 = vadd.f32 %v6646, %v6828
    %v6833 = vld [vmem:[%s16] sm:$0xff]
    %v6834 = vld [vmem:[%s16 + $0x8] sm:$0xff]
    %v6835 = vld [vmem:[%s16 + $0x10] sm:$0xff]
    %v6836 = vld [vmem:[%s16 + $0x18] sm:$0xff]
    %v6837 = vld [vmem:[%s17] sm:$0x1]
    %v6839 = vlaneseq
    %v6840 = vshrl.u32 %v6839, 7
    %v6841 = vsub.s32 0, %v6840
    %v6842 = vrot.slane %v6837, %v6841
    %v6845 = vsel %vm181, %v6831, 0
    %v6848 = vsel %vm181, %v6832, 0
    %6850 = vmatprep.subr.mxu0 0.0
    %6851 = vmatpush1.msra.mxu0 %v6833
    %6852 = vmatprep.subr.mxu0 0.0
    %6853 = vmatpush1.msra.mxu0 %v6834
    %6854 = vmatprep.subr.mxu0 0.0
    %6855 = vmatpush1.msra.mxu0 %v6835
    %6856 = vmatprep.subr.mxu0 0.0
    %6857 = vmatpush1.msra.mxu0 %v6836
    %6858 = vmatprep.subr.mxu0 0.0
    %6859 = vmatpush1.msra.mxu0 0.0
    %6860 = vmatprep.subr.mxu0 0.0
    %6861 = vmatpush1.msra.mxu0 0.0
    %6862 = vmatprep.subr.mxu0 0.0
    %6863 = vmatpush1.msra.mxu0 0.0
    %6864 = vmatprep.subr.mxu0 0.0
    %6865 = vmatpush1.msra.mxu0 0.0
    %6866 = vmatprep.subr.mxu0 0.0
    %6867 = vmatpush1.msra.mxu0 0.0
    %6868 = vmatprep.subr.mxu0 0.0
    %6869 = vmatpush1.msra.mxu0 0.0
    %6870 = vmatprep.subr.mxu0 0.0
    %6871 = vmatpush1.msra.mxu0 0.0
    %6872 = vmatprep.subr.mxu0 0.0
    %6873 = vmatpush1.msra.mxu0 0.0
    %6874 = vmatprep.subr.mxu0 0.0
    %6875 = vmatpush1.msra.mxu0 0.0
    %6876 = vmatprep.subr.mxu0 0.0
    %6877 = vmatpush1.msra.mxu0 0.0
    %6878 = vmatprep.subr.mxu0 0.0
    %6879 = vmatpush1.msra.mxu0 0.0
    %6880 = vmatprep.subr.mxu0 0.0
    %6881 = vmatpush1.msra.mxu0 0.0
    %6882 = vmatprep.subr.mxu0 0.0
    %6883 = vmatpush1.msra.mxu0 0.0
    %6884 = vmatprep.subr.mxu0 0.0
    %6885 = vmatpush1.msra.mxu0 0.0
    %6886 = vmatprep.subr.mxu0 0.0
    %6887 = vmatpush1.msra.mxu0 0.0
    %6888 = vmatprep.subr.mxu0 0.0
    %6889 = vmatpush1.msra.mxu0 0.0
    %6890 = vmatprep.subr.mxu0 0.0
    %6891 = vmatpush1.msra.mxu0 0.0
    %6892 = vmatprep.subr.mxu0 0.0
    %6893 = vmatpush1.msra.mxu0 0.0
    %6894 = vmatprep.subr.mxu0 0.0
    %6895 = vmatpush1.msra.mxu0 0.0
    %6896 = vmatprep.subr.mxu0 0.0
    %6897 = vmatpush1.msra.mxu0 0.0
    %6898 = vmatprep.subr.mxu0 0.0
    %6899 = vmatpush1.msra.mxu0 0.0
    %6900 = vmatprep.subr.mxu0 0.0
    %6901 = vmatpush1.msra.mxu0 0.0
    %6902 = vmatprep.subr.mxu0 0.0
    %6903 = vmatpush1.msra.mxu0 0.0
    %6904 = vmatprep.subr.mxu0 0.0
    %6905 = vmatpush1.msra.mxu0 0.0
    %6906 = vmatprep.subr.mxu0 0.0
    %6907 = vmatpush1.msra.mxu0 0.0
    %6908 = vmatprep.subr.mxu0 0.0
    %6909 = vmatpush1.msra.mxu0 0.0
    %6910 = vmatprep.subr.mxu0 0.0
    %6911 = vmatpush1.msra.mxu0 0.0
    %6912 = vmatprep.subr.mxu0 0.0
    %6913 = vmatpush1.msra.mxu0 0.0
    %6914 = vmatprep.mubr.f32.mxu0 0.0
    %6915 = vmatmul.mubr.f32.gmra.mrb[0].mxu0 %v6845
    %v6916 = vpop.f32.mrb[0].mxu0
    %v6917 = vadd.f32 %v6842, %v6916
    %v6918 = vpop.f32.mrb[0].mxu0
    %6919 = vmatprep.mubr.f32.mxu0 0.0
    %6920 = vmatmul.mubr.f32.gmra.mrb[0].mxu0 %v6848
    %v6921 = vpop.f32.mrb[0].mxu0
    %v6922 = vadd.f32 %v6842, %v6921
    %v6923 = vpop.f32.mrb[0].mxu0
    %6924 = vdwg.mxu0
    %6925 = vst [vmem:[#allocation2] sm:$0xff] %v6917
    %6926 = vst [vmem:[#allocation2 + $0x8] sm:$0xff] %v6922
    // Predicated region
    $region74: #{tpu_custom_call.1} parent=1 // pred_check
      _
    $region75: #{tpu_custom_call.1} parent=1 // pred_check_branch
      %6928 = sbr.rel (0) target = $region77
    $region76: #{tpu_custom_call.1} parent=1 // pred_region
      %s6930 = ssub.s32 256, 256
      %6931 = vsyncadd [#allocation3], %s6930
      %s6932 = sshll.u32 [#allocation2], 4
      %s6933 = int_to_ptr.vmem [resolvable:$true] %s6932
      %6938 = dma.vmem_to_hbm [thread:$0]  %s6933, 256, %s18, [#allocation3], 128, 128, 8
    $region77: #{tpu_custom_call.1} parent=1 // pred_fallthru
      _
    // Predicated region
    $region78: #{tpu_custom_call.1} parent=1 // pred_check
      _
    $region79: #{tpu_custom_call.1} parent=1 // pred_check_branch
      %6940 = sbr.rel (0) target = $region81
    $region80: #{tpu_custom_call.1} parent=1 // pred_region
      %6941 = dma.done [#allocation3], 256
    $region81: #{tpu_custom_call.1} parent=1 // pred_fallthru
      _
    %6942 = vsyncpa [#allocation3], 1

</llo_original>
